<compile_context>
chip_gen: v7x
topology: tpu7x:2x2x1
jax: 0.10.0
libtpu: 0.0.40
codegen_flags: <defaults>
</compile_context>

<pallas_src>
import functools

import jax
import jax.numpy as jnp
from jax import lax
from jax.experimental import pallas as pl
from jax.experimental.pallas import tpu as pltpu


# ------------------------------- fused kernel ------------------------------- #

def _bottleneck_kernel(x_ref, w1_ref, s1_ref, b1_ref,
                       w2_ref, s2_ref, b2_ref,
                       w3_ref, s3_ref, b3_ref,
                       ml_ref, mr_ref,
                       o_ref,
                       y1p_ref, acc_ref, *, H, W, guard):
    """One batch element per grid step; everything stays in VMEM."""
    HW = H * W

    x = x_ref[...]                                   # (HW, Cin) f32
    xb = x.astype(jnp.bfloat16)

    # ---- conv1 (1x1) + bn1 + relu -------------------------------------------
    y1 = jnp.dot(xb, w1_ref[...], preferred_element_type=jnp.float32)
    y1 = jnp.maximum(y1 * s1_ref[...] + b1_ref[...], 0.0)

    # Stage y1 into a flat, row-padded scratch: rows [guard+W, guard+(H+1)*W)
    # hold y1, everything else is zero -> implements the SAME zero padding
    # along H for free (no HBM pad, no unaligned stores: the store offset
    # guard+W is a multiple of 8).
    y1p_ref[...] = jnp.zeros_like(y1p_ref)
    y1p_ref[pl.ds(guard + W, HW), :] = y1

    # ---- conv2 (3x3, pad=1) + bn2 + relu : 9 shifted MXU taps ----------------
    # patch(ky, dx)[h*W + w] = y1_padded[h + ky, w + dx]; the flat shift wraps
    # across rows at the left/right image edge, which ml/mr mask back to zero.
    acc_ref[...] = jnp.zeros_like(acc_ref)
    for ky in range(3):
        for kx in range(3):
            dx = kx - 1
            patch = y1p_ref[pl.ds(guard + ky * W + dx, HW), :]
            if dx == -1:
                patch = patch * ml_ref[...]
            elif dx == 1:
                patch = patch * mr_ref[...]
            acc_ref[...] += jnp.dot(patch.astype(jnp.bfloat16), w2_ref[ky, kx],
                                    preferred_element_type=jnp.float32)
    y2 = jnp.maximum(acc_ref[...] * s2_ref[...] + b2_ref[...], 0.0)

    # ---- conv3 (1x1) + bn3 + identity residual + relu ------------------------
    y3 = jnp.dot(y2.astype(jnp.bfloat16), w3_ref[...],
                 preferred_element_type=jnp.float32)
    o_ref[...] = jnp.maximum(y3 * s3_ref[...] + b3_ref[...] + x, 0.0)


# ------------------------------ module forward ------------------------------ #

def bottleneck_forward(x_nchw, p):
    """Pallas implementation of Bottleneck.forward (stride=1, downsample=None)."""
    N, Cin, H, W = x_nchw.shape
    width = p["w1"].shape[1]
    Cout = p["w3"].shape[1]
    # identity residual requires inplanes == planes * expansion
    assert Cin == Cout, "stride=1 / downsample=None path requires Cin == Cout"

    # NCHW -> NHWC -> (N, H*W, C)
    x = jnp.transpose(x_nchw, (0, 2, 3, 1)).reshape(N, H * W, Cin)

    # bf16 weights for the MXU (epilogue math stays f32)
    w1 = p["w1"].astype(jnp.bfloat16)
    w2 = p["w2"].astype(jnp.bfloat16)
    w3 = p["w3"].astype(jnp.bfloat16)

    # Column-edge masks for the shifted 3x3 taps (dx = -1 / +1).
    col = jnp.arange(H * W, dtype=jnp.int32) % W
    mask_l = (col != 0).astype(jnp.float32)[:, None]        # kills w-1 < 0 wrap
    mask_r = (col != (W - 1)).astype(jnp.float32)[:, None]  # kills w+1 >= W wrap

    guard = 8 + ((-W) % 8)            # keeps the y1 store sublane-aligned
    total = guard + (H + 2) * W + 8   # + trailing guard for the dx=+1 reads

    flops = 2 * N * H * W * (Cin * width + 9 * width * width + width * Cout)
    bytes_accessed = (4 * (N * H * W * (Cin + Cout))
                      + 2 * (w1.size + w2.size + w3.size))

    kern = functools.partial(_bottleneck_kernel, H=H, W=W, guard=guard)
    out = pl.pallas_call(
        kern,
        out_shape=jax.ShapeDtypeStruct((N, H * W, Cout), jnp.float32),
        grid=(N,),
        in_specs=[
            pl.BlockSpec((None, H * W, Cin), lambda n: (n, 0, 0)),        # x
            pl.BlockSpec((Cin, width), lambda n: (0, 0)),                 # w1
            pl.BlockSpec((1, width), lambda n: (0, 0)),                   # scale1
            pl.BlockSpec((1, width), lambda n: (0, 0)),                   # bias1
            pl.BlockSpec((3, 3, width, width), lambda n: (0, 0, 0, 0)),   # w2
            pl.BlockSpec((1, width), lambda n: (0, 0)),                   # scale2
            pl.BlockSpec((1, width), lambda n: (0, 0)),                   # bias2
            pl.BlockSpec((width, Cout), lambda n: (0, 0)),                # w3
            pl.BlockSpec((1, Cout), lambda n: (0, 0)),                    # scale3
            pl.BlockSpec((1, Cout), lambda n: (0, 0)),                    # bias3
            pl.BlockSpec((H * W, 1), lambda n: (0, 0)),                   # mask_l
            pl.BlockSpec((H * W, 1), lambda n: (0, 0)),                   # mask_r
        ],
        out_specs=pl.BlockSpec((None, H * W, Cout), lambda n: (n, 0, 0)),
        scratch_shapes=[
            pltpu.VMEM((total, width), jnp.float32),     # row-padded y1
            pltpu.VMEM((H * W, width), jnp.float32),     # conv2 accumulator
        ],
        compiler_params=pltpu.CompilerParams(
            dimension_semantics=("parallel",),
            vmem_limit_bytes=48 * 1024 * 1024),
        cost_estimate=pl.CostEstimate(flops=flops, transcendentals=0,
                                      bytes_accessed=bytes_accessed),
    )(x, w1, p["scale1"], p["bias1"],
      w2, p["scale2"], p["bias2"],
      w3, p["scale3"], p["bias3"],
      mask_l, mask_r)

    out = out.reshape(N, H, W, Cout)
    return jnp.transpose(out, (0, 3, 1, 2))               # NHWC -> NCHW


# -------------------------- parameter construction -------------------------- #

def _fold_bn(gamma, beta, mean, var, eps=1e-5):
    scale = gamma / jnp.sqrt(var + eps)
    bias = beta - mean * scale
    return scale[None, :], bias[None, :]


def init_params(key, inplanes, planes, base_width=64, groups=1):
    expansion = 4
    width = int(planes * (base_width / 64.0)) * groups
    ks = jax.random.split(key, 15)

    def bn(k0, k1, k2, k3, c):
        gamma = 1.0 + 0.1 * jax.random.normal(k0, (c,), jnp.float32)
        beta = 0.1 * jax.random.normal(k1, (c,), jnp.float32)
        mean = 0.1 * jax.random.normal(k2, (c,), jnp.float32)
        var = 1.0 + 0.1 * jnp.abs(jax.random.normal(k3, (c,), jnp.float32))
        return _fold_bn(gamma, beta, mean, var)

    w1 = 0.2 * jax.random.normal(ks[0], (inplanes, width), jnp.float32)          # 1x1
    w2 = 0.2 * jax.random.normal(ks[1], (3, 3, width, width), jnp.float32)       # HWIO
    w3 = 0.2 * jax.random.normal(ks[2], (width, planes * expansion), jnp.float32)
    s1, b1 = bn(ks[3], ks[4], ks[5], ks[6], width)
    s2, b2 = bn(ks[7], ks[8], ks[9], ks[10], width)
    s3, b3 = bn(ks[11], ks[12], ks[13], ks[14], planes * expansion)
    return {"w1": w1, "w2": w2, "w3": w3,
            "scale1": s1, "bias1": b1,
            "scale2": s2, "bias2": b2,
            "scale3": s3, "bias3": b3}


# ----------------------------- pure-JAX reference --------------------------- #

def reference_forward(x_nchw, p):
    """XLA reference using the same bf16-matmul / f32-epilogue recipe."""
    x = jnp.transpose(x_nchw, (0, 2, 3, 1))
    dn = ("NHWC", "HWIO", "NHWC")
    y = lax.conv_general_dilated(
        x.astype(jnp.bfloat16), p["w1"].astype(jnp.bfloat16)[None, None],
        (1, 1), "VALID", dimension_numbers=dn, preferred_element_type=jnp.float32)
    y = jnp.maximum(y * p["scale1"][0] + p["bias1"][0], 0.0)
    y = lax.conv_general_dilated(
        y.astype(jnp.bfloat16), p["w2"].astype(jnp.bfloat16),
        (1, 1), "SAME", dimension_numbers=dn, preferred_element_type=jnp.float32)
    y = jnp.maximum(y * p["scale2"][0] + p["bias2"][0], 0.0)
    y = lax.conv_general_dilated(
        y.astype(jnp.bfloat16), p["w3"].astype(jnp.bfloat16)[None, None],
        (1, 1), "VALID", dimension_numbers=dn, preferred_element_type=jnp.float32)
    y = jnp.maximum(y * p["scale3"][0] + p["bias3"][0] + x, 0.0)
    return jnp.transpose(y, (0, 3, 1, 2))


# ---------------------------------- main ------------------------------------ #

if __name__ == "__main__":
    key = jax.random.PRNGKey(0)
    k_x, k_p = jax.random.split(key)

    N, inplanes, planes, H, W = 2, 16, 4, 16, 16   # width=4, out channels=16
    x = jax.random.normal(k_x, (N, inplanes, H, W), jnp.float32)   # NCHW
    params = init_params(k_p, inplanes, planes)

    fwd = jax.jit(bottleneck_forward)
    out = jax.block_until_ready(fwd(x, params))
    ref = reference_forward(x, params)

    assert out.shape == (N, planes * 4, H, W), out.shape
    max_err = float(jnp.max(jnp.abs(out - ref)))
    assert jnp.allclose(out, ref, atol=2e-2, rtol=2e-2), f"mismatch: {max_err}"
    print("KERNEL_OK")
</pallas_src>

<mosaic_0001>
module attributes {stable_mosaic.version = 11 : i64} {
  func.func @_bottleneck_kernel(%arg0: i32, %arg1: memref<1x256x16xf32, #tpu.memory_space<vmem>>, %arg2: memref<16x4xbf16, #tpu.memory_space<vmem>>, %arg3: memref<1x4xf32, #tpu.memory_space<vmem>>, %arg4: memref<1x4xf32, #tpu.memory_space<vmem>>, %arg5: memref<3x3x4x4xbf16, #tpu.memory_space<vmem>>, %arg6: memref<1x4xf32, #tpu.memory_space<vmem>>, %arg7: memref<1x4xf32, #tpu.memory_space<vmem>>, %arg8: memref<4x16xbf16, #tpu.memory_space<vmem>>, %arg9: memref<1x16xf32, #tpu.memory_space<vmem>>, %arg10: memref<1x16xf32, #tpu.memory_space<vmem>>, %arg11: memref<256x1xf32, #tpu.memory_space<vmem>>, %arg12: memref<256x1xf32, #tpu.memory_space<vmem>>, %arg13: memref<1x256x16xf32, #tpu.memory_space<vmem>>, %arg14: memref<304x4xf32, #tpu.memory_space<vmem>>, %arg15: memref<256x4xf32, #tpu.memory_space<vmem>>) attributes {dimension_semantics = [#tpu.dimension_semantics<parallel>], iteration_bounds = array<i64: 2>, scalar_prefetch = 0 : i64, scratch_operands = 2 : i64, tpu.core_type = #tpu.core_type<tc>, window_params = [{transform_indices = @transform_0, window_bounds = array<i64: 1, 256, 16>}, {pipeline_mode = #tpu.pipeline_mode<synchronous>, transform_indices = @transform_1, window_bounds = array<i64: 16, 4>}, {pipeline_mode = #tpu.pipeline_mode<synchronous>, transform_indices = @transform_2, window_bounds = array<i64: 1, 4>}, {pipeline_mode = #tpu.pipeline_mode<synchronous>, transform_indices = @transform_3, window_bounds = array<i64: 1, 4>}, {pipeline_mode = #tpu.pipeline_mode<synchronous>, transform_indices = @transform_4, window_bounds = array<i64: 3, 3, 4, 4>}, {pipeline_mode = #tpu.pipeline_mode<synchronous>, transform_indices = @transform_5, window_bounds = array<i64: 1, 4>}, {pipeline_mode = #tpu.pipeline_mode<synchronous>, transform_indices = @transform_6, window_bounds = array<i64: 1, 4>}, {pipeline_mode = #tpu.pipeline_mode<synchronous>, transform_indices = @transform_7, window_bounds = array<i64: 4, 16>}, {pipeline_mode = #tpu.pipeline_mode<synchronous>, transform_indices = @transform_8, window_bounds = array<i64: 1, 16>}, {pipeline_mode = #tpu.pipeline_mode<synchronous>, transform_indices = @transform_9, window_bounds = array<i64: 1, 16>}, {pipeline_mode = #tpu.pipeline_mode<synchronous>, transform_indices = @transform_10, window_bounds = array<i64: 256, 1>}, {pipeline_mode = #tpu.pipeline_mode<synchronous>, transform_indices = @transform_11, window_bounds = array<i64: 256, 1>}, {transform_indices = @transform_12, window_bounds = array<i64: 1, 256, 16>}]} {
    %c0 = arith.constant 0 : index
    %c0_0 = arith.constant 0 : index
    %c0_1 = arith.constant 0 : index
    %0 = vector.load %arg1[%c0, %c0_0, %c0_1] : memref<1x256x16xf32, #tpu.memory_space<vmem>>, vector<1x256x16xf32>
    %1 = vector.shape_cast %0 : vector<1x256x16xf32> to vector<256x16xf32>
    %2 = arith.truncf %1 : vector<256x16xf32> to vector<256x16xbf16>
    %c0_2 = arith.constant 0 : index
    %c0_3 = arith.constant 0 : index
    %3 = vector.load %arg2[%c0_2, %c0_3] : memref<16x4xbf16, #tpu.memory_space<vmem>>, vector<16x4xbf16>
    %cst = arith.constant dense<0.000000e+00> : vector<256x4xf32>
    %4 = tpu.matmul %2, %3, %cst {dimension_numbers = #tpu.dot_dimension_numbers<[1], [0], [0], [1], [0, 0, 1, 1], [], []>} : vector<256x16xbf16>, vector<16x4xbf16>, vector<256x4xf32> -> vector<256x4xf32>
    %c0_4 = arith.constant 0 : index
    %c0_5 = arith.constant 0 : index
    %5 = vector.load %arg3[%c0_4, %c0_5] : memref<1x4xf32, #tpu.memory_space<vmem>>, vector<1x4xf32>
    %6 = vector.broadcast %5 : vector<1x4xf32> to vector<256x4xf32>
    %7 = arith.mulf %4, %6 : vector<256x4xf32>
    %c0_6 = arith.constant 0 : index
    %c0_7 = arith.constant 0 : index
    %8 = vector.load %arg4[%c0_6, %c0_7] : memref<1x4xf32, #tpu.memory_space<vmem>>, vector<1x4xf32>
    %9 = vector.broadcast %8 : vector<1x4xf32> to vector<256x4xf32>
    %10 = arith.addf %7, %9 : vector<256x4xf32>
    %cst_8 = arith.constant 0.000000e+00 : f32
    %11 = vector.broadcast %cst_8 : f32 to vector<256x4xf32>
    %12 = arith.maximumf %10, %11 : vector<256x4xf32>
    %cst_9 = arith.constant 0.000000e+00 : f32
    %13 = vector.broadcast %cst_9 : f32 to vector<304x4xf32>
    %c0_10 = arith.constant 0 : index
    %c0_11 = arith.constant 0 : index
    %14 = vector.load %arg14[%c0_10, %c0_11] : memref<304x4xf32, #tpu.memory_space<vmem>>, vector<304x4xf32>
    tpu.vector_store %arg14[%c0_10, %c0_11], %13 {strides = array<i32>} : memref<304x4xf32, #tpu.memory_space<vmem>>, vector<304x4xf32>,
    %c24 = arith.constant 24 : index
    %c0_12 = arith.constant 0 : index
    %15 = vector.load %arg14[%c24, %c0_12] : memref<304x4xf32, #tpu.memory_space<vmem>>, vector<256x4xf32>
    tpu.vector_store %arg14[%c24, %c0_12], %12 {strides = array<i32>} : memref<304x4xf32, #tpu.memory_space<vmem>>, vector<256x4xf32>,
    %cst_13 = arith.constant 0.000000e+00 : f32
    %16 = vector.broadcast %cst_13 : f32 to vector<256x4xf32>
    %c0_14 = arith.constant 0 : index
    %c0_15 = arith.constant 0 : index
    %17 = vector.load %arg15[%c0_14, %c0_15] : memref<256x4xf32, #tpu.memory_space<vmem>>, vector<256x4xf32>
    tpu.vector_store %arg15[%c0_14, %c0_15], %16 {strides = array<i32>} : memref<256x4xf32, #tpu.memory_space<vmem>>, vector<256x4xf32>,
    %c7 = arith.constant 7 : index
    %c0_16 = arith.constant 0 : index
    %18 = vector.load %arg14[%c7, %c0_16] : memref<304x4xf32, #tpu.memory_space<vmem>>, vector<256x4xf32>
    %c0_17 = arith.constant 0 : index
    %c0_18 = arith.constant 0 : index
    %19 = vector.load %arg11[%c0_17, %c0_18] : memref<256x1xf32, #tpu.memory_space<vmem>>, vector<256x1xf32>
    %20 = vector.broadcast %19 : vector<256x1xf32> to vector<256x4xf32>
    %21 = arith.mulf %18, %20 : vector<256x4xf32>
    %c0_19 = arith.constant 0 : index
    %c0_20 = arith.constant 0 : index
    %22 = vector.load %arg15[%c0_19, %c0_20] : memref<256x4xf32, #tpu.memory_space<vmem>>, vector<256x4xf32>
    %23 = arith.truncf %21 : vector<256x4xf32> to vector<256x4xbf16>
    %c0_21 = arith.constant 0 : index
    %c0_22 = arith.constant 0 : index
    %c0_23 = arith.constant 0 : index
    %c0_24 = arith.constant 0 : index
    %24 = vector.load %arg5[%c0_21, %c0_22, %c0_23, %c0_24] : memref<3x3x4x4xbf16, #tpu.memory_space<vmem>>, vector<1x1x4x4xbf16>
    %25 = vector.shape_cast %24 : vector<1x1x4x4xbf16> to vector<4x4xbf16>
    %cst_25 = arith.constant dense<0.000000e+00> : vector<256x4xf32>
    %26 = tpu.matmul %23, %25, %cst_25 {dimension_numbers = #tpu.dot_dimension_numbers<[1], [0], [0], [1], [0, 0, 1, 1], [], []>} : vector<256x4xbf16>, vector<4x4xbf16>, vector<256x4xf32> -> vector<256x4xf32>
    %27 = arith.addf %22, %26 : vector<256x4xf32>
    %c0_26 = arith.constant 0 : index
    %c0_27 = arith.constant 0 : index
    %28 = vector.load %arg15[%c0_26, %c0_27] : memref<256x4xf32, #tpu.memory_space<vmem>>, vector<256x4xf32>
    tpu.vector_store %arg15[%c0_26, %c0_27], %27 {strides = array<i32>} : memref<256x4xf32, #tpu.memory_space<vmem>>, vector<256x4xf32>,
    %c8 = arith.constant 8 : index
    %c0_28 = arith.constant 0 : index
    %29 = vector.load %arg14[%c8, %c0_28] : memref<304x4xf32, #tpu.memory_space<vmem>>, vector<256x4xf32>
    %c0_29 = arith.constant 0 : index
    %c0_30 = arith.constant 0 : index
    %30 = vector.load %arg15[%c0_29, %c0_30] : memref<256x4xf32, #tpu.memory_space<vmem>>, vector<256x4xf32>
    %31 = arith.truncf %29 : vector<256x4xf32> to vector<256x4xbf16>
    %c0_31 = arith.constant 0 : index
    %c1 = arith.constant 1 : index
    %c0_32 = arith.constant 0 : index
    %c0_33 = arith.constant 0 : index
    %32 = vector.load %arg5[%c0_31, %c1, %c0_32, %c0_33] : memref<3x3x4x4xbf16, #tpu.memory_space<vmem>>, vector<1x1x4x4xbf16>
    %33 = vector.shape_cast %32 : vector<1x1x4x4xbf16> to vector<4x4xbf16>
    %cst_34 = arith.constant dense<0.000000e+00> : vector<256x4xf32>
    %34 = tpu.matmul %31, %33, %cst_34 {dimension_numbers = #tpu.dot_dimension_numbers<[1], [0], [0], [1], [0, 0, 1, 1], [], []>} : vector<256x4xbf16>, vector<4x4xbf16>, vector<256x4xf32> -> vector<256x4xf32>
    %35 = arith.addf %30, %34 : vector<256x4xf32>
    %c0_35 = arith.constant 0 : index
    %c0_36 = arith.constant 0 : index
    %36 = vector.load %arg15[%c0_35, %c0_36] : memref<256x4xf32, #tpu.memory_space<vmem>>, vector<256x4xf32>
    tpu.vector_store %arg15[%c0_35, %c0_36], %35 {strides = array<i32>} : memref<256x4xf32, #tpu.memory_space<vmem>>, vector<256x4xf32>,
    %c9 = arith.constant 9 : index
    %c0_37 = arith.constant 0 : index
    %37 = vector.load %arg14[%c9, %c0_37] : memref<304x4xf32, #tpu.memory_space<vmem>>, vector<256x4xf32>
    %c0_38 = arith.constant 0 : index
    %c0_39 = arith.constant 0 : index
    %38 = vector.load %arg12[%c0_38, %c0_39] : memref<256x1xf32, #tpu.memory_space<vmem>>, vector<256x1xf32>
    %39 = vector.broadcast %38 : vector<256x1xf32> to vector<256x4xf32>
    %40 = arith.mulf %37, %39 : vector<256x4xf32>
    %c0_40 = arith.constant 0 : index
    %c0_41 = arith.constant 0 : index
    %41 = vector.load %arg15[%c0_40, %c0_41] : memref<256x4xf32, #tpu.memory_space<vmem>>, vector<256x4xf32>
    %42 = arith.truncf %40 : vector<256x4xf32> to vector<256x4xbf16>
    %c0_42 = arith.constant 0 : index
    %c2 = arith.constant 2 : index
    %c0_43 = arith.constant 0 : index
    %c0_44 = arith.constant 0 : index
    %43 = vector.load %arg5[%c0_42, %c2, %c0_43, %c0_44] : memref<3x3x4x4xbf16, #tpu.memory_space<vmem>>, vector<1x1x4x4xbf16>
    %44 = vector.shape_cast %43 : vector<1x1x4x4xbf16> to vector<4x4xbf16>
    %cst_45 = arith.constant dense<0.000000e+00> : vector<256x4xf32>
    %45 = tpu.matmul %42, %44, %cst_45 {dimension_numbers = #tpu.dot_dimension_numbers<[1], [0], [0], [1], [0, 0, 1, 1], [], []>} : vector<256x4xbf16>, vector<4x4xbf16>, vector<256x4xf32> -> vector<256x4xf32>
    %46 = arith.addf %41, %45 : vector<256x4xf32>
    %c0_46 = arith.constant 0 : index
    %c0_47 = arith.constant 0 : index
    %47 = vector.load %arg15[%c0_46, %c0_47] : memref<256x4xf32, #tpu.memory_space<vmem>>, vector<256x4xf32>
    tpu.vector_store %arg15[%c0_46, %c0_47], %46 {strides = array<i32>} : memref<256x4xf32, #tpu.memory_space<vmem>>, vector<256x4xf32>,
    %c23 = arith.constant 23 : index
    %c0_48 = arith.constant 0 : index
    %48 = vector.load %arg14[%c23, %c0_48] : memref<304x4xf32, #tpu.memory_space<vmem>>, vector<256x4xf32>
    %c0_49 = arith.constant 0 : index
    %c0_50 = arith.constant 0 : index
    %49 = vector.load %arg11[%c0_49, %c0_50] : memref<256x1xf32, #tpu.memory_space<vmem>>, vector<256x1xf32>
    %50 = vector.broadcast %49 : vector<256x1xf32> to vector<256x4xf32>
    %51 = arith.mulf %48, %50 : vector<256x4xf32>
    %c0_51 = arith.constant 0 : index
    %c0_52 = arith.constant 0 : index
    %52 = vector.load %arg15[%c0_51, %c0_52] : memref<256x4xf32, #tpu.memory_space<vmem>>, vector<256x4xf32>
    %53 = arith.truncf %51 : vector<256x4xf32> to vector<256x4xbf16>
    %c1_53 = arith.constant 1 : index
    %c0_54 = arith.constant 0 : index
    %c0_55 = arith.constant 0 : index
    %c0_56 = arith.constant 0 : index
    %54 = vector.load %arg5[%c1_53, %c0_54, %c0_55, %c0_56] : memref<3x3x4x4xbf16, #tpu.memory_space<vmem>>, vector<1x1x4x4xbf16>
    %55 = vector.shape_cast %54 : vector<1x1x4x4xbf16> to vector<4x4xbf16>
    %cst_57 = arith.constant dense<0.000000e+00> : vector<256x4xf32>
    %56 = tpu.matmul %53, %55, %cst_57 {dimension_numbers = #tpu.dot_dimension_numbers<[1], [0], [0], [1], [0, 0, 1, 1], [], []>} : vector<256x4xbf16>, vector<4x4xbf16>, vector<256x4xf32> -> vector<256x4xf32>
    %57 = arith.addf %52, %56 : vector<256x4xf32>
    %c0_58 = arith.constant 0 : index
    %c0_59 = arith.constant 0 : index
    %58 = vector.load %arg15[%c0_58, %c0_59] : memref<256x4xf32, #tpu.memory_space<vmem>>, vector<256x4xf32>
    tpu.vector_store %arg15[%c0_58, %c0_59], %57 {strides = array<i32>} : memref<256x4xf32, #tpu.memory_space<vmem>>, vector<256x4xf32>,
    %c24_60 = arith.constant 24 : index
    %c0_61 = arith.constant 0 : index
    %59 = vector.load %arg14[%c24_60, %c0_61] : memref<304x4xf32, #tpu.memory_space<vmem>>, vector<256x4xf32>
    %c0_62 = arith.constant 0 : index
    %c0_63 = arith.constant 0 : index
    %60 = vector.load %arg15[%c0_62, %c0_63] : memref<256x4xf32, #tpu.memory_space<vmem>>, vector<256x4xf32>
    %61 = arith.truncf %59 : vector<256x4xf32> to vector<256x4xbf16>
    %c1_64 = arith.constant 1 : index
    %c1_65 = arith.constant 1 : index
    %c0_66 = arith.constant 0 : index
    %c0_67 = arith.constant 0 : index
    %62 = vector.load %arg5[%c1_64, %c1_65, %c0_66, %c0_67] : memref<3x3x4x4xbf16, #tpu.memory_space<vmem>>, vector<1x1x4x4xbf16>
    %63 = vector.shape_cast %62 : vector<1x1x4x4xbf16> to vector<4x4xbf16>
    %cst_68 = arith.constant dense<0.000000e+00> : vector<256x4xf32>
    %64 = tpu.matmul %61, %63, %cst_68 {dimension_numbers = #tpu.dot_dimension_numbers<[1], [0], [0], [1], [0, 0, 1, 1], [], []>} : vector<256x4xbf16>, vector<4x4xbf16>, vector<256x4xf32> -> vector<256x4xf32>
    %65 = arith.addf %60, %64 : vector<256x4xf32>
    %c0_69 = arith.constant 0 : index
    %c0_70 = arith.constant 0 : index
    %66 = vector.load %arg15[%c0_69, %c0_70] : memref<256x4xf32, #tpu.memory_space<vmem>>, vector<256x4xf32>
    tpu.vector_store %arg15[%c0_69, %c0_70], %65 {strides = array<i32>} : memref<256x4xf32, #tpu.memory_space<vmem>>, vector<256x4xf32>,
    %c25 = arith.constant 25 : index
    %c0_71 = arith.constant 0 : index
    %67 = vector.load %arg14[%c25, %c0_71] : memref<304x4xf32, #tpu.memory_space<vmem>>, vector<256x4xf32>
    %c0_72 = arith.constant 0 : index
    %c0_73 = arith.constant 0 : index
    %68 = vector.load %arg12[%c0_72, %c0_73] : memref<256x1xf32, #tpu.memory_space<vmem>>, vector<256x1xf32>
    %69 = vector.broadcast %68 : vector<256x1xf32> to vector<256x4xf32>
    %70 = arith.mulf %67, %69 : vector<256x4xf32>
    %c0_74 = arith.constant 0 : index
    %c0_75 = arith.constant 0 : index
    %71 = vector.load %arg15[%c0_74, %c0_75] : memref<256x4xf32, #tpu.memory_space<vmem>>, vector<256x4xf32>
    %72 = arith.truncf %70 : vector<256x4xf32> to vector<256x4xbf16>
    %c1_76 = arith.constant 1 : index
    %c2_77 = arith.constant 2 : index
    %c0_78 = arith.constant 0 : index
    %c0_79 = arith.constant 0 : index
    %73 = vector.load %arg5[%c1_76, %c2_77, %c0_78, %c0_79] : memref<3x3x4x4xbf16, #tpu.memory_space<vmem>>, vector<1x1x4x4xbf16>
    %74 = vector.shape_cast %73 : vector<1x1x4x4xbf16> to vector<4x4xbf16>
    %cst_80 = arith.constant dense<0.000000e+00> : vector<256x4xf32>
    %75 = tpu.matmul %72, %74, %cst_80 {dimension_numbers = #tpu.dot_dimension_numbers<[1], [0], [0], [1], [0, 0, 1, 1], [], []>} : vector<256x4xbf16>, vector<4x4xbf16>, vector<256x4xf32> -> vector<256x4xf32>
    %76 = arith.addf %71, %75 : vector<256x4xf32>
    %c0_81 = arith.constant 0 : index
    %c0_82 = arith.constant 0 : index
    %77 = vector.load %arg15[%c0_81, %c0_82] : memref<256x4xf32, #tpu.memory_space<vmem>>, vector<256x4xf32>
    tpu.vector_store %arg15[%c0_81, %c0_82], %76 {strides = array<i32>} : memref<256x4xf32, #tpu.memory_space<vmem>>, vector<256x4xf32>,
    %c39 = arith.constant 39 : index
    %c0_83 = arith.constant 0 : index
    %78 = vector.load %arg14[%c39, %c0_83] : memref<304x4xf32, #tpu.memory_space<vmem>>, vector<256x4xf32>
    %c0_84 = arith.constant 0 : index
    %c0_85 = arith.constant 0 : index
    %79 = vector.load %arg11[%c0_84, %c0_85] : memref<256x1xf32, #tpu.memory_space<vmem>>, vector<256x1xf32>
    %80 = vector.broadcast %79 : vector<256x1xf32> to vector<256x4xf32>
    %81 = arith.mulf %78, %80 : vector<256x4xf32>
    %c0_86 = arith.constant 0 : index
    %c0_87 = arith.constant 0 : index
    %82 = vector.load %arg15[%c0_86, %c0_87] : memref<256x4xf32, #tpu.memory_space<vmem>>, vector<256x4xf32>
    %83 = arith.truncf %81 : vector<256x4xf32> to vector<256x4xbf16>
    %c2_88 = arith.constant 2 : index
    %c0_89 = arith.constant 0 : index
    %c0_90 = arith.constant 0 : index
    %c0_91 = arith.constant 0 : index
    %84 = vector.load %arg5[%c2_88, %c0_89, %c0_90, %c0_91] : memref<3x3x4x4xbf16, #tpu.memory_space<vmem>>, vector<1x1x4x4xbf16>
    %85 = vector.shape_cast %84 : vector<1x1x4x4xbf16> to vector<4x4xbf16>
    %cst_92 = arith.constant dense<0.000000e+00> : vector<256x4xf32>
    %86 = tpu.matmul %83, %85, %cst_92 {dimension_numbers = #tpu.dot_dimension_numbers<[1], [0], [0], [1], [0, 0, 1, 1], [], []>} : vector<256x4xbf16>, vector<4x4xbf16>, vector<256x4xf32> -> vector<256x4xf32>
    %87 = arith.addf %82, %86 : vector<256x4xf32>
    %c0_93 = arith.constant 0 : index
    %c0_94 = arith.constant 0 : index
    %88 = vector.load %arg15[%c0_93, %c0_94] : memref<256x4xf32, #tpu.memory_space<vmem>>, vector<256x4xf32>
    tpu.vector_store %arg15[%c0_93, %c0_94], %87 {strides = array<i32>} : memref<256x4xf32, #tpu.memory_space<vmem>>, vector<256x4xf32>,
    %c40 = arith.constant 40 : index
    %c0_95 = arith.constant 0 : index
    %89 = vector.load %arg14[%c40, %c0_95] : memref<304x4xf32, #tpu.memory_space<vmem>>, vector<256x4xf32>
    %c0_96 = arith.constant 0 : index
    %c0_97 = arith.constant 0 : index
    %90 = vector.load %arg15[%c0_96, %c0_97] : memref<256x4xf32, #tpu.memory_space<vmem>>, vector<256x4xf32>
    %91 = arith.truncf %89 : vector<256x4xf32> to vector<256x4xbf16>
    %c2_98 = arith.constant 2 : index
    %c1_99 = arith.constant 1 : index
    %c0_100 = arith.constant 0 : index
    %c0_101 = arith.constant 0 : index
    %92 = vector.load %arg5[%c2_98, %c1_99, %c0_100, %c0_101] : memref<3x3x4x4xbf16, #tpu.memory_space<vmem>>, vector<1x1x4x4xbf16>
    %93 = vector.shape_cast %92 : vector<1x1x4x4xbf16> to vector<4x4xbf16>
    %cst_102 = arith.constant dense<0.000000e+00> : vector<256x4xf32>
    %94 = tpu.matmul %91, %93, %cst_102 {dimension_numbers = #tpu.dot_dimension_numbers<[1], [0], [0], [1], [0, 0, 1, 1], [], []>} : vector<256x4xbf16>, vector<4x4xbf16>, vector<256x4xf32> -> vector<256x4xf32>
    %95 = arith.addf %90, %94 : vector<256x4xf32>
    %c0_103 = arith.constant 0 : index
    %c0_104 = arith.constant 0 : index
    %96 = vector.load %arg15[%c0_103, %c0_104] : memref<256x4xf32, #tpu.memory_space<vmem>>, vector<256x4xf32>
    tpu.vector_store %arg15[%c0_103, %c0_104], %95 {strides = array<i32>} : memref<256x4xf32, #tpu.memory_space<vmem>>, vector<256x4xf32>,
    %c41 = arith.constant 41 : index
    %c0_105 = arith.constant 0 : index
    %97 = vector.load %arg14[%c41, %c0_105] : memref<304x4xf32, #tpu.memory_space<vmem>>, vector<256x4xf32>
    %c0_106 = arith.constant 0 : index
    %c0_107 = arith.constant 0 : index
    %98 = vector.load %arg12[%c0_106, %c0_107] : memref<256x1xf32, #tpu.memory_space<vmem>>, vector<256x1xf32>
    %99 = vector.broadcast %98 : vector<256x1xf32> to vector<256x4xf32>
    %100 = arith.mulf %97, %99 : vector<256x4xf32>
    %c0_108 = arith.constant 0 : index
    %c0_109 = arith.constant 0 : index
    %101 = vector.load %arg15[%c0_108, %c0_109] : memref<256x4xf32, #tpu.memory_space<vmem>>, vector<256x4xf32>
    %102 = arith.truncf %100 : vector<256x4xf32> to vector<256x4xbf16>
    %c2_110 = arith.constant 2 : index
    %c2_111 = arith.constant 2 : index
    %c0_112 = arith.constant 0 : index
    %c0_113 = arith.constant 0 : index
    %103 = vector.load %arg5[%c2_110, %c2_111, %c0_112, %c0_113] : memref<3x3x4x4xbf16, #tpu.memory_space<vmem>>, vector<1x1x4x4xbf16>
    %104 = vector.shape_cast %103 : vector<1x1x4x4xbf16> to vector<4x4xbf16>
    %cst_114 = arith.constant dense<0.000000e+00> : vector<256x4xf32>
    %105 = tpu.matmul %102, %104, %cst_114 {dimension_numbers = #tpu.dot_dimension_numbers<[1], [0], [0], [1], [0, 0, 1, 1], [], []>} : vector<256x4xbf16>, vector<4x4xbf16>, vector<256x4xf32> -> vector<256x4xf32>
    %106 = arith.addf %101, %105 : vector<256x4xf32>
    %c0_115 = arith.constant 0 : index
    %c0_116 = arith.constant 0 : index
    %107 = vector.load %arg15[%c0_115, %c0_116] : memref<256x4xf32, #tpu.memory_space<vmem>>, vector<256x4xf32>
    tpu.vector_store %arg15[%c0_115, %c0_116], %106 {strides = array<i32>} : memref<256x4xf32, #tpu.memory_space<vmem>>, vector<256x4xf32>,
    %c0_117 = arith.constant 0 : index
    %c0_118 = arith.constant 0 : index
    %108 = vector.load %arg15[%c0_117, %c0_118] : memref<256x4xf32, #tpu.memory_space<vmem>>, vector<256x4xf32>
    %c0_119 = arith.constant 0 : index
    %c0_120 = arith.constant 0 : index
    %109 = vector.load %arg6[%c0_119, %c0_120] : memref<1x4xf32, #tpu.memory_space<vmem>>, vector<1x4xf32>
    %110 = vector.broadcast %109 : vector<1x4xf32> to vector<256x4xf32>
    %111 = arith.mulf %108, %110 : vector<256x4xf32>
    %c0_121 = arith.constant 0 : index
    %c0_122 = arith.constant 0 : index
    %112 = vector.load %arg7[%c0_121, %c0_122] : memref<1x4xf32, #tpu.memory_space<vmem>>, vector<1x4xf32>
    %113 = vector.broadcast %112 : vector<1x4xf32> to vector<256x4xf32>
    %114 = arith.addf %111, %113 : vector<256x4xf32>
    %cst_123 = arith.constant 0.000000e+00 : f32
    %115 = vector.broadcast %cst_123 : f32 to vector<256x4xf32>
    %116 = arith.maximumf %114, %115 : vector<256x4xf32>
    %117 = arith.truncf %116 : vector<256x4xf32> to vector<256x4xbf16>
    %c0_124 = arith.constant 0 : index
    %c0_125 = arith.constant 0 : index
    %118 = vector.load %arg8[%c0_124, %c0_125] : memref<4x16xbf16, #tpu.memory_space<vmem>>, vector<4x16xbf16>
    %cst_126 = arith.constant dense<0.000000e+00> : vector<256x16xf32>
    %119 = tpu.matmul %117, %118, %cst_126 {dimension_numbers = #tpu.dot_dimension_numbers<[1], [0], [0], [1], [0, 0, 1, 1], [], []>} : vector<256x4xbf16>, vector<4x16xbf16>, vector<256x16xf32> -> vector<256x16xf32>
    %c0_127 = arith.constant 0 : index
    %c0_128 = arith.constant 0 : index
    %120 = vector.load %arg9[%c0_127, %c0_128] : memref<1x16xf32, #tpu.memory_space<vmem>>, vector<1x16xf32>
    %121 = vector.broadcast %120 : vector<1x16xf32> to vector<256x16xf32>
    %122 = arith.mulf %119, %121 : vector<256x16xf32>
    %c0_129 = arith.constant 0 : index
    %c0_130 = arith.constant 0 : index
    %123 = vector.load %arg10[%c0_129, %c0_130] : memref<1x16xf32, #tpu.memory_space<vmem>>, vector<1x16xf32>
    %124 = vector.broadcast %123 : vector<1x16xf32> to vector<256x16xf32>
    %125 = arith.addf %122, %124 : vector<256x16xf32>
    %126 = arith.addf %125, %1 : vector<256x16xf32>
    %cst_131 = arith.constant 0.000000e+00 : f32
    %127 = vector.broadcast %cst_131 : f32 to vector<256x16xf32>
    %128 = arith.maximumf %126, %127 : vector<256x16xf32>
    %c0_132 = arith.constant 0 : index
    %c0_133 = arith.constant 0 : index
    %c0_134 = arith.constant 0 : index
    %129 = vector.load %arg13[%c0_132, %c0_133, %c0_134] : memref<1x256x16xf32, #tpu.memory_space<vmem>>, vector<1x256x16xf32>
    %130 = vector.shape_cast %129 : vector<1x256x16xf32> to vector<256x16xf32>
    %131 = vector.shape_cast %128 : vector<256x16xf32> to vector<1x256x16xf32>
    tpu.vector_store %arg13[%c0_132, %c0_133, %c0_134], %131 {strides = array<i32>} : memref<1x256x16xf32, #tpu.memory_space<vmem>>, vector<1x256x16xf32>,
    return
  }
  func.func @transform_0(%arg0: i32) -> (i32, i32, i32) {
    %c0_i32 = arith.constant 0 : i32
    %c0_i32_0 = arith.constant 0 : i32
    %c0_i32_1 = arith.constant 0 : i32
    return %arg0, %c0_i32, %c0_i32_0 : i32, i32, i32
  }
  func.func @transform_1(%arg0: i32) -> (i32, i32) {
    %c0_i32 = arith.constant 0 : i32
    %c0_i32_0 = arith.constant 0 : i32
    %c0_i32_1 = arith.constant 0 : i32
    return %c0_i32, %c0_i32_0 : i32, i32
  }
  func.func @transform_2(%arg0: i32) -> (i32, i32) {
    %c0_i32 = arith.constant 0 : i32
    %c0_i32_0 = arith.constant 0 : i32
    %c0_i32_1 = arith.constant 0 : i32
    return %c0_i32, %c0_i32_0 : i32, i32
  }
  func.func @transform_3(%arg0: i32) -> (i32, i32) {
    %c0_i32 = arith.constant 0 : i32
    %c0_i32_0 = arith.constant 0 : i32
    %c0_i32_1 = arith.constant 0 : i32
    return %c0_i32, %c0_i32_0 : i32, i32
  }
  func.func @transform_4(%arg0: i32) -> (i32, i32, i32, i32) {
    %c0_i32 = arith.constant 0 : i32
    %c0_i32_0 = arith.constant 0 : i32
    %c0_i32_1 = arith.constant 0 : i32
    %c0_i32_2 = arith.constant 0 : i32
    %c0_i32_3 = arith.constant 0 : i32
    return %c0_i32, %c0_i32_0, %c0_i32_1, %c0_i32_2 : i32, i32, i32, i32
  }
  func.func @transform_5(%arg0: i32) -> (i32, i32) {
    %c0_i32 = arith.constant 0 : i32
    %c0_i32_0 = arith.constant 0 : i32
    %c0_i32_1 = arith.constant 0 : i32
    return %c0_i32, %c0_i32_0 : i32, i32
  }
  func.func @transform_6(%arg0: i32) -> (i32, i32) {
    %c0_i32 = arith.constant 0 : i32
    %c0_i32_0 = arith.constant 0 : i32
    %c0_i32_1 = arith.constant 0 : i32
    return %c0_i32, %c0_i32_0 : i32, i32
  }
  func.func @transform_7(%arg0: i32) -> (i32, i32) {
    %c0_i32 = arith.constant 0 : i32
    %c0_i32_0 = arith.constant 0 : i32
    %c0_i32_1 = arith.constant 0 : i32
    return %c0_i32, %c0_i32_0 : i32, i32
  }
  func.func @transform_8(%arg0: i32) -> (i32, i32) {
    %c0_i32 = arith.constant 0 : i32
    %c0_i32_0 = arith.constant 0 : i32
    %c0_i32_1 = arith.constant 0 : i32
    return %c0_i32, %c0_i32_0 : i32, i32
  }
  func.func @transform_9(%arg0: i32) -> (i32, i32) {
    %c0_i32 = arith.constant 0 : i32
    %c0_i32_0 = arith.constant 0 : i32
    %c0_i32_1 = arith.constant 0 : i32
    return %c0_i32, %c0_i32_0 : i32, i32
  }
  func.func @transform_10(%arg0: i32) -> (i32, i32) {
    %c0_i32 = arith.constant 0 : i32
    %c0_i32_0 = arith.constant 0 : i32
    %c0_i32_1 = arith.constant 0 : i32
    return %c0_i32, %c0_i32_0 : i32, i32
  }
  func.func @transform_11(%arg0: i32) -> (i32, i32) {
    %c0_i32 = arith.constant 0 : i32
    %c0_i32_0 = arith.constant 0 : i32
    %c0_i32_1 = arith.constant 0 : i32
    return %c0_i32, %c0_i32_0 : i32, i32
  }
  func.func @transform_12(%arg0: i32) -> (i32, i32, i32) {
    %c0_i32 = arith.constant 0 : i32
    %c0_i32_0 = arith.constant 0 : i32
    %c0_i32_1 = arith.constant 0 : i32
    return %arg0, %c0_i32, %c0_i32_0 : i32, i32, i32
  }
}

</mosaic_0001>

<llo_original>
// kernel: bottleneck_forward.1
$region0: #{bottleneck_forward.1}
  #allocation0 [shape = 'u32[]', space=smem, size = 0x4, offset = 0x4, fixed_abs, tag = 'smem constant byte address 0x4 - core index']
  #allocation1 [shape = 'u32[144,128]{1,0:T(1,128)}', space=vmem, size = 0x12000, scoped, tag = 'internal scratch']
  #allocation2 [shape = 'f32[304,4]{1,0:T(8,128)}', space=vmem, size = 0x26000, scoped, tag = 'scratch operand']
  #allocation3 [shape = 'f32[256,4]{1,0:T(8,128)}', space=vmem, size = 0x20000, scoped, tag = 'scratch operand']
  %s0 = inlined_call_operand.vmem [shape: f32[2,256,16], index: 0, kind: input, shape index: {}]
  %s1 = inlined_call_operand.vmem [shape: bf16[16,4], index: 1, kind: input, shape index: {}]
  %s2 = inlined_call_operand.vmem [shape: f32[1,4], index: 2, kind: input, shape index: {}]
  %s3 = inlined_call_operand.vmem [shape: f32[1,4], index: 3, kind: input, shape index: {}]
  %s4 = inlined_call_operand.vmem [shape: bf16[3,3,4,4], index: 4, kind: input, shape index: {}]
  %s5 = inlined_call_operand.vmem [shape: f32[1,4], index: 5, kind: input, shape index: {}]
  %s6 = inlined_call_operand.vmem [shape: f32[1,4], index: 6, kind: input, shape index: {}]
  %s7 = inlined_call_operand.vmem [shape: bf16[4,16], index: 7, kind: input, shape index: {}]
  %s8 = inlined_call_operand.vmem [shape: f32[1,16], index: 8, kind: input, shape index: {}]
  %s9 = inlined_call_operand.vmem [shape: f32[1,16], index: 9, kind: input, shape index: {}]
  %s10 = inlined_call_operand.vmem [shape: f32[256,1], index: 10, kind: input, shape index: {}]
  %s11 = inlined_call_operand.vmem [shape: f32[256,1], index: 11, kind: input, shape index: {}]
  %s12 = inlined_call_operand.vmem [shape: f32[2,256,16], index: 12, kind: output, shape index: {}]
  %s13 = sld [smem:[#allocation0]]
  $region81: #{bottleneck_forward.1} parent=0
    _
  %s15 = ssub.s32 1, %s13
  %s16 = scalar_select 0, %s15, %s13
  loop: start=0, step=1, limit=4
  $region2: #{bottleneck_forward.1} parent=0 // loop_pre_header
    _
  $region3: #{bottleneck_forward.1} parent=0 // loop_header
    %s18 = sphi 0, %s22
    %p19 = scmp.ge.s32.totalorder %s18, 4
    %s28 = sphi 0, %s30
    %s31 = sphi 0, %s28
    %s32 = sphi 0, %s31
    %s48 = sphi 0, %s32
    %s52 = sphi 0, %s52
    %s54 = sphi 0, %s52
    %s55 = sphi 0, %s54
    %s69 = sphi 0, %s55
    %s73 = sphi 0, %s73
    %s75 = sphi 0, %s73
    %s76 = sphi 0, %s75
    %s90 = sphi 0, %s76
    %s94 = sphi 0, %s94
    %s96 = sphi 0, %s94
    %s97 = sphi 0, %s96
    %s111 = sphi 0, %s97
    %s115 = sphi 0, %s115
    %s117 = sphi 0, %s115
    %s118 = sphi 0, %s117
    %s132 = sphi 0, %s118
    %s136 = sphi 0, %s136
    %s138 = sphi 0, %s136
    %s139 = sphi 0, %s138
    %s153 = sphi 0, %s139
    %s157 = sphi 0, %s157
    %s159 = sphi 0, %s157
    %s160 = sphi 0, %s159
    %s174 = sphi 0, %s160
    %s178 = sphi 0, %s178
    %s180 = sphi 0, %s178
    %s181 = sphi 0, %s180
    %s195 = sphi 0, %s181
    %s199 = sphi 0, %s199
    %s201 = sphi 0, %s199
    %s202 = sphi 0, %s201
    %s216 = sphi 0, %s202
    %s220 = sphi 0, %s220
    %s222 = sphi 0, %s220
    %s223 = sphi 0, %s222
    %s237 = sphi 0, %s223
    %s241 = sphi 0, %s241
    %s243 = sphi 0, %s241
    %s244 = sphi 0, %s243
    %s258 = sphi 0, %s244
    %s262 = sphi 0, %s262
    %s264 = sphi 0, %s262
    %s265 = sphi 0, %s264
    %s279 = sphi 0, %s265
    %s285 = sphi 0, %s287
    %s288 = sphi 0, %s285
    %s289 = sphi 0, %s288
    %s305 = sphi 0, %s289
  $region4: #{bottleneck_forward.1} parent=0 // loop_header_branch
    %21 = sbr.rel (%p19) target = $region8
  $region5: #{bottleneck_forward.1} parent=0 // loop_body
    %s23 = ssub.s32 %s18, 1
    %s24 = ssub.s32 %s18, 2
    %s25 = sadd.s32 %s18, 1
    %s26 = ssub.s32 %s18, %s25
    %p27 = scmp.eq.s32.totalorder %s26, 0
    %s29 = sadd.s32 %s28, 1
    %s30 = scalar_select %p27, %s28, %s29
    %p33 = pneg %p27
    %p34 = scmp.eq.s32.totalorder %s18, 1
    %p35 = por %p33, %p34
    %p36 = scmp.ne.s32.totalorder %s28, %s31
    %p37 = scmp.eq.s32.totalorder %s18, 0
    %p38 = por %p36, %p37
    %p39 = scmp.ne.s32.totalorder %s28, %s31
    %p40 = scmp.eq.s32.totalorder %s23, 1
    %p41 = por %p39, %p40
    %p42 = scmp.ne.s32.totalorder %s31, %s32
    %p43 = scmp.eq.s32.totalorder %s23, 0
    %p44 = por %p42, %p43
    %p45 = scmp.ne.s32.totalorder %s31, %s32
    %p46 = scmp.eq.s32.totalorder %s24, 1
    %p47 = por %p45, %p46
    %p49 = scmp.ne.s32.totalorder %s32, %s48
    %p50 = scmp.eq.s32.totalorder %s24, 0
    %p51 = por %p49, %p50
    %s53 = sadd.s32 %s52, 1
    %p56 = scmp.eq.s32.totalorder %s18, 1
    %p57 = scmp.ne.s32.totalorder %s52, %s54
    %p58 = scmp.eq.s32.totalorder %s18, 0
    %p59 = por %p57, %p58
    %p60 = scmp.ne.s32.totalorder %s52, %s54
    %p61 = scmp.eq.s32.totalorder %s23, 1
    %p62 = por %p60, %p61
    %p63 = scmp.ne.s32.totalorder %s54, %s55
    %p64 = scmp.eq.s32.totalorder %s23, 0
    %p65 = por %p63, %p64
    %p66 = scmp.ne.s32.totalorder %s54, %s55
    %p67 = scmp.eq.s32.totalorder %s24, 1
    %p68 = por %p66, %p67
    %p70 = scmp.ne.s32.totalorder %s55, %s69
    %p71 = scmp.eq.s32.totalorder %s24, 0
    %p72 = por %p70, %p71
    %s74 = sadd.s32 %s73, 1
    %p77 = scmp.eq.s32.totalorder %s18, 1
    %p78 = scmp.ne.s32.totalorder %s73, %s75
    %p79 = scmp.eq.s32.totalorder %s18, 0
    %p80 = por %p78, %p79
    %p81 = scmp.ne.s32.totalorder %s73, %s75
    %p82 = scmp.eq.s32.totalorder %s23, 1
    %p83 = por %p81, %p82
    %p84 = scmp.ne.s32.totalorder %s75, %s76
    %p85 = scmp.eq.s32.totalorder %s23, 0
    %p86 = por %p84, %p85
    %p87 = scmp.ne.s32.totalorder %s75, %s76
    %p88 = scmp.eq.s32.totalorder %s24, 1
    %p89 = por %p87, %p88
    %p91 = scmp.ne.s32.totalorder %s76, %s90
    %p92 = scmp.eq.s32.totalorder %s24, 0
    %p93 = por %p91, %p92
    %s95 = sadd.s32 %s94, 1
    %p98 = scmp.eq.s32.totalorder %s18, 1
    %p99 = scmp.ne.s32.totalorder %s94, %s96
    %p100 = scmp.eq.s32.totalorder %s18, 0
    %p101 = por %p99, %p100
    %p102 = scmp.ne.s32.totalorder %s94, %s96
    %p103 = scmp.eq.s32.totalorder %s23, 1
    %p104 = por %p102, %p103
    %p105 = scmp.ne.s32.totalorder %s96, %s97
    %p106 = scmp.eq.s32.totalorder %s23, 0
    %p107 = por %p105, %p106
    %p108 = scmp.ne.s32.totalorder %s96, %s97
    %p109 = scmp.eq.s32.totalorder %s24, 1
    %p110 = por %p108, %p109
    %p112 = scmp.ne.s32.totalorder %s97, %s111
    %p113 = scmp.eq.s32.totalorder %s24, 0
    %p114 = por %p112, %p113
    %s116 = sadd.s32 %s115, 1
    %p119 = scmp.eq.s32.totalorder %s18, 1
    %p120 = scmp.ne.s32.totalorder %s115, %s117
    %p121 = scmp.eq.s32.totalorder %s18, 0
    %p122 = por %p120, %p121
    %p123 = scmp.ne.s32.totalorder %s115, %s117
    %p124 = scmp.eq.s32.totalorder %s23, 1
    %p125 = por %p123, %p124
    %p126 = scmp.ne.s32.totalorder %s117, %s118
    %p127 = scmp.eq.s32.totalorder %s23, 0
    %p128 = por %p126, %p127
    %p129 = scmp.ne.s32.totalorder %s117, %s118
    %p130 = scmp.eq.s32.totalorder %s24, 1
    %p131 = por %p129, %p130
    %p133 = scmp.ne.s32.totalorder %s118, %s132
    %p134 = scmp.eq.s32.totalorder %s24, 0
    %p135 = por %p133, %p134
    %s137 = sadd.s32 %s136, 1
    %p140 = scmp.eq.s32.totalorder %s18, 1
    %p141 = scmp.ne.s32.totalorder %s136, %s138
    %p142 = scmp.eq.s32.totalorder %s18, 0
    %p143 = por %p141, %p142
    %p144 = scmp.ne.s32.totalorder %s136, %s138
    %p145 = scmp.eq.s32.totalorder %s23, 1
    %p146 = por %p144, %p145
    %p147 = scmp.ne.s32.totalorder %s138, %s139
    %p148 = scmp.eq.s32.totalorder %s23, 0
    %p149 = por %p147, %p148
    %p150 = scmp.ne.s32.totalorder %s138, %s139
    %p151 = scmp.eq.s32.totalorder %s24, 1
    %p152 = por %p150, %p151
    %p154 = scmp.ne.s32.totalorder %s139, %s153
    %p155 = scmp.eq.s32.totalorder %s24, 0
    %p156 = por %p154, %p155
    %s158 = sadd.s32 %s157, 1
    %p161 = scmp.eq.s32.totalorder %s18, 1
    %p162 = scmp.ne.s32.totalorder %s157, %s159
    %p163 = scmp.eq.s32.totalorder %s18, 0
    %p164 = por %p162, %p163
    %p165 = scmp.ne.s32.totalorder %s157, %s159
    %p166 = scmp.eq.s32.totalorder %s23, 1
    %p167 = por %p165, %p166
    %p168 = scmp.ne.s32.totalorder %s159, %s160
    %p169 = scmp.eq.s32.totalorder %s23, 0
    %p170 = por %p168, %p169
    %p171 = scmp.ne.s32.totalorder %s159, %s160
    %p172 = scmp.eq.s32.totalorder %s24, 1
    %p173 = por %p171, %p172
    %p175 = scmp.ne.s32.totalorder %s160, %s174
    %p176 = scmp.eq.s32.totalorder %s24, 0
    %p177 = por %p175, %p176
    %s179 = sadd.s32 %s178, 1
    %p182 = scmp.eq.s32.totalorder %s18, 1
    %p183 = scmp.ne.s32.totalorder %s178, %s180
    %p184 = scmp.eq.s32.totalorder %s18, 0
    %p185 = por %p183, %p184
    %p186 = scmp.ne.s32.totalorder %s178, %s180
    %p187 = scmp.eq.s32.totalorder %s23, 1
    %p188 = por %p186, %p187
    %p189 = scmp.ne.s32.totalorder %s180, %s181
    %p190 = scmp.eq.s32.totalorder %s23, 0
    %p191 = por %p189, %p190
    %p192 = scmp.ne.s32.totalorder %s180, %s181
    %p193 = scmp.eq.s32.totalorder %s24, 1
    %p194 = por %p192, %p193
    %p196 = scmp.ne.s32.totalorder %s181, %s195
    %p197 = scmp.eq.s32.totalorder %s24, 0
    %p198 = por %p196, %p197
    %s200 = sadd.s32 %s199, 1
    %p203 = scmp.eq.s32.totalorder %s18, 1
    %p204 = scmp.ne.s32.totalorder %s199, %s201
    %p205 = scmp.eq.s32.totalorder %s18, 0
    %p206 = por %p204, %p205
    %p207 = scmp.ne.s32.totalorder %s199, %s201
    %p208 = scmp.eq.s32.totalorder %s23, 1
    %p209 = por %p207, %p208
    %p210 = scmp.ne.s32.totalorder %s201, %s202
    %p211 = scmp.eq.s32.totalorder %s23, 0
    %p212 = por %p210, %p211
    %p213 = scmp.ne.s32.totalorder %s201, %s202
    %p214 = scmp.eq.s32.totalorder %s24, 1
    %p215 = por %p213, %p214
    %p217 = scmp.ne.s32.totalorder %s202, %s216
    %p218 = scmp.eq.s32.totalorder %s24, 0
    %p219 = por %p217, %p218
    %s221 = sadd.s32 %s220, 1
    %p224 = scmp.eq.s32.totalorder %s18, 1
    %p225 = scmp.ne.s32.totalorder %s220, %s222
    %p226 = scmp.eq.s32.totalorder %s18, 0
    %p227 = por %p225, %p226
    %p228 = scmp.ne.s32.totalorder %s220, %s222
    %p229 = scmp.eq.s32.totalorder %s23, 1
    %p230 = por %p228, %p229
    %p231 = scmp.ne.s32.totalorder %s222, %s223
    %p232 = scmp.eq.s32.totalorder %s23, 0
    %p233 = por %p231, %p232
    %p234 = scmp.ne.s32.totalorder %s222, %s223
    %p235 = scmp.eq.s32.totalorder %s24, 1
    %p236 = por %p234, %p235
    %p238 = scmp.ne.s32.totalorder %s223, %s237
    %p239 = scmp.eq.s32.totalorder %s24, 0
    %p240 = por %p238, %p239
    %s242 = sadd.s32 %s241, 1
    %p245 = scmp.eq.s32.totalorder %s18, 1
    %p246 = scmp.ne.s32.totalorder %s241, %s243
    %p247 = scmp.eq.s32.totalorder %s18, 0
    %p248 = por %p246, %p247
    %p249 = scmp.ne.s32.totalorder %s241, %s243
    %p250 = scmp.eq.s32.totalorder %s23, 1
    %p251 = por %p249, %p250
    %p252 = scmp.ne.s32.totalorder %s243, %s244
    %p253 = scmp.eq.s32.totalorder %s23, 0
    %p254 = por %p252, %p253
    %p255 = scmp.ne.s32.totalorder %s243, %s244
    %p256 = scmp.eq.s32.totalorder %s24, 1
    %p257 = por %p255, %p256
    %p259 = scmp.ne.s32.totalorder %s244, %s258
    %p260 = scmp.eq.s32.totalorder %s24, 0
    %p261 = por %p259, %p260
    %s263 = sadd.s32 %s262, 1
    %p266 = scmp.eq.s32.totalorder %s18, 1
    %p267 = scmp.ne.s32.totalorder %s262, %s264
    %p268 = scmp.eq.s32.totalorder %s18, 0
    %p269 = por %p267, %p268
    %p270 = scmp.ne.s32.totalorder %s262, %s264
    %p271 = scmp.eq.s32.totalorder %s23, 1
    %p272 = por %p270, %p271
    %p273 = scmp.ne.s32.totalorder %s264, %s265
    %p274 = scmp.eq.s32.totalorder %s23, 0
    %p275 = por %p273, %p274
    %p276 = scmp.ne.s32.totalorder %s264, %s265
    %p277 = scmp.eq.s32.totalorder %s24, 1
    %p278 = por %p276, %p277
    %p280 = scmp.ne.s32.totalorder %s265, %s279
    %p281 = scmp.eq.s32.totalorder %s24, 0
    %p282 = por %p280, %p281
    %s283 = ssub.s32 %s18, %s25
    %p284 = scmp.eq.s32.totalorder %s283, 0
    %s286 = sadd.s32 %s285, 1
    %s287 = scalar_select %p284, %s285, %s286
    %p290 = pneg %p284
    %p291 = scmp.eq.s32.totalorder %s18, 1
    %p292 = por %p290, %p291
    %p293 = scmp.ne.s32.totalorder %s285, %s288
    %p294 = scmp.eq.s32.totalorder %s18, 0
    %p295 = por %p293, %p294
    %p296 = scmp.ne.s32.totalorder %s285, %s288
    %p297 = scmp.eq.s32.totalorder %s23, 1
    %p298 = por %p296, %p297
    %p299 = scmp.ne.s32.totalorder %s288, %s289
    %p300 = scmp.eq.s32.totalorder %s23, 0
    %p301 = por %p299, %p300
    %p302 = scmp.ne.s32.totalorder %s288, %s289
    %p303 = scmp.eq.s32.totalorder %s24, 1
    %p304 = por %p302, %p303
    %p306 = scmp.ne.s32.totalorder %s289, %s305
    %p307 = scmp.eq.s32.totalorder %s24, 0
    %p308 = por %p306, %p307
    %p309 = scmp.le.s32.totalorder 1, %s18
    %p310 = scmp.lt.s32.totalorder %s18, 3
    %p311 = pnand %p309, %p310
    %p312 = pneg %p311
    // Predicated region
    $region9: #{bottleneck_forward.1} parent=5 // pred_check
      _
    $region10: #{bottleneck_forward.1} parent=5 // pred_check_branch
      %314 = sbr.rel (%p311) target = $region12
    $region11: #{bottleneck_forward.1} parent=5 // pred_region
      %s315 = ssub.s32 %s18, 1
      // Predicated region
      $region13: #{bottleneck_forward.1} parent=11 // pred_check
        %p316 = pneg %p65
      $region14: #{bottleneck_forward.1} parent=11 // pred_check_branch
        %318 = sbr.rel (%p316) target = $region16
      $region15: #{bottleneck_forward.1} parent=11 // pred_region
        _
      $region16: #{bottleneck_forward.1} parent=11 // pred_fallthru
        _
      // Predicated region
      $region17: #{bottleneck_forward.1} parent=11 // pred_check
        %p319 = pneg %p86
      $region18: #{bottleneck_forward.1} parent=11 // pred_check_branch
        %321 = sbr.rel (%p319) target = $region20
      $region19: #{bottleneck_forward.1} parent=11 // pred_region
        _
      $region20: #{bottleneck_forward.1} parent=11 // pred_fallthru
        _
      // Predicated region
      $region21: #{bottleneck_forward.1} parent=11 // pred_check
        %p322 = pneg %p107
      $region22: #{bottleneck_forward.1} parent=11 // pred_check_branch
        %324 = sbr.rel (%p322) target = $region24
      $region23: #{bottleneck_forward.1} parent=11 // pred_region
        _
      $region24: #{bottleneck_forward.1} parent=11 // pred_fallthru
        _
      // Predicated region
      $region25: #{bottleneck_forward.1} parent=11 // pred_check
        %p325 = pneg %p128
      $region26: #{bottleneck_forward.1} parent=11 // pred_check_branch
        %327 = sbr.rel (%p325) target = $region28
      $region27: #{bottleneck_forward.1} parent=11 // pred_region
        _
      $region28: #{bottleneck_forward.1} parent=11 // pred_fallthru
        _
      // Predicated region
      $region29: #{bottleneck_forward.1} parent=11 // pred_check
        %p328 = pneg %p149
      $region30: #{bottleneck_forward.1} parent=11 // pred_check_branch
        %330 = sbr.rel (%p328) target = $region32
      $region31: #{bottleneck_forward.1} parent=11 // pred_region
        _
      $region32: #{bottleneck_forward.1} parent=11 // pred_fallthru
        _
      // Predicated region
      $region33: #{bottleneck_forward.1} parent=11 // pred_check
        %p331 = pneg %p170
      $region34: #{bottleneck_forward.1} parent=11 // pred_check_branch
        %333 = sbr.rel (%p331) target = $region36
      $region35: #{bottleneck_forward.1} parent=11 // pred_region
        _
      $region36: #{bottleneck_forward.1} parent=11 // pred_fallthru
        _
      // Predicated region
      $region37: #{bottleneck_forward.1} parent=11 // pred_check
        %p334 = pneg %p191
      $region38: #{bottleneck_forward.1} parent=11 // pred_check_branch
        %336 = sbr.rel (%p334) target = $region40
      $region39: #{bottleneck_forward.1} parent=11 // pred_region
        _
      $region40: #{bottleneck_forward.1} parent=11 // pred_fallthru
        _
      // Predicated region
      $region41: #{bottleneck_forward.1} parent=11 // pred_check
        %p337 = pneg %p212
      $region42: #{bottleneck_forward.1} parent=11 // pred_check_branch
        %339 = sbr.rel (%p337) target = $region44
      $region43: #{bottleneck_forward.1} parent=11 // pred_region
        _
      $region44: #{bottleneck_forward.1} parent=11 // pred_fallthru
        _
      // Predicated region
      $region45: #{bottleneck_forward.1} parent=11 // pred_check
        %p340 = pneg %p233
      $region46: #{bottleneck_forward.1} parent=11 // pred_check_branch
        %342 = sbr.rel (%p340) target = $region48
      $region47: #{bottleneck_forward.1} parent=11 // pred_region
        _
      $region48: #{bottleneck_forward.1} parent=11 // pred_fallthru
        _
      // Predicated region
      $region49: #{bottleneck_forward.1} parent=11 // pred_check
        %p343 = pneg %p254
      $region50: #{bottleneck_forward.1} parent=11 // pred_check_branch
        %345 = sbr.rel (%p343) target = $region52
      $region51: #{bottleneck_forward.1} parent=11 // pred_region
        _
      $region52: #{bottleneck_forward.1} parent=11 // pred_fallthru
        _
      // Predicated region
      $region53: #{bottleneck_forward.1} parent=11 // pred_check
        %p346 = pneg %p275
      $region54: #{bottleneck_forward.1} parent=11 // pred_check_branch
        %348 = sbr.rel (%p346) target = $region56
      $region55: #{bottleneck_forward.1} parent=11 // pred_region
        _
      $region56: #{bottleneck_forward.1} parent=11 // pred_fallthru
        _
    $region12: #{bottleneck_forward.1} parent=5 // pred_fallthru
      _
    %p349 = scmp.lt.s32.totalorder %s18, 2
    // Predicated region
    $region57: #{bottleneck_forward.1} parent=5 // pred_check
      %p350 = pneg %p349
    $region58: #{bottleneck_forward.1} parent=5 // pred_check_branch
      %352 = sbr.rel (%p350) target = $region60
    $region59: #{bottleneck_forward.1} parent=5 // pred_region
      // Predicated region
      $region61: #{bottleneck_forward.1} parent=59 // pred_check
        %p353 = pneg %p38
      $region62: #{bottleneck_forward.1} parent=59 // pred_check_branch
        %355 = sbr.rel (%p353) target = $region64
      $region63: #{bottleneck_forward.1} parent=59 // pred_region
        %p356 = scmp.lt.s32.totalorder %s18, 1
        %s357 = scalar_select %p356, %s18, 1
        %s358 = smul.addr %s357, 32
        %s359 = smul.addr %s358, 8
        %s360 = scalar_lea.vmem %s0, %s359
      $region64: #{bottleneck_forward.1} parent=59 // pred_fallthru
        _
    $region60: #{bottleneck_forward.1} parent=5 // pred_fallthru
      _
    %p361 = scmp.le.s32.totalorder 1, %s18
    %p362 = scmp.lt.s32.totalorder %s18, 3
    %p363 = pnand %p361, %p362
    %p364 = pneg %p363
    // Predicated region
    $region65: #{bottleneck_forward.1} parent=5 // pred_check
      _
    $region66: #{bottleneck_forward.1} parent=5 // pred_check_branch
      %366 = sbr.rel (%p363) target = $region68
    $region67: #{bottleneck_forward.1} parent=5 // pred_region
      %s367 = ssub.s32 %s18, 1
      %p368 = scmp.lt.s32.totalorder %s23, 1
      %s369 = scalar_select %p368, %s23, 1
      %s370 = smul.addr %s369, 32
      %s371 = smul.addr %s370, 8
      %s372 = scalar_lea.vmem %s0, %s371
      %p373 = pneg %p44
      %p374 = pneg %p41
      %p375 = pneg %p65
      %p376 = pneg %p62
      %p377 = pneg %p86
      %p378 = pneg %p83
      %p379 = pneg %p107
      %p380 = pneg %p104
      %p381 = pneg %p128
      %p382 = pneg %p125
      %p383 = pneg %p149
      %p384 = pneg %p146
      %p385 = pneg %p170
      %p386 = pneg %p167
      %p387 = pneg %p191
      %p388 = pneg %p188
      %p389 = pneg %p212
      %p390 = pneg %p209
      %p391 = pneg %p233
      %p392 = pneg %p230
      %p393 = pneg %p254
      %p394 = pneg %p251
      %p395 = pneg %p275
      %p396 = pneg %p272
      %p397 = pneg %p301
      %p398 = pneg %p298
      %p399 = scmp.lt.s32.totalorder %s23, 1
      %s400 = scalar_select %p399, %s23, 1
      %s401 = smul.addr %s400, 32
      %s402 = smul.addr %s401, 8
      %s403 = scalar_lea.vmem %s12, %s402
      %p404 = scmp.lt.s32.totalorder %s23, 1
      %s405 = scalar_select %p404, %s23, 1
      %s406 = smul.addr %s405, 32
      %s407 = smul.addr %s406, 8
      %s408 = scalar_lea.vmem %s0, %s407
      %p409 = scmp.lt.s32.totalorder %s23, 1
      %s410 = scalar_select %p409, %s23, 1
      %s411 = smul.addr %s410, 32
      %s412 = smul.addr %s411, 8
      %s413 = scalar_lea.vmem %s12, %s412
      %v415 = vld [vmem:[%s408] sm:$0xff]
      %v416 = vld [vmem:[%s408 + $0x8] sm:$0xff]
      %v417 = vld [vmem:[%s408 + $0x10] sm:$0xff]
      %v418 = vld [vmem:[%s408 + $0x18] sm:$0xff]
      %v419 = vld [vmem:[%s408 + $0x20] sm:$0xff]
      %v420 = vld [vmem:[%s408 + $0x28] sm:$0xff]
      %v421 = vld [vmem:[%s408 + $0x30] sm:$0xff]
      %v422 = vld [vmem:[%s408 + $0x38] sm:$0xff]
      %v423 = vld [vmem:[%s408 + $0x40] sm:$0xff]
      %v424 = vld [vmem:[%s408 + $0x48] sm:$0xff]
      %v425 = vld [vmem:[%s408 + $0x50] sm:$0xff]
      %v426 = vld [vmem:[%s408 + $0x58] sm:$0xff]
      %v427 = vld [vmem:[%s408 + $0x60] sm:$0xff]
      %v428 = vld [vmem:[%s408 + $0x68] sm:$0xff]
      %v429 = vld [vmem:[%s408 + $0x70] sm:$0xff]
      %v430 = vld [vmem:[%s408 + $0x78] sm:$0xff]
      %v431 = vld [vmem:[%s408 + $0x80] sm:$0xff]
      %v432 = vld [vmem:[%s408 + $0x88] sm:$0xff]
      %v433 = vld [vmem:[%s408 + $0x90] sm:$0xff]
      %v434 = vld [vmem:[%s408 + $0x98] sm:$0xff]
      %v435 = vld [vmem:[%s408 + $0xa0] sm:$0xff]
      %v436 = vld [vmem:[%s408 + $0xa8] sm:$0xff]
      %v437 = vld [vmem:[%s408 + $0xb0] sm:$0xff]
      %v438 = vld [vmem:[%s408 + $0xb8] sm:$0xff]
      %v439 = vld [vmem:[%s408 + $0xc0] sm:$0xff]
      %v440 = vld [vmem:[%s408 + $0xc8] sm:$0xff]
      %v441 = vld [vmem:[%s408 + $0xd0] sm:$0xff]
      %v442 = vld [vmem:[%s408 + $0xd8] sm:$0xff]
      %v443 = vld [vmem:[%s408 + $0xe0] sm:$0xff]
      %v444 = vld [vmem:[%s408 + $0xe8] sm:$0xff]
      %v445 = vld [vmem:[%s408 + $0xf0] sm:$0xff]
      %v446 = vld [vmem:[%s408 + $0xf8] sm:$0xff]
      %v447 = vpack.c.bf16 %v416, %v415
      %v448 = vpack.c.bf16 %v418, %v417
      %v449 = vpack.c.bf16 %v420, %v419
      %v450 = vpack.c.bf16 %v422, %v421
      %v451 = vpack.c.bf16 %v424, %v423
      %v452 = vpack.c.bf16 %v426, %v425
      %v453 = vpack.c.bf16 %v428, %v427
      %v454 = vpack.c.bf16 %v430, %v429
      %v455 = vpack.c.bf16 %v432, %v431
      %v456 = vpack.c.bf16 %v434, %v433
      %v457 = vpack.c.bf16 %v436, %v435
      %v458 = vpack.c.bf16 %v438, %v437
      %v459 = vpack.c.bf16 %v440, %v439
      %v460 = vpack.c.bf16 %v442, %v441
      %v461 = vpack.c.bf16 %v444, %v443
      %v462 = vpack.c.bf16 %v446, %v445
      %v463 = vld [vmem:[%s1] sm:$0xf]
      %v464 = vld [vmem:[%s1 + $0x4] sm:$0xf]
      %v467 = vunpack.c.l.b16 %v463
      %v468 = vunpack.c.l.b16 %v464
      %v469 = vpack.c.b16 %v468, %v467
      %vm471 = vcmask 130048
      %v473 = vsel %vm471, %v447, 0
      %v476 = vsel %vm471, %v448, 0
      %v479 = vsel %vm471, %v449, 0
      %v482 = vsel %vm471, %v450, 0
      %v485 = vsel %vm471, %v451, 0
      %v488 = vsel %vm471, %v452, 0
      %v491 = vsel %vm471, %v453, 0
      %v494 = vsel %vm471, %v454, 0
      %v497 = vsel %vm471, %v455, 0
      %v500 = vsel %vm471, %v456, 0
      %v503 = vsel %vm471, %v457, 0
      %v506 = vsel %vm471, %v458, 0
      %v509 = vsel %vm471, %v459, 0
      %v512 = vsel %vm471, %v460, 0
      %v515 = vsel %vm471, %v461, 0
      %v518 = vsel %vm471, %v462, 0
      %520 = vmatprep.subr.bf16.mxu0 0
      %521 = vmatpush1.bf16.msra.mxu0 %v469
      %522 = vmatprep.subr.bf16.mxu0 0
      %523 = vmatpush1.bf16.msra.mxu0 0
      %524 = vmatprep.subr.bf16.mxu0 0
      %525 = vmatpush1.bf16.msra.mxu0 0
      %526 = vmatprep.subr.bf16.mxu0 0
      %527 = vmatpush1.bf16.msra.mxu0 0
      %528 = vmatprep.subr.bf16.mxu0 0
      %529 = vmatpush1.bf16.msra.mxu0 0
      %530 = vmatprep.subr.bf16.mxu0 0
      %531 = vmatpush1.bf16.msra.mxu0 0
      %532 = vmatprep.subr.bf16.mxu0 0
      %533 = vmatpush1.bf16.msra.mxu0 0
      %534 = vmatprep.subr.bf16.mxu0 0
      %535 = vmatpush1.bf16.msra.mxu0 0
      %536 = vmatprep.subr.bf16.mxu0 0
      %537 = vmatpush1.bf16.msra.mxu0 0
      %538 = vmatprep.subr.bf16.mxu0 0
      %539 = vmatpush1.bf16.msra.mxu0 0
      %540 = vmatprep.subr.bf16.mxu0 0
      %541 = vmatpush1.bf16.msra.mxu0 0
      %542 = vmatprep.subr.bf16.mxu0 0
      %543 = vmatpush1.bf16.msra.mxu0 0
      %544 = vmatprep.subr.bf16.mxu0 0
      %545 = vmatpush1.bf16.msra.mxu0 0
      %546 = vmatprep.subr.bf16.mxu0 0
      %547 = vmatpush1.bf16.msra.mxu0 0
      %548 = vmatprep.subr.bf16.mxu0 0
      %549 = vmatpush1.bf16.msra.mxu0 0
      %550 = vmatprep.subr.bf16.mxu0 0
      %551 = vmatpush1.bf16.msra.mxu0 0
      %552 = vmatprep.mubr.bf16.mxu0 0
      %553 = vmatmul.mubr.bf16.gmra.mrb[0].mxu0 %v473
      %v554 = vpop.f32.mrb[0].mxu0
      %v555 = vadd.f32 0.0, %v554
      %v556 = vpop.f32.mrb[0].mxu0
      %v557 = vpop.f32.mrb[0].mxu0
      %v558 = vadd.f32 0.0, %v557
      %v559 = vpop.f32.mrb[0].mxu0
      %560 = vmatprep.mubr.bf16.mxu0 0
      %561 = vmatmul.mubr.bf16.gmra.mrb[0].mxu0 %v476
      %v562 = vpop.f32.mrb[0].mxu0
      %v563 = vadd.f32 0.0, %v562
      %v564 = vpop.f32.mrb[0].mxu0
      %v565 = vpop.f32.mrb[0].mxu0
      %v566 = vadd.f32 0.0, %v565
      %v567 = vpop.f32.mrb[0].mxu0
      %568 = vmatprep.mubr.bf16.mxu0 0
      %569 = vmatmul.mubr.bf16.gmra.mrb[0].mxu0 %v479
      %v570 = vpop.f32.mrb[0].mxu0
      %v571 = vadd.f32 0.0, %v570
      %v572 = vpop.f32.mrb[0].mxu0
      %v573 = vpop.f32.mrb[0].mxu0
      %v574 = vadd.f32 0.0, %v573
      %v575 = vpop.f32.mrb[0].mxu0
      %576 = vmatprep.mubr.bf16.mxu0 0
      %577 = vmatmul.mubr.bf16.gmra.mrb[0].mxu0 %v482
      %v578 = vpop.f32.mrb[0].mxu0
      %v579 = vadd.f32 0.0, %v578
      %v580 = vpop.f32.mrb[0].mxu0
      %v581 = vpop.f32.mrb[0].mxu0
      %v582 = vadd.f32 0.0, %v581
      %v583 = vpop.f32.mrb[0].mxu0
      %584 = vmatprep.mubr.bf16.mxu0 0
      %585 = vmatmul.mubr.bf16.gmra.mrb[0].mxu0 %v485
      %v586 = vpop.f32.mrb[0].mxu0
      %v587 = vadd.f32 0.0, %v586
      %v588 = vpop.f32.mrb[0].mxu0
      %v589 = vpop.f32.mrb[0].mxu0
      %v590 = vadd.f32 0.0, %v589
      %v591 = vpop.f32.mrb[0].mxu0
      %592 = vmatprep.mubr.bf16.mxu0 0
      %593 = vmatmul.mubr.bf16.gmra.mrb[0].mxu0 %v488
      %v594 = vpop.f32.mrb[0].mxu0
      %v595 = vadd.f32 0.0, %v594
      %v596 = vpop.f32.mrb[0].mxu0
      %v597 = vpop.f32.mrb[0].mxu0
      %v598 = vadd.f32 0.0, %v597
      %v599 = vpop.f32.mrb[0].mxu0
      %600 = vmatprep.mubr.bf16.mxu0 0
      %601 = vmatmul.mubr.bf16.gmra.mrb[0].mxu0 %v491
      %v602 = vpop.f32.mrb[0].mxu0
      %v603 = vadd.f32 0.0, %v602
      %v604 = vpop.f32.mrb[0].mxu0
      %v605 = vpop.f32.mrb[0].mxu0
      %v606 = vadd.f32 0.0, %v605
      %v607 = vpop.f32.mrb[0].mxu0
      %608 = vmatprep.mubr.bf16.mxu0 0
      %609 = vmatmul.mubr.bf16.gmra.mrb[0].mxu0 %v494
      %v610 = vpop.f32.mrb[0].mxu0
      %v611 = vadd.f32 0.0, %v610
      %v612 = vpop.f32.mrb[0].mxu0
      %v613 = vpop.f32.mrb[0].mxu0
      %v614 = vadd.f32 0.0, %v613
      %v615 = vpop.f32.mrb[0].mxu0
      %616 = vmatprep.mubr.bf16.mxu0 0
      %617 = vmatmul.mubr.bf16.gmra.mrb[0].mxu0 %v497
      %v618 = vpop.f32.mrb[0].mxu0
      %v619 = vadd.f32 0.0, %v618
      %v620 = vpop.f32.mrb[0].mxu0
      %v621 = vpop.f32.mrb[0].mxu0
      %v622 = vadd.f32 0.0, %v621
      %v623 = vpop.f32.mrb[0].mxu0
      %624 = vmatprep.mubr.bf16.mxu0 0
      %625 = vmatmul.mubr.bf16.gmra.mrb[0].mxu0 %v500
      %v626 = vpop.f32.mrb[0].mxu0
      %v627 = vadd.f32 0.0, %v626
      %v628 = vpop.f32.mrb[0].mxu0
      %v629 = vpop.f32.mrb[0].mxu0
      %v630 = vadd.f32 0.0, %v629
      %v631 = vpop.f32.mrb[0].mxu0
      %632 = vmatprep.mubr.bf16.mxu0 0
      %633 = vmatmul.mubr.bf16.gmra.mrb[0].mxu0 %v503
      %v634 = vpop.f32.mrb[0].mxu0
      %v635 = vadd.f32 0.0, %v634
      %v636 = vpop.f32.mrb[0].mxu0
      %v637 = vpop.f32.mrb[0].mxu0
      %v638 = vadd.f32 0.0, %v637
      %v639 = vpop.f32.mrb[0].mxu0
      %640 = vmatprep.mubr.bf16.mxu0 0
      %641 = vmatmul.mubr.bf16.gmra.mrb[0].mxu0 %v506
      %v642 = vpop.f32.mrb[0].mxu0
      %v643 = vadd.f32 0.0, %v642
      %v644 = vpop.f32.mrb[0].mxu0
      %v645 = vpop.f32.mrb[0].mxu0
      %v646 = vadd.f32 0.0, %v645
      %v647 = vpop.f32.mrb[0].mxu0
      %648 = vmatprep.mubr.bf16.mxu0 0
      %649 = vmatmul.mubr.bf16.gmra.mrb[0].mxu0 %v509
      %v650 = vpop.f32.mrb[0].mxu0
      %v651 = vadd.f32 0.0, %v650
      %v652 = vpop.f32.mrb[0].mxu0
      %v653 = vpop.f32.mrb[0].mxu0
      %v654 = vadd.f32 0.0, %v653
      %v655 = vpop.f32.mrb[0].mxu0
      %656 = vmatprep.mubr.bf16.mxu0 0
      %657 = vmatmul.mubr.bf16.gmra.mrb[0].mxu0 %v512
      %v658 = vpop.f32.mrb[0].mxu0
      %v659 = vadd.f32 0.0, %v658
      %v660 = vpop.f32.mrb[0].mxu0
      %v661 = vpop.f32.mrb[0].mxu0
      %v662 = vadd.f32 0.0, %v661
      %v663 = vpop.f32.mrb[0].mxu0
      %664 = vmatprep.mubr.bf16.mxu0 0
      %665 = vmatmul.mubr.bf16.gmra.mrb[0].mxu0 %v515
      %v666 = vpop.f32.mrb[0].mxu0
      %v667 = vadd.f32 0.0, %v666
      %v668 = vpop.f32.mrb[0].mxu0
      %v669 = vpop.f32.mrb[0].mxu0
      %v670 = vadd.f32 0.0, %v669
      %v671 = vpop.f32.mrb[0].mxu0
      %672 = vmatprep.mubr.bf16.mxu0 0
      %673 = vmatmul.mubr.bf16.gmra.mrb[0].mxu0 %v518
      %v674 = vpop.f32.mrb[0].mxu0
      %v675 = vadd.f32 0.0, %v674
      %v676 = vpop.f32.mrb[0].mxu0
      %v677 = vpop.f32.mrb[0].mxu0
      %v678 = vadd.f32 0.0, %v677
      %v679 = vpop.f32.mrb[0].mxu0
      %680 = vdwg.mxu0
      %v681 = vld [vmem:[%s2] sm:$0x1]
      %v683 = vlaneseq
      %v684 = vshrl.u32 %v683, 7
      %v685 = vsub.s32 0, %v684
      %v686 = vrot.slane %v681, %v685
      %v688 = vmul.f32 %v555, %v686
      %v689 = vmul.f32 %v558, %v686
      %v690 = vmul.f32 %v563, %v686
      %v691 = vmul.f32 %v566, %v686
      %v692 = vmul.f32 %v571, %v686
      %v693 = vmul.f32 %v574, %v686
      %v694 = vmul.f32 %v579, %v686
      %v695 = vmul.f32 %v582, %v686
      %v696 = vmul.f32 %v587, %v686
      %v697 = vmul.f32 %v590, %v686
      %v698 = vmul.f32 %v595, %v686
      %v699 = vmul.f32 %v598, %v686
      %v700 = vmul.f32 %v603, %v686
      %v701 = vmul.f32 %v606, %v686
      %v702 = vmul.f32 %v611, %v686
      %v703 = vmul.f32 %v614, %v686
      %v704 = vmul.f32 %v619, %v686
      %v705 = vmul.f32 %v622, %v686
      %v706 = vmul.f32 %v627, %v686
      %v707 = vmul.f32 %v630, %v686
      %v708 = vmul.f32 %v635, %v686
      %v709 = vmul.f32 %v638, %v686
      %v710 = vmul.f32 %v643, %v686
      %v711 = vmul.f32 %v646, %v686
      %v712 = vmul.f32 %v651, %v686
      %v713 = vmul.f32 %v654, %v686
      %v714 = vmul.f32 %v659, %v686
      %v715 = vmul.f32 %v662, %v686
      %v716 = vmul.f32 %v667, %v686
      %v717 = vmul.f32 %v670, %v686
      %v718 = vmul.f32 %v675, %v686
      %v719 = vmul.f32 %v678, %v686
      %v720 = vld [vmem:[%s3] sm:$0x1]
      %v722 = vlaneseq
      %v723 = vshrl.u32 %v722, 7
      %v724 = vsub.s32 0, %v723
      %v725 = vrot.slane %v720, %v724
      %v727 = vadd.f32 %v688, %v725
      %v728 = vadd.f32 %v689, %v725
      %v729 = vadd.f32 %v690, %v725
      %v730 = vadd.f32 %v691, %v725
      %v731 = vadd.f32 %v692, %v725
      %v732 = vadd.f32 %v693, %v725
      %v733 = vadd.f32 %v694, %v725
      %v734 = vadd.f32 %v695, %v725
      %v735 = vadd.f32 %v696, %v725
      %v736 = vadd.f32 %v697, %v725
      %v737 = vadd.f32 %v698, %v725
      %v738 = vadd.f32 %v699, %v725
      %v739 = vadd.f32 %v700, %v725
      %v740 = vadd.f32 %v701, %v725
      %v741 = vadd.f32 %v702, %v725
      %v742 = vadd.f32 %v703, %v725
      %v743 = vadd.f32 %v704, %v725
      %v744 = vadd.f32 %v705, %v725
      %v745 = vadd.f32 %v706, %v725
      %v746 = vadd.f32 %v707, %v725
      %v747 = vadd.f32 %v708, %v725
      %v748 = vadd.f32 %v709, %v725
      %v749 = vadd.f32 %v710, %v725
      %v750 = vadd.f32 %v711, %v725
      %v751 = vadd.f32 %v712, %v725
      %v752 = vadd.f32 %v713, %v725
      %v753 = vadd.f32 %v714, %v725
      %v754 = vadd.f32 %v715, %v725
      %v755 = vadd.f32 %v716, %v725
      %v756 = vadd.f32 %v717, %v725
      %v757 = vadd.f32 %v718, %v725
      %v758 = vadd.f32 %v719, %v725
      %v759 = vmax.f32 %v727, 0.0
      %v760 = vmax.f32 %v728, 0.0
      %v761 = vmax.f32 %v729, 0.0
      %v762 = vmax.f32 %v730, 0.0
      %v763 = vmax.f32 %v731, 0.0
      %v764 = vmax.f32 %v732, 0.0
      %v765 = vmax.f32 %v733, 0.0
      %v766 = vmax.f32 %v734, 0.0
      %v767 = vmax.f32 %v735, 0.0
      %v768 = vmax.f32 %v736, 0.0
      %v769 = vmax.f32 %v737, 0.0
      %v770 = vmax.f32 %v738, 0.0
      %v771 = vmax.f32 %v739, 0.0
      %v772 = vmax.f32 %v740, 0.0
      %v773 = vmax.f32 %v741, 0.0
      %v774 = vmax.f32 %v742, 0.0
      %v775 = vmax.f32 %v743, 0.0
      %v776 = vmax.f32 %v744, 0.0
      %v777 = vmax.f32 %v745, 0.0
      %v778 = vmax.f32 %v746, 0.0
      %v779 = vmax.f32 %v747, 0.0
      %v780 = vmax.f32 %v748, 0.0
      %v781 = vmax.f32 %v749, 0.0
      %v782 = vmax.f32 %v750, 0.0
      %v783 = vmax.f32 %v751, 0.0
      %v784 = vmax.f32 %v752, 0.0
      %v785 = vmax.f32 %v753, 0.0
      %v786 = vmax.f32 %v754, 0.0
      %v787 = vmax.f32 %v755, 0.0
      %v788 = vmax.f32 %v756, 0.0
      %v789 = vmax.f32 %v757, 0.0
      %v790 = vmax.f32 %v758, 0.0
      %vm791 = vcmask 31744
      %792 = vst.msk [vmem:[#allocation2] sm:$0xff] %vm791, 0.0
      %793 = vst.msk [vmem:[#allocation2 + $0x8] sm:$0xff] %vm791, 0.0
      %794 = vst.msk [vmem:[#allocation2 + $0x10] sm:$0xff] %vm791, 0.0
      %795 = vst.msk [vmem:[#allocation2 + $0x18] sm:$0xff] %vm791, 0.0
      %796 = vst.msk [vmem:[#allocation2 + $0x20] sm:$0xff] %vm791, 0.0
      %797 = vst.msk [vmem:[#allocation2 + $0x28] sm:$0xff] %vm791, 0.0
      %798 = vst.msk [vmem:[#allocation2 + $0x30] sm:$0xff] %vm791, 0.0
      %799 = vst.msk [vmem:[#allocation2 + $0x38] sm:$0xff] %vm791, 0.0
      %800 = vst.msk [vmem:[#allocation2 + $0x40] sm:$0xff] %vm791, 0.0
      %801 = vst.msk [vmem:[#allocation2 + $0x48] sm:$0xff] %vm791, 0.0
      %802 = vst.msk [vmem:[#allocation2 + $0x50] sm:$0xff] %vm791, 0.0
      %803 = vst.msk [vmem:[#allocation2 + $0x58] sm:$0xff] %vm791, 0.0
      %804 = vst.msk [vmem:[#allocation2 + $0x60] sm:$0xff] %vm791, 0.0
      %805 = vst.msk [vmem:[#allocation2 + $0x68] sm:$0xff] %vm791, 0.0
      %806 = vst.msk [vmem:[#allocation2 + $0x70] sm:$0xff] %vm791, 0.0
      %807 = vst.msk [vmem:[#allocation2 + $0x78] sm:$0xff] %vm791, 0.0
      %808 = vst.msk [vmem:[#allocation2 + $0x80] sm:$0xff] %vm791, 0.0
      %809 = vst.msk [vmem:[#allocation2 + $0x88] sm:$0xff] %vm791, 0.0
      %810 = vst.msk [vmem:[#allocation2 + $0x90] sm:$0xff] %vm791, 0.0
      %811 = vst.msk [vmem:[#allocation2 + $0x98] sm:$0xff] %vm791, 0.0
      %812 = vst.msk [vmem:[#allocation2 + $0xa0] sm:$0xff] %vm791, 0.0
      %813 = vst.msk [vmem:[#allocation2 + $0xa8] sm:$0xff] %vm791, 0.0
      %814 = vst.msk [vmem:[#allocation2 + $0xb0] sm:$0xff] %vm791, 0.0
      %815 = vst.msk [vmem:[#allocation2 + $0xb8] sm:$0xff] %vm791, 0.0
      %816 = vst.msk [vmem:[#allocation2 + $0xc0] sm:$0xff] %vm791, 0.0
      %817 = vst.msk [vmem:[#allocation2 + $0xc8] sm:$0xff] %vm791, 0.0
      %818 = vst.msk [vmem:[#allocation2 + $0xd0] sm:$0xff] %vm791, 0.0
      %819 = vst.msk [vmem:[#allocation2 + $0xd8] sm:$0xff] %vm791, 0.0
      %820 = vst.msk [vmem:[#allocation2 + $0xe0] sm:$0xff] %vm791, 0.0
      %821 = vst.msk [vmem:[#allocation2 + $0xe8] sm:$0xff] %vm791, 0.0
      %822 = vst.msk [vmem:[#allocation2 + $0xf0] sm:$0xff] %vm791, 0.0
      %823 = vst.msk [vmem:[#allocation2 + $0xf8] sm:$0xff] %vm791, 0.0
      %824 = vst.msk [vmem:[#allocation2 + $0x100] sm:$0xff] %vm791, 0.0
      %825 = vst.msk [vmem:[#allocation2 + $0x108] sm:$0xff] %vm791, 0.0
      %826 = vst.msk [vmem:[#allocation2 + $0x110] sm:$0xff] %vm791, 0.0
      %827 = vst.msk [vmem:[#allocation2 + $0x118] sm:$0xff] %vm791, 0.0
      %828 = vst.msk [vmem:[#allocation2 + $0x120] sm:$0xff] %vm791, 0.0
      %829 = vst.msk [vmem:[#allocation2 + $0x128] sm:$0xff] %vm791, 0.0
      %830 = vst.msk [vmem:[#allocation2 + $0x18] sm:$0xff] %vm791, %v759
      %831 = vst.msk [vmem:[#allocation2 + $0x20] sm:$0xff] %vm791, %v760
      %832 = vst.msk [vmem:[#allocation2 + $0x28] sm:$0xff] %vm791, %v761
      %833 = vst.msk [vmem:[#allocation2 + $0x30] sm:$0xff] %vm791, %v762
      %834 = vst.msk [vmem:[#allocation2 + $0x38] sm:$0xff] %vm791, %v763
      %835 = vst.msk [vmem:[#allocation2 + $0x40] sm:$0xff] %vm791, %v764
      %836 = vst.msk [vmem:[#allocation2 + $0x48] sm:$0xff] %vm791, %v765
      %837 = vst.msk [vmem:[#allocation2 + $0x50] sm:$0xff] %vm791, %v766
      %838 = vst.msk [vmem:[#allocation2 + $0x58] sm:$0xff] %vm791, %v767
      %839 = vst.msk [vmem:[#allocation2 + $0x60] sm:$0xff] %vm791, %v768
      %840 = vst.msk [vmem:[#allocation2 + $0x68] sm:$0xff] %vm791, %v769
      %841 = vst.msk [vmem:[#allocation2 + $0x70] sm:$0xff] %vm791, %v770
      %842 = vst.msk [vmem:[#allocation2 + $0x78] sm:$0xff] %vm791, %v771
      %843 = vst.msk [vmem:[#allocation2 + $0x80] sm:$0xff] %vm791, %v772
      %844 = vst.msk [vmem:[#allocation2 + $0x88] sm:$0xff] %vm791, %v773
      %845 = vst.msk [vmem:[#allocation2 + $0x90] sm:$0xff] %vm791, %v774
      %846 = vst.msk [vmem:[#allocation2 + $0x98] sm:$0xff] %vm791, %v775
      %847 = vst.msk [vmem:[#allocation2 + $0xa0] sm:$0xff] %vm791, %v776
      %848 = vst.msk [vmem:[#allocation2 + $0xa8] sm:$0xff] %vm791, %v777
      %849 = vst.msk [vmem:[#allocation2 + $0xb0] sm:$0xff] %vm791, %v778
      %850 = vst.msk [vmem:[#allocation2 + $0xb8] sm:$0xff] %vm791, %v779
      %851 = vst.msk [vmem:[#allocation2 + $0xc0] sm:$0xff] %vm791, %v780
      %852 = vst.msk [vmem:[#allocation2 + $0xc8] sm:$0xff] %vm791, %v781
      %853 = vst.msk [vmem:[#allocation2 + $0xd0] sm:$0xff] %vm791, %v782
      %854 = vst.msk [vmem:[#allocation2 + $0xd8] sm:$0xff] %vm791, %v783
      %855 = vst.msk [vmem:[#allocation2 + $0xe0] sm:$0xff] %vm791, %v784
      %856 = vst.msk [vmem:[#allocation2 + $0xe8] sm:$0xff] %vm791, %v785
      %857 = vst.msk [vmem:[#allocation2 + $0xf0] sm:$0xff] %vm791, %v786
      %858 = vst.msk [vmem:[#allocation2 + $0xf8] sm:$0xff] %vm791, %v787
      %859 = vst.msk [vmem:[#allocation2 + $0x100] sm:$0xff] %vm791, %v788
      %860 = vst.msk [vmem:[#allocation2 + $0x108] sm:$0xff] %vm791, %v789
      %861 = vst.msk [vmem:[#allocation2 + $0x110] sm:$0xff] %vm791, %v790
      %862 = vst.msk [vmem:[#allocation3] sm:$0xff] %vm791, 0.0
      %863 = vst.msk [vmem:[#allocation3 + $0x8] sm:$0xff] %vm791, 0.0
      %864 = vst.msk [vmem:[#allocation3 + $0x10] sm:$0xff] %vm791, 0.0
      %865 = vst.msk [vmem:[#allocation3 + $0x18] sm:$0xff] %vm791, 0.0
      %866 = vst.msk [vmem:[#allocation3 + $0x20] sm:$0xff] %vm791, 0.0
      %867 = vst.msk [vmem:[#allocation3 + $0x28] sm:$0xff] %vm791, 0.0
      %868 = vst.msk [vmem:[#allocation3 + $0x30] sm:$0xff] %vm791, 0.0
      %869 = vst.msk [vmem:[#allocation3 + $0x38] sm:$0xff] %vm791, 0.0
      %870 = vst.msk [vmem:[#allocation3 + $0x40] sm:$0xff] %vm791, 0.0
      %871 = vst.msk [vmem:[#allocation3 + $0x48] sm:$0xff] %vm791, 0.0
      %872 = vst.msk [vmem:[#allocation3 + $0x50] sm:$0xff] %vm791, 0.0
      %873 = vst.msk [vmem:[#allocation3 + $0x58] sm:$0xff] %vm791, 0.0
      %874 = vst.msk [vmem:[#allocation3 + $0x60] sm:$0xff] %vm791, 0.0
      %875 = vst.msk [vmem:[#allocation3 + $0x68] sm:$0xff] %vm791, 0.0
      %876 = vst.msk [vmem:[#allocation3 + $0x70] sm:$0xff] %vm791, 0.0
      %877 = vst.msk [vmem:[#allocation3 + $0x78] sm:$0xff] %vm791, 0.0
      %878 = vst.msk [vmem:[#allocation3 + $0x80] sm:$0xff] %vm791, 0.0
      %879 = vst.msk [vmem:[#allocation3 + $0x88] sm:$0xff] %vm791, 0.0
      %880 = vst.msk [vmem:[#allocation3 + $0x90] sm:$0xff] %vm791, 0.0
      %881 = vst.msk [vmem:[#allocation3 + $0x98] sm:$0xff] %vm791, 0.0
      %882 = vst.msk [vmem:[#allocation3 + $0xa0] sm:$0xff] %vm791, 0.0
      %883 = vst.msk [vmem:[#allocation3 + $0xa8] sm:$0xff] %vm791, 0.0
      %884 = vst.msk [vmem:[#allocation3 + $0xb0] sm:$0xff] %vm791, 0.0
      %885 = vst.msk [vmem:[#allocation3 + $0xb8] sm:$0xff] %vm791, 0.0
      %886 = vst.msk [vmem:[#allocation3 + $0xc0] sm:$0xff] %vm791, 0.0
      %887 = vst.msk [vmem:[#allocation3 + $0xc8] sm:$0xff] %vm791, 0.0
      %888 = vst.msk [vmem:[#allocation3 + $0xd0] sm:$0xff] %vm791, 0.0
      %889 = vst.msk [vmem:[#allocation3 + $0xd8] sm:$0xff] %vm791, 0.0
      %890 = vst.msk [vmem:[#allocation3 + $0xe0] sm:$0xff] %vm791, 0.0
      %891 = vst.msk [vmem:[#allocation3 + $0xe8] sm:$0xff] %vm791, 0.0
      %892 = vst.msk [vmem:[#allocation3 + $0xf0] sm:$0xff] %vm791, 0.0
      %893 = vst.msk [vmem:[#allocation3 + $0xf8] sm:$0xff] %vm791, 0.0
      %v894 = vld [vmem:[#allocation2 + $0x7] sm:$0xff]
      %v895 = vld [vmem:[#allocation2 + $0xf] sm:$0xff]
      %v896 = vld [vmem:[#allocation2 + $0x17] sm:$0xff]
      %v897 = vld [vmem:[#allocation2 + $0x1f] sm:$0xff]
      %v898 = vld [vmem:[#allocation2 + $0x27] sm:$0xff]
      %v899 = vld [vmem:[#allocation2 + $0x2f] sm:$0xff]
      %v900 = vld [vmem:[#allocation2 + $0x37] sm:$0xff]
      %v901 = vld [vmem:[#allocation2 + $0x3f] sm:$0xff]
      %v902 = vld [vmem:[#allocation2 + $0x47] sm:$0xff]
      %v903 = vld [vmem:[#allocation2 + $0x4f] sm:$0xff]
      %v904 = vld [vmem:[#allocation2 + $0x57] sm:$0xff]
      %v905 = vld [vmem:[#allocation2 + $0x5f] sm:$0xff]
      %v906 = vld [vmem:[#allocation2 + $0x67] sm:$0xff]
      %v907 = vld [vmem:[#allocation2 + $0x6f] sm:$0xff]
      %v908 = vld [vmem:[#allocation2 + $0x77] sm:$0xff]
      %v909 = vld [vmem:[#allocation2 + $0x7f] sm:$0xff]
      %v910 = vld [vmem:[#allocation2 + $0x87] sm:$0xff]
      %v911 = vld [vmem:[#allocation2 + $0x8f] sm:$0xff]
      %v912 = vld [vmem:[#allocation2 + $0x97] sm:$0xff]
      %v913 = vld [vmem:[#allocation2 + $0x9f] sm:$0xff]
      %v914 = vld [vmem:[#allocation2 + $0xa7] sm:$0xff]
      %v915 = vld [vmem:[#allocation2 + $0xaf] sm:$0xff]
      %v916 = vld [vmem:[#allocation2 + $0xb7] sm:$0xff]
      %v917 = vld [vmem:[#allocation2 + $0xbf] sm:$0xff]
      %v918 = vld [vmem:[#allocation2 + $0xc7] sm:$0xff]
      %v919 = vld [vmem:[#allocation2 + $0xcf] sm:$0xff]
      %v920 = vld [vmem:[#allocation2 + $0xd7] sm:$0xff]
      %v921 = vld [vmem:[#allocation2 + $0xdf] sm:$0xff]
      %v922 = vld [vmem:[#allocation2 + $0xe7] sm:$0xff]
      %v923 = vld [vmem:[#allocation2 + $0xef] sm:$0xff]
      %v924 = vld [vmem:[#allocation2 + $0xf7] sm:$0xff]
      %v925 = vld [vmem:[#allocation2 + $0xff] sm:$0xff]
      %v926 = vld [vmem:[%s10] sm:$0xff]
      %v927 = vld [vmem:[%s10 + $0x8] sm:$0xff]
      %v928 = vld [vmem:[%s10 + $0x10] sm:$0xff]
      %v929 = vld [vmem:[%s10 + $0x18] sm:$0xff]
      %v930 = vld [vmem:[%s10 + $0x20] sm:$0xff]
      %v931 = vld [vmem:[%s10 + $0x28] sm:$0xff]
      %v932 = vld [vmem:[%s10 + $0x30] sm:$0xff]
      %v933 = vld [vmem:[%s10 + $0x38] sm:$0xff]
      %v934 = vld [vmem:[%s10 + $0x40] sm:$0xff]
      %v935 = vld [vmem:[%s10 + $0x48] sm:$0xff]
      %v936 = vld [vmem:[%s10 + $0x50] sm:$0xff]
      %v937 = vld [vmem:[%s10 + $0x58] sm:$0xff]
      %v938 = vld [vmem:[%s10 + $0x60] sm:$0xff]
      %v939 = vld [vmem:[%s10 + $0x68] sm:$0xff]
      %v940 = vld [vmem:[%s10 + $0x70] sm:$0xff]
      %v941 = vld [vmem:[%s10 + $0x78] sm:$0xff]
      %v942 = vld [vmem:[%s10 + $0x80] sm:$0xff]
      %v943 = vld [vmem:[%s10 + $0x88] sm:$0xff]
      %v944 = vld [vmem:[%s10 + $0x90] sm:$0xff]
      %v945 = vld [vmem:[%s10 + $0x98] sm:$0xff]
      %v946 = vld [vmem:[%s10 + $0xa0] sm:$0xff]
      %v947 = vld [vmem:[%s10 + $0xa8] sm:$0xff]
      %v948 = vld [vmem:[%s10 + $0xb0] sm:$0xff]
      %v949 = vld [vmem:[%s10 + $0xb8] sm:$0xff]
      %v950 = vld [vmem:[%s10 + $0xc0] sm:$0xff]
      %v951 = vld [vmem:[%s10 + $0xc8] sm:$0xff]
      %v952 = vld [vmem:[%s10 + $0xd0] sm:$0xff]
      %v953 = vld [vmem:[%s10 + $0xd8] sm:$0xff]
      %v954 = vld [vmem:[%s10 + $0xe0] sm:$0xff]
      %v955 = vld [vmem:[%s10 + $0xe8] sm:$0xff]
      %v956 = vld [vmem:[%s10 + $0xf0] sm:$0xff]
      %v957 = vld [vmem:[%s10 + $0xf8] sm:$0xff]
      %959 = vset.pattern.permute.xlu0 0
      %960 = vperm.xlu0 %959, %v926
      %v961 = vpop.permute.xlu0 %960
      %964 = vset.pattern.permute.xlu0 0
      %965 = vperm.xlu0 %964, %v927
      %v966 = vpop.permute.xlu0 %965
      %969 = vset.pattern.permute.xlu0 0
      %970 = vperm.xlu0 %969, %v928
      %v971 = vpop.permute.xlu0 %970
      %974 = vset.pattern.permute.xlu0 0
      %975 = vperm.xlu0 %974, %v929
      %v976 = vpop.permute.xlu0 %975
      %979 = vset.pattern.permute.xlu0 0
      %980 = vperm.xlu0 %979, %v930
      %v981 = vpop.permute.xlu0 %980
      %984 = vset.pattern.permute.xlu0 0
      %985 = vperm.xlu0 %984, %v931
      %v986 = vpop.permute.xlu0 %985
      %989 = vset.pattern.permute.xlu0 0
      %990 = vperm.xlu0 %989, %v932
      %v991 = vpop.permute.xlu0 %990
      %994 = vset.pattern.permute.xlu0 0
      %995 = vperm.xlu0 %994, %v933
      %v996 = vpop.permute.xlu0 %995
      %999 = vset.pattern.permute.xlu0 0
      %1000 = vperm.xlu0 %999, %v934
      %v1001 = vpop.permute.xlu0 %1000
      %1004 = vset.pattern.permute.xlu0 0
      %1005 = vperm.xlu0 %1004, %v935
      %v1006 = vpop.permute.xlu0 %1005
      %1009 = vset.pattern.permute.xlu0 0
      %1010 = vperm.xlu0 %1009, %v936
      %v1011 = vpop.permute.xlu0 %1010
      %1014 = vset.pattern.permute.xlu0 0
      %1015 = vperm.xlu0 %1014, %v937
      %v1016 = vpop.permute.xlu0 %1015
      %1019 = vset.pattern.permute.xlu0 0
      %1020 = vperm.xlu0 %1019, %v938
      %v1021 = vpop.permute.xlu0 %1020
      %1024 = vset.pattern.permute.xlu0 0
      %1025 = vperm.xlu0 %1024, %v939
      %v1026 = vpop.permute.xlu0 %1025
      %1029 = vset.pattern.permute.xlu0 0
      %1030 = vperm.xlu0 %1029, %v940
      %v1031 = vpop.permute.xlu0 %1030
      %1034 = vset.pattern.permute.xlu0 0
      %1035 = vperm.xlu0 %1034, %v941
      %v1036 = vpop.permute.xlu0 %1035
      %1039 = vset.pattern.permute.xlu0 0
      %1040 = vperm.xlu0 %1039, %v942
      %v1041 = vpop.permute.xlu0 %1040
      %1044 = vset.pattern.permute.xlu0 0
      %1045 = vperm.xlu0 %1044, %v943
      %v1046 = vpop.permute.xlu0 %1045
      %1049 = vset.pattern.permute.xlu0 0
      %1050 = vperm.xlu0 %1049, %v944
      %v1051 = vpop.permute.xlu0 %1050
      %1054 = vset.pattern.permute.xlu0 0
      %1055 = vperm.xlu0 %1054, %v945
      %v1056 = vpop.permute.xlu0 %1055
      %1059 = vset.pattern.permute.xlu0 0
      %1060 = vperm.xlu0 %1059, %v946
      %v1061 = vpop.permute.xlu0 %1060
      %1064 = vset.pattern.permute.xlu0 0
      %1065 = vperm.xlu0 %1064, %v947
      %v1066 = vpop.permute.xlu0 %1065
      %1069 = vset.pattern.permute.xlu0 0
      %1070 = vperm.xlu0 %1069, %v948
      %v1071 = vpop.permute.xlu0 %1070
      %1074 = vset.pattern.permute.xlu0 0
      %1075 = vperm.xlu0 %1074, %v949
      %v1076 = vpop.permute.xlu0 %1075
      %1079 = vset.pattern.permute.xlu0 0
      %1080 = vperm.xlu0 %1079, %v950
      %v1081 = vpop.permute.xlu0 %1080
      %1084 = vset.pattern.permute.xlu0 0
      %1085 = vperm.xlu0 %1084, %v951
      %v1086 = vpop.permute.xlu0 %1085
      %1089 = vset.pattern.permute.xlu0 0
      %1090 = vperm.xlu0 %1089, %v952
      %v1091 = vpop.permute.xlu0 %1090
      %1094 = vset.pattern.permute.xlu0 0
      %1095 = vperm.xlu0 %1094, %v953
      %v1096 = vpop.permute.xlu0 %1095
      %1099 = vset.pattern.permute.xlu0 0
      %1100 = vperm.xlu0 %1099, %v954
      %v1101 = vpop.permute.xlu0 %1100
      %1104 = vset.pattern.permute.xlu0 0
      %1105 = vperm.xlu0 %1104, %v955
      %v1106 = vpop.permute.xlu0 %1105
      %1109 = vset.pattern.permute.xlu0 0
      %1110 = vperm.xlu0 %1109, %v956
      %v1111 = vpop.permute.xlu0 %1110
      %1114 = vset.pattern.permute.xlu0 0
      %1115 = vperm.xlu0 %1114, %v957
      %v1116 = vpop.permute.xlu0 %1115
      %v1118 = vmul.f32 %v894, %v961
      %v1119 = vmul.f32 %v895, %v966
      %v1120 = vmul.f32 %v896, %v971
      %v1121 = vmul.f32 %v897, %v976
      %v1122 = vmul.f32 %v898, %v981
      %v1123 = vmul.f32 %v899, %v986
      %v1124 = vmul.f32 %v900, %v991
      %v1125 = vmul.f32 %v901, %v996
      %v1126 = vmul.f32 %v902, %v1001
      %v1127 = vmul.f32 %v903, %v1006
      %v1128 = vmul.f32 %v904, %v1011
      %v1129 = vmul.f32 %v905, %v1016
      %v1130 = vmul.f32 %v906, %v1021
      %v1131 = vmul.f32 %v907, %v1026
      %v1132 = vmul.f32 %v908, %v1031
      %v1133 = vmul.f32 %v909, %v1036
      %v1134 = vmul.f32 %v910, %v1041
      %v1135 = vmul.f32 %v911, %v1046
      %v1136 = vmul.f32 %v912, %v1051
      %v1137 = vmul.f32 %v913, %v1056
      %v1138 = vmul.f32 %v914, %v1061
      %v1139 = vmul.f32 %v915, %v1066
      %v1140 = vmul.f32 %v916, %v1071
      %v1141 = vmul.f32 %v917, %v1076
      %v1142 = vmul.f32 %v918, %v1081
      %v1143 = vmul.f32 %v919, %v1086
      %v1144 = vmul.f32 %v920, %v1091
      %v1145 = vmul.f32 %v921, %v1096
      %v1146 = vmul.f32 %v922, %v1101
      %v1147 = vmul.f32 %v923, %v1106
      %v1148 = vmul.f32 %v924, %v1111
      %v1149 = vmul.f32 %v925, %v1116
      %v1150 = vld [vmem:[#allocation3] sm:$0xff]
      %v1151 = vld [vmem:[#allocation3 + $0x8] sm:$0xff]
      %v1152 = vld [vmem:[#allocation3 + $0x10] sm:$0xff]
      %v1153 = vld [vmem:[#allocation3 + $0x18] sm:$0xff]
      %v1154 = vld [vmem:[#allocation3 + $0x20] sm:$0xff]
      %v1155 = vld [vmem:[#allocation3 + $0x28] sm:$0xff]
      %v1156 = vld [vmem:[#allocation3 + $0x30] sm:$0xff]
      %v1157 = vld [vmem:[#allocation3 + $0x38] sm:$0xff]
      %v1158 = vld [vmem:[#allocation3 + $0x40] sm:$0xff]
      %v1159 = vld [vmem:[#allocation3 + $0x48] sm:$0xff]
      %v1160 = vld [vmem:[#allocation3 + $0x50] sm:$0xff]
      %v1161 = vld [vmem:[#allocation3 + $0x58] sm:$0xff]
      %v1162 = vld [vmem:[#allocation3 + $0x60] sm:$0xff]
      %v1163 = vld [vmem:[#allocation3 + $0x68] sm:$0xff]
      %v1164 = vld [vmem:[#allocation3 + $0x70] sm:$0xff]
      %v1165 = vld [vmem:[#allocation3 + $0x78] sm:$0xff]
      %v1166 = vld [vmem:[#allocation3 + $0x80] sm:$0xff]
      %v1167 = vld [vmem:[#allocation3 + $0x88] sm:$0xff]
      %v1168 = vld [vmem:[#allocation3 + $0x90] sm:$0xff]
      %v1169 = vld [vmem:[#allocation3 + $0x98] sm:$0xff]
      %v1170 = vld [vmem:[#allocation3 + $0xa0] sm:$0xff]
      %v1171 = vld [vmem:[#allocation3 + $0xa8] sm:$0xff]
      %v1172 = vld [vmem:[#allocation3 + $0xb0] sm:$0xff]
      %v1173 = vld [vmem:[#allocation3 + $0xb8] sm:$0xff]
      %v1174 = vld [vmem:[#allocation3 + $0xc0] sm:$0xff]
      %v1175 = vld [vmem:[#allocation3 + $0xc8] sm:$0xff]
      %v1176 = vld [vmem:[#allocation3 + $0xd0] sm:$0xff]
      %v1177 = vld [vmem:[#allocation3 + $0xd8] sm:$0xff]
      %v1178 = vld [vmem:[#allocation3 + $0xe0] sm:$0xff]
      %v1179 = vld [vmem:[#allocation3 + $0xe8] sm:$0xff]
      %v1180 = vld [vmem:[#allocation3 + $0xf0] sm:$0xff]
      %v1181 = vld [vmem:[#allocation3 + $0xf8] sm:$0xff]
      %v1182 = vpack.c.bf16 %v1119, %v1118
      %v1183 = vpack.c.bf16 %v1121, %v1120
      %v1184 = vpack.c.bf16 %v1123, %v1122
      %v1185 = vpack.c.bf16 %v1125, %v1124
      %v1186 = vpack.c.bf16 %v1127, %v1126
      %v1187 = vpack.c.bf16 %v1129, %v1128
      %v1188 = vpack.c.bf16 %v1131, %v1130
      %v1189 = vpack.c.bf16 %v1133, %v1132
      %v1190 = vpack.c.bf16 %v1135, %v1134
      %v1191 = vpack.c.bf16 %v1137, %v1136
      %v1192 = vpack.c.bf16 %v1139, %v1138
      %v1193 = vpack.c.bf16 %v1141, %v1140
      %v1194 = vpack.c.bf16 %v1143, %v1142
      %v1195 = vpack.c.bf16 %v1145, %v1144
      %v1196 = vpack.c.bf16 %v1147, %v1146
      %v1197 = vpack.c.bf16 %v1149, %v1148
      %v1198 = vld [vmem:[%s4] sm:$0x3]
      %v1200 = vsel %vm791, %v1182, 0
      %v1203 = vsel %vm791, %v1183, 0
      %v1206 = vsel %vm791, %v1184, 0
      %v1209 = vsel %vm791, %v1185, 0
      %v1212 = vsel %vm791, %v1186, 0
      %v1215 = vsel %vm791, %v1187, 0
      %v1218 = vsel %vm791, %v1188, 0
      %v1221 = vsel %vm791, %v1189, 0
      %v1224 = vsel %vm791, %v1190, 0
      %v1227 = vsel %vm791, %v1191, 0
      %v1230 = vsel %vm791, %v1192, 0
      %v1233 = vsel %vm791, %v1193, 0
      %v1236 = vsel %vm791, %v1194, 0
      %v1239 = vsel %vm791, %v1195, 0
      %v1242 = vsel %vm791, %v1196, 0
      %v1245 = vsel %vm791, %v1197, 0
      %vm1247 = vcmask 1041408
      %v1249 = vsel %vm1247, %v1198, 0
      %1251 = vmatprep.subr.bf16.mxu0 0
      %1252 = vmatpush1.bf16.msra.mxu0 %v1249
      %1253 = vmatprep.subr.bf16.mxu0 0
      %1254 = vmatpush1.bf16.msra.mxu0 0
      %1255 = vmatprep.subr.bf16.mxu0 0
      %1256 = vmatpush1.bf16.msra.mxu0 0
      %1257 = vmatprep.subr.bf16.mxu0 0
      %1258 = vmatpush1.bf16.msra.mxu0 0
      %1259 = vmatprep.subr.bf16.mxu0 0
      %1260 = vmatpush1.bf16.msra.mxu0 0
      %1261 = vmatprep.subr.bf16.mxu0 0
      %1262 = vmatpush1.bf16.msra.mxu0 0
      %1263 = vmatprep.subr.bf16.mxu0 0
      %1264 = vmatpush1.bf16.msra.mxu0 0
      %1265 = vmatprep.subr.bf16.mxu0 0
      %1266 = vmatpush1.bf16.msra.mxu0 0
      %1267 = vmatprep.subr.bf16.mxu0 0
      %1268 = vmatpush1.bf16.msra.mxu0 0
      %1269 = vmatprep.subr.bf16.mxu0 0
      %1270 = vmatpush1.bf16.msra.mxu0 0
      %1271 = vmatprep.subr.bf16.mxu0 0
      %1272 = vmatpush1.bf16.msra.mxu0 0
      %1273 = vmatprep.subr.bf16.mxu0 0
      %1274 = vmatpush1.bf16.msra.mxu0 0
      %1275 = vmatprep.subr.bf16.mxu0 0
      %1276 = vmatpush1.bf16.msra.mxu0 0
      %1277 = vmatprep.subr.bf16.mxu0 0
      %1278 = vmatpush1.bf16.msra.mxu0 0
      %1279 = vmatprep.subr.bf16.mxu0 0
      %1280 = vmatpush1.bf16.msra.mxu0 0
      %1281 = vmatprep.subr.bf16.mxu0 0
      %1282 = vmatpush1.bf16.msra.mxu0 0
      %1283 = vmatprep.mubr.bf16.mxu0 0
      %1284 = vmatmul.mubr.bf16.gmra.mrb[0].mxu0 %v1200
      %v1285 = vpop.f32.mrb[0].mxu0
      %v1286 = vadd.f32 0.0, %v1285
      %v1287 = vpop.f32.mrb[0].mxu0
      %v1288 = vpop.f32.mrb[0].mxu0
      %v1289 = vadd.f32 0.0, %v1288
      %v1290 = vpop.f32.mrb[0].mxu0
      %1291 = vmatprep.mubr.bf16.mxu0 0
      %1292 = vmatmul.mubr.bf16.gmra.mrb[0].mxu0 %v1203
      %v1293 = vpop.f32.mrb[0].mxu0
      %v1294 = vadd.f32 0.0, %v1293
      %v1295 = vpop.f32.mrb[0].mxu0
      %v1296 = vpop.f32.mrb[0].mxu0
      %v1297 = vadd.f32 0.0, %v1296
      %v1298 = vpop.f32.mrb[0].mxu0
      %1299 = vmatprep.mubr.bf16.mxu0 0
      %1300 = vmatmul.mubr.bf16.gmra.mrb[0].mxu0 %v1206
      %v1301 = vpop.f32.mrb[0].mxu0
      %v1302 = vadd.f32 0.0, %v1301
      %v1303 = vpop.f32.mrb[0].mxu0
      %v1304 = vpop.f32.mrb[0].mxu0
      %v1305 = vadd.f32 0.0, %v1304
      %v1306 = vpop.f32.mrb[0].mxu0
      %1307 = vmatprep.mubr.bf16.mxu0 0
      %1308 = vmatmul.mubr.bf16.gmra.mrb[0].mxu0 %v1209
      %v1309 = vpop.f32.mrb[0].mxu0
      %v1310 = vadd.f32 0.0, %v1309
      %v1311 = vpop.f32.mrb[0].mxu0
      %v1312 = vpop.f32.mrb[0].mxu0
      %v1313 = vadd.f32 0.0, %v1312
      %v1314 = vpop.f32.mrb[0].mxu0
      %1315 = vmatprep.mubr.bf16.mxu0 0
      %1316 = vmatmul.mubr.bf16.gmra.mrb[0].mxu0 %v1212
      %v1317 = vpop.f32.mrb[0].mxu0
      %v1318 = vadd.f32 0.0, %v1317
      %v1319 = vpop.f32.mrb[0].mxu0
      %v1320 = vpop.f32.mrb[0].mxu0
      %v1321 = vadd.f32 0.0, %v1320
      %v1322 = vpop.f32.mrb[0].mxu0
      %1323 = vmatprep.mubr.bf16.mxu0 0
      %1324 = vmatmul.mubr.bf16.gmra.mrb[0].mxu0 %v1215
      %v1325 = vpop.f32.mrb[0].mxu0
      %v1326 = vadd.f32 0.0, %v1325
      %v1327 = vpop.f32.mrb[0].mxu0
      %v1328 = vpop.f32.mrb[0].mxu0
      %v1329 = vadd.f32 0.0, %v1328
      %v1330 = vpop.f32.mrb[0].mxu0
      %1331 = vmatprep.mubr.bf16.mxu0 0
      %1332 = vmatmul.mubr.bf16.gmra.mrb[0].mxu0 %v1218
      %v1333 = vpop.f32.mrb[0].mxu0
      %v1334 = vadd.f32 0.0, %v1333
      %v1335 = vpop.f32.mrb[0].mxu0
      %v1336 = vpop.f32.mrb[0].mxu0
      %v1337 = vadd.f32 0.0, %v1336
      %v1338 = vpop.f32.mrb[0].mxu0
      %1339 = vmatprep.mubr.bf16.mxu0 0
      %1340 = vmatmul.mubr.bf16.gmra.mrb[0].mxu0 %v1221
      %v1341 = vpop.f32.mrb[0].mxu0
      %v1342 = vadd.f32 0.0, %v1341
      %v1343 = vpop.f32.mrb[0].mxu0
      %v1344 = vpop.f32.mrb[0].mxu0
      %v1345 = vadd.f32 0.0, %v1344
      %v1346 = vpop.f32.mrb[0].mxu0
      %1347 = vmatprep.mubr.bf16.mxu0 0
      %1348 = vmatmul.mubr.bf16.gmra.mrb[0].mxu0 %v1224
      %v1349 = vpop.f32.mrb[0].mxu0
      %v1350 = vadd.f32 0.0, %v1349
      %v1351 = vpop.f32.mrb[0].mxu0
      %v1352 = vpop.f32.mrb[0].mxu0
      %v1353 = vadd.f32 0.0, %v1352
      %v1354 = vpop.f32.mrb[0].mxu0
      %1355 = vmatprep.mubr.bf16.mxu0 0
      %1356 = vmatmul.mubr.bf16.gmra.mrb[0].mxu0 %v1227
      %v1357 = vpop.f32.mrb[0].mxu0
      %v1358 = vadd.f32 0.0, %v1357
      %v1359 = vpop.f32.mrb[0].mxu0
      %v1360 = vpop.f32.mrb[0].mxu0
      %v1361 = vadd.f32 0.0, %v1360
      %v1362 = vpop.f32.mrb[0].mxu0
      %1363 = vmatprep.mubr.bf16.mxu0 0
      %1364 = vmatmul.mubr.bf16.gmra.mrb[0].mxu0 %v1230
      %v1365 = vpop.f32.mrb[0].mxu0
      %v1366 = vadd.f32 0.0, %v1365
      %v1367 = vpop.f32.mrb[0].mxu0
      %v1368 = vpop.f32.mrb[0].mxu0
      %v1369 = vadd.f32 0.0, %v1368
      %v1370 = vpop.f32.mrb[0].mxu0
      %1371 = vmatprep.mubr.bf16.mxu0 0
      %1372 = vmatmul.mubr.bf16.gmra.mrb[0].mxu0 %v1233
      %v1373 = vpop.f32.mrb[0].mxu0
      %v1374 = vadd.f32 0.0, %v1373
      %v1375 = vpop.f32.mrb[0].mxu0
      %v1376 = vpop.f32.mrb[0].mxu0
      %v1377 = vadd.f32 0.0, %v1376
      %v1378 = vpop.f32.mrb[0].mxu0
      %1379 = vmatprep.mubr.bf16.mxu0 0
      %1380 = vmatmul.mubr.bf16.gmra.mrb[0].mxu0 %v1236
      %v1381 = vpop.f32.mrb[0].mxu0
      %v1382 = vadd.f32 0.0, %v1381
      %v1383 = vpop.f32.mrb[0].mxu0
      %v1384 = vpop.f32.mrb[0].mxu0
      %v1385 = vadd.f32 0.0, %v1384
      %v1386 = vpop.f32.mrb[0].mxu0
      %1387 = vmatprep.mubr.bf16.mxu0 0
      %1388 = vmatmul.mubr.bf16.gmra.mrb[0].mxu0 %v1239
      %v1389 = vpop.f32.mrb[0].mxu0
      %v1390 = vadd.f32 0.0, %v1389
      %v1391 = vpop.f32.mrb[0].mxu0
      %v1392 = vpop.f32.mrb[0].mxu0
      %v1393 = vadd.f32 0.0, %v1392
      %v1394 = vpop.f32.mrb[0].mxu0
      %1395 = vmatprep.mubr.bf16.mxu0 0
      %1396 = vmatmul.mubr.bf16.gmra.mrb[0].mxu0 %v1242
      %v1397 = vpop.f32.mrb[0].mxu0
      %v1398 = vadd.f32 0.0, %v1397
      %v1399 = vpop.f32.mrb[0].mxu0
      %v1400 = vpop.f32.mrb[0].mxu0
      %v1401 = vadd.f32 0.0, %v1400
      %v1402 = vpop.f32.mrb[0].mxu0
      %1403 = vmatprep.mubr.bf16.mxu0 0
      %1404 = vmatmul.mubr.bf16.gmra.mrb[0].mxu0 %v1245
      %v1405 = vpop.f32.mrb[0].mxu0
      %v1406 = vadd.f32 0.0, %v1405
      %v1407 = vpop.f32.mrb[0].mxu0
      %v1408 = vpop.f32.mrb[0].mxu0
      %v1409 = vadd.f32 0.0, %v1408
      %v1410 = vpop.f32.mrb[0].mxu0
      %1411 = vdwg.mxu0
      %v1412 = vadd.f32 %v1150, %v1286
      %v1413 = vadd.f32 %v1151, %v1289
      %v1414 = vadd.f32 %v1152, %v1294
      %v1415 = vadd.f32 %v1153, %v1297
      %v1416 = vadd.f32 %v1154, %v1302
      %v1417 = vadd.f32 %v1155, %v1305
      %v1418 = vadd.f32 %v1156, %v1310
      %v1419 = vadd.f32 %v1157, %v1313
      %v1420 = vadd.f32 %v1158, %v1318
      %v1421 = vadd.f32 %v1159, %v1321
      %v1422 = vadd.f32 %v1160, %v1326
      %v1423 = vadd.f32 %v1161, %v1329
      %v1424 = vadd.f32 %v1162, %v1334
      %v1425 = vadd.f32 %v1163, %v1337
      %v1426 = vadd.f32 %v1164, %v1342
      %v1427 = vadd.f32 %v1165, %v1345
      %v1428 = vadd.f32 %v1166, %v1350
      %v1429 = vadd.f32 %v1167, %v1353
      %v1430 = vadd.f32 %v1168, %v1358
      %v1431 = vadd.f32 %v1169, %v1361
      %v1432 = vadd.f32 %v1170, %v1366
      %v1433 = vadd.f32 %v1171, %v1369
      %v1434 = vadd.f32 %v1172, %v1374
      %v1435 = vadd.f32 %v1173, %v1377
      %v1436 = vadd.f32 %v1174, %v1382
      %v1437 = vadd.f32 %v1175, %v1385
      %v1438 = vadd.f32 %v1176, %v1390
      %v1439 = vadd.f32 %v1177, %v1393
      %v1440 = vadd.f32 %v1178, %v1398
      %v1441 = vadd.f32 %v1179, %v1401
      %v1442 = vadd.f32 %v1180, %v1406
      %v1443 = vadd.f32 %v1181, %v1409
      %1444 = vst.msk [vmem:[#allocation3] sm:$0xff] %vm791, %v1412
      %1445 = vst.msk [vmem:[#allocation3 + $0x8] sm:$0xff] %vm791, %v1413
      %1446 = vst.msk [vmem:[#allocation3 + $0x10] sm:$0xff] %vm791, %v1414
      %1447 = vst.msk [vmem:[#allocation3 + $0x18] sm:$0xff] %vm791, %v1415
      %1448 = vst.msk [vmem:[#allocation3 + $0x20] sm:$0xff] %vm791, %v1416
      %1449 = vst.msk [vmem:[#allocation3 + $0x28] sm:$0xff] %vm791, %v1417
      %1450 = vst.msk [vmem:[#allocation3 + $0x30] sm:$0xff] %vm791, %v1418
      %1451 = vst.msk [vmem:[#allocation3 + $0x38] sm:$0xff] %vm791, %v1419
      %1452 = vst.msk [vmem:[#allocation3 + $0x40] sm:$0xff] %vm791, %v1420
      %1453 = vst.msk [vmem:[#allocation3 + $0x48] sm:$0xff] %vm791, %v1421
      %1454 = vst.msk [vmem:[#allocation3 + $0x50] sm:$0xff] %vm791, %v1422
      %1455 = vst.msk [vmem:[#allocation3 + $0x58] sm:$0xff] %vm791, %v1423
      %1456 = vst.msk [vmem:[#allocation3 + $0x60] sm:$0xff] %vm791, %v1424
      %1457 = vst.msk [vmem:[#allocation3 + $0x68] sm:$0xff] %vm791, %v1425
      %1458 = vst.msk [vmem:[#allocation3 + $0x70] sm:$0xff] %vm791, %v1426
      %1459 = vst.msk [vmem:[#allocation3 + $0x78] sm:$0xff] %vm791, %v1427
      %1460 = vst.msk [vmem:[#allocation3 + $0x80] sm:$0xff] %vm791, %v1428
      %1461 = vst.msk [vmem:[#allocation3 + $0x88] sm:$0xff] %vm791, %v1429
      %1462 = vst.msk [vmem:[#allocation3 + $0x90] sm:$0xff] %vm791, %v1430
      %1463 = vst.msk [vmem:[#allocation3 + $0x98] sm:$0xff] %vm791, %v1431
      %1464 = vst.msk [vmem:[#allocation3 + $0xa0] sm:$0xff] %vm791, %v1432
      %1465 = vst.msk [vmem:[#allocation3 + $0xa8] sm:$0xff] %vm791, %v1433
      %1466 = vst.msk [vmem:[#allocation3 + $0xb0] sm:$0xff] %vm791, %v1434
      %1467 = vst.msk [vmem:[#allocation3 + $0xb8] sm:$0xff] %vm791, %v1435
      %1468 = vst.msk [vmem:[#allocation3 + $0xc0] sm:$0xff] %vm791, %v1436
      %1469 = vst.msk [vmem:[#allocation3 + $0xc8] sm:$0xff] %vm791, %v1437
      %1470 = vst.msk [vmem:[#allocation3 + $0xd0] sm:$0xff] %vm791, %v1438
      %1471 = vst.msk [vmem:[#allocation3 + $0xd8] sm:$0xff] %vm791, %v1439
      %1472 = vst.msk [vmem:[#allocation3 + $0xe0] sm:$0xff] %vm791, %v1440
      %1473 = vst.msk [vmem:[#allocation3 + $0xe8] sm:$0xff] %vm791, %v1441
      %1474 = vst.msk [vmem:[#allocation3 + $0xf0] sm:$0xff] %vm791, %v1442
      %1475 = vst.msk [vmem:[#allocation3 + $0xf8] sm:$0xff] %vm791, %v1443
      %v1476 = vld [vmem:[#allocation2 + $0x8] sm:$0xff]
      %v1477 = vld [vmem:[#allocation2 + $0x10] sm:$0xff]
      %v1478 = vld [vmem:[#allocation2 + $0x18] sm:$0xff]
      %v1479 = vld [vmem:[#allocation2 + $0x20] sm:$0xff]
      %v1480 = vld [vmem:[#allocation2 + $0x28] sm:$0xff]
      %v1481 = vld [vmem:[#allocation2 + $0x30] sm:$0xff]
      %v1482 = vld [vmem:[#allocation2 + $0x38] sm:$0xff]
      %v1483 = vld [vmem:[#allocation2 + $0x40] sm:$0xff]
      %v1484 = vld [vmem:[#allocation2 + $0x48] sm:$0xff]
      %v1485 = vld [vmem:[#allocation2 + $0x50] sm:$0xff]
      %v1486 = vld [vmem:[#allocation2 + $0x58] sm:$0xff]
      %v1487 = vld [vmem:[#allocation2 + $0x60] sm:$0xff]
      %v1488 = vld [vmem:[#allocation2 + $0x68] sm:$0xff]
      %v1489 = vld [vmem:[#allocation2 + $0x70] sm:$0xff]
      %v1490 = vld [vmem:[#allocation2 + $0x78] sm:$0xff]
      %v1491 = vld [vmem:[#allocation2 + $0x80] sm:$0xff]
      %v1492 = vld [vmem:[#allocation2 + $0x88] sm:$0xff]
      %v1493 = vld [vmem:[#allocation2 + $0x90] sm:$0xff]
      %v1494 = vld [vmem:[#allocation2 + $0x98] sm:$0xff]
      %v1495 = vld [vmem:[#allocation2 + $0xa0] sm:$0xff]
      %v1496 = vld [vmem:[#allocation2 + $0xa8] sm:$0xff]
      %v1497 = vld [vmem:[#allocation2 + $0xb0] sm:$0xff]
      %v1498 = vld [vmem:[#allocation2 + $0xb8] sm:$0xff]
      %v1499 = vld [vmem:[#allocation2 + $0xc0] sm:$0xff]
      %v1500 = vld [vmem:[#allocation2 + $0xc8] sm:$0xff]
      %v1501 = vld [vmem:[#allocation2 + $0xd0] sm:$0xff]
      %v1502 = vld [vmem:[#allocation2 + $0xd8] sm:$0xff]
      %v1503 = vld [vmem:[#allocation2 + $0xe0] sm:$0xff]
      %v1504 = vld [vmem:[#allocation2 + $0xe8] sm:$0xff]
      %v1505 = vld [vmem:[#allocation2 + $0xf0] sm:$0xff]
      %v1506 = vld [vmem:[#allocation2 + $0xf8] sm:$0xff]
      %v1507 = vld [vmem:[#allocation2 + $0x100] sm:$0xff]
      %v1508 = vld [vmem:[#allocation3] sm:$0xff]
      %v1509 = vld [vmem:[#allocation3 + $0x8] sm:$0xff]
      %v1510 = vld [vmem:[#allocation3 + $0x10] sm:$0xff]
      %v1511 = vld [vmem:[#allocation3 + $0x18] sm:$0xff]
      %v1512 = vld [vmem:[#allocation3 + $0x20] sm:$0xff]
      %v1513 = vld [vmem:[#allocation3 + $0x28] sm:$0xff]
      %v1514 = vld [vmem:[#allocation3 + $0x30] sm:$0xff]
      %v1515 = vld [vmem:[#allocation3 + $0x38] sm:$0xff]
      %v1516 = vld [vmem:[#allocation3 + $0x40] sm:$0xff]
      %v1517 = vld [vmem:[#allocation3 + $0x48] sm:$0xff]
      %v1518 = vld [vmem:[#allocation3 + $0x50] sm:$0xff]
      %v1519 = vld [vmem:[#allocation3 + $0x58] sm:$0xff]
      %v1520 = vld [vmem:[#allocation3 + $0x60] sm:$0xff]
      %v1521 = vld [vmem:[#allocation3 + $0x68] sm:$0xff]
      %v1522 = vld [vmem:[#allocation3 + $0x70] sm:$0xff]
      %v1523 = vld [vmem:[#allocation3 + $0x78] sm:$0xff]
      %v1524 = vld [vmem:[#allocation3 + $0x80] sm:$0xff]
      %v1525 = vld [vmem:[#allocation3 + $0x88] sm:$0xff]
      %v1526 = vld [vmem:[#allocation3 + $0x90] sm:$0xff]
      %v1527 = vld [vmem:[#allocation3 + $0x98] sm:$0xff]
      %v1528 = vld [vmem:[#allocation3 + $0xa0] sm:$0xff]
      %v1529 = vld [vmem:[#allocation3 + $0xa8] sm:$0xff]
      %v1530 = vld [vmem:[#allocation3 + $0xb0] sm:$0xff]
      %v1531 = vld [vmem:[#allocation3 + $0xb8] sm:$0xff]
      %v1532 = vld [vmem:[#allocation3 + $0xc0] sm:$0xff]
      %v1533 = vld [vmem:[#allocation3 + $0xc8] sm:$0xff]
      %v1534 = vld [vmem:[#allocation3 + $0xd0] sm:$0xff]
      %v1535 = vld [vmem:[#allocation3 + $0xd8] sm:$0xff]
      %v1536 = vld [vmem:[#allocation3 + $0xe0] sm:$0xff]
      %v1537 = vld [vmem:[#allocation3 + $0xe8] sm:$0xff]
      %v1538 = vld [vmem:[#allocation3 + $0xf0] sm:$0xff]
      %v1539 = vld [vmem:[#allocation3 + $0xf8] sm:$0xff]
      %v1540 = vpack.c.bf16 %v1477, %v1476
      %v1541 = vpack.c.bf16 %v1479, %v1478
      %v1542 = vpack.c.bf16 %v1481, %v1480
      %v1543 = vpack.c.bf16 %v1483, %v1482
      %v1544 = vpack.c.bf16 %v1485, %v1484
      %v1545 = vpack.c.bf16 %v1487, %v1486
      %v1546 = vpack.c.bf16 %v1489, %v1488
      %v1547 = vpack.c.bf16 %v1491, %v1490
      %v1548 = vpack.c.bf16 %v1493, %v1492
      %v1549 = vpack.c.bf16 %v1495, %v1494
      %v1550 = vpack.c.bf16 %v1497, %v1496
      %v1551 = vpack.c.bf16 %v1499, %v1498
      %v1552 = vpack.c.bf16 %v1501, %v1500
      %v1553 = vpack.c.bf16 %v1503, %v1502
      %v1554 = vpack.c.bf16 %v1505, %v1504
      %v1555 = vpack.c.bf16 %v1507, %v1506
      %s1556 = scalar_lea.vmem %s4, 2
      %v1557 = vld [vmem:[%s1556] sm:$0x3]
      %v1559 = vsel %vm791, %v1540, 0
      %v1562 = vsel %vm791, %v1541, 0
      %v1565 = vsel %vm791, %v1542, 0
      %v1568 = vsel %vm791, %v1543, 0
      %v1571 = vsel %vm791, %v1544, 0
      %v1574 = vsel %vm791, %v1545, 0
      %v1577 = vsel %vm791, %v1546, 0
      %v1580 = vsel %vm791, %v1547, 0
      %v1583 = vsel %vm791, %v1548, 0
      %v1586 = vsel %vm791, %v1549, 0
      %v1589 = vsel %vm791, %v1550, 0
      %v1592 = vsel %vm791, %v1551, 0
      %v1595 = vsel %vm791, %v1552, 0
      %v1598 = vsel %vm791, %v1553, 0
      %v1601 = vsel %vm791, %v1554, 0
      %v1604 = vsel %vm791, %v1555, 0
      %v1607 = vsel %vm1247, %v1557, 0
      %1609 = vmatprep.subr.bf16.mxu0 0
      %1610 = vmatpush1.bf16.msra.mxu0 %v1607
      %1611 = vmatprep.subr.bf16.mxu0 0
      %1612 = vmatpush1.bf16.msra.mxu0 0
      %1613 = vmatprep.subr.bf16.mxu0 0
      %1614 = vmatpush1.bf16.msra.mxu0 0
      %1615 = vmatprep.subr.bf16.mxu0 0
      %1616 = vmatpush1.bf16.msra.mxu0 0
      %1617 = vmatprep.subr.bf16.mxu0 0
      %1618 = vmatpush1.bf16.msra.mxu0 0
      %1619 = vmatprep.subr.bf16.mxu0 0
      %1620 = vmatpush1.bf16.msra.mxu0 0
      %1621 = vmatprep.subr.bf16.mxu0 0
      %1622 = vmatpush1.bf16.msra.mxu0 0
      %1623 = vmatprep.subr.bf16.mxu0 0
      %1624 = vmatpush1.bf16.msra.mxu0 0
      %1625 = vmatprep.subr.bf16.mxu0 0
      %1626 = vmatpush1.bf16.msra.mxu0 0
      %1627 = vmatprep.subr.bf16.mxu0 0
      %1628 = vmatpush1.bf16.msra.mxu0 0
      %1629 = vmatprep.subr.bf16.mxu0 0
      %1630 = vmatpush1.bf16.msra.mxu0 0
      %1631 = vmatprep.subr.bf16.mxu0 0
      %1632 = vmatpush1.bf16.msra.mxu0 0
      %1633 = vmatprep.subr.bf16.mxu0 0
      %1634 = vmatpush1.bf16.msra.mxu0 0
      %1635 = vmatprep.subr.bf16.mxu0 0
      %1636 = vmatpush1.bf16.msra.mxu0 0
      %1637 = vmatprep.subr.bf16.mxu0 0
      %1638 = vmatpush1.bf16.msra.mxu0 0
      %1639 = vmatprep.subr.bf16.mxu0 0
      %1640 = vmatpush1.bf16.msra.mxu0 0
      %1641 = vmatprep.mubr.bf16.mxu0 0
      %1642 = vmatmul.mubr.bf16.gmra.mrb[0].mxu0 %v1559
      %v1643 = vpop.f32.mrb[0].mxu0
      %v1644 = vadd.f32 0.0, %v1643
      %v1645 = vpop.f32.mrb[0].mxu0
      %v1646 = vpop.f32.mrb[0].mxu0
      %v1647 = vadd.f32 0.0, %v1646
      %v1648 = vpop.f32.mrb[0].mxu0
      %1649 = vmatprep.mubr.bf16.mxu0 0
      %1650 = vmatmul.mubr.bf16.gmra.mrb[0].mxu0 %v1562
      %v1651 = vpop.f32.mrb[0].mxu0
      %v1652 = vadd.f32 0.0, %v1651
      %v1653 = vpop.f32.mrb[0].mxu0
      %v1654 = vpop.f32.mrb[0].mxu0
      %v1655 = vadd.f32 0.0, %v1654
      %v1656 = vpop.f32.mrb[0].mxu0
      %1657 = vmatprep.mubr.bf16.mxu0 0
      %1658 = vmatmul.mubr.bf16.gmra.mrb[0].mxu0 %v1565
      %v1659 = vpop.f32.mrb[0].mxu0
      %v1660 = vadd.f32 0.0, %v1659
      %v1661 = vpop.f32.mrb[0].mxu0
      %v1662 = vpop.f32.mrb[0].mxu0
      %v1663 = vadd.f32 0.0, %v1662
      %v1664 = vpop.f32.mrb[0].mxu0
      %1665 = vmatprep.mubr.bf16.mxu0 0
      %1666 = vmatmul.mubr.bf16.gmra.mrb[0].mxu0 %v1568
      %v1667 = vpop.f32.mrb[0].mxu0
      %v1668 = vadd.f32 0.0, %v1667
      %v1669 = vpop.f32.mrb[0].mxu0
      %v1670 = vpop.f32.mrb[0].mxu0
      %v1671 = vadd.f32 0.0, %v1670
      %v1672 = vpop.f32.mrb[0].mxu0
      %1673 = vmatprep.mubr.bf16.mxu0 0
      %1674 = vmatmul.mubr.bf16.gmra.mrb[0].mxu0 %v1571
      %v1675 = vpop.f32.mrb[0].mxu0
      %v1676 = vadd.f32 0.0, %v1675
      %v1677 = vpop.f32.mrb[0].mxu0
      %v1678 = vpop.f32.mrb[0].mxu0
      %v1679 = vadd.f32 0.0, %v1678
      %v1680 = vpop.f32.mrb[0].mxu0
      %1681 = vmatprep.mubr.bf16.mxu0 0
      %1682 = vmatmul.mubr.bf16.gmra.mrb[0].mxu0 %v1574
      %v1683 = vpop.f32.mrb[0].mxu0
      %v1684 = vadd.f32 0.0, %v1683
      %v1685 = vpop.f32.mrb[0].mxu0
      %v1686 = vpop.f32.mrb[0].mxu0
      %v1687 = vadd.f32 0.0, %v1686
      %v1688 = vpop.f32.mrb[0].mxu0
      %1689 = vmatprep.mubr.bf16.mxu0 0
      %1690 = vmatmul.mubr.bf16.gmra.mrb[0].mxu0 %v1577
      %v1691 = vpop.f32.mrb[0].mxu0
      %v1692 = vadd.f32 0.0, %v1691
      %v1693 = vpop.f32.mrb[0].mxu0
      %v1694 = vpop.f32.mrb[0].mxu0
      %v1695 = vadd.f32 0.0, %v1694
      %v1696 = vpop.f32.mrb[0].mxu0
      %1697 = vmatprep.mubr.bf16.mxu0 0
      %1698 = vmatmul.mubr.bf16.gmra.mrb[0].mxu0 %v1580
      %v1699 = vpop.f32.mrb[0].mxu0
      %v1700 = vadd.f32 0.0, %v1699
      %v1701 = vpop.f32.mrb[0].mxu0
      %v1702 = vpop.f32.mrb[0].mxu0
      %v1703 = vadd.f32 0.0, %v1702
      %v1704 = vpop.f32.mrb[0].mxu0
      %1705 = vmatprep.mubr.bf16.mxu0 0
      %1706 = vmatmul.mubr.bf16.gmra.mrb[0].mxu0 %v1583
      %v1707 = vpop.f32.mrb[0].mxu0
      %v1708 = vadd.f32 0.0, %v1707
      %v1709 = vpop.f32.mrb[0].mxu0
      %v1710 = vpop.f32.mrb[0].mxu0
      %v1711 = vadd.f32 0.0, %v1710
      %v1712 = vpop.f32.mrb[0].mxu0
      %1713 = vmatprep.mubr.bf16.mxu0 0
      %1714 = vmatmul.mubr.bf16.gmra.mrb[0].mxu0 %v1586
      %v1715 = vpop.f32.mrb[0].mxu0
      %v1716 = vadd.f32 0.0, %v1715
      %v1717 = vpop.f32.mrb[0].mxu0
      %v1718 = vpop.f32.mrb[0].mxu0
      %v1719 = vadd.f32 0.0, %v1718
      %v1720 = vpop.f32.mrb[0].mxu0
      %1721 = vmatprep.mubr.bf16.mxu0 0
      %1722 = vmatmul.mubr.bf16.gmra.mrb[0].mxu0 %v1589
      %v1723 = vpop.f32.mrb[0].mxu0
      %v1724 = vadd.f32 0.0, %v1723
      %v1725 = vpop.f32.mrb[0].mxu0
      %v1726 = vpop.f32.mrb[0].mxu0
      %v1727 = vadd.f32 0.0, %v1726
      %v1728 = vpop.f32.mrb[0].mxu0
      %1729 = vmatprep.mubr.bf16.mxu0 0
      %1730 = vmatmul.mubr.bf16.gmra.mrb[0].mxu0 %v1592
      %v1731 = vpop.f32.mrb[0].mxu0
      %v1732 = vadd.f32 0.0, %v1731
      %v1733 = vpop.f32.mrb[0].mxu0
      %v1734 = vpop.f32.mrb[0].mxu0
      %v1735 = vadd.f32 0.0, %v1734
      %v1736 = vpop.f32.mrb[0].mxu0
      %1737 = vmatprep.mubr.bf16.mxu0 0
      %1738 = vmatmul.mubr.bf16.gmra.mrb[0].mxu0 %v1595
      %v1739 = vpop.f32.mrb[0].mxu0
      %v1740 = vadd.f32 0.0, %v1739
      %v1741 = vpop.f32.mrb[0].mxu0
      %v1742 = vpop.f32.mrb[0].mxu0
      %v1743 = vadd.f32 0.0, %v1742
      %v1744 = vpop.f32.mrb[0].mxu0
      %1745 = vmatprep.mubr.bf16.mxu0 0
      %1746 = vmatmul.mubr.bf16.gmra.mrb[0].mxu0 %v1598
      %v1747 = vpop.f32.mrb[0].mxu0
      %v1748 = vadd.f32 0.0, %v1747
      %v1749 = vpop.f32.mrb[0].mxu0
      %v1750 = vpop.f32.mrb[0].mxu0
      %v1751 = vadd.f32 0.0, %v1750
      %v1752 = vpop.f32.mrb[0].mxu0
      %1753 = vmatprep.mubr.bf16.mxu0 0
      %1754 = vmatmul.mubr.bf16.gmra.mrb[0].mxu0 %v1601
      %v1755 = vpop.f32.mrb[0].mxu0
      %v1756 = vadd.f32 0.0, %v1755
      %v1757 = vpop.f32.mrb[0].mxu0
      %v1758 = vpop.f32.mrb[0].mxu0
      %v1759 = vadd.f32 0.0, %v1758
      %v1760 = vpop.f32.mrb[0].mxu0
      %1761 = vmatprep.mubr.bf16.mxu0 0
      %1762 = vmatmul.mubr.bf16.gmra.mrb[0].mxu0 %v1604
      %v1763 = vpop.f32.mrb[0].mxu0
      %v1764 = vadd.f32 0.0, %v1763
      %v1765 = vpop.f32.mrb[0].mxu0
      %v1766 = vpop.f32.mrb[0].mxu0
      %v1767 = vadd.f32 0.0, %v1766
      %v1768 = vpop.f32.mrb[0].mxu0
      %1769 = vdwg.mxu0
      %v1770 = vadd.f32 %v1508, %v1644
      %v1771 = vadd.f32 %v1509, %v1647
      %v1772 = vadd.f32 %v1510, %v1652
      %v1773 = vadd.f32 %v1511, %v1655
      %v1774 = vadd.f32 %v1512, %v1660
      %v1775 = vadd.f32 %v1513, %v1663
      %v1776 = vadd.f32 %v1514, %v1668
      %v1777 = vadd.f32 %v1515, %v1671
      %v1778 = vadd.f32 %v1516, %v1676
      %v1779 = vadd.f32 %v1517, %v1679
      %v1780 = vadd.f32 %v1518, %v1684
      %v1781 = vadd.f32 %v1519, %v1687
      %v1782 = vadd.f32 %v1520, %v1692
      %v1783 = vadd.f32 %v1521, %v1695
      %v1784 = vadd.f32 %v1522, %v1700
      %v1785 = vadd.f32 %v1523, %v1703
      %v1786 = vadd.f32 %v1524, %v1708
      %v1787 = vadd.f32 %v1525, %v1711
      %v1788 = vadd.f32 %v1526, %v1716
      %v1789 = vadd.f32 %v1527, %v1719
      %v1790 = vadd.f32 %v1528, %v1724
      %v1791 = vadd.f32 %v1529, %v1727
      %v1792 = vadd.f32 %v1530, %v1732
      %v1793 = vadd.f32 %v1531, %v1735
      %v1794 = vadd.f32 %v1532, %v1740
      %v1795 = vadd.f32 %v1533, %v1743
      %v1796 = vadd.f32 %v1534, %v1748
      %v1797 = vadd.f32 %v1535, %v1751
      %v1798 = vadd.f32 %v1536, %v1756
      %v1799 = vadd.f32 %v1537, %v1759
      %v1800 = vadd.f32 %v1538, %v1764
      %v1801 = vadd.f32 %v1539, %v1767
      %1802 = vst.msk [vmem:[#allocation3] sm:$0xff] %vm791, %v1770
      %1803 = vst.msk [vmem:[#allocation3 + $0x8] sm:$0xff] %vm791, %v1771
      %1804 = vst.msk [vmem:[#allocation3 + $0x10] sm:$0xff] %vm791, %v1772
      %1805 = vst.msk [vmem:[#allocation3 + $0x18] sm:$0xff] %vm791, %v1773
      %1806 = vst.msk [vmem:[#allocation3 + $0x20] sm:$0xff] %vm791, %v1774
      %1807 = vst.msk [vmem:[#allocation3 + $0x28] sm:$0xff] %vm791, %v1775
      %1808 = vst.msk [vmem:[#allocation3 + $0x30] sm:$0xff] %vm791, %v1776
      %1809 = vst.msk [vmem:[#allocation3 + $0x38] sm:$0xff] %vm791, %v1777
      %1810 = vst.msk [vmem:[#allocation3 + $0x40] sm:$0xff] %vm791, %v1778
      %1811 = vst.msk [vmem:[#allocation3 + $0x48] sm:$0xff] %vm791, %v1779
      %1812 = vst.msk [vmem:[#allocation3 + $0x50] sm:$0xff] %vm791, %v1780
      %1813 = vst.msk [vmem:[#allocation3 + $0x58] sm:$0xff] %vm791, %v1781
      %1814 = vst.msk [vmem:[#allocation3 + $0x60] sm:$0xff] %vm791, %v1782
      %1815 = vst.msk [vmem:[#allocation3 + $0x68] sm:$0xff] %vm791, %v1783
      %1816 = vst.msk [vmem:[#allocation3 + $0x70] sm:$0xff] %vm791, %v1784
      %1817 = vst.msk [vmem:[#allocation3 + $0x78] sm:$0xff] %vm791, %v1785
      %1818 = vst.msk [vmem:[#allocation3 + $0x80] sm:$0xff] %vm791, %v1786
      %1819 = vst.msk [vmem:[#allocation3 + $0x88] sm:$0xff] %vm791, %v1787
      %1820 = vst.msk [vmem:[#allocation3 + $0x90] sm:$0xff] %vm791, %v1788
      %1821 = vst.msk [vmem:[#allocation3 + $0x98] sm:$0xff] %vm791, %v1789
      %1822 = vst.msk [vmem:[#allocation3 + $0xa0] sm:$0xff] %vm791, %v1790
      %1823 = vst.msk [vmem:[#allocation3 + $0xa8] sm:$0xff] %vm791, %v1791
      %1824 = vst.msk [vmem:[#allocation3 + $0xb0] sm:$0xff] %vm791, %v1792
      %1825 = vst.msk [vmem:[#allocation3 + $0xb8] sm:$0xff] %vm791, %v1793
      %1826 = vst.msk [vmem:[#allocation3 + $0xc0] sm:$0xff] %vm791, %v1794
      %1827 = vst.msk [vmem:[#allocation3 + $0xc8] sm:$0xff] %vm791, %v1795
      %1828 = vst.msk [vmem:[#allocation3 + $0xd0] sm:$0xff] %vm791, %v1796
      %1829 = vst.msk [vmem:[#allocation3 + $0xd8] sm:$0xff] %vm791, %v1797
      %1830 = vst.msk [vmem:[#allocation3 + $0xe0] sm:$0xff] %vm791, %v1798
      %1831 = vst.msk [vmem:[#allocation3 + $0xe8] sm:$0xff] %vm791, %v1799
      %1832 = vst.msk [vmem:[#allocation3 + $0xf0] sm:$0xff] %vm791, %v1800
      %1833 = vst.msk [vmem:[#allocation3 + $0xf8] sm:$0xff] %vm791, %v1801
      %v1834 = vld [vmem:[#allocation2 + $0x9] sm:$0xff]
      %v1835 = vld [vmem:[#allocation2 + $0x11] sm:$0xff]
      %v1836 = vld [vmem:[#allocation2 + $0x19] sm:$0xff]
      %v1837 = vld [vmem:[#allocation2 + $0x21] sm:$0xff]
      %v1838 = vld [vmem:[#allocation2 + $0x29] sm:$0xff]
      %v1839 = vld [vmem:[#allocation2 + $0x31] sm:$0xff]
      %v1840 = vld [vmem:[#allocation2 + $0x39] sm:$0xff]
      %v1841 = vld [vmem:[#allocation2 + $0x41] sm:$0xff]
      %v1842 = vld [vmem:[#allocation2 + $0x49] sm:$0xff]
      %v1843 = vld [vmem:[#allocation2 + $0x51] sm:$0xff]
      %v1844 = vld [vmem:[#allocation2 + $0x59] sm:$0xff]
      %v1845 = vld [vmem:[#allocation2 + $0x61] sm:$0xff]
      %v1846 = vld [vmem:[#allocation2 + $0x69] sm:$0xff]
      %v1847 = vld [vmem:[#allocation2 + $0x71] sm:$0xff]
      %v1848 = vld [vmem:[#allocation2 + $0x79] sm:$0xff]
      %v1849 = vld [vmem:[#allocation2 + $0x81] sm:$0xff]
      %v1850 = vld [vmem:[#allocation2 + $0x89] sm:$0xff]
      %v1851 = vld [vmem:[#allocation2 + $0x91] sm:$0xff]
      %v1852 = vld [vmem:[#allocation2 + $0x99] sm:$0xff]
      %v1853 = vld [vmem:[#allocation2 + $0xa1] sm:$0xff]
      %v1854 = vld [vmem:[#allocation2 + $0xa9] sm:$0xff]
      %v1855 = vld [vmem:[#allocation2 + $0xb1] sm:$0xff]
      %v1856 = vld [vmem:[#allocation2 + $0xb9] sm:$0xff]
      %v1857 = vld [vmem:[#allocation2 + $0xc1] sm:$0xff]
      %v1858 = vld [vmem:[#allocation2 + $0xc9] sm:$0xff]
      %v1859 = vld [vmem:[#allocation2 + $0xd1] sm:$0xff]
      %v1860 = vld [vmem:[#allocation2 + $0xd9] sm:$0xff]
      %v1861 = vld [vmem:[#allocation2 + $0xe1] sm:$0xff]
      %v1862 = vld [vmem:[#allocation2 + $0xe9] sm:$0xff]
      %v1863 = vld [vmem:[#allocation2 + $0xf1] sm:$0xff]
      %v1864 = vld [vmem:[#allocation2 + $0xf9] sm:$0xff]
      %v1865 = vld [vmem:[#allocation2 + $0x101] sm:$0xff]
      %v1866 = vld [vmem:[%s11] sm:$0xff]
      %v1867 = vld [vmem:[%s11 + $0x8] sm:$0xff]
      %v1868 = vld [vmem:[%s11 + $0x10] sm:$0xff]
      %v1869 = vld [vmem:[%s11 + $0x18] sm:$0xff]
      %v1870 = vld [vmem:[%s11 + $0x20] sm:$0xff]
      %v1871 = vld [vmem:[%s11 + $0x28] sm:$0xff]
      %v1872 = vld [vmem:[%s11 + $0x30] sm:$0xff]
      %v1873 = vld [vmem:[%s11 + $0x38] sm:$0xff]
      %v1874 = vld [vmem:[%s11 + $0x40] sm:$0xff]
      %v1875 = vld [vmem:[%s11 + $0x48] sm:$0xff]
      %v1876 = vld [vmem:[%s11 + $0x50] sm:$0xff]
      %v1877 = vld [vmem:[%s11 + $0x58] sm:$0xff]
      %v1878 = vld [vmem:[%s11 + $0x60] sm:$0xff]
      %v1879 = vld [vmem:[%s11 + $0x68] sm:$0xff]
      %v1880 = vld [vmem:[%s11 + $0x70] sm:$0xff]
      %v1881 = vld [vmem:[%s11 + $0x78] sm:$0xff]
      %v1882 = vld [vmem:[%s11 + $0x80] sm:$0xff]
      %v1883 = vld [vmem:[%s11 + $0x88] sm:$0xff]
      %v1884 = vld [vmem:[%s11 + $0x90] sm:$0xff]
      %v1885 = vld [vmem:[%s11 + $0x98] sm:$0xff]
      %v1886 = vld [vmem:[%s11 + $0xa0] sm:$0xff]
      %v1887 = vld [vmem:[%s11 + $0xa8] sm:$0xff]
      %v1888 = vld [vmem:[%s11 + $0xb0] sm:$0xff]
      %v1889 = vld [vmem:[%s11 + $0xb8] sm:$0xff]
      %v1890 = vld [vmem:[%s11 + $0xc0] sm:$0xff]
      %v1891 = vld [vmem:[%s11 + $0xc8] sm:$0xff]
      %v1892 = vld [vmem:[%s11 + $0xd0] sm:$0xff]
      %v1893 = vld [vmem:[%s11 + $0xd8] sm:$0xff]
      %v1894 = vld [vmem:[%s11 + $0xe0] sm:$0xff]
      %v1895 = vld [vmem:[%s11 + $0xe8] sm:$0xff]
      %v1896 = vld [vmem:[%s11 + $0xf0] sm:$0xff]
      %v1897 = vld [vmem:[%s11 + $0xf8] sm:$0xff]
      %1899 = vset.pattern.permute.xlu0 0
      %1900 = vperm.xlu0 %1899, %v1866
      %v1901 = vpop.permute.xlu0 %1900
      %1904 = vset.pattern.permute.xlu0 0
      %1905 = vperm.xlu0 %1904, %v1867
      %v1906 = vpop.permute.xlu0 %1905
      %1909 = vset.pattern.permute.xlu0 0
      %1910 = vperm.xlu0 %1909, %v1868
      %v1911 = vpop.permute.xlu0 %1910
      %1914 = vset.pattern.permute.xlu0 0
      %1915 = vperm.xlu0 %1914, %v1869
      %v1916 = vpop.permute.xlu0 %1915
      %1919 = vset.pattern.permute.xlu0 0
      %1920 = vperm.xlu0 %1919, %v1870
      %v1921 = vpop.permute.xlu0 %1920
      %1924 = vset.pattern.permute.xlu0 0
      %1925 = vperm.xlu0 %1924, %v1871
      %v1926 = vpop.permute.xlu0 %1925
      %1929 = vset.pattern.permute.xlu0 0
      %1930 = vperm.xlu0 %1929, %v1872
      %v1931 = vpop.permute.xlu0 %1930
      %1934 = vset.pattern.permute.xlu0 0
      %1935 = vperm.xlu0 %1934, %v1873
      %v1936 = vpop.permute.xlu0 %1935
      %1939 = vset.pattern.permute.xlu0 0
      %1940 = vperm.xlu0 %1939, %v1874
      %v1941 = vpop.permute.xlu0 %1940
      %1944 = vset.pattern.permute.xlu0 0
      %1945 = vperm.xlu0 %1944, %v1875
      %v1946 = vpop.permute.xlu0 %1945
      %1949 = vset.pattern.permute.xlu0 0
      %1950 = vperm.xlu0 %1949, %v1876
      %v1951 = vpop.permute.xlu0 %1950
      %1954 = vset.pattern.permute.xlu0 0
      %1955 = vperm.xlu0 %1954, %v1877
      %v1956 = vpop.permute.xlu0 %1955
      %1959 = vset.pattern.permute.xlu0 0
      %1960 = vperm.xlu0 %1959, %v1878
      %v1961 = vpop.permute.xlu0 %1960
      %1964 = vset.pattern.permute.xlu0 0
      %1965 = vperm.xlu0 %1964, %v1879
      %v1966 = vpop.permute.xlu0 %1965
      %1969 = vset.pattern.permute.xlu0 0
      %1970 = vperm.xlu0 %1969, %v1880
      %v1971 = vpop.permute.xlu0 %1970
      %1974 = vset.pattern.permute.xlu0 0
      %1975 = vperm.xlu0 %1974, %v1881
      %v1976 = vpop.permute.xlu0 %1975
      %1979 = vset.pattern.permute.xlu0 0
      %1980 = vperm.xlu0 %1979, %v1882
      %v1981 = vpop.permute.xlu0 %1980
      %1984 = vset.pattern.permute.xlu0 0
      %1985 = vperm.xlu0 %1984, %v1883
      %v1986 = vpop.permute.xlu0 %1985
      %1989 = vset.pattern.permute.xlu0 0
      %1990 = vperm.xlu0 %1989, %v1884
      %v1991 = vpop.permute.xlu0 %1990
      %1994 = vset.pattern.permute.xlu0 0
      %1995 = vperm.xlu0 %1994, %v1885
      %v1996 = vpop.permute.xlu0 %1995
      %1999 = vset.pattern.permute.xlu0 0
      %2000 = vperm.xlu0 %1999, %v1886
      %v2001 = vpop.permute.xlu0 %2000
      %2004 = vset.pattern.permute.xlu0 0
      %2005 = vperm.xlu0 %2004, %v1887
      %v2006 = vpop.permute.xlu0 %2005
      %2009 = vset.pattern.permute.xlu0 0
      %2010 = vperm.xlu0 %2009, %v1888
      %v2011 = vpop.permute.xlu0 %2010
      %2014 = vset.pattern.permute.xlu0 0
      %2015 = vperm.xlu0 %2014, %v1889
      %v2016 = vpop.permute.xlu0 %2015
      %2019 = vset.pattern.permute.xlu0 0
      %2020 = vperm.xlu0 %2019, %v1890
      %v2021 = vpop.permute.xlu0 %2020
      %2024 = vset.pattern.permute.xlu0 0
      %2025 = vperm.xlu0 %2024, %v1891
      %v2026 = vpop.permute.xlu0 %2025
      %2029 = vset.pattern.permute.xlu0 0
      %2030 = vperm.xlu0 %2029, %v1892
      %v2031 = vpop.permute.xlu0 %2030
      %2034 = vset.pattern.permute.xlu0 0
      %2035 = vperm.xlu0 %2034, %v1893
      %v2036 = vpop.permute.xlu0 %2035
      %2039 = vset.pattern.permute.xlu0 0
      %2040 = vperm.xlu0 %2039, %v1894
      %v2041 = vpop.permute.xlu0 %2040
      %2044 = vset.pattern.permute.xlu0 0
      %2045 = vperm.xlu0 %2044, %v1895
      %v2046 = vpop.permute.xlu0 %2045
      %2049 = vset.pattern.permute.xlu0 0
      %2050 = vperm.xlu0 %2049, %v1896
      %v2051 = vpop.permute.xlu0 %2050
      %2054 = vset.pattern.permute.xlu0 0
      %2055 = vperm.xlu0 %2054, %v1897
      %v2056 = vpop.permute.xlu0 %2055
      %v2058 = vmul.f32 %v1834, %v1901
      %v2059 = vmul.f32 %v1835, %v1906
      %v2060 = vmul.f32 %v1836, %v1911
      %v2061 = vmul.f32 %v1837, %v1916
      %v2062 = vmul.f32 %v1838, %v1921
      %v2063 = vmul.f32 %v1839, %v1926
      %v2064 = vmul.f32 %v1840, %v1931
      %v2065 = vmul.f32 %v1841, %v1936
      %v2066 = vmul.f32 %v1842, %v1941
      %v2067 = vmul.f32 %v1843, %v1946
      %v2068 = vmul.f32 %v1844, %v1951
      %v2069 = vmul.f32 %v1845, %v1956
      %v2070 = vmul.f32 %v1846, %v1961
      %v2071 = vmul.f32 %v1847, %v1966
      %v2072 = vmul.f32 %v1848, %v1971
      %v2073 = vmul.f32 %v1849, %v1976
      %v2074 = vmul.f32 %v1850, %v1981
      %v2075 = vmul.f32 %v1851, %v1986
      %v2076 = vmul.f32 %v1852, %v1991
      %v2077 = vmul.f32 %v1853, %v1996
      %v2078 = vmul.f32 %v1854, %v2001
      %v2079 = vmul.f32 %v1855, %v2006
      %v2080 = vmul.f32 %v1856, %v2011
      %v2081 = vmul.f32 %v1857, %v2016
      %v2082 = vmul.f32 %v1858, %v2021
      %v2083 = vmul.f32 %v1859, %v2026
      %v2084 = vmul.f32 %v1860, %v2031
      %v2085 = vmul.f32 %v1861, %v2036
      %v2086 = vmul.f32 %v1862, %v2041
      %v2087 = vmul.f32 %v1863, %v2046
      %v2088 = vmul.f32 %v1864, %v2051
      %v2089 = vmul.f32 %v1865, %v2056
      %v2090 = vld [vmem:[#allocation3] sm:$0xff]
      %v2091 = vld [vmem:[#allocation3 + $0x8] sm:$0xff]
      %v2092 = vld [vmem:[#allocation3 + $0x10] sm:$0xff]
      %v2093 = vld [vmem:[#allocation3 + $0x18] sm:$0xff]
      %v2094 = vld [vmem:[#allocation3 + $0x20] sm:$0xff]
      %v2095 = vld [vmem:[#allocation3 + $0x28] sm:$0xff]
      %v2096 = vld [vmem:[#allocation3 + $0x30] sm:$0xff]
      %v2097 = vld [vmem:[#allocation3 + $0x38] sm:$0xff]
      %v2098 = vld [vmem:[#allocation3 + $0x40] sm:$0xff]
      %v2099 = vld [vmem:[#allocation3 + $0x48] sm:$0xff]
      %v2100 = vld [vmem:[#allocation3 + $0x50] sm:$0xff]
      %v2101 = vld [vmem:[#allocation3 + $0x58] sm:$0xff]
      %v2102 = vld [vmem:[#allocation3 + $0x60] sm:$0xff]
      %v2103 = vld [vmem:[#allocation3 + $0x68] sm:$0xff]
      %v2104 = vld [vmem:[#allocation3 + $0x70] sm:$0xff]
      %v2105 = vld [vmem:[#allocation3 + $0x78] sm:$0xff]
      %v2106 = vld [vmem:[#allocation3 + $0x80] sm:$0xff]
      %v2107 = vld [vmem:[#allocation3 + $0x88] sm:$0xff]
      %v2108 = vld [vmem:[#allocation3 + $0x90] sm:$0xff]
      %v2109 = vld [vmem:[#allocation3 + $0x98] sm:$0xff]
      %v2110 = vld [vmem:[#allocation3 + $0xa0] sm:$0xff]
      %v2111 = vld [vmem:[#allocation3 + $0xa8] sm:$0xff]
      %v2112 = vld [vmem:[#allocation3 + $0xb0] sm:$0xff]
      %v2113 = vld [vmem:[#allocation3 + $0xb8] sm:$0xff]
      %v2114 = vld [vmem:[#allocation3 + $0xc0] sm:$0xff]
      %v2115 = vld [vmem:[#allocation3 + $0xc8] sm:$0xff]
      %v2116 = vld [vmem:[#allocation3 + $0xd0] sm:$0xff]
      %v2117 = vld [vmem:[#allocation3 + $0xd8] sm:$0xff]
      %v2118 = vld [vmem:[#allocation3 + $0xe0] sm:$0xff]
      %v2119 = vld [vmem:[#allocation3 + $0xe8] sm:$0xff]
      %v2120 = vld [vmem:[#allocation3 + $0xf0] sm:$0xff]
      %v2121 = vld [vmem:[#allocation3 + $0xf8] sm:$0xff]
      %v2122 = vpack.c.bf16 %v2059, %v2058
      %v2123 = vpack.c.bf16 %v2061, %v2060
      %v2124 = vpack.c.bf16 %v2063, %v2062
      %v2125 = vpack.c.bf16 %v2065, %v2064
      %v2126 = vpack.c.bf16 %v2067, %v2066
      %v2127 = vpack.c.bf16 %v2069, %v2068
      %v2128 = vpack.c.bf16 %v2071, %v2070
      %v2129 = vpack.c.bf16 %v2073, %v2072
      %v2130 = vpack.c.bf16 %v2075, %v2074
      %v2131 = vpack.c.bf16 %v2077, %v2076
      %v2132 = vpack.c.bf16 %v2079, %v2078
      %v2133 = vpack.c.bf16 %v2081, %v2080
      %v2134 = vpack.c.bf16 %v2083, %v2082
      %v2135 = vpack.c.bf16 %v2085, %v2084
      %v2136 = vpack.c.bf16 %v2087, %v2086
      %v2137 = vpack.c.bf16 %v2089, %v2088
      %s2138 = scalar_lea.vmem %s4, 4
      %v2139 = vld [vmem:[%s2138] sm:$0x3]
      %v2141 = vsel %vm791, %v2122, 0
      %v2144 = vsel %vm791, %v2123, 0
      %v2147 = vsel %vm791, %v2124, 0
      %v2150 = vsel %vm791, %v2125, 0
      %v2153 = vsel %vm791, %v2126, 0
      %v2156 = vsel %vm791, %v2127, 0
      %v2159 = vsel %vm791, %v2128, 0
      %v2162 = vsel %vm791, %v2129, 0
      %v2165 = vsel %vm791, %v2130, 0
      %v2168 = vsel %vm791, %v2131, 0
      %v2171 = vsel %vm791, %v2132, 0
      %v2174 = vsel %vm791, %v2133, 0
      %v2177 = vsel %vm791, %v2134, 0
      %v2180 = vsel %vm791, %v2135, 0
      %v2183 = vsel %vm791, %v2136, 0
      %v2186 = vsel %vm791, %v2137, 0
      %v2189 = vsel %vm1247, %v2139, 0
      %2191 = vmatprep.subr.bf16.mxu0 0
      %2192 = vmatpush1.bf16.msra.mxu0 %v2189
      %2193 = vmatprep.subr.bf16.mxu0 0
      %2194 = vmatpush1.bf16.msra.mxu0 0
      %2195 = vmatprep.subr.bf16.mxu0 0
      %2196 = vmatpush1.bf16.msra.mxu0 0
      %2197 = vmatprep.subr.bf16.mxu0 0
      %2198 = vmatpush1.bf16.msra.mxu0 0
      %2199 = vmatprep.subr.bf16.mxu0 0
      %2200 = vmatpush1.bf16.msra.mxu0 0
      %2201 = vmatprep.subr.bf16.mxu0 0
      %2202 = vmatpush1.bf16.msra.mxu0 0
      %2203 = vmatprep.subr.bf16.mxu0 0
      %2204 = vmatpush1.bf16.msra.mxu0 0
      %2205 = vmatprep.subr.bf16.mxu0 0
      %2206 = vmatpush1.bf16.msra.mxu0 0
      %2207 = vmatprep.subr.bf16.mxu0 0
      %2208 = vmatpush1.bf16.msra.mxu0 0
      %2209 = vmatprep.subr.bf16.mxu0 0
      %2210 = vmatpush1.bf16.msra.mxu0 0
      %2211 = vmatprep.subr.bf16.mxu0 0
      %2212 = vmatpush1.bf16.msra.mxu0 0
      %2213 = vmatprep.subr.bf16.mxu0 0
      %2214 = vmatpush1.bf16.msra.mxu0 0
      %2215 = vmatprep.subr.bf16.mxu0 0
      %2216 = vmatpush1.bf16.msra.mxu0 0
      %2217 = vmatprep.subr.bf16.mxu0 0
      %2218 = vmatpush1.bf16.msra.mxu0 0
      %2219 = vmatprep.subr.bf16.mxu0 0
      %2220 = vmatpush1.bf16.msra.mxu0 0
      %2221 = vmatprep.subr.bf16.mxu0 0
      %2222 = vmatpush1.bf16.msra.mxu0 0
      %2223 = vmatprep.mubr.bf16.mxu0 0
      %2224 = vmatmul.mubr.bf16.gmra.mrb[0].mxu0 %v2141
      %v2225 = vpop.f32.mrb[0].mxu0
      %v2226 = vadd.f32 0.0, %v2225
      %v2227 = vpop.f32.mrb[0].mxu0
      %v2228 = vpop.f32.mrb[0].mxu0
      %v2229 = vadd.f32 0.0, %v2228
      %v2230 = vpop.f32.mrb[0].mxu0
      %2231 = vmatprep.mubr.bf16.mxu0 0
      %2232 = vmatmul.mubr.bf16.gmra.mrb[0].mxu0 %v2144
      %v2233 = vpop.f32.mrb[0].mxu0
      %v2234 = vadd.f32 0.0, %v2233
      %v2235 = vpop.f32.mrb[0].mxu0
      %v2236 = vpop.f32.mrb[0].mxu0
      %v2237 = vadd.f32 0.0, %v2236
      %v2238 = vpop.f32.mrb[0].mxu0
      %2239 = vmatprep.mubr.bf16.mxu0 0
      %2240 = vmatmul.mubr.bf16.gmra.mrb[0].mxu0 %v2147
      %v2241 = vpop.f32.mrb[0].mxu0
      %v2242 = vadd.f32 0.0, %v2241
      %v2243 = vpop.f32.mrb[0].mxu0
      %v2244 = vpop.f32.mrb[0].mxu0
      %v2245 = vadd.f32 0.0, %v2244
      %v2246 = vpop.f32.mrb[0].mxu0
      %2247 = vmatprep.mubr.bf16.mxu0 0
      %2248 = vmatmul.mubr.bf16.gmra.mrb[0].mxu0 %v2150
      %v2249 = vpop.f32.mrb[0].mxu0
      %v2250 = vadd.f32 0.0, %v2249
      %v2251 = vpop.f32.mrb[0].mxu0
      %v2252 = vpop.f32.mrb[0].mxu0
      %v2253 = vadd.f32 0.0, %v2252
      %v2254 = vpop.f32.mrb[0].mxu0
      %2255 = vmatprep.mubr.bf16.mxu0 0
      %2256 = vmatmul.mubr.bf16.gmra.mrb[0].mxu0 %v2153
      %v2257 = vpop.f32.mrb[0].mxu0
      %v2258 = vadd.f32 0.0, %v2257
      %v2259 = vpop.f32.mrb[0].mxu0
      %v2260 = vpop.f32.mrb[0].mxu0
      %v2261 = vadd.f32 0.0, %v2260
      %v2262 = vpop.f32.mrb[0].mxu0
      %2263 = vmatprep.mubr.bf16.mxu0 0
      %2264 = vmatmul.mubr.bf16.gmra.mrb[0].mxu0 %v2156
      %v2265 = vpop.f32.mrb[0].mxu0
      %v2266 = vadd.f32 0.0, %v2265
      %v2267 = vpop.f32.mrb[0].mxu0
      %v2268 = vpop.f32.mrb[0].mxu0
      %v2269 = vadd.f32 0.0, %v2268
      %v2270 = vpop.f32.mrb[0].mxu0
      %2271 = vmatprep.mubr.bf16.mxu0 0
      %2272 = vmatmul.mubr.bf16.gmra.mrb[0].mxu0 %v2159
      %v2273 = vpop.f32.mrb[0].mxu0
      %v2274 = vadd.f32 0.0, %v2273
      %v2275 = vpop.f32.mrb[0].mxu0
      %v2276 = vpop.f32.mrb[0].mxu0
      %v2277 = vadd.f32 0.0, %v2276
      %v2278 = vpop.f32.mrb[0].mxu0
      %2279 = vmatprep.mubr.bf16.mxu0 0
      %2280 = vmatmul.mubr.bf16.gmra.mrb[0].mxu0 %v2162
      %v2281 = vpop.f32.mrb[0].mxu0
      %v2282 = vadd.f32 0.0, %v2281
      %v2283 = vpop.f32.mrb[0].mxu0
      %v2284 = vpop.f32.mrb[0].mxu0
      %v2285 = vadd.f32 0.0, %v2284
      %v2286 = vpop.f32.mrb[0].mxu0
      %2287 = vmatprep.mubr.bf16.mxu0 0
      %2288 = vmatmul.mubr.bf16.gmra.mrb[0].mxu0 %v2165
      %v2289 = vpop.f32.mrb[0].mxu0
      %v2290 = vadd.f32 0.0, %v2289
      %v2291 = vpop.f32.mrb[0].mxu0
      %v2292 = vpop.f32.mrb[0].mxu0
      %v2293 = vadd.f32 0.0, %v2292
      %v2294 = vpop.f32.mrb[0].mxu0
      %2295 = vmatprep.mubr.bf16.mxu0 0
      %2296 = vmatmul.mubr.bf16.gmra.mrb[0].mxu0 %v2168
      %v2297 = vpop.f32.mrb[0].mxu0
      %v2298 = vadd.f32 0.0, %v2297
      %v2299 = vpop.f32.mrb[0].mxu0
      %v2300 = vpop.f32.mrb[0].mxu0
      %v2301 = vadd.f32 0.0, %v2300
      %v2302 = vpop.f32.mrb[0].mxu0
      %2303 = vmatprep.mubr.bf16.mxu0 0
      %2304 = vmatmul.mubr.bf16.gmra.mrb[0].mxu0 %v2171
      %v2305 = vpop.f32.mrb[0].mxu0
      %v2306 = vadd.f32 0.0, %v2305
      %v2307 = vpop.f32.mrb[0].mxu0
      %v2308 = vpop.f32.mrb[0].mxu0
      %v2309 = vadd.f32 0.0, %v2308
      %v2310 = vpop.f32.mrb[0].mxu0
      %2311 = vmatprep.mubr.bf16.mxu0 0
      %2312 = vmatmul.mubr.bf16.gmra.mrb[0].mxu0 %v2174
      %v2313 = vpop.f32.mrb[0].mxu0
      %v2314 = vadd.f32 0.0, %v2313
      %v2315 = vpop.f32.mrb[0].mxu0
      %v2316 = vpop.f32.mrb[0].mxu0
      %v2317 = vadd.f32 0.0, %v2316
      %v2318 = vpop.f32.mrb[0].mxu0
      %2319 = vmatprep.mubr.bf16.mxu0 0
      %2320 = vmatmul.mubr.bf16.gmra.mrb[0].mxu0 %v2177
      %v2321 = vpop.f32.mrb[0].mxu0
      %v2322 = vadd.f32 0.0, %v2321
      %v2323 = vpop.f32.mrb[0].mxu0
      %v2324 = vpop.f32.mrb[0].mxu0
      %v2325 = vadd.f32 0.0, %v2324
      %v2326 = vpop.f32.mrb[0].mxu0
      %2327 = vmatprep.mubr.bf16.mxu0 0
      %2328 = vmatmul.mubr.bf16.gmra.mrb[0].mxu0 %v2180
      %v2329 = vpop.f32.mrb[0].mxu0
      %v2330 = vadd.f32 0.0, %v2329
      %v2331 = vpop.f32.mrb[0].mxu0
      %v2332 = vpop.f32.mrb[0].mxu0
      %v2333 = vadd.f32 0.0, %v2332
      %v2334 = vpop.f32.mrb[0].mxu0
      %2335 = vmatprep.mubr.bf16.mxu0 0
      %2336 = vmatmul.mubr.bf16.gmra.mrb[0].mxu0 %v2183
      %v2337 = vpop.f32.mrb[0].mxu0
      %v2338 = vadd.f32 0.0, %v2337
      %v2339 = vpop.f32.mrb[0].mxu0
      %v2340 = vpop.f32.mrb[0].mxu0
      %v2341 = vadd.f32 0.0, %v2340
      %v2342 = vpop.f32.mrb[0].mxu0
      %2343 = vmatprep.mubr.bf16.mxu0 0
      %2344 = vmatmul.mubr.bf16.gmra.mrb[0].mxu0 %v2186
      %v2345 = vpop.f32.mrb[0].mxu0
      %v2346 = vadd.f32 0.0, %v2345
      %v2347 = vpop.f32.mrb[0].mxu0
      %v2348 = vpop.f32.mrb[0].mxu0
      %v2349 = vadd.f32 0.0, %v2348
      %v2350 = vpop.f32.mrb[0].mxu0
      %2351 = vdwg.mxu0
      %v2352 = vadd.f32 %v2090, %v2226
      %v2353 = vadd.f32 %v2091, %v2229
      %v2354 = vadd.f32 %v2092, %v2234
      %v2355 = vadd.f32 %v2093, %v2237
      %v2356 = vadd.f32 %v2094, %v2242
      %v2357 = vadd.f32 %v2095, %v2245
      %v2358 = vadd.f32 %v2096, %v2250
      %v2359 = vadd.f32 %v2097, %v2253
      %v2360 = vadd.f32 %v2098, %v2258
      %v2361 = vadd.f32 %v2099, %v2261
      %v2362 = vadd.f32 %v2100, %v2266
      %v2363 = vadd.f32 %v2101, %v2269
      %v2364 = vadd.f32 %v2102, %v2274
      %v2365 = vadd.f32 %v2103, %v2277
      %v2366 = vadd.f32 %v2104, %v2282
      %v2367 = vadd.f32 %v2105, %v2285
      %v2368 = vadd.f32 %v2106, %v2290
      %v2369 = vadd.f32 %v2107, %v2293
      %v2370 = vadd.f32 %v2108, %v2298
      %v2371 = vadd.f32 %v2109, %v2301
      %v2372 = vadd.f32 %v2110, %v2306
      %v2373 = vadd.f32 %v2111, %v2309
      %v2374 = vadd.f32 %v2112, %v2314
      %v2375 = vadd.f32 %v2113, %v2317
      %v2376 = vadd.f32 %v2114, %v2322
      %v2377 = vadd.f32 %v2115, %v2325
      %v2378 = vadd.f32 %v2116, %v2330
      %v2379 = vadd.f32 %v2117, %v2333
      %v2380 = vadd.f32 %v2118, %v2338
      %v2381 = vadd.f32 %v2119, %v2341
      %v2382 = vadd.f32 %v2120, %v2346
      %v2383 = vadd.f32 %v2121, %v2349
      %2384 = vst.msk [vmem:[#allocation3] sm:$0xff] %vm791, %v2352
      %2385 = vst.msk [vmem:[#allocation3 + $0x8] sm:$0xff] %vm791, %v2353
      %2386 = vst.msk [vmem:[#allocation3 + $0x10] sm:$0xff] %vm791, %v2354
      %2387 = vst.msk [vmem:[#allocation3 + $0x18] sm:$0xff] %vm791, %v2355
      %2388 = vst.msk [vmem:[#allocation3 + $0x20] sm:$0xff] %vm791, %v2356
      %2389 = vst.msk [vmem:[#allocation3 + $0x28] sm:$0xff] %vm791, %v2357
      %2390 = vst.msk [vmem:[#allocation3 + $0x30] sm:$0xff] %vm791, %v2358
      %2391 = vst.msk [vmem:[#allocation3 + $0x38] sm:$0xff] %vm791, %v2359
      %2392 = vst.msk [vmem:[#allocation3 + $0x40] sm:$0xff] %vm791, %v2360
      %2393 = vst.msk [vmem:[#allocation3 + $0x48] sm:$0xff] %vm791, %v2361
      %2394 = vst.msk [vmem:[#allocation3 + $0x50] sm:$0xff] %vm791, %v2362
      %2395 = vst.msk [vmem:[#allocation3 + $0x58] sm:$0xff] %vm791, %v2363
      %2396 = vst.msk [vmem:[#allocation3 + $0x60] sm:$0xff] %vm791, %v2364
      %2397 = vst.msk [vmem:[#allocation3 + $0x68] sm:$0xff] %vm791, %v2365
      %2398 = vst.msk [vmem:[#allocation3 + $0x70] sm:$0xff] %vm791, %v2366
      %2399 = vst.msk [vmem:[#allocation3 + $0x78] sm:$0xff] %vm791, %v2367
      %2400 = vst.msk [vmem:[#allocation3 + $0x80] sm:$0xff] %vm791, %v2368
      %2401 = vst.msk [vmem:[#allocation3 + $0x88] sm:$0xff] %vm791, %v2369
      %2402 = vst.msk [vmem:[#allocation3 + $0x90] sm:$0xff] %vm791, %v2370
      %2403 = vst.msk [vmem:[#allocation3 + $0x98] sm:$0xff] %vm791, %v2371
      %2404 = vst.msk [vmem:[#allocation3 + $0xa0] sm:$0xff] %vm791, %v2372
      %2405 = vst.msk [vmem:[#allocation3 + $0xa8] sm:$0xff] %vm791, %v2373
      %2406 = vst.msk [vmem:[#allocation3 + $0xb0] sm:$0xff] %vm791, %v2374
      %2407 = vst.msk [vmem:[#allocation3 + $0xb8] sm:$0xff] %vm791, %v2375
      %2408 = vst.msk [vmem:[#allocation3 + $0xc0] sm:$0xff] %vm791, %v2376
      %2409 = vst.msk [vmem:[#allocation3 + $0xc8] sm:$0xff] %vm791, %v2377
      %2410 = vst.msk [vmem:[#allocation3 + $0xd0] sm:$0xff] %vm791, %v2378
      %2411 = vst.msk [vmem:[#allocation3 + $0xd8] sm:$0xff] %vm791, %v2379
      %2412 = vst.msk [vmem:[#allocation3 + $0xe0] sm:$0xff] %vm791, %v2380
      %2413 = vst.msk [vmem:[#allocation3 + $0xe8] sm:$0xff] %vm791, %v2381
      %2414 = vst.msk [vmem:[#allocation3 + $0xf0] sm:$0xff] %vm791, %v2382
      %2415 = vst.msk [vmem:[#allocation3 + $0xf8] sm:$0xff] %vm791, %v2383
      %v2416 = vld [vmem:[#allocation2 + $0x17] sm:$0xff]
      %v2417 = vld [vmem:[#allocation2 + $0x1f] sm:$0xff]
      %v2418 = vld [vmem:[#allocation2 + $0x27] sm:$0xff]
      %v2419 = vld [vmem:[#allocation2 + $0x2f] sm:$0xff]
      %v2420 = vld [vmem:[#allocation2 + $0x37] sm:$0xff]
      %v2421 = vld [vmem:[#allocation2 + $0x3f] sm:$0xff]
      %v2422 = vld [vmem:[#allocation2 + $0x47] sm:$0xff]
      %v2423 = vld [vmem:[#allocation2 + $0x4f] sm:$0xff]
      %v2424 = vld [vmem:[#allocation2 + $0x57] sm:$0xff]
      %v2425 = vld [vmem:[#allocation2 + $0x5f] sm:$0xff]
      %v2426 = vld [vmem:[#allocation2 + $0x67] sm:$0xff]
      %v2427 = vld [vmem:[#allocation2 + $0x6f] sm:$0xff]
      %v2428 = vld [vmem:[#allocation2 + $0x77] sm:$0xff]
      %v2429 = vld [vmem:[#allocation2 + $0x7f] sm:$0xff]
      %v2430 = vld [vmem:[#allocation2 + $0x87] sm:$0xff]
      %v2431 = vld [vmem:[#allocation2 + $0x8f] sm:$0xff]
      %v2432 = vld [vmem:[#allocation2 + $0x97] sm:$0xff]
      %v2433 = vld [vmem:[#allocation2 + $0x9f] sm:$0xff]
      %v2434 = vld [vmem:[#allocation2 + $0xa7] sm:$0xff]
      %v2435 = vld [vmem:[#allocation2 + $0xaf] sm:$0xff]
      %v2436 = vld [vmem:[#allocation2 + $0xb7] sm:$0xff]
      %v2437 = vld [vmem:[#allocation2 + $0xbf] sm:$0xff]
      %v2438 = vld [vmem:[#allocation2 + $0xc7] sm:$0xff]
      %v2439 = vld [vmem:[#allocation2 + $0xcf] sm:$0xff]
      %v2440 = vld [vmem:[#allocation2 + $0xd7] sm:$0xff]
      %v2441 = vld [vmem:[#allocation2 + $0xdf] sm:$0xff]
      %v2442 = vld [vmem:[#allocation2 + $0xe7] sm:$0xff]
      %v2443 = vld [vmem:[#allocation2 + $0xef] sm:$0xff]
      %v2444 = vld [vmem:[#allocation2 + $0xf7] sm:$0xff]
      %v2445 = vld [vmem:[#allocation2 + $0xff] sm:$0xff]
      %v2446 = vld [vmem:[#allocation2 + $0x107] sm:$0xff]
      %v2447 = vld [vmem:[#allocation2 + $0x10f] sm:$0xff]
      %v2448 = vld [vmem:[%s10] sm:$0xff]
      %v2449 = vld [vmem:[%s10 + $0x8] sm:$0xff]
      %v2450 = vld [vmem:[%s10 + $0x10] sm:$0xff]
      %v2451 = vld [vmem:[%s10 + $0x18] sm:$0xff]
      %v2452 = vld [vmem:[%s10 + $0x20] sm:$0xff]
      %v2453 = vld [vmem:[%s10 + $0x28] sm:$0xff]
      %v2454 = vld [vmem:[%s10 + $0x30] sm:$0xff]
      %v2455 = vld [vmem:[%s10 + $0x38] sm:$0xff]
      %v2456 = vld [vmem:[%s10 + $0x40] sm:$0xff]
      %v2457 = vld [vmem:[%s10 + $0x48] sm:$0xff]
      %v2458 = vld [vmem:[%s10 + $0x50] sm:$0xff]
      %v2459 = vld [vmem:[%s10 + $0x58] sm:$0xff]
      %v2460 = vld [vmem:[%s10 + $0x60] sm:$0xff]
      %v2461 = vld [vmem:[%s10 + $0x68] sm:$0xff]
      %v2462 = vld [vmem:[%s10 + $0x70] sm:$0xff]
      %v2463 = vld [vmem:[%s10 + $0x78] sm:$0xff]
      %v2464 = vld [vmem:[%s10 + $0x80] sm:$0xff]
      %v2465 = vld [vmem:[%s10 + $0x88] sm:$0xff]
      %v2466 = vld [vmem:[%s10 + $0x90] sm:$0xff]
      %v2467 = vld [vmem:[%s10 + $0x98] sm:$0xff]
      %v2468 = vld [vmem:[%s10 + $0xa0] sm:$0xff]
      %v2469 = vld [vmem:[%s10 + $0xa8] sm:$0xff]
      %v2470 = vld [vmem:[%s10 + $0xb0] sm:$0xff]
      %v2471 = vld [vmem:[%s10 + $0xb8] sm:$0xff]
      %v2472 = vld [vmem:[%s10 + $0xc0] sm:$0xff]
      %v2473 = vld [vmem:[%s10 + $0xc8] sm:$0xff]
      %v2474 = vld [vmem:[%s10 + $0xd0] sm:$0xff]
      %v2475 = vld [vmem:[%s10 + $0xd8] sm:$0xff]
      %v2476 = vld [vmem:[%s10 + $0xe0] sm:$0xff]
      %v2477 = vld [vmem:[%s10 + $0xe8] sm:$0xff]
      %v2478 = vld [vmem:[%s10 + $0xf0] sm:$0xff]
      %v2479 = vld [vmem:[%s10 + $0xf8] sm:$0xff]
      %2481 = vset.pattern.permute.xlu0 0
      %2482 = vperm.xlu0 %2481, %v2448
      %v2483 = vpop.permute.xlu0 %2482
      %2486 = vset.pattern.permute.xlu0 0
      %2487 = vperm.xlu0 %2486, %v2449
      %v2488 = vpop.permute.xlu0 %2487
      %2491 = vset.pattern.permute.xlu0 0
      %2492 = vperm.xlu0 %2491, %v2450
      %v2493 = vpop.permute.xlu0 %2492
      %2496 = vset.pattern.permute.xlu0 0
      %2497 = vperm.xlu0 %2496, %v2451
      %v2498 = vpop.permute.xlu0 %2497
      %2501 = vset.pattern.permute.xlu0 0
      %2502 = vperm.xlu0 %2501, %v2452
      %v2503 = vpop.permute.xlu0 %2502
      %2506 = vset.pattern.permute.xlu0 0
      %2507 = vperm.xlu0 %2506, %v2453
      %v2508 = vpop.permute.xlu0 %2507
      %2511 = vset.pattern.permute.xlu0 0
      %2512 = vperm.xlu0 %2511, %v2454
      %v2513 = vpop.permute.xlu0 %2512
      %2516 = vset.pattern.permute.xlu0 0
      %2517 = vperm.xlu0 %2516, %v2455
      %v2518 = vpop.permute.xlu0 %2517
      %2521 = vset.pattern.permute.xlu0 0
      %2522 = vperm.xlu0 %2521, %v2456
      %v2523 = vpop.permute.xlu0 %2522
      %2526 = vset.pattern.permute.xlu0 0
      %2527 = vperm.xlu0 %2526, %v2457
      %v2528 = vpop.permute.xlu0 %2527
      %2531 = vset.pattern.permute.xlu0 0
      %2532 = vperm.xlu0 %2531, %v2458
      %v2533 = vpop.permute.xlu0 %2532
      %2536 = vset.pattern.permute.xlu0 0
      %2537 = vperm.xlu0 %2536, %v2459
      %v2538 = vpop.permute.xlu0 %2537
      %2541 = vset.pattern.permute.xlu0 0
      %2542 = vperm.xlu0 %2541, %v2460
      %v2543 = vpop.permute.xlu0 %2542
      %2546 = vset.pattern.permute.xlu0 0
      %2547 = vperm.xlu0 %2546, %v2461
      %v2548 = vpop.permute.xlu0 %2547
      %2551 = vset.pattern.permute.xlu0 0
      %2552 = vperm.xlu0 %2551, %v2462
      %v2553 = vpop.permute.xlu0 %2552
      %2556 = vset.pattern.permute.xlu0 0
      %2557 = vperm.xlu0 %2556, %v2463
      %v2558 = vpop.permute.xlu0 %2557
      %2561 = vset.pattern.permute.xlu0 0
      %2562 = vperm.xlu0 %2561, %v2464
      %v2563 = vpop.permute.xlu0 %2562
      %2566 = vset.pattern.permute.xlu0 0
      %2567 = vperm.xlu0 %2566, %v2465
      %v2568 = vpop.permute.xlu0 %2567
      %2571 = vset.pattern.permute.xlu0 0
      %2572 = vperm.xlu0 %2571, %v2466
      %v2573 = vpop.permute.xlu0 %2572
      %2576 = vset.pattern.permute.xlu0 0
      %2577 = vperm.xlu0 %2576, %v2467
      %v2578 = vpop.permute.xlu0 %2577
      %2581 = vset.pattern.permute.xlu0 0
      %2582 = vperm.xlu0 %2581, %v2468
      %v2583 = vpop.permute.xlu0 %2582
      %2586 = vset.pattern.permute.xlu0 0
      %2587 = vperm.xlu0 %2586, %v2469
      %v2588 = vpop.permute.xlu0 %2587
      %2591 = vset.pattern.permute.xlu0 0
      %2592 = vperm.xlu0 %2591, %v2470
      %v2593 = vpop.permute.xlu0 %2592
      %2596 = vset.pattern.permute.xlu0 0
      %2597 = vperm.xlu0 %2596, %v2471
      %v2598 = vpop.permute.xlu0 %2597
      %2601 = vset.pattern.permute.xlu0 0
      %2602 = vperm.xlu0 %2601, %v2472
      %v2603 = vpop.permute.xlu0 %2602
      %2606 = vset.pattern.permute.xlu0 0
      %2607 = vperm.xlu0 %2606, %v2473
      %v2608 = vpop.permute.xlu0 %2607
      %2611 = vset.pattern.permute.xlu0 0
      %2612 = vperm.xlu0 %2611, %v2474
      %v2613 = vpop.permute.xlu0 %2612
      %2616 = vset.pattern.permute.xlu0 0
      %2617 = vperm.xlu0 %2616, %v2475
      %v2618 = vpop.permute.xlu0 %2617
      %2621 = vset.pattern.permute.xlu0 0
      %2622 = vperm.xlu0 %2621, %v2476
      %v2623 = vpop.permute.xlu0 %2622
      %2626 = vset.pattern.permute.xlu0 0
      %2627 = vperm.xlu0 %2626, %v2477
      %v2628 = vpop.permute.xlu0 %2627
      %2631 = vset.pattern.permute.xlu0 0
      %2632 = vperm.xlu0 %2631, %v2478
      %v2633 = vpop.permute.xlu0 %2632
      %2636 = vset.pattern.permute.xlu0 0
      %2637 = vperm.xlu0 %2636, %v2479
      %v2638 = vpop.permute.xlu0 %2637
      %v2640 = vmul.f32 %v2416, %v2483
      %v2641 = vmul.f32 %v2417, %v2488
      %v2642 = vmul.f32 %v2418, %v2493
      %v2643 = vmul.f32 %v2419, %v2498
      %v2644 = vmul.f32 %v2420, %v2503
      %v2645 = vmul.f32 %v2421, %v2508
      %v2646 = vmul.f32 %v2422, %v2513
      %v2647 = vmul.f32 %v2423, %v2518
      %v2648 = vmul.f32 %v2424, %v2523
      %v2649 = vmul.f32 %v2425, %v2528
      %v2650 = vmul.f32 %v2426, %v2533
      %v2651 = vmul.f32 %v2427, %v2538
      %v2652 = vmul.f32 %v2428, %v2543
      %v2653 = vmul.f32 %v2429, %v2548
      %v2654 = vmul.f32 %v2430, %v2553
      %v2655 = vmul.f32 %v2431, %v2558
      %v2656 = vmul.f32 %v2432, %v2563
      %v2657 = vmul.f32 %v2433, %v2568
      %v2658 = vmul.f32 %v2434, %v2573
      %v2659 = vmul.f32 %v2435, %v2578
      %v2660 = vmul.f32 %v2436, %v2583
      %v2661 = vmul.f32 %v2437, %v2588
      %v2662 = vmul.f32 %v2438, %v2593
      %v2663 = vmul.f32 %v2439, %v2598
      %v2664 = vmul.f32 %v2440, %v2603
      %v2665 = vmul.f32 %v2441, %v2608
      %v2666 = vmul.f32 %v2442, %v2613
      %v2667 = vmul.f32 %v2443, %v2618
      %v2668 = vmul.f32 %v2444, %v2623
      %v2669 = vmul.f32 %v2445, %v2628
      %v2670 = vmul.f32 %v2446, %v2633
      %v2671 = vmul.f32 %v2447, %v2638
      %v2672 = vld [vmem:[#allocation3] sm:$0xff]
      %v2673 = vld [vmem:[#allocation3 + $0x8] sm:$0xff]
      %v2674 = vld [vmem:[#allocation3 + $0x10] sm:$0xff]
      %v2675 = vld [vmem:[#allocation3 + $0x18] sm:$0xff]
      %v2676 = vld [vmem:[#allocation3 + $0x20] sm:$0xff]
      %v2677 = vld [vmem:[#allocation3 + $0x28] sm:$0xff]
      %v2678 = vld [vmem:[#allocation3 + $0x30] sm:$0xff]
      %v2679 = vld [vmem:[#allocation3 + $0x38] sm:$0xff]
      %v2680 = vld [vmem:[#allocation3 + $0x40] sm:$0xff]
      %v2681 = vld [vmem:[#allocation3 + $0x48] sm:$0xff]
      %v2682 = vld [vmem:[#allocation3 + $0x50] sm:$0xff]
      %v2683 = vld [vmem:[#allocation3 + $0x58] sm:$0xff]
      %v2684 = vld [vmem:[#allocation3 + $0x60] sm:$0xff]
      %v2685 = vld [vmem:[#allocation3 + $0x68] sm:$0xff]
      %v2686 = vld [vmem:[#allocation3 + $0x70] sm:$0xff]
      %v2687 = vld [vmem:[#allocation3 + $0x78] sm:$0xff]
      %v2688 = vld [vmem:[#allocation3 + $0x80] sm:$0xff]
      %v2689 = vld [vmem:[#allocation3 + $0x88] sm:$0xff]
      %v2690 = vld [vmem:[#allocation3 + $0x90] sm:$0xff]
      %v2691 = vld [vmem:[#allocation3 + $0x98] sm:$0xff]
      %v2692 = vld [vmem:[#allocation3 + $0xa0] sm:$0xff]
      %v2693 = vld [vmem:[#allocation3 + $0xa8] sm:$0xff]
      %v2694 = vld [vmem:[#allocation3 + $0xb0] sm:$0xff]
      %v2695 = vld [vmem:[#allocation3 + $0xb8] sm:$0xff]
      %v2696 = vld [vmem:[#allocation3 + $0xc0] sm:$0xff]
      %v2697 = vld [vmem:[#allocation3 + $0xc8] sm:$0xff]
      %v2698 = vld [vmem:[#allocation3 + $0xd0] sm:$0xff]
      %v2699 = vld [vmem:[#allocation3 + $0xd8] sm:$0xff]
      %v2700 = vld [vmem:[#allocation3 + $0xe0] sm:$0xff]
      %v2701 = vld [vmem:[#allocation3 + $0xe8] sm:$0xff]
      %v2702 = vld [vmem:[#allocation3 + $0xf0] sm:$0xff]
      %v2703 = vld [vmem:[#allocation3 + $0xf8] sm:$0xff]
      %v2704 = vpack.c.bf16 %v2641, %v2640
      %v2705 = vpack.c.bf16 %v2643, %v2642
      %v2706 = vpack.c.bf16 %v2645, %v2644
      %v2707 = vpack.c.bf16 %v2647, %v2646
      %v2708 = vpack.c.bf16 %v2649, %v2648
      %v2709 = vpack.c.bf16 %v2651, %v2650
      %v2710 = vpack.c.bf16 %v2653, %v2652
      %v2711 = vpack.c.bf16 %v2655, %v2654
      %v2712 = vpack.c.bf16 %v2657, %v2656
      %v2713 = vpack.c.bf16 %v2659, %v2658
      %v2714 = vpack.c.bf16 %v2661, %v2660
      %v2715 = vpack.c.bf16 %v2663, %v2662
      %v2716 = vpack.c.bf16 %v2665, %v2664
      %v2717 = vpack.c.bf16 %v2667, %v2666
      %v2718 = vpack.c.bf16 %v2669, %v2668
      %v2719 = vpack.c.bf16 %v2671, %v2670
      %s2720 = scalar_lea.vmem %s4, 6
      %v2721 = vld [vmem:[%s2720] sm:$0x3]
      %v2723 = vsel %vm791, %v2704, 0
      %v2726 = vsel %vm791, %v2705, 0
      %v2729 = vsel %vm791, %v2706, 0
      %v2732 = vsel %vm791, %v2707, 0
      %v2735 = vsel %vm791, %v2708, 0
      %v2738 = vsel %vm791, %v2709, 0
      %v2741 = vsel %vm791, %v2710, 0
      %v2744 = vsel %vm791, %v2711, 0
      %v2747 = vsel %vm791, %v2712, 0
      %v2750 = vsel %vm791, %v2713, 0
      %v2753 = vsel %vm791, %v2714, 0
      %v2756 = vsel %vm791, %v2715, 0
      %v2759 = vsel %vm791, %v2716, 0
      %v2762 = vsel %vm791, %v2717, 0
      %v2765 = vsel %vm791, %v2718, 0
      %v2768 = vsel %vm791, %v2719, 0
      %v2771 = vsel %vm1247, %v2721, 0
      %2773 = vmatprep.subr.bf16.mxu0 0
      %2774 = vmatpush1.bf16.msra.mxu0 %v2771
      %2775 = vmatprep.subr.bf16.mxu0 0
      %2776 = vmatpush1.bf16.msra.mxu0 0
      %2777 = vmatprep.subr.bf16.mxu0 0
      %2778 = vmatpush1.bf16.msra.mxu0 0
      %2779 = vmatprep.subr.bf16.mxu0 0
      %2780 = vmatpush1.bf16.msra.mxu0 0
      %2781 = vmatprep.subr.bf16.mxu0 0
      %2782 = vmatpush1.bf16.msra.mxu0 0
      %2783 = vmatprep.subr.bf16.mxu0 0
      %2784 = vmatpush1.bf16.msra.mxu0 0
      %2785 = vmatprep.subr.bf16.mxu0 0
      %2786 = vmatpush1.bf16.msra.mxu0 0
      %2787 = vmatprep.subr.bf16.mxu0 0
      %2788 = vmatpush1.bf16.msra.mxu0 0
      %2789 = vmatprep.subr.bf16.mxu0 0
      %2790 = vmatpush1.bf16.msra.mxu0 0
      %2791 = vmatprep.subr.bf16.mxu0 0
      %2792 = vmatpush1.bf16.msra.mxu0 0
      %2793 = vmatprep.subr.bf16.mxu0 0
      %2794 = vmatpush1.bf16.msra.mxu0 0
      %2795 = vmatprep.subr.bf16.mxu0 0
      %2796 = vmatpush1.bf16.msra.mxu0 0
      %2797 = vmatprep.subr.bf16.mxu0 0
      %2798 = vmatpush1.bf16.msra.mxu0 0
      %2799 = vmatprep.subr.bf16.mxu0 0
      %2800 = vmatpush1.bf16.msra.mxu0 0
      %2801 = vmatprep.subr.bf16.mxu0 0
      %2802 = vmatpush1.bf16.msra.mxu0 0
      %2803 = vmatprep.subr.bf16.mxu0 0
      %2804 = vmatpush1.bf16.msra.mxu0 0
      %2805 = vmatprep.mubr.bf16.mxu0 0
      %2806 = vmatmul.mubr.bf16.gmra.mrb[0].mxu0 %v2723
      %v2807 = vpop.f32.mrb[0].mxu0
      %v2808 = vadd.f32 0.0, %v2807
      %v2809 = vpop.f32.mrb[0].mxu0
      %v2810 = vpop.f32.mrb[0].mxu0
      %v2811 = vadd.f32 0.0, %v2810
      %v2812 = vpop.f32.mrb[0].mxu0
      %2813 = vmatprep.mubr.bf16.mxu0 0
      %2814 = vmatmul.mubr.bf16.gmra.mrb[0].mxu0 %v2726
      %v2815 = vpop.f32.mrb[0].mxu0
      %v2816 = vadd.f32 0.0, %v2815
      %v2817 = vpop.f32.mrb[0].mxu0
      %v2818 = vpop.f32.mrb[0].mxu0
      %v2819 = vadd.f32 0.0, %v2818
      %v2820 = vpop.f32.mrb[0].mxu0
      %2821 = vmatprep.mubr.bf16.mxu0 0
      %2822 = vmatmul.mubr.bf16.gmra.mrb[0].mxu0 %v2729
      %v2823 = vpop.f32.mrb[0].mxu0
      %v2824 = vadd.f32 0.0, %v2823
      %v2825 = vpop.f32.mrb[0].mxu0
      %v2826 = vpop.f32.mrb[0].mxu0
      %v2827 = vadd.f32 0.0, %v2826
      %v2828 = vpop.f32.mrb[0].mxu0
      %2829 = vmatprep.mubr.bf16.mxu0 0
      %2830 = vmatmul.mubr.bf16.gmra.mrb[0].mxu0 %v2732
      %v2831 = vpop.f32.mrb[0].mxu0
      %v2832 = vadd.f32 0.0, %v2831
      %v2833 = vpop.f32.mrb[0].mxu0
      %v2834 = vpop.f32.mrb[0].mxu0
      %v2835 = vadd.f32 0.0, %v2834
      %v2836 = vpop.f32.mrb[0].mxu0
      %2837 = vmatprep.mubr.bf16.mxu0 0
      %2838 = vmatmul.mubr.bf16.gmra.mrb[0].mxu0 %v2735
      %v2839 = vpop.f32.mrb[0].mxu0
      %v2840 = vadd.f32 0.0, %v2839
      %v2841 = vpop.f32.mrb[0].mxu0
      %v2842 = vpop.f32.mrb[0].mxu0
      %v2843 = vadd.f32 0.0, %v2842
      %v2844 = vpop.f32.mrb[0].mxu0
      %2845 = vmatprep.mubr.bf16.mxu0 0
      %2846 = vmatmul.mubr.bf16.gmra.mrb[0].mxu0 %v2738
      %v2847 = vpop.f32.mrb[0].mxu0
      %v2848 = vadd.f32 0.0, %v2847
      %v2849 = vpop.f32.mrb[0].mxu0
      %v2850 = vpop.f32.mrb[0].mxu0
      %v2851 = vadd.f32 0.0, %v2850
      %v2852 = vpop.f32.mrb[0].mxu0
      %2853 = vmatprep.mubr.bf16.mxu0 0
      %2854 = vmatmul.mubr.bf16.gmra.mrb[0].mxu0 %v2741
      %v2855 = vpop.f32.mrb[0].mxu0
      %v2856 = vadd.f32 0.0, %v2855
      %v2857 = vpop.f32.mrb[0].mxu0
      %v2858 = vpop.f32.mrb[0].mxu0
      %v2859 = vadd.f32 0.0, %v2858
      %v2860 = vpop.f32.mrb[0].mxu0
      %2861 = vmatprep.mubr.bf16.mxu0 0
      %2862 = vmatmul.mubr.bf16.gmra.mrb[0].mxu0 %v2744
      %v2863 = vpop.f32.mrb[0].mxu0
      %v2864 = vadd.f32 0.0, %v2863
      %v2865 = vpop.f32.mrb[0].mxu0
      %v2866 = vpop.f32.mrb[0].mxu0
      %v2867 = vadd.f32 0.0, %v2866
      %v2868 = vpop.f32.mrb[0].mxu0
      %2869 = vmatprep.mubr.bf16.mxu0 0
      %2870 = vmatmul.mubr.bf16.gmra.mrb[0].mxu0 %v2747
      %v2871 = vpop.f32.mrb[0].mxu0
      %v2872 = vadd.f32 0.0, %v2871
      %v2873 = vpop.f32.mrb[0].mxu0
      %v2874 = vpop.f32.mrb[0].mxu0
      %v2875 = vadd.f32 0.0, %v2874
      %v2876 = vpop.f32.mrb[0].mxu0
      %2877 = vmatprep.mubr.bf16.mxu0 0
      %2878 = vmatmul.mubr.bf16.gmra.mrb[0].mxu0 %v2750
      %v2879 = vpop.f32.mrb[0].mxu0
      %v2880 = vadd.f32 0.0, %v2879
      %v2881 = vpop.f32.mrb[0].mxu0
      %v2882 = vpop.f32.mrb[0].mxu0
      %v2883 = vadd.f32 0.0, %v2882
      %v2884 = vpop.f32.mrb[0].mxu0
      %2885 = vmatprep.mubr.bf16.mxu0 0
      %2886 = vmatmul.mubr.bf16.gmra.mrb[0].mxu0 %v2753
      %v2887 = vpop.f32.mrb[0].mxu0
      %v2888 = vadd.f32 0.0, %v2887
      %v2889 = vpop.f32.mrb[0].mxu0
      %v2890 = vpop.f32.mrb[0].mxu0
      %v2891 = vadd.f32 0.0, %v2890
      %v2892 = vpop.f32.mrb[0].mxu0
      %2893 = vmatprep.mubr.bf16.mxu0 0
      %2894 = vmatmul.mubr.bf16.gmra.mrb[0].mxu0 %v2756
      %v2895 = vpop.f32.mrb[0].mxu0
      %v2896 = vadd.f32 0.0, %v2895
      %v2897 = vpop.f32.mrb[0].mxu0
      %v2898 = vpop.f32.mrb[0].mxu0
      %v2899 = vadd.f32 0.0, %v2898
      %v2900 = vpop.f32.mrb[0].mxu0
      %2901 = vmatprep.mubr.bf16.mxu0 0
      %2902 = vmatmul.mubr.bf16.gmra.mrb[0].mxu0 %v2759
      %v2903 = vpop.f32.mrb[0].mxu0
      %v2904 = vadd.f32 0.0, %v2903
      %v2905 = vpop.f32.mrb[0].mxu0
      %v2906 = vpop.f32.mrb[0].mxu0
      %v2907 = vadd.f32 0.0, %v2906
      %v2908 = vpop.f32.mrb[0].mxu0
      %2909 = vmatprep.mubr.bf16.mxu0 0
      %2910 = vmatmul.mubr.bf16.gmra.mrb[0].mxu0 %v2762
      %v2911 = vpop.f32.mrb[0].mxu0
      %v2912 = vadd.f32 0.0, %v2911
      %v2913 = vpop.f32.mrb[0].mxu0
      %v2914 = vpop.f32.mrb[0].mxu0
      %v2915 = vadd.f32 0.0, %v2914
      %v2916 = vpop.f32.mrb[0].mxu0
      %2917 = vmatprep.mubr.bf16.mxu0 0
      %2918 = vmatmul.mubr.bf16.gmra.mrb[0].mxu0 %v2765
      %v2919 = vpop.f32.mrb[0].mxu0
      %v2920 = vadd.f32 0.0, %v2919
      %v2921 = vpop.f32.mrb[0].mxu0
      %v2922 = vpop.f32.mrb[0].mxu0
      %v2923 = vadd.f32 0.0, %v2922
      %v2924 = vpop.f32.mrb[0].mxu0
      %2925 = vmatprep.mubr.bf16.mxu0 0
      %2926 = vmatmul.mubr.bf16.gmra.mrb[0].mxu0 %v2768
      %v2927 = vpop.f32.mrb[0].mxu0
      %v2928 = vadd.f32 0.0, %v2927
      %v2929 = vpop.f32.mrb[0].mxu0
      %v2930 = vpop.f32.mrb[0].mxu0
      %v2931 = vadd.f32 0.0, %v2930
      %v2932 = vpop.f32.mrb[0].mxu0
      %2933 = vdwg.mxu0
      %v2934 = vadd.f32 %v2672, %v2808
      %v2935 = vadd.f32 %v2673, %v2811
      %v2936 = vadd.f32 %v2674, %v2816
      %v2937 = vadd.f32 %v2675, %v2819
      %v2938 = vadd.f32 %v2676, %v2824
      %v2939 = vadd.f32 %v2677, %v2827
      %v2940 = vadd.f32 %v2678, %v2832
      %v2941 = vadd.f32 %v2679, %v2835
      %v2942 = vadd.f32 %v2680, %v2840
      %v2943 = vadd.f32 %v2681, %v2843
      %v2944 = vadd.f32 %v2682, %v2848
      %v2945 = vadd.f32 %v2683, %v2851
      %v2946 = vadd.f32 %v2684, %v2856
      %v2947 = vadd.f32 %v2685, %v2859
      %v2948 = vadd.f32 %v2686, %v2864
      %v2949 = vadd.f32 %v2687, %v2867
      %v2950 = vadd.f32 %v2688, %v2872
      %v2951 = vadd.f32 %v2689, %v2875
      %v2952 = vadd.f32 %v2690, %v2880
      %v2953 = vadd.f32 %v2691, %v2883
      %v2954 = vadd.f32 %v2692, %v2888
      %v2955 = vadd.f32 %v2693, %v2891
      %v2956 = vadd.f32 %v2694, %v2896
      %v2957 = vadd.f32 %v2695, %v2899
      %v2958 = vadd.f32 %v2696, %v2904
      %v2959 = vadd.f32 %v2697, %v2907
      %v2960 = vadd.f32 %v2698, %v2912
      %v2961 = vadd.f32 %v2699, %v2915
      %v2962 = vadd.f32 %v2700, %v2920
      %v2963 = vadd.f32 %v2701, %v2923
      %v2964 = vadd.f32 %v2702, %v2928
      %v2965 = vadd.f32 %v2703, %v2931
      %2966 = vst.msk [vmem:[#allocation3] sm:$0xff] %vm791, %v2934
      %2967 = vst.msk [vmem:[#allocation3 + $0x8] sm:$0xff] %vm791, %v2935
      %2968 = vst.msk [vmem:[#allocation3 + $0x10] sm:$0xff] %vm791, %v2936
      %2969 = vst.msk [vmem:[#allocation3 + $0x18] sm:$0xff] %vm791, %v2937
      %2970 = vst.msk [vmem:[#allocation3 + $0x20] sm:$0xff] %vm791, %v2938
      %2971 = vst.msk [vmem:[#allocation3 + $0x28] sm:$0xff] %vm791, %v2939
      %2972 = vst.msk [vmem:[#allocation3 + $0x30] sm:$0xff] %vm791, %v2940
      %2973 = vst.msk [vmem:[#allocation3 + $0x38] sm:$0xff] %vm791, %v2941
      %2974 = vst.msk [vmem:[#allocation3 + $0x40] sm:$0xff] %vm791, %v2942
      %2975 = vst.msk [vmem:[#allocation3 + $0x48] sm:$0xff] %vm791, %v2943
      %2976 = vst.msk [vmem:[#allocation3 + $0x50] sm:$0xff] %vm791, %v2944
      %2977 = vst.msk [vmem:[#allocation3 + $0x58] sm:$0xff] %vm791, %v2945
      %2978 = vst.msk [vmem:[#allocation3 + $0x60] sm:$0xff] %vm791, %v2946
      %2979 = vst.msk [vmem:[#allocation3 + $0x68] sm:$0xff] %vm791, %v2947
      %2980 = vst.msk [vmem:[#allocation3 + $0x70] sm:$0xff] %vm791, %v2948
      %2981 = vst.msk [vmem:[#allocation3 + $0x78] sm:$0xff] %vm791, %v2949
      %2982 = vst.msk [vmem:[#allocation3 + $0x80] sm:$0xff] %vm791, %v2950
      %2983 = vst.msk [vmem:[#allocation3 + $0x88] sm:$0xff] %vm791, %v2951
      %2984 = vst.msk [vmem:[#allocation3 + $0x90] sm:$0xff] %vm791, %v2952
      %2985 = vst.msk [vmem:[#allocation3 + $0x98] sm:$0xff] %vm791, %v2953
      %2986 = vst.msk [vmem:[#allocation3 + $0xa0] sm:$0xff] %vm791, %v2954
      %2987 = vst.msk [vmem:[#allocation3 + $0xa8] sm:$0xff] %vm791, %v2955
      %2988 = vst.msk [vmem:[#allocation3 + $0xb0] sm:$0xff] %vm791, %v2956
      %2989 = vst.msk [vmem:[#allocation3 + $0xb8] sm:$0xff] %vm791, %v2957
      %2990 = vst.msk [vmem:[#allocation3 + $0xc0] sm:$0xff] %vm791, %v2958
      %2991 = vst.msk [vmem:[#allocation3 + $0xc8] sm:$0xff] %vm791, %v2959
      %2992 = vst.msk [vmem:[#allocation3 + $0xd0] sm:$0xff] %vm791, %v2960
      %2993 = vst.msk [vmem:[#allocation3 + $0xd8] sm:$0xff] %vm791, %v2961
      %2994 = vst.msk [vmem:[#allocation3 + $0xe0] sm:$0xff] %vm791, %v2962
      %2995 = vst.msk [vmem:[#allocation3 + $0xe8] sm:$0xff] %vm791, %v2963
      %2996 = vst.msk [vmem:[#allocation3 + $0xf0] sm:$0xff] %vm791, %v2964
      %2997 = vst.msk [vmem:[#allocation3 + $0xf8] sm:$0xff] %vm791, %v2965
      %v2998 = vld [vmem:[#allocation2 + $0x18] sm:$0xff]
      %v2999 = vld [vmem:[#allocation2 + $0x20] sm:$0xff]
      %v3000 = vld [vmem:[#allocation2 + $0x28] sm:$0xff]
      %v3001 = vld [vmem:[#allocation2 + $0x30] sm:$0xff]
      %v3002 = vld [vmem:[#allocation2 + $0x38] sm:$0xff]
      %v3003 = vld [vmem:[#allocation2 + $0x40] sm:$0xff]
      %v3004 = vld [vmem:[#allocation2 + $0x48] sm:$0xff]
      %v3005 = vld [vmem:[#allocation2 + $0x50] sm:$0xff]
      %v3006 = vld [vmem:[#allocation2 + $0x58] sm:$0xff]
      %v3007 = vld [vmem:[#allocation2 + $0x60] sm:$0xff]
      %v3008 = vld [vmem:[#allocation2 + $0x68] sm:$0xff]
      %v3009 = vld [vmem:[#allocation2 + $0x70] sm:$0xff]
      %v3010 = vld [vmem:[#allocation2 + $0x78] sm:$0xff]
      %v3011 = vld [vmem:[#allocation2 + $0x80] sm:$0xff]
      %v3012 = vld [vmem:[#allocation2 + $0x88] sm:$0xff]
      %v3013 = vld [vmem:[#allocation2 + $0x90] sm:$0xff]
      %v3014 = vld [vmem:[#allocation2 + $0x98] sm:$0xff]
      %v3015 = vld [vmem:[#allocation2 + $0xa0] sm:$0xff]
      %v3016 = vld [vmem:[#allocation2 + $0xa8] sm:$0xff]
      %v3017 = vld [vmem:[#allocation2 + $0xb0] sm:$0xff]
      %v3018 = vld [vmem:[#allocation2 + $0xb8] sm:$0xff]
      %v3019 = vld [vmem:[#allocation2 + $0xc0] sm:$0xff]
      %v3020 = vld [vmem:[#allocation2 + $0xc8] sm:$0xff]
      %v3021 = vld [vmem:[#allocation2 + $0xd0] sm:$0xff]
      %v3022 = vld [vmem:[#allocation2 + $0xd8] sm:$0xff]
      %v3023 = vld [vmem:[#allocation2 + $0xe0] sm:$0xff]
      %v3024 = vld [vmem:[#allocation2 + $0xe8] sm:$0xff]
      %v3025 = vld [vmem:[#allocation2 + $0xf0] sm:$0xff]
      %v3026 = vld [vmem:[#allocation2 + $0xf8] sm:$0xff]
      %v3027 = vld [vmem:[#allocation2 + $0x100] sm:$0xff]
      %v3028 = vld [vmem:[#allocation2 + $0x108] sm:$0xff]
      %v3029 = vld [vmem:[#allocation2 + $0x110] sm:$0xff]
      %v3030 = vld [vmem:[#allocation3] sm:$0xff]
      %v3031 = vld [vmem:[#allocation3 + $0x8] sm:$0xff]
      %v3032 = vld [vmem:[#allocation3 + $0x10] sm:$0xff]
      %v3033 = vld [vmem:[#allocation3 + $0x18] sm:$0xff]
      %v3034 = vld [vmem:[#allocation3 + $0x20] sm:$0xff]
      %v3035 = vld [vmem:[#allocation3 + $0x28] sm:$0xff]
      %v3036 = vld [vmem:[#allocation3 + $0x30] sm:$0xff]
      %v3037 = vld [vmem:[#allocation3 + $0x38] sm:$0xff]
      %v3038 = vld [vmem:[#allocation3 + $0x40] sm:$0xff]
      %v3039 = vld [vmem:[#allocation3 + $0x48] sm:$0xff]
      %v3040 = vld [vmem:[#allocation3 + $0x50] sm:$0xff]
      %v3041 = vld [vmem:[#allocation3 + $0x58] sm:$0xff]
      %v3042 = vld [vmem:[#allocation3 + $0x60] sm:$0xff]
      %v3043 = vld [vmem:[#allocation3 + $0x68] sm:$0xff]
      %v3044 = vld [vmem:[#allocation3 + $0x70] sm:$0xff]
      %v3045 = vld [vmem:[#allocation3 + $0x78] sm:$0xff]
      %v3046 = vld [vmem:[#allocation3 + $0x80] sm:$0xff]
      %v3047 = vld [vmem:[#allocation3 + $0x88] sm:$0xff]
      %v3048 = vld [vmem:[#allocation3 + $0x90] sm:$0xff]
      %v3049 = vld [vmem:[#allocation3 + $0x98] sm:$0xff]
      %v3050 = vld [vmem:[#allocation3 + $0xa0] sm:$0xff]
      %v3051 = vld [vmem:[#allocation3 + $0xa8] sm:$0xff]
      %v3052 = vld [vmem:[#allocation3 + $0xb0] sm:$0xff]
      %v3053 = vld [vmem:[#allocation3 + $0xb8] sm:$0xff]
      %v3054 = vld [vmem:[#allocation3 + $0xc0] sm:$0xff]
      %v3055 = vld [vmem:[#allocation3 + $0xc8] sm:$0xff]
      %v3056 = vld [vmem:[#allocation3 + $0xd0] sm:$0xff]
      %v3057 = vld [vmem:[#allocation3 + $0xd8] sm:$0xff]
      %v3058 = vld [vmem:[#allocation3 + $0xe0] sm:$0xff]
      %v3059 = vld [vmem:[#allocation3 + $0xe8] sm:$0xff]
      %v3060 = vld [vmem:[#allocation3 + $0xf0] sm:$0xff]
      %v3061 = vld [vmem:[#allocation3 + $0xf8] sm:$0xff]
      %v3062 = vpack.c.bf16 %v2999, %v2998
      %v3063 = vpack.c.bf16 %v3001, %v3000
      %v3064 = vpack.c.bf16 %v3003, %v3002
      %v3065 = vpack.c.bf16 %v3005, %v3004
      %v3066 = vpack.c.bf16 %v3007, %v3006
      %v3067 = vpack.c.bf16 %v3009, %v3008
      %v3068 = vpack.c.bf16 %v3011, %v3010
      %v3069 = vpack.c.bf16 %v3013, %v3012
      %v3070 = vpack.c.bf16 %v3015, %v3014
      %v3071 = vpack.c.bf16 %v3017, %v3016
      %v3072 = vpack.c.bf16 %v3019, %v3018
      %v3073 = vpack.c.bf16 %v3021, %v3020
      %v3074 = vpack.c.bf16 %v3023, %v3022
      %v3075 = vpack.c.bf16 %v3025, %v3024
      %v3076 = vpack.c.bf16 %v3027, %v3026
      %v3077 = vpack.c.bf16 %v3029, %v3028
      %s3078 = scalar_lea.vmem %s4, 8
      %v3079 = vld [vmem:[%s3078] sm:$0x3]
      %v3081 = vsel %vm791, %v3062, 0
      %v3084 = vsel %vm791, %v3063, 0
      %v3087 = vsel %vm791, %v3064, 0
      %v3090 = vsel %vm791, %v3065, 0
      %v3093 = vsel %vm791, %v3066, 0
      %v3096 = vsel %vm791, %v3067, 0
      %v3099 = vsel %vm791, %v3068, 0
      %v3102 = vsel %vm791, %v3069, 0
      %v3105 = vsel %vm791, %v3070, 0
      %v3108 = vsel %vm791, %v3071, 0
      %v3111 = vsel %vm791, %v3072, 0
      %v3114 = vsel %vm791, %v3073, 0
      %v3117 = vsel %vm791, %v3074, 0
      %v3120 = vsel %vm791, %v3075, 0
      %v3123 = vsel %vm791, %v3076, 0
      %v3126 = vsel %vm791, %v3077, 0
      %v3129 = vsel %vm1247, %v3079, 0
      %3131 = vmatprep.subr.bf16.mxu0 0
      %3132 = vmatpush1.bf16.msra.mxu0 %v3129
      %3133 = vmatprep.subr.bf16.mxu0 0
      %3134 = vmatpush1.bf16.msra.mxu0 0
      %3135 = vmatprep.subr.bf16.mxu0 0
      %3136 = vmatpush1.bf16.msra.mxu0 0
      %3137 = vmatprep.subr.bf16.mxu0 0
      %3138 = vmatpush1.bf16.msra.mxu0 0
      %3139 = vmatprep.subr.bf16.mxu0 0
      %3140 = vmatpush1.bf16.msra.mxu0 0
      %3141 = vmatprep.subr.bf16.mxu0 0
      %3142 = vmatpush1.bf16.msra.mxu0 0
      %3143 = vmatprep.subr.bf16.mxu0 0
      %3144 = vmatpush1.bf16.msra.mxu0 0
      %3145 = vmatprep.subr.bf16.mxu0 0
      %3146 = vmatpush1.bf16.msra.mxu0 0
      %3147 = vmatprep.subr.bf16.mxu0 0
      %3148 = vmatpush1.bf16.msra.mxu0 0
      %3149 = vmatprep.subr.bf16.mxu0 0
      %3150 = vmatpush1.bf16.msra.mxu0 0
      %3151 = vmatprep.subr.bf16.mxu0 0
      %3152 = vmatpush1.bf16.msra.mxu0 0
      %3153 = vmatprep.subr.bf16.mxu0 0
      %3154 = vmatpush1.bf16.msra.mxu0 0
      %3155 = vmatprep.subr.bf16.mxu0 0
      %3156 = vmatpush1.bf16.msra.mxu0 0
      %3157 = vmatprep.subr.bf16.mxu0 0
      %3158 = vmatpush1.bf16.msra.mxu0 0
      %3159 = vmatprep.subr.bf16.mxu0 0
      %3160 = vmatpush1.bf16.msra.mxu0 0
      %3161 = vmatprep.subr.bf16.mxu0 0
      %3162 = vmatpush1.bf16.msra.mxu0 0
      %3163 = vmatprep.mubr.bf16.mxu0 0
      %3164 = vmatmul.mubr.bf16.gmra.mrb[0].mxu0 %v3081
      %v3165 = vpop.f32.mrb[0].mxu0
      %v3166 = vadd.f32 0.0, %v3165
      %v3167 = vpop.f32.mrb[0].mxu0
      %v3168 = vpop.f32.mrb[0].mxu0
      %v3169 = vadd.f32 0.0, %v3168
      %v3170 = vpop.f32.mrb[0].mxu0
      %3171 = vmatprep.mubr.bf16.mxu0 0
      %3172 = vmatmul.mubr.bf16.gmra.mrb[0].mxu0 %v3084
      %v3173 = vpop.f32.mrb[0].mxu0
      %v3174 = vadd.f32 0.0, %v3173
      %v3175 = vpop.f32.mrb[0].mxu0
      %v3176 = vpop.f32.mrb[0].mxu0
      %v3177 = vadd.f32 0.0, %v3176
      %v3178 = vpop.f32.mrb[0].mxu0
      %3179 = vmatprep.mubr.bf16.mxu0 0
      %3180 = vmatmul.mubr.bf16.gmra.mrb[0].mxu0 %v3087
      %v3181 = vpop.f32.mrb[0].mxu0
      %v3182 = vadd.f32 0.0, %v3181
      %v3183 = vpop.f32.mrb[0].mxu0
      %v3184 = vpop.f32.mrb[0].mxu0
      %v3185 = vadd.f32 0.0, %v3184
      %v3186 = vpop.f32.mrb[0].mxu0
      %3187 = vmatprep.mubr.bf16.mxu0 0
      %3188 = vmatmul.mubr.bf16.gmra.mrb[0].mxu0 %v3090
      %v3189 = vpop.f32.mrb[0].mxu0
      %v3190 = vadd.f32 0.0, %v3189
      %v3191 = vpop.f32.mrb[0].mxu0
      %v3192 = vpop.f32.mrb[0].mxu0
      %v3193 = vadd.f32 0.0, %v3192
      %v3194 = vpop.f32.mrb[0].mxu0
      %3195 = vmatprep.mubr.bf16.mxu0 0
      %3196 = vmatmul.mubr.bf16.gmra.mrb[0].mxu0 %v3093
      %v3197 = vpop.f32.mrb[0].mxu0
      %v3198 = vadd.f32 0.0, %v3197
      %v3199 = vpop.f32.mrb[0].mxu0
      %v3200 = vpop.f32.mrb[0].mxu0
      %v3201 = vadd.f32 0.0, %v3200
      %v3202 = vpop.f32.mrb[0].mxu0
      %3203 = vmatprep.mubr.bf16.mxu0 0
      %3204 = vmatmul.mubr.bf16.gmra.mrb[0].mxu0 %v3096
      %v3205 = vpop.f32.mrb[0].mxu0
      %v3206 = vadd.f32 0.0, %v3205
      %v3207 = vpop.f32.mrb[0].mxu0
      %v3208 = vpop.f32.mrb[0].mxu0
      %v3209 = vadd.f32 0.0, %v3208
      %v3210 = vpop.f32.mrb[0].mxu0
      %3211 = vmatprep.mubr.bf16.mxu0 0
      %3212 = vmatmul.mubr.bf16.gmra.mrb[0].mxu0 %v3099
      %v3213 = vpop.f32.mrb[0].mxu0
      %v3214 = vadd.f32 0.0, %v3213
      %v3215 = vpop.f32.mrb[0].mxu0
      %v3216 = vpop.f32.mrb[0].mxu0
      %v3217 = vadd.f32 0.0, %v3216
      %v3218 = vpop.f32.mrb[0].mxu0
      %3219 = vmatprep.mubr.bf16.mxu0 0
      %3220 = vmatmul.mubr.bf16.gmra.mrb[0].mxu0 %v3102
      %v3221 = vpop.f32.mrb[0].mxu0
      %v3222 = vadd.f32 0.0, %v3221
      %v3223 = vpop.f32.mrb[0].mxu0
      %v3224 = vpop.f32.mrb[0].mxu0
      %v3225 = vadd.f32 0.0, %v3224
      %v3226 = vpop.f32.mrb[0].mxu0
      %3227 = vmatprep.mubr.bf16.mxu0 0
      %3228 = vmatmul.mubr.bf16.gmra.mrb[0].mxu0 %v3105
      %v3229 = vpop.f32.mrb[0].mxu0
      %v3230 = vadd.f32 0.0, %v3229
      %v3231 = vpop.f32.mrb[0].mxu0
      %v3232 = vpop.f32.mrb[0].mxu0
      %v3233 = vadd.f32 0.0, %v3232
      %v3234 = vpop.f32.mrb[0].mxu0
      %3235 = vmatprep.mubr.bf16.mxu0 0
      %3236 = vmatmul.mubr.bf16.gmra.mrb[0].mxu0 %v3108
      %v3237 = vpop.f32.mrb[0].mxu0
      %v3238 = vadd.f32 0.0, %v3237
      %v3239 = vpop.f32.mrb[0].mxu0
      %v3240 = vpop.f32.mrb[0].mxu0
      %v3241 = vadd.f32 0.0, %v3240
      %v3242 = vpop.f32.mrb[0].mxu0
      %3243 = vmatprep.mubr.bf16.mxu0 0
      %3244 = vmatmul.mubr.bf16.gmra.mrb[0].mxu0 %v3111
      %v3245 = vpop.f32.mrb[0].mxu0
      %v3246 = vadd.f32 0.0, %v3245
      %v3247 = vpop.f32.mrb[0].mxu0
      %v3248 = vpop.f32.mrb[0].mxu0
      %v3249 = vadd.f32 0.0, %v3248
      %v3250 = vpop.f32.mrb[0].mxu0
      %3251 = vmatprep.mubr.bf16.mxu0 0
      %3252 = vmatmul.mubr.bf16.gmra.mrb[0].mxu0 %v3114
      %v3253 = vpop.f32.mrb[0].mxu0
      %v3254 = vadd.f32 0.0, %v3253
      %v3255 = vpop.f32.mrb[0].mxu0
      %v3256 = vpop.f32.mrb[0].mxu0
      %v3257 = vadd.f32 0.0, %v3256
      %v3258 = vpop.f32.mrb[0].mxu0
      %3259 = vmatprep.mubr.bf16.mxu0 0
      %3260 = vmatmul.mubr.bf16.gmra.mrb[0].mxu0 %v3117
      %v3261 = vpop.f32.mrb[0].mxu0
      %v3262 = vadd.f32 0.0, %v3261
      %v3263 = vpop.f32.mrb[0].mxu0
      %v3264 = vpop.f32.mrb[0].mxu0
      %v3265 = vadd.f32 0.0, %v3264
      %v3266 = vpop.f32.mrb[0].mxu0
      %3267 = vmatprep.mubr.bf16.mxu0 0
      %3268 = vmatmul.mubr.bf16.gmra.mrb[0].mxu0 %v3120
      %v3269 = vpop.f32.mrb[0].mxu0
      %v3270 = vadd.f32 0.0, %v3269
      %v3271 = vpop.f32.mrb[0].mxu0
      %v3272 = vpop.f32.mrb[0].mxu0
      %v3273 = vadd.f32 0.0, %v3272
      %v3274 = vpop.f32.mrb[0].mxu0
      %3275 = vmatprep.mubr.bf16.mxu0 0
      %3276 = vmatmul.mubr.bf16.gmra.mrb[0].mxu0 %v3123
      %v3277 = vpop.f32.mrb[0].mxu0
      %v3278 = vadd.f32 0.0, %v3277
      %v3279 = vpop.f32.mrb[0].mxu0
      %v3280 = vpop.f32.mrb[0].mxu0
      %v3281 = vadd.f32 0.0, %v3280
      %v3282 = vpop.f32.mrb[0].mxu0
      %3283 = vmatprep.mubr.bf16.mxu0 0
      %3284 = vmatmul.mubr.bf16.gmra.mrb[0].mxu0 %v3126
      %v3285 = vpop.f32.mrb[0].mxu0
      %v3286 = vadd.f32 0.0, %v3285
      %v3287 = vpop.f32.mrb[0].mxu0
      %v3288 = vpop.f32.mrb[0].mxu0
      %v3289 = vadd.f32 0.0, %v3288
      %v3290 = vpop.f32.mrb[0].mxu0
      %3291 = vdwg.mxu0
      %v3292 = vadd.f32 %v3030, %v3166
      %v3293 = vadd.f32 %v3031, %v3169
      %v3294 = vadd.f32 %v3032, %v3174
      %v3295 = vadd.f32 %v3033, %v3177
      %v3296 = vadd.f32 %v3034, %v3182
      %v3297 = vadd.f32 %v3035, %v3185
      %v3298 = vadd.f32 %v3036, %v3190
      %v3299 = vadd.f32 %v3037, %v3193
      %v3300 = vadd.f32 %v3038, %v3198
      %v3301 = vadd.f32 %v3039, %v3201
      %v3302 = vadd.f32 %v3040, %v3206
      %v3303 = vadd.f32 %v3041, %v3209
      %v3304 = vadd.f32 %v3042, %v3214
      %v3305 = vadd.f32 %v3043, %v3217
      %v3306 = vadd.f32 %v3044, %v3222
      %v3307 = vadd.f32 %v3045, %v3225
      %v3308 = vadd.f32 %v3046, %v3230
      %v3309 = vadd.f32 %v3047, %v3233
      %v3310 = vadd.f32 %v3048, %v3238
      %v3311 = vadd.f32 %v3049, %v3241
      %v3312 = vadd.f32 %v3050, %v3246
      %v3313 = vadd.f32 %v3051, %v3249
      %v3314 = vadd.f32 %v3052, %v3254
      %v3315 = vadd.f32 %v3053, %v3257
      %v3316 = vadd.f32 %v3054, %v3262
      %v3317 = vadd.f32 %v3055, %v3265
      %v3318 = vadd.f32 %v3056, %v3270
      %v3319 = vadd.f32 %v3057, %v3273
      %v3320 = vadd.f32 %v3058, %v3278
      %v3321 = vadd.f32 %v3059, %v3281
      %v3322 = vadd.f32 %v3060, %v3286
      %v3323 = vadd.f32 %v3061, %v3289
      %3324 = vst.msk [vmem:[#allocation3] sm:$0xff] %vm791, %v3292
      %3325 = vst.msk [vmem:[#allocation3 + $0x8] sm:$0xff] %vm791, %v3293
      %3326 = vst.msk [vmem:[#allocation3 + $0x10] sm:$0xff] %vm791, %v3294
      %3327 = vst.msk [vmem:[#allocation3 + $0x18] sm:$0xff] %vm791, %v3295
      %3328 = vst.msk [vmem:[#allocation3 + $0x20] sm:$0xff] %vm791, %v3296
      %3329 = vst.msk [vmem:[#allocation3 + $0x28] sm:$0xff] %vm791, %v3297
      %3330 = vst.msk [vmem:[#allocation3 + $0x30] sm:$0xff] %vm791, %v3298
      %3331 = vst.msk [vmem:[#allocation3 + $0x38] sm:$0xff] %vm791, %v3299
      %3332 = vst.msk [vmem:[#allocation3 + $0x40] sm:$0xff] %vm791, %v3300
      %3333 = vst.msk [vmem:[#allocation3 + $0x48] sm:$0xff] %vm791, %v3301
      %3334 = vst.msk [vmem:[#allocation3 + $0x50] sm:$0xff] %vm791, %v3302
      %3335 = vst.msk [vmem:[#allocation3 + $0x58] sm:$0xff] %vm791, %v3303
      %3336 = vst.msk [vmem:[#allocation3 + $0x60] sm:$0xff] %vm791, %v3304
      %3337 = vst.msk [vmem:[#allocation3 + $0x68] sm:$0xff] %vm791, %v3305
      %3338 = vst.msk [vmem:[#allocation3 + $0x70] sm:$0xff] %vm791, %v3306
      %3339 = vst.msk [vmem:[#allocation3 + $0x78] sm:$0xff] %vm791, %v3307
      %3340 = vst.msk [vmem:[#allocation3 + $0x80] sm:$0xff] %vm791, %v3308
      %3341 = vst.msk [vmem:[#allocation3 + $0x88] sm:$0xff] %vm791, %v3309
      %3342 = vst.msk [vmem:[#allocation3 + $0x90] sm:$0xff] %vm791, %v3310
      %3343 = vst.msk [vmem:[#allocation3 + $0x98] sm:$0xff] %vm791, %v3311
      %3344 = vst.msk [vmem:[#allocation3 + $0xa0] sm:$0xff] %vm791, %v3312
      %3345 = vst.msk [vmem:[#allocation3 + $0xa8] sm:$0xff] %vm791, %v3313
      %3346 = vst.msk [vmem:[#allocation3 + $0xb0] sm:$0xff] %vm791, %v3314
      %3347 = vst.msk [vmem:[#allocation3 + $0xb8] sm:$0xff] %vm791, %v3315
      %3348 = vst.msk [vmem:[#allocation3 + $0xc0] sm:$0xff] %vm791, %v3316
      %3349 = vst.msk [vmem:[#allocation3 + $0xc8] sm:$0xff] %vm791, %v3317
      %3350 = vst.msk [vmem:[#allocation3 + $0xd0] sm:$0xff] %vm791, %v3318
      %3351 = vst.msk [vmem:[#allocation3 + $0xd8] sm:$0xff] %vm791, %v3319
      %3352 = vst.msk [vmem:[#allocation3 + $0xe0] sm:$0xff] %vm791, %v3320
      %3353 = vst.msk [vmem:[#allocation3 + $0xe8] sm:$0xff] %vm791, %v3321
      %3354 = vst.msk [vmem:[#allocation3 + $0xf0] sm:$0xff] %vm791, %v3322
      %3355 = vst.msk [vmem:[#allocation3 + $0xf8] sm:$0xff] %vm791, %v3323
      %v3356 = vld [vmem:[#allocation2 + $0x19] sm:$0xff]
      %v3357 = vld [vmem:[#allocation2 + $0x21] sm:$0xff]
      %v3358 = vld [vmem:[#allocation2 + $0x29] sm:$0xff]
      %v3359 = vld [vmem:[#allocation2 + $0x31] sm:$0xff]
      %v3360 = vld [vmem:[#allocation2 + $0x39] sm:$0xff]
      %v3361 = vld [vmem:[#allocation2 + $0x41] sm:$0xff]
      %v3362 = vld [vmem:[#allocation2 + $0x49] sm:$0xff]
      %v3363 = vld [vmem:[#allocation2 + $0x51] sm:$0xff]
      %v3364 = vld [vmem:[#allocation2 + $0x59] sm:$0xff]
      %v3365 = vld [vmem:[#allocation2 + $0x61] sm:$0xff]
      %v3366 = vld [vmem:[#allocation2 + $0x69] sm:$0xff]
      %v3367 = vld [vmem:[#allocation2 + $0x71] sm:$0xff]
      %v3368 = vld [vmem:[#allocation2 + $0x79] sm:$0xff]
      %v3369 = vld [vmem:[#allocation2 + $0x81] sm:$0xff]
      %v3370 = vld [vmem:[#allocation2 + $0x89] sm:$0xff]
      %v3371 = vld [vmem:[#allocation2 + $0x91] sm:$0xff]
      %v3372 = vld [vmem:[#allocation2 + $0x99] sm:$0xff]
      %v3373 = vld [vmem:[#allocation2 + $0xa1] sm:$0xff]
      %v3374 = vld [vmem:[#allocation2 + $0xa9] sm:$0xff]
      %v3375 = vld [vmem:[#allocation2 + $0xb1] sm:$0xff]
      %v3376 = vld [vmem:[#allocation2 + $0xb9] sm:$0xff]
      %v3377 = vld [vmem:[#allocation2 + $0xc1] sm:$0xff]
      %v3378 = vld [vmem:[#allocation2 + $0xc9] sm:$0xff]
      %v3379 = vld [vmem:[#allocation2 + $0xd1] sm:$0xff]
      %v3380 = vld [vmem:[#allocation2 + $0xd9] sm:$0xff]
      %v3381 = vld [vmem:[#allocation2 + $0xe1] sm:$0xff]
      %v3382 = vld [vmem:[#allocation2 + $0xe9] sm:$0xff]
      %v3383 = vld [vmem:[#allocation2 + $0xf1] sm:$0xff]
      %v3384 = vld [vmem:[#allocation2 + $0xf9] sm:$0xff]
      %v3385 = vld [vmem:[#allocation2 + $0x101] sm:$0xff]
      %v3386 = vld [vmem:[#allocation2 + $0x109] sm:$0xff]
      %v3387 = vld [vmem:[#allocation2 + $0x111] sm:$0xff]
      %v3388 = vld [vmem:[%s11] sm:$0xff]
      %v3389 = vld [vmem:[%s11 + $0x8] sm:$0xff]
      %v3390 = vld [vmem:[%s11 + $0x10] sm:$0xff]
      %v3391 = vld [vmem:[%s11 + $0x18] sm:$0xff]
      %v3392 = vld [vmem:[%s11 + $0x20] sm:$0xff]
      %v3393 = vld [vmem:[%s11 + $0x28] sm:$0xff]
      %v3394 = vld [vmem:[%s11 + $0x30] sm:$0xff]
      %v3395 = vld [vmem:[%s11 + $0x38] sm:$0xff]
      %v3396 = vld [vmem:[%s11 + $0x40] sm:$0xff]
      %v3397 = vld [vmem:[%s11 + $0x48] sm:$0xff]
      %v3398 = vld [vmem:[%s11 + $0x50] sm:$0xff]
      %v3399 = vld [vmem:[%s11 + $0x58] sm:$0xff]
      %v3400 = vld [vmem:[%s11 + $0x60] sm:$0xff]
      %v3401 = vld [vmem:[%s11 + $0x68] sm:$0xff]
      %v3402 = vld [vmem:[%s11 + $0x70] sm:$0xff]
      %v3403 = vld [vmem:[%s11 + $0x78] sm:$0xff]
      %v3404 = vld [vmem:[%s11 + $0x80] sm:$0xff]
      %v3405 = vld [vmem:[%s11 + $0x88] sm:$0xff]
      %v3406 = vld [vmem:[%s11 + $0x90] sm:$0xff]
      %v3407 = vld [vmem:[%s11 + $0x98] sm:$0xff]
      %v3408 = vld [vmem:[%s11 + $0xa0] sm:$0xff]
      %v3409 = vld [vmem:[%s11 + $0xa8] sm:$0xff]
      %v3410 = vld [vmem:[%s11 + $0xb0] sm:$0xff]
      %v3411 = vld [vmem:[%s11 + $0xb8] sm:$0xff]
      %v3412 = vld [vmem:[%s11 + $0xc0] sm:$0xff]
      %v3413 = vld [vmem:[%s11 + $0xc8] sm:$0xff]
      %v3414 = vld [vmem:[%s11 + $0xd0] sm:$0xff]
      %v3415 = vld [vmem:[%s11 + $0xd8] sm:$0xff]
      %v3416 = vld [vmem:[%s11 + $0xe0] sm:$0xff]
      %v3417 = vld [vmem:[%s11 + $0xe8] sm:$0xff]
      %v3418 = vld [vmem:[%s11 + $0xf0] sm:$0xff]
      %v3419 = vld [vmem:[%s11 + $0xf8] sm:$0xff]
      %3421 = vset.pattern.permute.xlu0 0
      %3422 = vperm.xlu0 %3421, %v3388
      %v3423 = vpop.permute.xlu0 %3422
      %3426 = vset.pattern.permute.xlu0 0
      %3427 = vperm.xlu0 %3426, %v3389
      %v3428 = vpop.permute.xlu0 %3427
      %3431 = vset.pattern.permute.xlu0 0
      %3432 = vperm.xlu0 %3431, %v3390
      %v3433 = vpop.permute.xlu0 %3432
      %3436 = vset.pattern.permute.xlu0 0
      %3437 = vperm.xlu0 %3436, %v3391
      %v3438 = vpop.permute.xlu0 %3437
      %3441 = vset.pattern.permute.xlu0 0
      %3442 = vperm.xlu0 %3441, %v3392
      %v3443 = vpop.permute.xlu0 %3442
      %3446 = vset.pattern.permute.xlu0 0
      %3447 = vperm.xlu0 %3446, %v3393
      %v3448 = vpop.permute.xlu0 %3447
      %3451 = vset.pattern.permute.xlu0 0
      %3452 = vperm.xlu0 %3451, %v3394
      %v3453 = vpop.permute.xlu0 %3452
      %3456 = vset.pattern.permute.xlu0 0
      %3457 = vperm.xlu0 %3456, %v3395
      %v3458 = vpop.permute.xlu0 %3457
      %3461 = vset.pattern.permute.xlu0 0
      %3462 = vperm.xlu0 %3461, %v3396
      %v3463 = vpop.permute.xlu0 %3462
      %3466 = vset.pattern.permute.xlu0 0
      %3467 = vperm.xlu0 %3466, %v3397
      %v3468 = vpop.permute.xlu0 %3467
      %3471 = vset.pattern.permute.xlu0 0
      %3472 = vperm.xlu0 %3471, %v3398
      %v3473 = vpop.permute.xlu0 %3472
      %3476 = vset.pattern.permute.xlu0 0
      %3477 = vperm.xlu0 %3476, %v3399
      %v3478 = vpop.permute.xlu0 %3477
      %3481 = vset.pattern.permute.xlu0 0
      %3482 = vperm.xlu0 %3481, %v3400
      %v3483 = vpop.permute.xlu0 %3482
      %3486 = vset.pattern.permute.xlu0 0
      %3487 = vperm.xlu0 %3486, %v3401
      %v3488 = vpop.permute.xlu0 %3487
      %3491 = vset.pattern.permute.xlu0 0
      %3492 = vperm.xlu0 %3491, %v3402
      %v3493 = vpop.permute.xlu0 %3492
      %3496 = vset.pattern.permute.xlu0 0
      %3497 = vperm.xlu0 %3496, %v3403
      %v3498 = vpop.permute.xlu0 %3497
      %3501 = vset.pattern.permute.xlu0 0
      %3502 = vperm.xlu0 %3501, %v3404
      %v3503 = vpop.permute.xlu0 %3502
      %3506 = vset.pattern.permute.xlu0 0
      %3507 = vperm.xlu0 %3506, %v3405
      %v3508 = vpop.permute.xlu0 %3507
      %3511 = vset.pattern.permute.xlu0 0
      %3512 = vperm.xlu0 %3511, %v3406
      %v3513 = vpop.permute.xlu0 %3512
      %3516 = vset.pattern.permute.xlu0 0
      %3517 = vperm.xlu0 %3516, %v3407
      %v3518 = vpop.permute.xlu0 %3517
      %3521 = vset.pattern.permute.xlu0 0
      %3522 = vperm.xlu0 %3521, %v3408
      %v3523 = vpop.permute.xlu0 %3522
      %3526 = vset.pattern.permute.xlu0 0
      %3527 = vperm.xlu0 %3526, %v3409
      %v3528 = vpop.permute.xlu0 %3527
      %3531 = vset.pattern.permute.xlu0 0
      %3532 = vperm.xlu0 %3531, %v3410
      %v3533 = vpop.permute.xlu0 %3532
      %3536 = vset.pattern.permute.xlu0 0
      %3537 = vperm.xlu0 %3536, %v3411
      %v3538 = vpop.permute.xlu0 %3537
      %3541 = vset.pattern.permute.xlu0 0
      %3542 = vperm.xlu0 %3541, %v3412
      %v3543 = vpop.permute.xlu0 %3542
      %3546 = vset.pattern.permute.xlu0 0
      %3547 = vperm.xlu0 %3546, %v3413
      %v3548 = vpop.permute.xlu0 %3547
      %3551 = vset.pattern.permute.xlu0 0
      %3552 = vperm.xlu0 %3551, %v3414
      %v3553 = vpop.permute.xlu0 %3552
      %3556 = vset.pattern.permute.xlu0 0
      %3557 = vperm.xlu0 %3556, %v3415
      %v3558 = vpop.permute.xlu0 %3557
      %3561 = vset.pattern.permute.xlu0 0
      %3562 = vperm.xlu0 %3561, %v3416
      %v3563 = vpop.permute.xlu0 %3562
      %3566 = vset.pattern.permute.xlu0 0
      %3567 = vperm.xlu0 %3566, %v3417
      %v3568 = vpop.permute.xlu0 %3567
      %3571 = vset.pattern.permute.xlu0 0
      %3572 = vperm.xlu0 %3571, %v3418
      %v3573 = vpop.permute.xlu0 %3572
      %3576 = vset.pattern.permute.xlu0 0
      %3577 = vperm.xlu0 %3576, %v3419
      %v3578 = vpop.permute.xlu0 %3577
      %v3580 = vmul.f32 %v3356, %v3423
      %v3581 = vmul.f32 %v3357, %v3428
      %v3582 = vmul.f32 %v3358, %v3433
      %v3583 = vmul.f32 %v3359, %v3438
      %v3584 = vmul.f32 %v3360, %v3443
      %v3585 = vmul.f32 %v3361, %v3448
      %v3586 = vmul.f32 %v3362, %v3453
      %v3587 = vmul.f32 %v3363, %v3458
      %v3588 = vmul.f32 %v3364, %v3463
      %v3589 = vmul.f32 %v3365, %v3468
      %v3590 = vmul.f32 %v3366, %v3473
      %v3591 = vmul.f32 %v3367, %v3478
      %v3592 = vmul.f32 %v3368, %v3483
      %v3593 = vmul.f32 %v3369, %v3488
      %v3594 = vmul.f32 %v3370, %v3493
      %v3595 = vmul.f32 %v3371, %v3498
      %v3596 = vmul.f32 %v3372, %v3503
      %v3597 = vmul.f32 %v3373, %v3508
      %v3598 = vmul.f32 %v3374, %v3513
      %v3599 = vmul.f32 %v3375, %v3518
      %v3600 = vmul.f32 %v3376, %v3523
      %v3601 = vmul.f32 %v3377, %v3528
      %v3602 = vmul.f32 %v3378, %v3533
      %v3603 = vmul.f32 %v3379, %v3538
      %v3604 = vmul.f32 %v3380, %v3543
      %v3605 = vmul.f32 %v3381, %v3548
      %v3606 = vmul.f32 %v3382, %v3553
      %v3607 = vmul.f32 %v3383, %v3558
      %v3608 = vmul.f32 %v3384, %v3563
      %v3609 = vmul.f32 %v3385, %v3568
      %v3610 = vmul.f32 %v3386, %v3573
      %v3611 = vmul.f32 %v3387, %v3578
      %v3612 = vld [vmem:[#allocation3] sm:$0xff]
      %v3613 = vld [vmem:[#allocation3 + $0x8] sm:$0xff]
      %v3614 = vld [vmem:[#allocation3 + $0x10] sm:$0xff]
      %v3615 = vld [vmem:[#allocation3 + $0x18] sm:$0xff]
      %v3616 = vld [vmem:[#allocation3 + $0x20] sm:$0xff]
      %v3617 = vld [vmem:[#allocation3 + $0x28] sm:$0xff]
      %v3618 = vld [vmem:[#allocation3 + $0x30] sm:$0xff]
      %v3619 = vld [vmem:[#allocation3 + $0x38] sm:$0xff]
      %v3620 = vld [vmem:[#allocation3 + $0x40] sm:$0xff]
      %v3621 = vld [vmem:[#allocation3 + $0x48] sm:$0xff]
      %v3622 = vld [vmem:[#allocation3 + $0x50] sm:$0xff]
      %v3623 = vld [vmem:[#allocation3 + $0x58] sm:$0xff]
      %v3624 = vld [vmem:[#allocation3 + $0x60] sm:$0xff]
      %v3625 = vld [vmem:[#allocation3 + $0x68] sm:$0xff]
      %v3626 = vld [vmem:[#allocation3 + $0x70] sm:$0xff]
      %v3627 = vld [vmem:[#allocation3 + $0x78] sm:$0xff]
      %v3628 = vld [vmem:[#allocation3 + $0x80] sm:$0xff]
      %v3629 = vld [vmem:[#allocation3 + $0x88] sm:$0xff]
      %v3630 = vld [vmem:[#allocation3 + $0x90] sm:$0xff]
      %v3631 = vld [vmem:[#allocation3 + $0x98] sm:$0xff]
      %v3632 = vld [vmem:[#allocation3 + $0xa0] sm:$0xff]
      %v3633 = vld [vmem:[#allocation3 + $0xa8] sm:$0xff]
      %v3634 = vld [vmem:[#allocation3 + $0xb0] sm:$0xff]
      %v3635 = vld [vmem:[#allocation3 + $0xb8] sm:$0xff]
      %v3636 = vld [vmem:[#allocation3 + $0xc0] sm:$0xff]
      %v3637 = vld [vmem:[#allocation3 + $0xc8] sm:$0xff]
      %v3638 = vld [vmem:[#allocation3 + $0xd0] sm:$0xff]
      %v3639 = vld [vmem:[#allocation3 + $0xd8] sm:$0xff]
      %v3640 = vld [vmem:[#allocation3 + $0xe0] sm:$0xff]
      %v3641 = vld [vmem:[#allocation3 + $0xe8] sm:$0xff]
      %v3642 = vld [vmem:[#allocation3 + $0xf0] sm:$0xff]
      %v3643 = vld [vmem:[#allocation3 + $0xf8] sm:$0xff]
      %v3644 = vpack.c.bf16 %v3581, %v3580
      %v3645 = vpack.c.bf16 %v3583, %v3582
      %v3646 = vpack.c.bf16 %v3585, %v3584
      %v3647 = vpack.c.bf16 %v3587, %v3586
      %v3648 = vpack.c.bf16 %v3589, %v3588
      %v3649 = vpack.c.bf16 %v3591, %v3590
      %v3650 = vpack.c.bf16 %v3593, %v3592
      %v3651 = vpack.c.bf16 %v3595, %v3594
      %v3652 = vpack.c.bf16 %v3597, %v3596
      %v3653 = vpack.c.bf16 %v3599, %v3598
      %v3654 = vpack.c.bf16 %v3601, %v3600
      %v3655 = vpack.c.bf16 %v3603, %v3602
      %v3656 = vpack.c.bf16 %v3605, %v3604
      %v3657 = vpack.c.bf16 %v3607, %v3606
      %v3658 = vpack.c.bf16 %v3609, %v3608
      %v3659 = vpack.c.bf16 %v3611, %v3610
      %s3660 = scalar_lea.vmem %s4, 10
      %v3661 = vld [vmem:[%s3660] sm:$0x3]
      %v3663 = vsel %vm791, %v3644, 0
      %v3666 = vsel %vm791, %v3645, 0
      %v3669 = vsel %vm791, %v3646, 0
      %v3672 = vsel %vm791, %v3647, 0
      %v3675 = vsel %vm791, %v3648, 0
      %v3678 = vsel %vm791, %v3649, 0
      %v3681 = vsel %vm791, %v3650, 0
      %v3684 = vsel %vm791, %v3651, 0
      %v3687 = vsel %vm791, %v3652, 0
      %v3690 = vsel %vm791, %v3653, 0
      %v3693 = vsel %vm791, %v3654, 0
      %v3696 = vsel %vm791, %v3655, 0
      %v3699 = vsel %vm791, %v3656, 0
      %v3702 = vsel %vm791, %v3657, 0
      %v3705 = vsel %vm791, %v3658, 0
      %v3708 = vsel %vm791, %v3659, 0
      %v3711 = vsel %vm1247, %v3661, 0
      %3713 = vmatprep.subr.bf16.mxu0 0
      %3714 = vmatpush1.bf16.msra.mxu0 %v3711
      %3715 = vmatprep.subr.bf16.mxu0 0
      %3716 = vmatpush1.bf16.msra.mxu0 0
      %3717 = vmatprep.subr.bf16.mxu0 0
      %3718 = vmatpush1.bf16.msra.mxu0 0
      %3719 = vmatprep.subr.bf16.mxu0 0
      %3720 = vmatpush1.bf16.msra.mxu0 0
      %3721 = vmatprep.subr.bf16.mxu0 0
      %3722 = vmatpush1.bf16.msra.mxu0 0
      %3723 = vmatprep.subr.bf16.mxu0 0
      %3724 = vmatpush1.bf16.msra.mxu0 0
      %3725 = vmatprep.subr.bf16.mxu0 0
      %3726 = vmatpush1.bf16.msra.mxu0 0
      %3727 = vmatprep.subr.bf16.mxu0 0
      %3728 = vmatpush1.bf16.msra.mxu0 0
      %3729 = vmatprep.subr.bf16.mxu0 0
      %3730 = vmatpush1.bf16.msra.mxu0 0
      %3731 = vmatprep.subr.bf16.mxu0 0
      %3732 = vmatpush1.bf16.msra.mxu0 0
      %3733 = vmatprep.subr.bf16.mxu0 0
      %3734 = vmatpush1.bf16.msra.mxu0 0
      %3735 = vmatprep.subr.bf16.mxu0 0
      %3736 = vmatpush1.bf16.msra.mxu0 0
      %3737 = vmatprep.subr.bf16.mxu0 0
      %3738 = vmatpush1.bf16.msra.mxu0 0
      %3739 = vmatprep.subr.bf16.mxu0 0
      %3740 = vmatpush1.bf16.msra.mxu0 0
      %3741 = vmatprep.subr.bf16.mxu0 0
      %3742 = vmatpush1.bf16.msra.mxu0 0
      %3743 = vmatprep.subr.bf16.mxu0 0
      %3744 = vmatpush1.bf16.msra.mxu0 0
      %3745 = vmatprep.mubr.bf16.mxu0 0
      %3746 = vmatmul.mubr.bf16.gmra.mrb[0].mxu0 %v3663
      %v3747 = vpop.f32.mrb[0].mxu0
      %v3748 = vadd.f32 0.0, %v3747
      %v3749 = vpop.f32.mrb[0].mxu0
      %v3750 = vpop.f32.mrb[0].mxu0
      %v3751 = vadd.f32 0.0, %v3750
      %v3752 = vpop.f32.mrb[0].mxu0
      %3753 = vmatprep.mubr.bf16.mxu0 0
      %3754 = vmatmul.mubr.bf16.gmra.mrb[0].mxu0 %v3666
      %v3755 = vpop.f32.mrb[0].mxu0
      %v3756 = vadd.f32 0.0, %v3755
      %v3757 = vpop.f32.mrb[0].mxu0
      %v3758 = vpop.f32.mrb[0].mxu0
      %v3759 = vadd.f32 0.0, %v3758
      %v3760 = vpop.f32.mrb[0].mxu0
      %3761 = vmatprep.mubr.bf16.mxu0 0
      %3762 = vmatmul.mubr.bf16.gmra.mrb[0].mxu0 %v3669
      %v3763 = vpop.f32.mrb[0].mxu0
      %v3764 = vadd.f32 0.0, %v3763
      %v3765 = vpop.f32.mrb[0].mxu0
      %v3766 = vpop.f32.mrb[0].mxu0
      %v3767 = vadd.f32 0.0, %v3766
      %v3768 = vpop.f32.mrb[0].mxu0
      %3769 = vmatprep.mubr.bf16.mxu0 0
      %3770 = vmatmul.mubr.bf16.gmra.mrb[0].mxu0 %v3672
      %v3771 = vpop.f32.mrb[0].mxu0
      %v3772 = vadd.f32 0.0, %v3771
      %v3773 = vpop.f32.mrb[0].mxu0
      %v3774 = vpop.f32.mrb[0].mxu0
      %v3775 = vadd.f32 0.0, %v3774
      %v3776 = vpop.f32.mrb[0].mxu0
      %3777 = vmatprep.mubr.bf16.mxu0 0
      %3778 = vmatmul.mubr.bf16.gmra.mrb[0].mxu0 %v3675
      %v3779 = vpop.f32.mrb[0].mxu0
      %v3780 = vadd.f32 0.0, %v3779
      %v3781 = vpop.f32.mrb[0].mxu0
      %v3782 = vpop.f32.mrb[0].mxu0
      %v3783 = vadd.f32 0.0, %v3782
      %v3784 = vpop.f32.mrb[0].mxu0
      %3785 = vmatprep.mubr.bf16.mxu0 0
      %3786 = vmatmul.mubr.bf16.gmra.mrb[0].mxu0 %v3678
      %v3787 = vpop.f32.mrb[0].mxu0
      %v3788 = vadd.f32 0.0, %v3787
      %v3789 = vpop.f32.mrb[0].mxu0
      %v3790 = vpop.f32.mrb[0].mxu0
      %v3791 = vadd.f32 0.0, %v3790
      %v3792 = vpop.f32.mrb[0].mxu0
      %3793 = vmatprep.mubr.bf16.mxu0 0
      %3794 = vmatmul.mubr.bf16.gmra.mrb[0].mxu0 %v3681
      %v3795 = vpop.f32.mrb[0].mxu0
      %v3796 = vadd.f32 0.0, %v3795
      %v3797 = vpop.f32.mrb[0].mxu0
      %v3798 = vpop.f32.mrb[0].mxu0
      %v3799 = vadd.f32 0.0, %v3798
      %v3800 = vpop.f32.mrb[0].mxu0
      %3801 = vmatprep.mubr.bf16.mxu0 0
      %3802 = vmatmul.mubr.bf16.gmra.mrb[0].mxu0 %v3684
      %v3803 = vpop.f32.mrb[0].mxu0
      %v3804 = vadd.f32 0.0, %v3803
      %v3805 = vpop.f32.mrb[0].mxu0
      %v3806 = vpop.f32.mrb[0].mxu0
      %v3807 = vadd.f32 0.0, %v3806
      %v3808 = vpop.f32.mrb[0].mxu0
      %3809 = vmatprep.mubr.bf16.mxu0 0
      %3810 = vmatmul.mubr.bf16.gmra.mrb[0].mxu0 %v3687
      %v3811 = vpop.f32.mrb[0].mxu0
      %v3812 = vadd.f32 0.0, %v3811
      %v3813 = vpop.f32.mrb[0].mxu0
      %v3814 = vpop.f32.mrb[0].mxu0
      %v3815 = vadd.f32 0.0, %v3814
      %v3816 = vpop.f32.mrb[0].mxu0
      %3817 = vmatprep.mubr.bf16.mxu0 0
      %3818 = vmatmul.mubr.bf16.gmra.mrb[0].mxu0 %v3690
      %v3819 = vpop.f32.mrb[0].mxu0
      %v3820 = vadd.f32 0.0, %v3819
      %v3821 = vpop.f32.mrb[0].mxu0
      %v3822 = vpop.f32.mrb[0].mxu0
      %v3823 = vadd.f32 0.0, %v3822
      %v3824 = vpop.f32.mrb[0].mxu0
      %3825 = vmatprep.mubr.bf16.mxu0 0
      %3826 = vmatmul.mubr.bf16.gmra.mrb[0].mxu0 %v3693
      %v3827 = vpop.f32.mrb[0].mxu0
      %v3828 = vadd.f32 0.0, %v3827
      %v3829 = vpop.f32.mrb[0].mxu0
      %v3830 = vpop.f32.mrb[0].mxu0
      %v3831 = vadd.f32 0.0, %v3830
      %v3832 = vpop.f32.mrb[0].mxu0
      %3833 = vmatprep.mubr.bf16.mxu0 0
      %3834 = vmatmul.mubr.bf16.gmra.mrb[0].mxu0 %v3696
      %v3835 = vpop.f32.mrb[0].mxu0
      %v3836 = vadd.f32 0.0, %v3835
      %v3837 = vpop.f32.mrb[0].mxu0
      %v3838 = vpop.f32.mrb[0].mxu0
      %v3839 = vadd.f32 0.0, %v3838
      %v3840 = vpop.f32.mrb[0].mxu0
      %3841 = vmatprep.mubr.bf16.mxu0 0
      %3842 = vmatmul.mubr.bf16.gmra.mrb[0].mxu0 %v3699
      %v3843 = vpop.f32.mrb[0].mxu0
      %v3844 = vadd.f32 0.0, %v3843
      %v3845 = vpop.f32.mrb[0].mxu0
      %v3846 = vpop.f32.mrb[0].mxu0
      %v3847 = vadd.f32 0.0, %v3846
      %v3848 = vpop.f32.mrb[0].mxu0
      %3849 = vmatprep.mubr.bf16.mxu0 0
      %3850 = vmatmul.mubr.bf16.gmra.mrb[0].mxu0 %v3702
      %v3851 = vpop.f32.mrb[0].mxu0
      %v3852 = vadd.f32 0.0, %v3851
      %v3853 = vpop.f32.mrb[0].mxu0
      %v3854 = vpop.f32.mrb[0].mxu0
      %v3855 = vadd.f32 0.0, %v3854
      %v3856 = vpop.f32.mrb[0].mxu0
      %3857 = vmatprep.mubr.bf16.mxu0 0
      %3858 = vmatmul.mubr.bf16.gmra.mrb[0].mxu0 %v3705
      %v3859 = vpop.f32.mrb[0].mxu0
      %v3860 = vadd.f32 0.0, %v3859
      %v3861 = vpop.f32.mrb[0].mxu0
      %v3862 = vpop.f32.mrb[0].mxu0
      %v3863 = vadd.f32 0.0, %v3862
      %v3864 = vpop.f32.mrb[0].mxu0
      %3865 = vmatprep.mubr.bf16.mxu0 0
      %3866 = vmatmul.mubr.bf16.gmra.mrb[0].mxu0 %v3708
      %v3867 = vpop.f32.mrb[0].mxu0
      %v3868 = vadd.f32 0.0, %v3867
      %v3869 = vpop.f32.mrb[0].mxu0
      %v3870 = vpop.f32.mrb[0].mxu0
      %v3871 = vadd.f32 0.0, %v3870
      %v3872 = vpop.f32.mrb[0].mxu0
      %3873 = vdwg.mxu0
      %v3874 = vadd.f32 %v3612, %v3748
      %v3875 = vadd.f32 %v3613, %v3751
      %v3876 = vadd.f32 %v3614, %v3756
      %v3877 = vadd.f32 %v3615, %v3759
      %v3878 = vadd.f32 %v3616, %v3764
      %v3879 = vadd.f32 %v3617, %v3767
      %v3880 = vadd.f32 %v3618, %v3772
      %v3881 = vadd.f32 %v3619, %v3775
      %v3882 = vadd.f32 %v3620, %v3780
      %v3883 = vadd.f32 %v3621, %v3783
      %v3884 = vadd.f32 %v3622, %v3788
      %v3885 = vadd.f32 %v3623, %v3791
      %v3886 = vadd.f32 %v3624, %v3796
      %v3887 = vadd.f32 %v3625, %v3799
      %v3888 = vadd.f32 %v3626, %v3804
      %v3889 = vadd.f32 %v3627, %v3807
      %v3890 = vadd.f32 %v3628, %v3812
      %v3891 = vadd.f32 %v3629, %v3815
      %v3892 = vadd.f32 %v3630, %v3820
      %v3893 = vadd.f32 %v3631, %v3823
      %v3894 = vadd.f32 %v3632, %v3828
      %v3895 = vadd.f32 %v3633, %v3831
      %v3896 = vadd.f32 %v3634, %v3836
      %v3897 = vadd.f32 %v3635, %v3839
      %v3898 = vadd.f32 %v3636, %v3844
      %v3899 = vadd.f32 %v3637, %v3847
      %v3900 = vadd.f32 %v3638, %v3852
      %v3901 = vadd.f32 %v3639, %v3855
      %v3902 = vadd.f32 %v3640, %v3860
      %v3903 = vadd.f32 %v3641, %v3863
      %v3904 = vadd.f32 %v3642, %v3868
      %v3905 = vadd.f32 %v3643, %v3871
      %3906 = vst.msk [vmem:[#allocation3] sm:$0xff] %vm791, %v3874
      %3907 = vst.msk [vmem:[#allocation3 + $0x8] sm:$0xff] %vm791, %v3875
      %3908 = vst.msk [vmem:[#allocation3 + $0x10] sm:$0xff] %vm791, %v3876
      %3909 = vst.msk [vmem:[#allocation3 + $0x18] sm:$0xff] %vm791, %v3877
      %3910 = vst.msk [vmem:[#allocation3 + $0x20] sm:$0xff] %vm791, %v3878
      %3911 = vst.msk [vmem:[#allocation3 + $0x28] sm:$0xff] %vm791, %v3879
      %3912 = vst.msk [vmem:[#allocation3 + $0x30] sm:$0xff] %vm791, %v3880
      %3913 = vst.msk [vmem:[#allocation3 + $0x38] sm:$0xff] %vm791, %v3881
      %3914 = vst.msk [vmem:[#allocation3 + $0x40] sm:$0xff] %vm791, %v3882
      %3915 = vst.msk [vmem:[#allocation3 + $0x48] sm:$0xff] %vm791, %v3883
      %3916 = vst.msk [vmem:[#allocation3 + $0x50] sm:$0xff] %vm791, %v3884
      %3917 = vst.msk [vmem:[#allocation3 + $0x58] sm:$0xff] %vm791, %v3885
      %3918 = vst.msk [vmem:[#allocation3 + $0x60] sm:$0xff] %vm791, %v3886
      %3919 = vst.msk [vmem:[#allocation3 + $0x68] sm:$0xff] %vm791, %v3887
      %3920 = vst.msk [vmem:[#allocation3 + $0x70] sm:$0xff] %vm791, %v3888
      %3921 = vst.msk [vmem:[#allocation3 + $0x78] sm:$0xff] %vm791, %v3889
      %3922 = vst.msk [vmem:[#allocation3 + $0x80] sm:$0xff] %vm791, %v3890
      %3923 = vst.msk [vmem:[#allocation3 + $0x88] sm:$0xff] %vm791, %v3891
      %3924 = vst.msk [vmem:[#allocation3 + $0x90] sm:$0xff] %vm791, %v3892
      %3925 = vst.msk [vmem:[#allocation3 + $0x98] sm:$0xff] %vm791, %v3893
      %3926 = vst.msk [vmem:[#allocation3 + $0xa0] sm:$0xff] %vm791, %v3894
      %3927 = vst.msk [vmem:[#allocation3 + $0xa8] sm:$0xff] %vm791, %v3895
      %3928 = vst.msk [vmem:[#allocation3 + $0xb0] sm:$0xff] %vm791, %v3896
      %3929 = vst.msk [vmem:[#allocation3 + $0xb8] sm:$0xff] %vm791, %v3897
      %3930 = vst.msk [vmem:[#allocation3 + $0xc0] sm:$0xff] %vm791, %v3898
      %3931 = vst.msk [vmem:[#allocation3 + $0xc8] sm:$0xff] %vm791, %v3899
      %3932 = vst.msk [vmem:[#allocation3 + $0xd0] sm:$0xff] %vm791, %v3900
      %3933 = vst.msk [vmem:[#allocation3 + $0xd8] sm:$0xff] %vm791, %v3901
      %3934 = vst.msk [vmem:[#allocation3 + $0xe0] sm:$0xff] %vm791, %v3902
      %3935 = vst.msk [vmem:[#allocation3 + $0xe8] sm:$0xff] %vm791, %v3903
      %3936 = vst.msk [vmem:[#allocation3 + $0xf0] sm:$0xff] %vm791, %v3904
      %3937 = vst.msk [vmem:[#allocation3 + $0xf8] sm:$0xff] %vm791, %v3905
      %v3938 = vld [vmem:[#allocation2 + $0x27] sm:$0xff]
      %v3939 = vld [vmem:[#allocation2 + $0x2f] sm:$0xff]
      %v3940 = vld [vmem:[#allocation2 + $0x37] sm:$0xff]
      %v3941 = vld [vmem:[#allocation2 + $0x3f] sm:$0xff]
      %v3942 = vld [vmem:[#allocation2 + $0x47] sm:$0xff]
      %v3943 = vld [vmem:[#allocation2 + $0x4f] sm:$0xff]
      %v3944 = vld [vmem:[#allocation2 + $0x57] sm:$0xff]
      %v3945 = vld [vmem:[#allocation2 + $0x5f] sm:$0xff]
      %v3946 = vld [vmem:[#allocation2 + $0x67] sm:$0xff]
      %v3947 = vld [vmem:[#allocation2 + $0x6f] sm:$0xff]
      %v3948 = vld [vmem:[#allocation2 + $0x77] sm:$0xff]
      %v3949 = vld [vmem:[#allocation2 + $0x7f] sm:$0xff]
      %v3950 = vld [vmem:[#allocation2 + $0x87] sm:$0xff]
      %v3951 = vld [vmem:[#allocation2 + $0x8f] sm:$0xff]
      %v3952 = vld [vmem:[#allocation2 + $0x97] sm:$0xff]
      %v3953 = vld [vmem:[#allocation2 + $0x9f] sm:$0xff]
      %v3954 = vld [vmem:[#allocation2 + $0xa7] sm:$0xff]
      %v3955 = vld [vmem:[#allocation2 + $0xaf] sm:$0xff]
      %v3956 = vld [vmem:[#allocation2 + $0xb7] sm:$0xff]
      %v3957 = vld [vmem:[#allocation2 + $0xbf] sm:$0xff]
      %v3958 = vld [vmem:[#allocation2 + $0xc7] sm:$0xff]
      %v3959 = vld [vmem:[#allocation2 + $0xcf] sm:$0xff]
      %v3960 = vld [vmem:[#allocation2 + $0xd7] sm:$0xff]
      %v3961 = vld [vmem:[#allocation2 + $0xdf] sm:$0xff]
      %v3962 = vld [vmem:[#allocation2 + $0xe7] sm:$0xff]
      %v3963 = vld [vmem:[#allocation2 + $0xef] sm:$0xff]
      %v3964 = vld [vmem:[#allocation2 + $0xf7] sm:$0xff]
      %v3965 = vld [vmem:[#allocation2 + $0xff] sm:$0xff]
      %v3966 = vld [vmem:[#allocation2 + $0x107] sm:$0xff]
      %v3967 = vld [vmem:[#allocation2 + $0x10f] sm:$0xff]
      %v3968 = vld [vmem:[#allocation2 + $0x117] sm:$0xff]
      %v3969 = vld [vmem:[#allocation2 + $0x11f] sm:$0xff]
      %v3970 = vld [vmem:[%s10] sm:$0xff]
      %v3971 = vld [vmem:[%s10 + $0x8] sm:$0xff]
      %v3972 = vld [vmem:[%s10 + $0x10] sm:$0xff]
      %v3973 = vld [vmem:[%s10 + $0x18] sm:$0xff]
      %v3974 = vld [vmem:[%s10 + $0x20] sm:$0xff]
      %v3975 = vld [vmem:[%s10 + $0x28] sm:$0xff]
      %v3976 = vld [vmem:[%s10 + $0x30] sm:$0xff]
      %v3977 = vld [vmem:[%s10 + $0x38] sm:$0xff]
      %v3978 = vld [vmem:[%s10 + $0x40] sm:$0xff]
      %v3979 = vld [vmem:[%s10 + $0x48] sm:$0xff]
      %v3980 = vld [vmem:[%s10 + $0x50] sm:$0xff]
      %v3981 = vld [vmem:[%s10 + $0x58] sm:$0xff]
      %v3982 = vld [vmem:[%s10 + $0x60] sm:$0xff]
      %v3983 = vld [vmem:[%s10 + $0x68] sm:$0xff]
      %v3984 = vld [vmem:[%s10 + $0x70] sm:$0xff]
      %v3985 = vld [vmem:[%s10 + $0x78] sm:$0xff]
      %v3986 = vld [vmem:[%s10 + $0x80] sm:$0xff]
      %v3987 = vld [vmem:[%s10 + $0x88] sm:$0xff]
      %v3988 = vld [vmem:[%s10 + $0x90] sm:$0xff]
      %v3989 = vld [vmem:[%s10 + $0x98] sm:$0xff]
      %v3990 = vld [vmem:[%s10 + $0xa0] sm:$0xff]
      %v3991 = vld [vmem:[%s10 + $0xa8] sm:$0xff]
      %v3992 = vld [vmem:[%s10 + $0xb0] sm:$0xff]
      %v3993 = vld [vmem:[%s10 + $0xb8] sm:$0xff]
      %v3994 = vld [vmem:[%s10 + $0xc0] sm:$0xff]
      %v3995 = vld [vmem:[%s10 + $0xc8] sm:$0xff]
      %v3996 = vld [vmem:[%s10 + $0xd0] sm:$0xff]
      %v3997 = vld [vmem:[%s10 + $0xd8] sm:$0xff]
      %v3998 = vld [vmem:[%s10 + $0xe0] sm:$0xff]
      %v3999 = vld [vmem:[%s10 + $0xe8] sm:$0xff]
      %v4000 = vld [vmem:[%s10 + $0xf0] sm:$0xff]
      %v4001 = vld [vmem:[%s10 + $0xf8] sm:$0xff]
      %4003 = vset.pattern.permute.xlu0 0
      %4004 = vperm.xlu0 %4003, %v3970
      %v4005 = vpop.permute.xlu0 %4004
      %4008 = vset.pattern.permute.xlu0 0
      %4009 = vperm.xlu0 %4008, %v3971
      %v4010 = vpop.permute.xlu0 %4009
      %4013 = vset.pattern.permute.xlu0 0
      %4014 = vperm.xlu0 %4013, %v3972
      %v4015 = vpop.permute.xlu0 %4014
      %4018 = vset.pattern.permute.xlu0 0
      %4019 = vperm.xlu0 %4018, %v3973
      %v4020 = vpop.permute.xlu0 %4019
      %4023 = vset.pattern.permute.xlu0 0
      %4024 = vperm.xlu0 %4023, %v3974
      %v4025 = vpop.permute.xlu0 %4024
      %4028 = vset.pattern.permute.xlu0 0
      %4029 = vperm.xlu0 %4028, %v3975
      %v4030 = vpop.permute.xlu0 %4029
      %4033 = vset.pattern.permute.xlu0 0
      %4034 = vperm.xlu0 %4033, %v3976
      %v4035 = vpop.permute.xlu0 %4034
      %4038 = vset.pattern.permute.xlu0 0
      %4039 = vperm.xlu0 %4038, %v3977
      %v4040 = vpop.permute.xlu0 %4039
      %4043 = vset.pattern.permute.xlu0 0
      %4044 = vperm.xlu0 %4043, %v3978
      %v4045 = vpop.permute.xlu0 %4044
      %4048 = vset.pattern.permute.xlu0 0
      %4049 = vperm.xlu0 %4048, %v3979
      %v4050 = vpop.permute.xlu0 %4049
      %4053 = vset.pattern.permute.xlu0 0
      %4054 = vperm.xlu0 %4053, %v3980
      %v4055 = vpop.permute.xlu0 %4054
      %4058 = vset.pattern.permute.xlu0 0
      %4059 = vperm.xlu0 %4058, %v3981
      %v4060 = vpop.permute.xlu0 %4059
      %4063 = vset.pattern.permute.xlu0 0
      %4064 = vperm.xlu0 %4063, %v3982
      %v4065 = vpop.permute.xlu0 %4064
      %4068 = vset.pattern.permute.xlu0 0
      %4069 = vperm.xlu0 %4068, %v3983
      %v4070 = vpop.permute.xlu0 %4069
      %4073 = vset.pattern.permute.xlu0 0
      %4074 = vperm.xlu0 %4073, %v3984
      %v4075 = vpop.permute.xlu0 %4074
      %4078 = vset.pattern.permute.xlu0 0
      %4079 = vperm.xlu0 %4078, %v3985
      %v4080 = vpop.permute.xlu0 %4079
      %4083 = vset.pattern.permute.xlu0 0
      %4084 = vperm.xlu0 %4083, %v3986
      %v4085 = vpop.permute.xlu0 %4084
      %4088 = vset.pattern.permute.xlu0 0
      %4089 = vperm.xlu0 %4088, %v3987
      %v4090 = vpop.permute.xlu0 %4089
      %4093 = vset.pattern.permute.xlu0 0
      %4094 = vperm.xlu0 %4093, %v3988
      %v4095 = vpop.permute.xlu0 %4094
      %4098 = vset.pattern.permute.xlu0 0
      %4099 = vperm.xlu0 %4098, %v3989
      %v4100 = vpop.permute.xlu0 %4099
      %4103 = vset.pattern.permute.xlu0 0
      %4104 = vperm.xlu0 %4103, %v3990
      %v4105 = vpop.permute.xlu0 %4104
      %4108 = vset.pattern.permute.xlu0 0
      %4109 = vperm.xlu0 %4108, %v3991
      %v4110 = vpop.permute.xlu0 %4109
      %4113 = vset.pattern.permute.xlu0 0
      %4114 = vperm.xlu0 %4113, %v3992
      %v4115 = vpop.permute.xlu0 %4114
      %4118 = vset.pattern.permute.xlu0 0
      %4119 = vperm.xlu0 %4118, %v3993
      %v4120 = vpop.permute.xlu0 %4119
      %4123 = vset.pattern.permute.xlu0 0
      %4124 = vperm.xlu0 %4123, %v3994
      %v4125 = vpop.permute.xlu0 %4124
      %4128 = vset.pattern.permute.xlu0 0
      %4129 = vperm.xlu0 %4128, %v3995
      %v4130 = vpop.permute.xlu0 %4129
      %4133 = vset.pattern.permute.xlu0 0
      %4134 = vperm.xlu0 %4133, %v3996
      %v4135 = vpop.permute.xlu0 %4134
      %4138 = vset.pattern.permute.xlu0 0
      %4139 = vperm.xlu0 %4138, %v3997
      %v4140 = vpop.permute.xlu0 %4139
      %4143 = vset.pattern.permute.xlu0 0
      %4144 = vperm.xlu0 %4143, %v3998
      %v4145 = vpop.permute.xlu0 %4144
      %4148 = vset.pattern.permute.xlu0 0
      %4149 = vperm.xlu0 %4148, %v3999
      %v4150 = vpop.permute.xlu0 %4149
      %4153 = vset.pattern.permute.xlu0 0
      %4154 = vperm.xlu0 %4153, %v4000
      %v4155 = vpop.permute.xlu0 %4154
      %4158 = vset.pattern.permute.xlu0 0
      %4159 = vperm.xlu0 %4158, %v4001
      %v4160 = vpop.permute.xlu0 %4159
      %v4162 = vmul.f32 %v3938, %v4005
      %v4163 = vmul.f32 %v3939, %v4010
      %v4164 = vmul.f32 %v3940, %v4015
      %v4165 = vmul.f32 %v3941, %v4020
      %v4166 = vmul.f32 %v3942, %v4025
      %v4167 = vmul.f32 %v3943, %v4030
      %v4168 = vmul.f32 %v3944, %v4035
      %v4169 = vmul.f32 %v3945, %v4040
      %v4170 = vmul.f32 %v3946, %v4045
      %v4171 = vmul.f32 %v3947, %v4050
      %v4172 = vmul.f32 %v3948, %v4055
      %v4173 = vmul.f32 %v3949, %v4060
      %v4174 = vmul.f32 %v3950, %v4065
      %v4175 = vmul.f32 %v3951, %v4070
      %v4176 = vmul.f32 %v3952, %v4075
      %v4177 = vmul.f32 %v3953, %v4080
      %v4178 = vmul.f32 %v3954, %v4085
      %v4179 = vmul.f32 %v3955, %v4090
      %v4180 = vmul.f32 %v3956, %v4095
      %v4181 = vmul.f32 %v3957, %v4100
      %v4182 = vmul.f32 %v3958, %v4105
      %v4183 = vmul.f32 %v3959, %v4110
      %v4184 = vmul.f32 %v3960, %v4115
      %v4185 = vmul.f32 %v3961, %v4120
      %v4186 = vmul.f32 %v3962, %v4125
      %v4187 = vmul.f32 %v3963, %v4130
      %v4188 = vmul.f32 %v3964, %v4135
      %v4189 = vmul.f32 %v3965, %v4140
      %v4190 = vmul.f32 %v3966, %v4145
      %v4191 = vmul.f32 %v3967, %v4150
      %v4192 = vmul.f32 %v3968, %v4155
      %v4193 = vmul.f32 %v3969, %v4160
      %v4194 = vld [vmem:[#allocation3] sm:$0xff]
      %v4195 = vld [vmem:[#allocation3 + $0x8] sm:$0xff]
      %v4196 = vld [vmem:[#allocation3 + $0x10] sm:$0xff]
      %v4197 = vld [vmem:[#allocation3 + $0x18] sm:$0xff]
      %v4198 = vld [vmem:[#allocation3 + $0x20] sm:$0xff]
      %v4199 = vld [vmem:[#allocation3 + $0x28] sm:$0xff]
      %v4200 = vld [vmem:[#allocation3 + $0x30] sm:$0xff]
      %v4201 = vld [vmem:[#allocation3 + $0x38] sm:$0xff]
      %v4202 = vld [vmem:[#allocation3 + $0x40] sm:$0xff]
      %v4203 = vld [vmem:[#allocation3 + $0x48] sm:$0xff]
      %v4204 = vld [vmem:[#allocation3 + $0x50] sm:$0xff]
      %v4205 = vld [vmem:[#allocation3 + $0x58] sm:$0xff]
      %v4206 = vld [vmem:[#allocation3 + $0x60] sm:$0xff]
      %v4207 = vld [vmem:[#allocation3 + $0x68] sm:$0xff]
      %v4208 = vld [vmem:[#allocation3 + $0x70] sm:$0xff]
      %v4209 = vld [vmem:[#allocation3 + $0x78] sm:$0xff]
      %v4210 = vld [vmem:[#allocation3 + $0x80] sm:$0xff]
      %v4211 = vld [vmem:[#allocation3 + $0x88] sm:$0xff]
      %v4212 = vld [vmem:[#allocation3 + $0x90] sm:$0xff]
      %v4213 = vld [vmem:[#allocation3 + $0x98] sm:$0xff]
      %v4214 = vld [vmem:[#allocation3 + $0xa0] sm:$0xff]
      %v4215 = vld [vmem:[#allocation3 + $0xa8] sm:$0xff]
      %v4216 = vld [vmem:[#allocation3 + $0xb0] sm:$0xff]
      %v4217 = vld [vmem:[#allocation3 + $0xb8] sm:$0xff]
      %v4218 = vld [vmem:[#allocation3 + $0xc0] sm:$0xff]
      %v4219 = vld [vmem:[#allocation3 + $0xc8] sm:$0xff]
      %v4220 = vld [vmem:[#allocation3 + $0xd0] sm:$0xff]
      %v4221 = vld [vmem:[#allocation3 + $0xd8] sm:$0xff]
      %v4222 = vld [vmem:[#allocation3 + $0xe0] sm:$0xff]
      %v4223 = vld [vmem:[#allocation3 + $0xe8] sm:$0xff]
      %v4224 = vld [vmem:[#allocation3 + $0xf0] sm:$0xff]
      %v4225 = vld [vmem:[#allocation3 + $0xf8] sm:$0xff]
      %v4226 = vpack.c.bf16 %v4163, %v4162
      %v4227 = vpack.c.bf16 %v4165, %v4164
      %v4228 = vpack.c.bf16 %v4167, %v4166
      %v4229 = vpack.c.bf16 %v4169, %v4168
      %v4230 = vpack.c.bf16 %v4171, %v4170
      %v4231 = vpack.c.bf16 %v4173, %v4172
      %v4232 = vpack.c.bf16 %v4175, %v4174
      %v4233 = vpack.c.bf16 %v4177, %v4176
      %v4234 = vpack.c.bf16 %v4179, %v4178
      %v4235 = vpack.c.bf16 %v4181, %v4180
      %v4236 = vpack.c.bf16 %v4183, %v4182
      %v4237 = vpack.c.bf16 %v4185, %v4184
      %v4238 = vpack.c.bf16 %v4187, %v4186
      %v4239 = vpack.c.bf16 %v4189, %v4188
      %v4240 = vpack.c.bf16 %v4191, %v4190
      %v4241 = vpack.c.bf16 %v4193, %v4192
      %s4242 = scalar_lea.vmem %s4, 12
      %v4243 = vld [vmem:[%s4242] sm:$0x3]
      %v4245 = vsel %vm791, %v4226, 0
      %v4248 = vsel %vm791, %v4227, 0
      %v4251 = vsel %vm791, %v4228, 0
      %v4254 = vsel %vm791, %v4229, 0
      %v4257 = vsel %vm791, %v4230, 0
      %v4260 = vsel %vm791, %v4231, 0
      %v4263 = vsel %vm791, %v4232, 0
      %v4266 = vsel %vm791, %v4233, 0
      %v4269 = vsel %vm791, %v4234, 0
      %v4272 = vsel %vm791, %v4235, 0
      %v4275 = vsel %vm791, %v4236, 0
      %v4278 = vsel %vm791, %v4237, 0
      %v4281 = vsel %vm791, %v4238, 0
      %v4284 = vsel %vm791, %v4239, 0
      %v4287 = vsel %vm791, %v4240, 0
      %v4290 = vsel %vm791, %v4241, 0
      %v4293 = vsel %vm1247, %v4243, 0
      %4295 = vmatprep.subr.bf16.mxu0 0
      %4296 = vmatpush1.bf16.msra.mxu0 %v4293
      %4297 = vmatprep.subr.bf16.mxu0 0
      %4298 = vmatpush1.bf16.msra.mxu0 0
      %4299 = vmatprep.subr.bf16.mxu0 0
      %4300 = vmatpush1.bf16.msra.mxu0 0
      %4301 = vmatprep.subr.bf16.mxu0 0
      %4302 = vmatpush1.bf16.msra.mxu0 0
      %4303 = vmatprep.subr.bf16.mxu0 0
      %4304 = vmatpush1.bf16.msra.mxu0 0
      %4305 = vmatprep.subr.bf16.mxu0 0
      %4306 = vmatpush1.bf16.msra.mxu0 0
      %4307 = vmatprep.subr.bf16.mxu0 0
      %4308 = vmatpush1.bf16.msra.mxu0 0
      %4309 = vmatprep.subr.bf16.mxu0 0
      %4310 = vmatpush1.bf16.msra.mxu0 0
      %4311 = vmatprep.subr.bf16.mxu0 0
      %4312 = vmatpush1.bf16.msra.mxu0 0
      %4313 = vmatprep.subr.bf16.mxu0 0
      %4314 = vmatpush1.bf16.msra.mxu0 0
      %4315 = vmatprep.subr.bf16.mxu0 0
      %4316 = vmatpush1.bf16.msra.mxu0 0
      %4317 = vmatprep.subr.bf16.mxu0 0
      %4318 = vmatpush1.bf16.msra.mxu0 0
      %4319 = vmatprep.subr.bf16.mxu0 0
      %4320 = vmatpush1.bf16.msra.mxu0 0
      %4321 = vmatprep.subr.bf16.mxu0 0
      %4322 = vmatpush1.bf16.msra.mxu0 0
      %4323 = vmatprep.subr.bf16.mxu0 0
      %4324 = vmatpush1.bf16.msra.mxu0 0
      %4325 = vmatprep.subr.bf16.mxu0 0
      %4326 = vmatpush1.bf16.msra.mxu0 0
      %4327 = vmatprep.mubr.bf16.mxu0 0
      %4328 = vmatmul.mubr.bf16.gmra.mrb[0].mxu0 %v4245
      %v4329 = vpop.f32.mrb[0].mxu0
      %v4330 = vadd.f32 0.0, %v4329
      %v4331 = vpop.f32.mrb[0].mxu0
      %v4332 = vpop.f32.mrb[0].mxu0
      %v4333 = vadd.f32 0.0, %v4332
      %v4334 = vpop.f32.mrb[0].mxu0
      %4335 = vmatprep.mubr.bf16.mxu0 0
      %4336 = vmatmul.mubr.bf16.gmra.mrb[0].mxu0 %v4248
      %v4337 = vpop.f32.mrb[0].mxu0
      %v4338 = vadd.f32 0.0, %v4337
      %v4339 = vpop.f32.mrb[0].mxu0
      %v4340 = vpop.f32.mrb[0].mxu0
      %v4341 = vadd.f32 0.0, %v4340
      %v4342 = vpop.f32.mrb[0].mxu0
      %4343 = vmatprep.mubr.bf16.mxu0 0
      %4344 = vmatmul.mubr.bf16.gmra.mrb[0].mxu0 %v4251
      %v4345 = vpop.f32.mrb[0].mxu0
      %v4346 = vadd.f32 0.0, %v4345
      %v4347 = vpop.f32.mrb[0].mxu0
      %v4348 = vpop.f32.mrb[0].mxu0
      %v4349 = vadd.f32 0.0, %v4348
      %v4350 = vpop.f32.mrb[0].mxu0
      %4351 = vmatprep.mubr.bf16.mxu0 0
      %4352 = vmatmul.mubr.bf16.gmra.mrb[0].mxu0 %v4254
      %v4353 = vpop.f32.mrb[0].mxu0
      %v4354 = vadd.f32 0.0, %v4353
      %v4355 = vpop.f32.mrb[0].mxu0
      %v4356 = vpop.f32.mrb[0].mxu0
      %v4357 = vadd.f32 0.0, %v4356
      %v4358 = vpop.f32.mrb[0].mxu0
      %4359 = vmatprep.mubr.bf16.mxu0 0
      %4360 = vmatmul.mubr.bf16.gmra.mrb[0].mxu0 %v4257
      %v4361 = vpop.f32.mrb[0].mxu0
      %v4362 = vadd.f32 0.0, %v4361
      %v4363 = vpop.f32.mrb[0].mxu0
      %v4364 = vpop.f32.mrb[0].mxu0
      %v4365 = vadd.f32 0.0, %v4364
      %v4366 = vpop.f32.mrb[0].mxu0
      %4367 = vmatprep.mubr.bf16.mxu0 0
      %4368 = vmatmul.mubr.bf16.gmra.mrb[0].mxu0 %v4260
      %v4369 = vpop.f32.mrb[0].mxu0
      %v4370 = vadd.f32 0.0, %v4369
      %v4371 = vpop.f32.mrb[0].mxu0
      %v4372 = vpop.f32.mrb[0].mxu0
      %v4373 = vadd.f32 0.0, %v4372
      %v4374 = vpop.f32.mrb[0].mxu0
      %4375 = vmatprep.mubr.bf16.mxu0 0
      %4376 = vmatmul.mubr.bf16.gmra.mrb[0].mxu0 %v4263
      %v4377 = vpop.f32.mrb[0].mxu0
      %v4378 = vadd.f32 0.0, %v4377
      %v4379 = vpop.f32.mrb[0].mxu0
      %v4380 = vpop.f32.mrb[0].mxu0
      %v4381 = vadd.f32 0.0, %v4380
      %v4382 = vpop.f32.mrb[0].mxu0
      %4383 = vmatprep.mubr.bf16.mxu0 0
      %4384 = vmatmul.mubr.bf16.gmra.mrb[0].mxu0 %v4266
      %v4385 = vpop.f32.mrb[0].mxu0
      %v4386 = vadd.f32 0.0, %v4385
      %v4387 = vpop.f32.mrb[0].mxu0
      %v4388 = vpop.f32.mrb[0].mxu0
      %v4389 = vadd.f32 0.0, %v4388
      %v4390 = vpop.f32.mrb[0].mxu0
      %4391 = vmatprep.mubr.bf16.mxu0 0
      %4392 = vmatmul.mubr.bf16.gmra.mrb[0].mxu0 %v4269
      %v4393 = vpop.f32.mrb[0].mxu0
      %v4394 = vadd.f32 0.0, %v4393
      %v4395 = vpop.f32.mrb[0].mxu0
      %v4396 = vpop.f32.mrb[0].mxu0
      %v4397 = vadd.f32 0.0, %v4396
      %v4398 = vpop.f32.mrb[0].mxu0
      %4399 = vmatprep.mubr.bf16.mxu0 0
      %4400 = vmatmul.mubr.bf16.gmra.mrb[0].mxu0 %v4272
      %v4401 = vpop.f32.mrb[0].mxu0
      %v4402 = vadd.f32 0.0, %v4401
      %v4403 = vpop.f32.mrb[0].mxu0
      %v4404 = vpop.f32.mrb[0].mxu0
      %v4405 = vadd.f32 0.0, %v4404
      %v4406 = vpop.f32.mrb[0].mxu0
      %4407 = vmatprep.mubr.bf16.mxu0 0
      %4408 = vmatmul.mubr.bf16.gmra.mrb[0].mxu0 %v4275
      %v4409 = vpop.f32.mrb[0].mxu0
      %v4410 = vadd.f32 0.0, %v4409
      %v4411 = vpop.f32.mrb[0].mxu0
      %v4412 = vpop.f32.mrb[0].mxu0
      %v4413 = vadd.f32 0.0, %v4412
      %v4414 = vpop.f32.mrb[0].mxu0
      %4415 = vmatprep.mubr.bf16.mxu0 0
      %4416 = vmatmul.mubr.bf16.gmra.mrb[0].mxu0 %v4278
      %v4417 = vpop.f32.mrb[0].mxu0
      %v4418 = vadd.f32 0.0, %v4417
      %v4419 = vpop.f32.mrb[0].mxu0
      %v4420 = vpop.f32.mrb[0].mxu0
      %v4421 = vadd.f32 0.0, %v4420
      %v4422 = vpop.f32.mrb[0].mxu0
      %4423 = vmatprep.mubr.bf16.mxu0 0
      %4424 = vmatmul.mubr.bf16.gmra.mrb[0].mxu0 %v4281
      %v4425 = vpop.f32.mrb[0].mxu0
      %v4426 = vadd.f32 0.0, %v4425
      %v4427 = vpop.f32.mrb[0].mxu0
      %v4428 = vpop.f32.mrb[0].mxu0
      %v4429 = vadd.f32 0.0, %v4428
      %v4430 = vpop.f32.mrb[0].mxu0
      %4431 = vmatprep.mubr.bf16.mxu0 0
      %4432 = vmatmul.mubr.bf16.gmra.mrb[0].mxu0 %v4284
      %v4433 = vpop.f32.mrb[0].mxu0
      %v4434 = vadd.f32 0.0, %v4433
      %v4435 = vpop.f32.mrb[0].mxu0
      %v4436 = vpop.f32.mrb[0].mxu0
      %v4437 = vadd.f32 0.0, %v4436
      %v4438 = vpop.f32.mrb[0].mxu0
      %4439 = vmatprep.mubr.bf16.mxu0 0
      %4440 = vmatmul.mubr.bf16.gmra.mrb[0].mxu0 %v4287
      %v4441 = vpop.f32.mrb[0].mxu0
      %v4442 = vadd.f32 0.0, %v4441
      %v4443 = vpop.f32.mrb[0].mxu0
      %v4444 = vpop.f32.mrb[0].mxu0
      %v4445 = vadd.f32 0.0, %v4444
      %v4446 = vpop.f32.mrb[0].mxu0
      %4447 = vmatprep.mubr.bf16.mxu0 0
      %4448 = vmatmul.mubr.bf16.gmra.mrb[0].mxu0 %v4290
      %v4449 = vpop.f32.mrb[0].mxu0
      %v4450 = vadd.f32 0.0, %v4449
      %v4451 = vpop.f32.mrb[0].mxu0
      %v4452 = vpop.f32.mrb[0].mxu0
      %v4453 = vadd.f32 0.0, %v4452
      %v4454 = vpop.f32.mrb[0].mxu0
      %4455 = vdwg.mxu0
      %v4456 = vadd.f32 %v4194, %v4330
      %v4457 = vadd.f32 %v4195, %v4333
      %v4458 = vadd.f32 %v4196, %v4338
      %v4459 = vadd.f32 %v4197, %v4341
      %v4460 = vadd.f32 %v4198, %v4346
      %v4461 = vadd.f32 %v4199, %v4349
      %v4462 = vadd.f32 %v4200, %v4354
      %v4463 = vadd.f32 %v4201, %v4357
      %v4464 = vadd.f32 %v4202, %v4362
      %v4465 = vadd.f32 %v4203, %v4365
      %v4466 = vadd.f32 %v4204, %v4370
      %v4467 = vadd.f32 %v4205, %v4373
      %v4468 = vadd.f32 %v4206, %v4378
      %v4469 = vadd.f32 %v4207, %v4381
      %v4470 = vadd.f32 %v4208, %v4386
      %v4471 = vadd.f32 %v4209, %v4389
      %v4472 = vadd.f32 %v4210, %v4394
      %v4473 = vadd.f32 %v4211, %v4397
      %v4474 = vadd.f32 %v4212, %v4402
      %v4475 = vadd.f32 %v4213, %v4405
      %v4476 = vadd.f32 %v4214, %v4410
      %v4477 = vadd.f32 %v4215, %v4413
      %v4478 = vadd.f32 %v4216, %v4418
      %v4479 = vadd.f32 %v4217, %v4421
      %v4480 = vadd.f32 %v4218, %v4426
      %v4481 = vadd.f32 %v4219, %v4429
      %v4482 = vadd.f32 %v4220, %v4434
      %v4483 = vadd.f32 %v4221, %v4437
      %v4484 = vadd.f32 %v4222, %v4442
      %v4485 = vadd.f32 %v4223, %v4445
      %v4486 = vadd.f32 %v4224, %v4450
      %v4487 = vadd.f32 %v4225, %v4453
      %4488 = vst.msk [vmem:[#allocation3] sm:$0xff] %vm791, %v4456
      %4489 = vst.msk [vmem:[#allocation3 + $0x8] sm:$0xff] %vm791, %v4457
      %4490 = vst.msk [vmem:[#allocation3 + $0x10] sm:$0xff] %vm791, %v4458
      %4491 = vst.msk [vmem:[#allocation3 + $0x18] sm:$0xff] %vm791, %v4459
      %4492 = vst.msk [vmem:[#allocation3 + $0x20] sm:$0xff] %vm791, %v4460
      %4493 = vst.msk [vmem:[#allocation3 + $0x28] sm:$0xff] %vm791, %v4461
      %4494 = vst.msk [vmem:[#allocation3 + $0x30] sm:$0xff] %vm791, %v4462
      %4495 = vst.msk [vmem:[#allocation3 + $0x38] sm:$0xff] %vm791, %v4463
      %4496 = vst.msk [vmem:[#allocation3 + $0x40] sm:$0xff] %vm791, %v4464
      %4497 = vst.msk [vmem:[#allocation3 + $0x48] sm:$0xff] %vm791, %v4465
      %4498 = vst.msk [vmem:[#allocation3 + $0x50] sm:$0xff] %vm791, %v4466
      %4499 = vst.msk [vmem:[#allocation3 + $0x58] sm:$0xff] %vm791, %v4467
      %4500 = vst.msk [vmem:[#allocation3 + $0x60] sm:$0xff] %vm791, %v4468
      %4501 = vst.msk [vmem:[#allocation3 + $0x68] sm:$0xff] %vm791, %v4469
      %4502 = vst.msk [vmem:[#allocation3 + $0x70] sm:$0xff] %vm791, %v4470
      %4503 = vst.msk [vmem:[#allocation3 + $0x78] sm:$0xff] %vm791, %v4471
      %4504 = vst.msk [vmem:[#allocation3 + $0x80] sm:$0xff] %vm791, %v4472
      %4505 = vst.msk [vmem:[#allocation3 + $0x88] sm:$0xff] %vm791, %v4473
      %4506 = vst.msk [vmem:[#allocation3 + $0x90] sm:$0xff] %vm791, %v4474
      %4507 = vst.msk [vmem:[#allocation3 + $0x98] sm:$0xff] %vm791, %v4475
      %4508 = vst.msk [vmem:[#allocation3 + $0xa0] sm:$0xff] %vm791, %v4476
      %4509 = vst.msk [vmem:[#allocation3 + $0xa8] sm:$0xff] %vm791, %v4477
      %4510 = vst.msk [vmem:[#allocation3 + $0xb0] sm:$0xff] %vm791, %v4478
      %4511 = vst.msk [vmem:[#allocation3 + $0xb8] sm:$0xff] %vm791, %v4479
      %4512 = vst.msk [vmem:[#allocation3 + $0xc0] sm:$0xff] %vm791, %v4480
      %4513 = vst.msk [vmem:[#allocation3 + $0xc8] sm:$0xff] %vm791, %v4481
      %4514 = vst.msk [vmem:[#allocation3 + $0xd0] sm:$0xff] %vm791, %v4482
      %4515 = vst.msk [vmem:[#allocation3 + $0xd8] sm:$0xff] %vm791, %v4483
      %4516 = vst.msk [vmem:[#allocation3 + $0xe0] sm:$0xff] %vm791, %v4484
      %4517 = vst.msk [vmem:[#allocation3 + $0xe8] sm:$0xff] %vm791, %v4485
      %4518 = vst.msk [vmem:[#allocation3 + $0xf0] sm:$0xff] %vm791, %v4486
      %4519 = vst.msk [vmem:[#allocation3 + $0xf8] sm:$0xff] %vm791, %v4487
      %v4520 = vld [vmem:[#allocation2 + $0x28] sm:$0xff]
      %v4521 = vld [vmem:[#allocation2 + $0x30] sm:$0xff]
      %v4522 = vld [vmem:[#allocation2 + $0x38] sm:$0xff]
      %v4523 = vld [vmem:[#allocation2 + $0x40] sm:$0xff]
      %v4524 = vld [vmem:[#allocation2 + $0x48] sm:$0xff]
      %v4525 = vld [vmem:[#allocation2 + $0x50] sm:$0xff]
      %v4526 = vld [vmem:[#allocation2 + $0x58] sm:$0xff]
      %v4527 = vld [vmem:[#allocation2 + $0x60] sm:$0xff]
      %v4528 = vld [vmem:[#allocation2 + $0x68] sm:$0xff]
      %v4529 = vld [vmem:[#allocation2 + $0x70] sm:$0xff]
      %v4530 = vld [vmem:[#allocation2 + $0x78] sm:$0xff]
      %v4531 = vld [vmem:[#allocation2 + $0x80] sm:$0xff]
      %v4532 = vld [vmem:[#allocation2 + $0x88] sm:$0xff]
      %v4533 = vld [vmem:[#allocation2 + $0x90] sm:$0xff]
      %v4534 = vld [vmem:[#allocation2 + $0x98] sm:$0xff]
      %v4535 = vld [vmem:[#allocation2 + $0xa0] sm:$0xff]
      %v4536 = vld [vmem:[#allocation2 + $0xa8] sm:$0xff]
      %v4537 = vld [vmem:[#allocation2 + $0xb0] sm:$0xff]
      %v4538 = vld [vmem:[#allocation2 + $0xb8] sm:$0xff]
      %v4539 = vld [vmem:[#allocation2 + $0xc0] sm:$0xff]
      %v4540 = vld [vmem:[#allocation2 + $0xc8] sm:$0xff]
      %v4541 = vld [vmem:[#allocation2 + $0xd0] sm:$0xff]
      %v4542 = vld [vmem:[#allocation2 + $0xd8] sm:$0xff]
      %v4543 = vld [vmem:[#allocation2 + $0xe0] sm:$0xff]
      %v4544 = vld [vmem:[#allocation2 + $0xe8] sm:$0xff]
      %v4545 = vld [vmem:[#allocation2 + $0xf0] sm:$0xff]
      %v4546 = vld [vmem:[#allocation2 + $0xf8] sm:$0xff]
      %v4547 = vld [vmem:[#allocation2 + $0x100] sm:$0xff]
      %v4548 = vld [vmem:[#allocation2 + $0x108] sm:$0xff]
      %v4549 = vld [vmem:[#allocation2 + $0x110] sm:$0xff]
      %v4550 = vld [vmem:[#allocation2 + $0x118] sm:$0xff]
      %v4551 = vld [vmem:[#allocation2 + $0x120] sm:$0xff]
      %v4552 = vld [vmem:[#allocation3] sm:$0xff]
      %v4553 = vld [vmem:[#allocation3 + $0x8] sm:$0xff]
      %v4554 = vld [vmem:[#allocation3 + $0x10] sm:$0xff]
      %v4555 = vld [vmem:[#allocation3 + $0x18] sm:$0xff]
      %v4556 = vld [vmem:[#allocation3 + $0x20] sm:$0xff]
      %v4557 = vld [vmem:[#allocation3 + $0x28] sm:$0xff]
      %v4558 = vld [vmem:[#allocation3 + $0x30] sm:$0xff]
      %v4559 = vld [vmem:[#allocation3 + $0x38] sm:$0xff]
      %v4560 = vld [vmem:[#allocation3 + $0x40] sm:$0xff]
      %v4561 = vld [vmem:[#allocation3 + $0x48] sm:$0xff]
      %v4562 = vld [vmem:[#allocation3 + $0x50] sm:$0xff]
      %v4563 = vld [vmem:[#allocation3 + $0x58] sm:$0xff]
      %v4564 = vld [vmem:[#allocation3 + $0x60] sm:$0xff]
      %v4565 = vld [vmem:[#allocation3 + $0x68] sm:$0xff]
      %v4566 = vld [vmem:[#allocation3 + $0x70] sm:$0xff]
      %v4567 = vld [vmem:[#allocation3 + $0x78] sm:$0xff]
      %v4568 = vld [vmem:[#allocation3 + $0x80] sm:$0xff]
      %v4569 = vld [vmem:[#allocation3 + $0x88] sm:$0xff]
      %v4570 = vld [vmem:[#allocation3 + $0x90] sm:$0xff]
      %v4571 = vld [vmem:[#allocation3 + $0x98] sm:$0xff]
      %v4572 = vld [vmem:[#allocation3 + $0xa0] sm:$0xff]
      %v4573 = vld [vmem:[#allocation3 + $0xa8] sm:$0xff]
      %v4574 = vld [vmem:[#allocation3 + $0xb0] sm:$0xff]
      %v4575 = vld [vmem:[#allocation3 + $0xb8] sm:$0xff]
      %v4576 = vld [vmem:[#allocation3 + $0xc0] sm:$0xff]
      %v4577 = vld [vmem:[#allocation3 + $0xc8] sm:$0xff]
      %v4578 = vld [vmem:[#allocation3 + $0xd0] sm:$0xff]
      %v4579 = vld [vmem:[#allocation3 + $0xd8] sm:$0xff]
      %v4580 = vld [vmem:[#allocation3 + $0xe0] sm:$0xff]
      %v4581 = vld [vmem:[#allocation3 + $0xe8] sm:$0xff]
      %v4582 = vld [vmem:[#allocation3 + $0xf0] sm:$0xff]
      %v4583 = vld [vmem:[#allocation3 + $0xf8] sm:$0xff]
      %v4584 = vpack.c.bf16 %v4521, %v4520
      %v4585 = vpack.c.bf16 %v4523, %v4522
      %v4586 = vpack.c.bf16 %v4525, %v4524
      %v4587 = vpack.c.bf16 %v4527, %v4526
      %v4588 = vpack.c.bf16 %v4529, %v4528
      %v4589 = vpack.c.bf16 %v4531, %v4530
      %v4590 = vpack.c.bf16 %v4533, %v4532
      %v4591 = vpack.c.bf16 %v4535, %v4534
      %v4592 = vpack.c.bf16 %v4537, %v4536
      %v4593 = vpack.c.bf16 %v4539, %v4538
      %v4594 = vpack.c.bf16 %v4541, %v4540
      %v4595 = vpack.c.bf16 %v4543, %v4542
      %v4596 = vpack.c.bf16 %v4545, %v4544
      %v4597 = vpack.c.bf16 %v4547, %v4546
      %v4598 = vpack.c.bf16 %v4549, %v4548
      %v4599 = vpack.c.bf16 %v4551, %v4550
      %s4600 = scalar_lea.vmem %s4, 14
      %v4601 = vld [vmem:[%s4600] sm:$0x3]
      %v4603 = vsel %vm791, %v4584, 0
      %v4606 = vsel %vm791, %v4585, 0
      %v4609 = vsel %vm791, %v4586, 0
      %v4612 = vsel %vm791, %v4587, 0
      %v4615 = vsel %vm791, %v4588, 0
      %v4618 = vsel %vm791, %v4589, 0
      %v4621 = vsel %vm791, %v4590, 0
      %v4624 = vsel %vm791, %v4591, 0
      %v4627 = vsel %vm791, %v4592, 0
      %v4630 = vsel %vm791, %v4593, 0
      %v4633 = vsel %vm791, %v4594, 0
      %v4636 = vsel %vm791, %v4595, 0
      %v4639 = vsel %vm791, %v4596, 0
      %v4642 = vsel %vm791, %v4597, 0
      %v4645 = vsel %vm791, %v4598, 0
      %v4648 = vsel %vm791, %v4599, 0
      %v4651 = vsel %vm1247, %v4601, 0
      %4653 = vmatprep.subr.bf16.mxu0 0
      %4654 = vmatpush1.bf16.msra.mxu0 %v4651
      %4655 = vmatprep.subr.bf16.mxu0 0
      %4656 = vmatpush1.bf16.msra.mxu0 0
      %4657 = vmatprep.subr.bf16.mxu0 0
      %4658 = vmatpush1.bf16.msra.mxu0 0
      %4659 = vmatprep.subr.bf16.mxu0 0
      %4660 = vmatpush1.bf16.msra.mxu0 0
      %4661 = vmatprep.subr.bf16.mxu0 0
      %4662 = vmatpush1.bf16.msra.mxu0 0
      %4663 = vmatprep.subr.bf16.mxu0 0
      %4664 = vmatpush1.bf16.msra.mxu0 0
      %4665 = vmatprep.subr.bf16.mxu0 0
      %4666 = vmatpush1.bf16.msra.mxu0 0
      %4667 = vmatprep.subr.bf16.mxu0 0
      %4668 = vmatpush1.bf16.msra.mxu0 0
      %4669 = vmatprep.subr.bf16.mxu0 0
      %4670 = vmatpush1.bf16.msra.mxu0 0
      %4671 = vmatprep.subr.bf16.mxu0 0
      %4672 = vmatpush1.bf16.msra.mxu0 0
      %4673 = vmatprep.subr.bf16.mxu0 0
      %4674 = vmatpush1.bf16.msra.mxu0 0
      %4675 = vmatprep.subr.bf16.mxu0 0
      %4676 = vmatpush1.bf16.msra.mxu0 0
      %4677 = vmatprep.subr.bf16.mxu0 0
      %4678 = vmatpush1.bf16.msra.mxu0 0
      %4679 = vmatprep.subr.bf16.mxu0 0
      %4680 = vmatpush1.bf16.msra.mxu0 0
      %4681 = vmatprep.subr.bf16.mxu0 0
      %4682 = vmatpush1.bf16.msra.mxu0 0
      %4683 = vmatprep.subr.bf16.mxu0 0
      %4684 = vmatpush1.bf16.msra.mxu0 0
      %4685 = vmatprep.mubr.bf16.mxu0 0
      %4686 = vmatmul.mubr.bf16.gmra.mrb[0].mxu0 %v4603
      %v4687 = vpop.f32.mrb[0].mxu0
      %v4688 = vadd.f32 0.0, %v4687
      %v4689 = vpop.f32.mrb[0].mxu0
      %v4690 = vpop.f32.mrb[0].mxu0
      %v4691 = vadd.f32 0.0, %v4690
      %v4692 = vpop.f32.mrb[0].mxu0
      %4693 = vmatprep.mubr.bf16.mxu0 0
      %4694 = vmatmul.mubr.bf16.gmra.mrb[0].mxu0 %v4606
      %v4695 = vpop.f32.mrb[0].mxu0
      %v4696 = vadd.f32 0.0, %v4695
      %v4697 = vpop.f32.mrb[0].mxu0
      %v4698 = vpop.f32.mrb[0].mxu0
      %v4699 = vadd.f32 0.0, %v4698
      %v4700 = vpop.f32.mrb[0].mxu0
      %4701 = vmatprep.mubr.bf16.mxu0 0
      %4702 = vmatmul.mubr.bf16.gmra.mrb[0].mxu0 %v4609
      %v4703 = vpop.f32.mrb[0].mxu0
      %v4704 = vadd.f32 0.0, %v4703
      %v4705 = vpop.f32.mrb[0].mxu0
      %v4706 = vpop.f32.mrb[0].mxu0
      %v4707 = vadd.f32 0.0, %v4706
      %v4708 = vpop.f32.mrb[0].mxu0
      %4709 = vmatprep.mubr.bf16.mxu0 0
      %4710 = vmatmul.mubr.bf16.gmra.mrb[0].mxu0 %v4612
      %v4711 = vpop.f32.mrb[0].mxu0
      %v4712 = vadd.f32 0.0, %v4711
      %v4713 = vpop.f32.mrb[0].mxu0
      %v4714 = vpop.f32.mrb[0].mxu0
      %v4715 = vadd.f32 0.0, %v4714
      %v4716 = vpop.f32.mrb[0].mxu0
      %4717 = vmatprep.mubr.bf16.mxu0 0
      %4718 = vmatmul.mubr.bf16.gmra.mrb[0].mxu0 %v4615
      %v4719 = vpop.f32.mrb[0].mxu0
      %v4720 = vadd.f32 0.0, %v4719
      %v4721 = vpop.f32.mrb[0].mxu0
      %v4722 = vpop.f32.mrb[0].mxu0
      %v4723 = vadd.f32 0.0, %v4722
      %v4724 = vpop.f32.mrb[0].mxu0
      %4725 = vmatprep.mubr.bf16.mxu0 0
      %4726 = vmatmul.mubr.bf16.gmra.mrb[0].mxu0 %v4618
      %v4727 = vpop.f32.mrb[0].mxu0
      %v4728 = vadd.f32 0.0, %v4727
      %v4729 = vpop.f32.mrb[0].mxu0
      %v4730 = vpop.f32.mrb[0].mxu0
      %v4731 = vadd.f32 0.0, %v4730
      %v4732 = vpop.f32.mrb[0].mxu0
      %4733 = vmatprep.mubr.bf16.mxu0 0
      %4734 = vmatmul.mubr.bf16.gmra.mrb[0].mxu0 %v4621
      %v4735 = vpop.f32.mrb[0].mxu0
      %v4736 = vadd.f32 0.0, %v4735
      %v4737 = vpop.f32.mrb[0].mxu0
      %v4738 = vpop.f32.mrb[0].mxu0
      %v4739 = vadd.f32 0.0, %v4738
      %v4740 = vpop.f32.mrb[0].mxu0
      %4741 = vmatprep.mubr.bf16.mxu0 0
      %4742 = vmatmul.mubr.bf16.gmra.mrb[0].mxu0 %v4624
      %v4743 = vpop.f32.mrb[0].mxu0
      %v4744 = vadd.f32 0.0, %v4743
      %v4745 = vpop.f32.mrb[0].mxu0
      %v4746 = vpop.f32.mrb[0].mxu0
      %v4747 = vadd.f32 0.0, %v4746
      %v4748 = vpop.f32.mrb[0].mxu0
      %4749 = vmatprep.mubr.bf16.mxu0 0
      %4750 = vmatmul.mubr.bf16.gmra.mrb[0].mxu0 %v4627
      %v4751 = vpop.f32.mrb[0].mxu0
      %v4752 = vadd.f32 0.0, %v4751
      %v4753 = vpop.f32.mrb[0].mxu0
      %v4754 = vpop.f32.mrb[0].mxu0
      %v4755 = vadd.f32 0.0, %v4754
      %v4756 = vpop.f32.mrb[0].mxu0
      %4757 = vmatprep.mubr.bf16.mxu0 0
      %4758 = vmatmul.mubr.bf16.gmra.mrb[0].mxu0 %v4630
      %v4759 = vpop.f32.mrb[0].mxu0
      %v4760 = vadd.f32 0.0, %v4759
      %v4761 = vpop.f32.mrb[0].mxu0
      %v4762 = vpop.f32.mrb[0].mxu0
      %v4763 = vadd.f32 0.0, %v4762
      %v4764 = vpop.f32.mrb[0].mxu0
      %4765 = vmatprep.mubr.bf16.mxu0 0
      %4766 = vmatmul.mubr.bf16.gmra.mrb[0].mxu0 %v4633
      %v4767 = vpop.f32.mrb[0].mxu0
      %v4768 = vadd.f32 0.0, %v4767
      %v4769 = vpop.f32.mrb[0].mxu0
      %v4770 = vpop.f32.mrb[0].mxu0
      %v4771 = vadd.f32 0.0, %v4770
      %v4772 = vpop.f32.mrb[0].mxu0
      %4773 = vmatprep.mubr.bf16.mxu0 0
      %4774 = vmatmul.mubr.bf16.gmra.mrb[0].mxu0 %v4636
      %v4775 = vpop.f32.mrb[0].mxu0
      %v4776 = vadd.f32 0.0, %v4775
      %v4777 = vpop.f32.mrb[0].mxu0
      %v4778 = vpop.f32.mrb[0].mxu0
      %v4779 = vadd.f32 0.0, %v4778
      %v4780 = vpop.f32.mrb[0].mxu0
      %4781 = vmatprep.mubr.bf16.mxu0 0
      %4782 = vmatmul.mubr.bf16.gmra.mrb[0].mxu0 %v4639
      %v4783 = vpop.f32.mrb[0].mxu0
      %v4784 = vadd.f32 0.0, %v4783
      %v4785 = vpop.f32.mrb[0].mxu0
      %v4786 = vpop.f32.mrb[0].mxu0
      %v4787 = vadd.f32 0.0, %v4786
      %v4788 = vpop.f32.mrb[0].mxu0
      %4789 = vmatprep.mubr.bf16.mxu0 0
      %4790 = vmatmul.mubr.bf16.gmra.mrb[0].mxu0 %v4642
      %v4791 = vpop.f32.mrb[0].mxu0
      %v4792 = vadd.f32 0.0, %v4791
      %v4793 = vpop.f32.mrb[0].mxu0
      %v4794 = vpop.f32.mrb[0].mxu0
      %v4795 = vadd.f32 0.0, %v4794
      %v4796 = vpop.f32.mrb[0].mxu0
      %4797 = vmatprep.mubr.bf16.mxu0 0
      %4798 = vmatmul.mubr.bf16.gmra.mrb[0].mxu0 %v4645
      %v4799 = vpop.f32.mrb[0].mxu0
      %v4800 = vadd.f32 0.0, %v4799
      %v4801 = vpop.f32.mrb[0].mxu0
      %v4802 = vpop.f32.mrb[0].mxu0
      %v4803 = vadd.f32 0.0, %v4802
      %v4804 = vpop.f32.mrb[0].mxu0
      %4805 = vmatprep.mubr.bf16.mxu0 0
      %4806 = vmatmul.mubr.bf16.gmra.mrb[0].mxu0 %v4648
      %v4807 = vpop.f32.mrb[0].mxu0
      %v4808 = vadd.f32 0.0, %v4807
      %v4809 = vpop.f32.mrb[0].mxu0
      %v4810 = vpop.f32.mrb[0].mxu0
      %v4811 = vadd.f32 0.0, %v4810
      %v4812 = vpop.f32.mrb[0].mxu0
      %4813 = vdwg.mxu0
      %v4814 = vadd.f32 %v4552, %v4688
      %v4815 = vadd.f32 %v4553, %v4691
      %v4816 = vadd.f32 %v4554, %v4696
      %v4817 = vadd.f32 %v4555, %v4699
      %v4818 = vadd.f32 %v4556, %v4704
      %v4819 = vadd.f32 %v4557, %v4707
      %v4820 = vadd.f32 %v4558, %v4712
      %v4821 = vadd.f32 %v4559, %v4715
      %v4822 = vadd.f32 %v4560, %v4720
      %v4823 = vadd.f32 %v4561, %v4723
      %v4824 = vadd.f32 %v4562, %v4728
      %v4825 = vadd.f32 %v4563, %v4731
      %v4826 = vadd.f32 %v4564, %v4736
      %v4827 = vadd.f32 %v4565, %v4739
      %v4828 = vadd.f32 %v4566, %v4744
      %v4829 = vadd.f32 %v4567, %v4747
      %v4830 = vadd.f32 %v4568, %v4752
      %v4831 = vadd.f32 %v4569, %v4755
      %v4832 = vadd.f32 %v4570, %v4760
      %v4833 = vadd.f32 %v4571, %v4763
      %v4834 = vadd.f32 %v4572, %v4768
      %v4835 = vadd.f32 %v4573, %v4771
      %v4836 = vadd.f32 %v4574, %v4776
      %v4837 = vadd.f32 %v4575, %v4779
      %v4838 = vadd.f32 %v4576, %v4784
      %v4839 = vadd.f32 %v4577, %v4787
      %v4840 = vadd.f32 %v4578, %v4792
      %v4841 = vadd.f32 %v4579, %v4795
      %v4842 = vadd.f32 %v4580, %v4800
      %v4843 = vadd.f32 %v4581, %v4803
      %v4844 = vadd.f32 %v4582, %v4808
      %v4845 = vadd.f32 %v4583, %v4811
      %4846 = vst.msk [vmem:[#allocation3] sm:$0xff] %vm791, %v4814
      %4847 = vst.msk [vmem:[#allocation3 + $0x8] sm:$0xff] %vm791, %v4815
      %4848 = vst.msk [vmem:[#allocation3 + $0x10] sm:$0xff] %vm791, %v4816
      %4849 = vst.msk [vmem:[#allocation3 + $0x18] sm:$0xff] %vm791, %v4817
      %4850 = vst.msk [vmem:[#allocation3 + $0x20] sm:$0xff] %vm791, %v4818
      %4851 = vst.msk [vmem:[#allocation3 + $0x28] sm:$0xff] %vm791, %v4819
      %4852 = vst.msk [vmem:[#allocation3 + $0x30] sm:$0xff] %vm791, %v4820
      %4853 = vst.msk [vmem:[#allocation3 + $0x38] sm:$0xff] %vm791, %v4821
      %4854 = vst.msk [vmem:[#allocation3 + $0x40] sm:$0xff] %vm791, %v4822
      %4855 = vst.msk [vmem:[#allocation3 + $0x48] sm:$0xff] %vm791, %v4823
      %4856 = vst.msk [vmem:[#allocation3 + $0x50] sm:$0xff] %vm791, %v4824
      %4857 = vst.msk [vmem:[#allocation3 + $0x58] sm:$0xff] %vm791, %v4825
      %4858 = vst.msk [vmem:[#allocation3 + $0x60] sm:$0xff] %vm791, %v4826
      %4859 = vst.msk [vmem:[#allocation3 + $0x68] sm:$0xff] %vm791, %v4827
      %4860 = vst.msk [vmem:[#allocation3 + $0x70] sm:$0xff] %vm791, %v4828
      %4861 = vst.msk [vmem:[#allocation3 + $0x78] sm:$0xff] %vm791, %v4829
      %4862 = vst.msk [vmem:[#allocation3 + $0x80] sm:$0xff] %vm791, %v4830
      %4863 = vst.msk [vmem:[#allocation3 + $0x88] sm:$0xff] %vm791, %v4831
      %4864 = vst.msk [vmem:[#allocation3 + $0x90] sm:$0xff] %vm791, %v4832
      %4865 = vst.msk [vmem:[#allocation3 + $0x98] sm:$0xff] %vm791, %v4833
      %4866 = vst.msk [vmem:[#allocation3 + $0xa0] sm:$0xff] %vm791, %v4834
      %4867 = vst.msk [vmem:[#allocation3 + $0xa8] sm:$0xff] %vm791, %v4835
      %4868 = vst.msk [vmem:[#allocation3 + $0xb0] sm:$0xff] %vm791, %v4836
      %4869 = vst.msk [vmem:[#allocation3 + $0xb8] sm:$0xff] %vm791, %v4837
      %4870 = vst.msk [vmem:[#allocation3 + $0xc0] sm:$0xff] %vm791, %v4838
      %4871 = vst.msk [vmem:[#allocation3 + $0xc8] sm:$0xff] %vm791, %v4839
      %4872 = vst.msk [vmem:[#allocation3 + $0xd0] sm:$0xff] %vm791, %v4840
      %4873 = vst.msk [vmem:[#allocation3 + $0xd8] sm:$0xff] %vm791, %v4841
      %4874 = vst.msk [vmem:[#allocation3 + $0xe0] sm:$0xff] %vm791, %v4842
      %4875 = vst.msk [vmem:[#allocation3 + $0xe8] sm:$0xff] %vm791, %v4843
      %4876 = vst.msk [vmem:[#allocation3 + $0xf0] sm:$0xff] %vm791, %v4844
      %4877 = vst.msk [vmem:[#allocation3 + $0xf8] sm:$0xff] %vm791, %v4845
      %v4878 = vld [vmem:[#allocation2 + $0x29] sm:$0xff]
      %v4879 = vld [vmem:[#allocation2 + $0x31] sm:$0xff]
      %v4880 = vld [vmem:[#allocation2 + $0x39] sm:$0xff]
      %v4881 = vld [vmem:[#allocation2 + $0x41] sm:$0xff]
      %v4882 = vld [vmem:[#allocation2 + $0x49] sm:$0xff]
      %v4883 = vld [vmem:[#allocation2 + $0x51] sm:$0xff]
      %v4884 = vld [vmem:[#allocation2 + $0x59] sm:$0xff]
      %v4885 = vld [vmem:[#allocation2 + $0x61] sm:$0xff]
      %v4886 = vld [vmem:[#allocation2 + $0x69] sm:$0xff]
      %v4887 = vld [vmem:[#allocation2 + $0x71] sm:$0xff]
      %v4888 = vld [vmem:[#allocation2 + $0x79] sm:$0xff]
      %v4889 = vld [vmem:[#allocation2 + $0x81] sm:$0xff]
      %v4890 = vld [vmem:[#allocation2 + $0x89] sm:$0xff]
      %v4891 = vld [vmem:[#allocation2 + $0x91] sm:$0xff]
      %v4892 = vld [vmem:[#allocation2 + $0x99] sm:$0xff]
      %v4893 = vld [vmem:[#allocation2 + $0xa1] sm:$0xff]
      %v4894 = vld [vmem:[#allocation2 + $0xa9] sm:$0xff]
      %v4895 = vld [vmem:[#allocation2 + $0xb1] sm:$0xff]
      %v4896 = vld [vmem:[#allocation2 + $0xb9] sm:$0xff]
      %v4897 = vld [vmem:[#allocation2 + $0xc1] sm:$0xff]
      %v4898 = vld [vmem:[#allocation2 + $0xc9] sm:$0xff]
      %v4899 = vld [vmem:[#allocation2 + $0xd1] sm:$0xff]
      %v4900 = vld [vmem:[#allocation2 + $0xd9] sm:$0xff]
      %v4901 = vld [vmem:[#allocation2 + $0xe1] sm:$0xff]
      %v4902 = vld [vmem:[#allocation2 + $0xe9] sm:$0xff]
      %v4903 = vld [vmem:[#allocation2 + $0xf1] sm:$0xff]
      %v4904 = vld [vmem:[#allocation2 + $0xf9] sm:$0xff]
      %v4905 = vld [vmem:[#allocation2 + $0x101] sm:$0xff]
      %v4906 = vld [vmem:[#allocation2 + $0x109] sm:$0xff]
      %v4907 = vld [vmem:[#allocation2 + $0x111] sm:$0xff]
      %v4908 = vld [vmem:[#allocation2 + $0x119] sm:$0xff]
      %v4909 = vld [vmem:[#allocation2 + $0x121] sm:$0xff]
      %v4910 = vld [vmem:[%s11] sm:$0xff]
      %v4911 = vld [vmem:[%s11 + $0x8] sm:$0xff]
      %v4912 = vld [vmem:[%s11 + $0x10] sm:$0xff]
      %v4913 = vld [vmem:[%s11 + $0x18] sm:$0xff]
      %v4914 = vld [vmem:[%s11 + $0x20] sm:$0xff]
      %v4915 = vld [vmem:[%s11 + $0x28] sm:$0xff]
      %v4916 = vld [vmem:[%s11 + $0x30] sm:$0xff]
      %v4917 = vld [vmem:[%s11 + $0x38] sm:$0xff]
      %v4918 = vld [vmem:[%s11 + $0x40] sm:$0xff]
      %v4919 = vld [vmem:[%s11 + $0x48] sm:$0xff]
      %v4920 = vld [vmem:[%s11 + $0x50] sm:$0xff]
      %v4921 = vld [vmem:[%s11 + $0x58] sm:$0xff]
      %v4922 = vld [vmem:[%s11 + $0x60] sm:$0xff]
      %v4923 = vld [vmem:[%s11 + $0x68] sm:$0xff]
      %v4924 = vld [vmem:[%s11 + $0x70] sm:$0xff]
      %v4925 = vld [vmem:[%s11 + $0x78] sm:$0xff]
      %v4926 = vld [vmem:[%s11 + $0x80] sm:$0xff]
      %v4927 = vld [vmem:[%s11 + $0x88] sm:$0xff]
      %v4928 = vld [vmem:[%s11 + $0x90] sm:$0xff]
      %v4929 = vld [vmem:[%s11 + $0x98] sm:$0xff]
      %v4930 = vld [vmem:[%s11 + $0xa0] sm:$0xff]
      %v4931 = vld [vmem:[%s11 + $0xa8] sm:$0xff]
      %v4932 = vld [vmem:[%s11 + $0xb0] sm:$0xff]
      %v4933 = vld [vmem:[%s11 + $0xb8] sm:$0xff]
      %v4934 = vld [vmem:[%s11 + $0xc0] sm:$0xff]
      %v4935 = vld [vmem:[%s11 + $0xc8] sm:$0xff]
      %v4936 = vld [vmem:[%s11 + $0xd0] sm:$0xff]
      %v4937 = vld [vmem:[%s11 + $0xd8] sm:$0xff]
      %v4938 = vld [vmem:[%s11 + $0xe0] sm:$0xff]
      %v4939 = vld [vmem:[%s11 + $0xe8] sm:$0xff]
      %v4940 = vld [vmem:[%s11 + $0xf0] sm:$0xff]
      %v4941 = vld [vmem:[%s11 + $0xf8] sm:$0xff]
      %4943 = vset.pattern.permute.xlu0 0
      %4944 = vperm.xlu0 %4943, %v4910
      %v4945 = vpop.permute.xlu0 %4944
      %4948 = vset.pattern.permute.xlu0 0
      %4949 = vperm.xlu0 %4948, %v4911
      %v4950 = vpop.permute.xlu0 %4949
      %4953 = vset.pattern.permute.xlu0 0
      %4954 = vperm.xlu0 %4953, %v4912
      %v4955 = vpop.permute.xlu0 %4954
      %4958 = vset.pattern.permute.xlu0 0
      %4959 = vperm.xlu0 %4958, %v4913
      %v4960 = vpop.permute.xlu0 %4959
      %4963 = vset.pattern.permute.xlu0 0
      %4964 = vperm.xlu0 %4963, %v4914
      %v4965 = vpop.permute.xlu0 %4964
      %4968 = vset.pattern.permute.xlu0 0
      %4969 = vperm.xlu0 %4968, %v4915
      %v4970 = vpop.permute.xlu0 %4969
      %4973 = vset.pattern.permute.xlu0 0
      %4974 = vperm.xlu0 %4973, %v4916
      %v4975 = vpop.permute.xlu0 %4974
      %4978 = vset.pattern.permute.xlu0 0
      %4979 = vperm.xlu0 %4978, %v4917
      %v4980 = vpop.permute.xlu0 %4979
      %4983 = vset.pattern.permute.xlu0 0
      %4984 = vperm.xlu0 %4983, %v4918
      %v4985 = vpop.permute.xlu0 %4984
      %4988 = vset.pattern.permute.xlu0 0
      %4989 = vperm.xlu0 %4988, %v4919
      %v4990 = vpop.permute.xlu0 %4989
      %4993 = vset.pattern.permute.xlu0 0
      %4994 = vperm.xlu0 %4993, %v4920
      %v4995 = vpop.permute.xlu0 %4994
      %4998 = vset.pattern.permute.xlu0 0
      %4999 = vperm.xlu0 %4998, %v4921
      %v5000 = vpop.permute.xlu0 %4999
      %5003 = vset.pattern.permute.xlu0 0
      %5004 = vperm.xlu0 %5003, %v4922
      %v5005 = vpop.permute.xlu0 %5004
      %5008 = vset.pattern.permute.xlu0 0
      %5009 = vperm.xlu0 %5008, %v4923
      %v5010 = vpop.permute.xlu0 %5009
      %5013 = vset.pattern.permute.xlu0 0
      %5014 = vperm.xlu0 %5013, %v4924
      %v5015 = vpop.permute.xlu0 %5014
      %5018 = vset.pattern.permute.xlu0 0
      %5019 = vperm.xlu0 %5018, %v4925
      %v5020 = vpop.permute.xlu0 %5019
      %5023 = vset.pattern.permute.xlu0 0
      %5024 = vperm.xlu0 %5023, %v4926
      %v5025 = vpop.permute.xlu0 %5024
      %5028 = vset.pattern.permute.xlu0 0
      %5029 = vperm.xlu0 %5028, %v4927
      %v5030 = vpop.permute.xlu0 %5029
      %5033 = vset.pattern.permute.xlu0 0
      %5034 = vperm.xlu0 %5033, %v4928
      %v5035 = vpop.permute.xlu0 %5034
      %5038 = vset.pattern.permute.xlu0 0
      %5039 = vperm.xlu0 %5038, %v4929
      %v5040 = vpop.permute.xlu0 %5039
      %5043 = vset.pattern.permute.xlu0 0
      %5044 = vperm.xlu0 %5043, %v4930
      %v5045 = vpop.permute.xlu0 %5044
      %5048 = vset.pattern.permute.xlu0 0
      %5049 = vperm.xlu0 %5048, %v4931
      %v5050 = vpop.permute.xlu0 %5049
      %5053 = vset.pattern.permute.xlu0 0
      %5054 = vperm.xlu0 %5053, %v4932
      %v5055 = vpop.permute.xlu0 %5054
      %5058 = vset.pattern.permute.xlu0 0
      %5059 = vperm.xlu0 %5058, %v4933
      %v5060 = vpop.permute.xlu0 %5059
      %5063 = vset.pattern.permute.xlu0 0
      %5064 = vperm.xlu0 %5063, %v4934
      %v5065 = vpop.permute.xlu0 %5064
      %5068 = vset.pattern.permute.xlu0 0
      %5069 = vperm.xlu0 %5068, %v4935
      %v5070 = vpop.permute.xlu0 %5069
      %5073 = vset.pattern.permute.xlu0 0
      %5074 = vperm.xlu0 %5073, %v4936
      %v5075 = vpop.permute.xlu0 %5074
      %5078 = vset.pattern.permute.xlu0 0
      %5079 = vperm.xlu0 %5078, %v4937
      %v5080 = vpop.permute.xlu0 %5079
      %5083 = vset.pattern.permute.xlu0 0
      %5084 = vperm.xlu0 %5083, %v4938
      %v5085 = vpop.permute.xlu0 %5084
      %5088 = vset.pattern.permute.xlu0 0
      %5089 = vperm.xlu0 %5088, %v4939
      %v5090 = vpop.permute.xlu0 %5089
      %5093 = vset.pattern.permute.xlu0 0
      %5094 = vperm.xlu0 %5093, %v4940
      %v5095 = vpop.permute.xlu0 %5094
      %5098 = vset.pattern.permute.xlu0 0
      %5099 = vperm.xlu0 %5098, %v4941
      %v5100 = vpop.permute.xlu0 %5099
      %v5102 = vmul.f32 %v4878, %v4945
      %v5103 = vmul.f32 %v4879, %v4950
      %v5104 = vmul.f32 %v4880, %v4955
      %v5105 = vmul.f32 %v4881, %v4960
      %v5106 = vmul.f32 %v4882, %v4965
      %v5107 = vmul.f32 %v4883, %v4970
      %v5108 = vmul.f32 %v4884, %v4975
      %v5109 = vmul.f32 %v4885, %v4980
      %v5110 = vmul.f32 %v4886, %v4985
      %v5111 = vmul.f32 %v4887, %v4990
      %v5112 = vmul.f32 %v4888, %v4995
      %v5113 = vmul.f32 %v4889, %v5000
      %v5114 = vmul.f32 %v4890, %v5005
      %v5115 = vmul.f32 %v4891, %v5010
      %v5116 = vmul.f32 %v4892, %v5015
      %v5117 = vmul.f32 %v4893, %v5020
      %v5118 = vmul.f32 %v4894, %v5025
      %v5119 = vmul.f32 %v4895, %v5030
      %v5120 = vmul.f32 %v4896, %v5035
      %v5121 = vmul.f32 %v4897, %v5040
      %v5122 = vmul.f32 %v4898, %v5045
      %v5123 = vmul.f32 %v4899, %v5050
      %v5124 = vmul.f32 %v4900, %v5055
      %v5125 = vmul.f32 %v4901, %v5060
      %v5126 = vmul.f32 %v4902, %v5065
      %v5127 = vmul.f32 %v4903, %v5070
      %v5128 = vmul.f32 %v4904, %v5075
      %v5129 = vmul.f32 %v4905, %v5080
      %v5130 = vmul.f32 %v4906, %v5085
      %v5131 = vmul.f32 %v4907, %v5090
      %v5132 = vmul.f32 %v4908, %v5095
      %v5133 = vmul.f32 %v4909, %v5100
      %v5134 = vld [vmem:[#allocation3] sm:$0xff]
      %v5135 = vld [vmem:[#allocation3 + $0x8] sm:$0xff]
      %v5136 = vld [vmem:[#allocation3 + $0x10] sm:$0xff]
      %v5137 = vld [vmem:[#allocation3 + $0x18] sm:$0xff]
      %v5138 = vld [vmem:[#allocation3 + $0x20] sm:$0xff]
      %v5139 = vld [vmem:[#allocation3 + $0x28] sm:$0xff]
      %v5140 = vld [vmem:[#allocation3 + $0x30] sm:$0xff]
      %v5141 = vld [vmem:[#allocation3 + $0x38] sm:$0xff]
      %v5142 = vld [vmem:[#allocation3 + $0x40] sm:$0xff]
      %v5143 = vld [vmem:[#allocation3 + $0x48] sm:$0xff]
      %v5144 = vld [vmem:[#allocation3 + $0x50] sm:$0xff]
      %v5145 = vld [vmem:[#allocation3 + $0x58] sm:$0xff]
      %v5146 = vld [vmem:[#allocation3 + $0x60] sm:$0xff]
      %v5147 = vld [vmem:[#allocation3 + $0x68] sm:$0xff]
      %v5148 = vld [vmem:[#allocation3 + $0x70] sm:$0xff]
      %v5149 = vld [vmem:[#allocation3 + $0x78] sm:$0xff]
      %v5150 = vld [vmem:[#allocation3 + $0x80] sm:$0xff]
      %v5151 = vld [vmem:[#allocation3 + $0x88] sm:$0xff]
      %v5152 = vld [vmem:[#allocation3 + $0x90] sm:$0xff]
      %v5153 = vld [vmem:[#allocation3 + $0x98] sm:$0xff]
      %v5154 = vld [vmem:[#allocation3 + $0xa0] sm:$0xff]
      %v5155 = vld [vmem:[#allocation3 + $0xa8] sm:$0xff]
      %v5156 = vld [vmem:[#allocation3 + $0xb0] sm:$0xff]
      %v5157 = vld [vmem:[#allocation3 + $0xb8] sm:$0xff]
      %v5158 = vld [vmem:[#allocation3 + $0xc0] sm:$0xff]
      %v5159 = vld [vmem:[#allocation3 + $0xc8] sm:$0xff]
      %v5160 = vld [vmem:[#allocation3 + $0xd0] sm:$0xff]
      %v5161 = vld [vmem:[#allocation3 + $0xd8] sm:$0xff]
      %v5162 = vld [vmem:[#allocation3 + $0xe0] sm:$0xff]
      %v5163 = vld [vmem:[#allocation3 + $0xe8] sm:$0xff]
      %v5164 = vld [vmem:[#allocation3 + $0xf0] sm:$0xff]
      %v5165 = vld [vmem:[#allocation3 + $0xf8] sm:$0xff]
      %v5166 = vpack.c.bf16 %v5103, %v5102
      %v5167 = vpack.c.bf16 %v5105, %v5104
      %v5168 = vpack.c.bf16 %v5107, %v5106
      %v5169 = vpack.c.bf16 %v5109, %v5108
      %v5170 = vpack.c.bf16 %v5111, %v5110
      %v5171 = vpack.c.bf16 %v5113, %v5112
      %v5172 = vpack.c.bf16 %v5115, %v5114
      %v5173 = vpack.c.bf16 %v5117, %v5116
      %v5174 = vpack.c.bf16 %v5119, %v5118
      %v5175 = vpack.c.bf16 %v5121, %v5120
      %v5176 = vpack.c.bf16 %v5123, %v5122
      %v5177 = vpack.c.bf16 %v5125, %v5124
      %v5178 = vpack.c.bf16 %v5127, %v5126
      %v5179 = vpack.c.bf16 %v5129, %v5128
      %v5180 = vpack.c.bf16 %v5131, %v5130
      %v5181 = vpack.c.bf16 %v5133, %v5132
      %s5182 = scalar_lea.vmem %s4, 16
      %v5183 = vld [vmem:[%s5182] sm:$0x3]
      %v5185 = vsel %vm791, %v5166, 0
      %v5188 = vsel %vm791, %v5167, 0
      %v5191 = vsel %vm791, %v5168, 0
      %v5194 = vsel %vm791, %v5169, 0
      %v5197 = vsel %vm791, %v5170, 0
      %v5200 = vsel %vm791, %v5171, 0
      %v5203 = vsel %vm791, %v5172, 0
      %v5206 = vsel %vm791, %v5173, 0
      %v5209 = vsel %vm791, %v5174, 0
      %v5212 = vsel %vm791, %v5175, 0
      %v5215 = vsel %vm791, %v5176, 0
      %v5218 = vsel %vm791, %v5177, 0
      %v5221 = vsel %vm791, %v5178, 0
      %v5224 = vsel %vm791, %v5179, 0
      %v5227 = vsel %vm791, %v5180, 0
      %v5230 = vsel %vm791, %v5181, 0
      %v5233 = vsel %vm1247, %v5183, 0
      %5235 = vmatprep.subr.bf16.mxu0 0
      %5236 = vmatpush1.bf16.msra.mxu0 %v5233
      %5237 = vmatprep.subr.bf16.mxu0 0
      %5238 = vmatpush1.bf16.msra.mxu0 0
      %5239 = vmatprep.subr.bf16.mxu0 0
      %5240 = vmatpush1.bf16.msra.mxu0 0
      %5241 = vmatprep.subr.bf16.mxu0 0
      %5242 = vmatpush1.bf16.msra.mxu0 0
      %5243 = vmatprep.subr.bf16.mxu0 0
      %5244 = vmatpush1.bf16.msra.mxu0 0
      %5245 = vmatprep.subr.bf16.mxu0 0
      %5246 = vmatpush1.bf16.msra.mxu0 0
      %5247 = vmatprep.subr.bf16.mxu0 0
      %5248 = vmatpush1.bf16.msra.mxu0 0
      %5249 = vmatprep.subr.bf16.mxu0 0
      %5250 = vmatpush1.bf16.msra.mxu0 0
      %5251 = vmatprep.subr.bf16.mxu0 0
      %5252 = vmatpush1.bf16.msra.mxu0 0
      %5253 = vmatprep.subr.bf16.mxu0 0
      %5254 = vmatpush1.bf16.msra.mxu0 0
      %5255 = vmatprep.subr.bf16.mxu0 0
      %5256 = vmatpush1.bf16.msra.mxu0 0
      %5257 = vmatprep.subr.bf16.mxu0 0
      %5258 = vmatpush1.bf16.msra.mxu0 0
      %5259 = vmatprep.subr.bf16.mxu0 0
      %5260 = vmatpush1.bf16.msra.mxu0 0
      %5261 = vmatprep.subr.bf16.mxu0 0
      %5262 = vmatpush1.bf16.msra.mxu0 0
      %5263 = vmatprep.subr.bf16.mxu0 0
      %5264 = vmatpush1.bf16.msra.mxu0 0
      %5265 = vmatprep.subr.bf16.mxu0 0
      %5266 = vmatpush1.bf16.msra.mxu0 0
      %5267 = vmatprep.mubr.bf16.mxu0 0
      %5268 = vmatmul.mubr.bf16.gmra.mrb[0].mxu0 %v5185
      %v5269 = vpop.f32.mrb[0].mxu0
      %v5270 = vadd.f32 0.0, %v5269
      %v5271 = vpop.f32.mrb[0].mxu0
      %v5272 = vpop.f32.mrb[0].mxu0
      %v5273 = vadd.f32 0.0, %v5272
      %v5274 = vpop.f32.mrb[0].mxu0
      %5275 = vmatprep.mubr.bf16.mxu0 0
      %5276 = vmatmul.mubr.bf16.gmra.mrb[0].mxu0 %v5188
      %v5277 = vpop.f32.mrb[0].mxu0
      %v5278 = vadd.f32 0.0, %v5277
      %v5279 = vpop.f32.mrb[0].mxu0
      %v5280 = vpop.f32.mrb[0].mxu0
      %v5281 = vadd.f32 0.0, %v5280
      %v5282 = vpop.f32.mrb[0].mxu0
      %5283 = vmatprep.mubr.bf16.mxu0 0
      %5284 = vmatmul.mubr.bf16.gmra.mrb[0].mxu0 %v5191
      %v5285 = vpop.f32.mrb[0].mxu0
      %v5286 = vadd.f32 0.0, %v5285
      %v5287 = vpop.f32.mrb[0].mxu0
      %v5288 = vpop.f32.mrb[0].mxu0
      %v5289 = vadd.f32 0.0, %v5288
      %v5290 = vpop.f32.mrb[0].mxu0
      %5291 = vmatprep.mubr.bf16.mxu0 0
      %5292 = vmatmul.mubr.bf16.gmra.mrb[0].mxu0 %v5194
      %v5293 = vpop.f32.mrb[0].mxu0
      %v5294 = vadd.f32 0.0, %v5293
      %v5295 = vpop.f32.mrb[0].mxu0
      %v5296 = vpop.f32.mrb[0].mxu0
      %v5297 = vadd.f32 0.0, %v5296
      %v5298 = vpop.f32.mrb[0].mxu0
      %5299 = vmatprep.mubr.bf16.mxu0 0
      %5300 = vmatmul.mubr.bf16.gmra.mrb[0].mxu0 %v5197
      %v5301 = vpop.f32.mrb[0].mxu0
      %v5302 = vadd.f32 0.0, %v5301
      %v5303 = vpop.f32.mrb[0].mxu0
      %v5304 = vpop.f32.mrb[0].mxu0
      %v5305 = vadd.f32 0.0, %v5304
      %v5306 = vpop.f32.mrb[0].mxu0
      %5307 = vmatprep.mubr.bf16.mxu0 0
      %5308 = vmatmul.mubr.bf16.gmra.mrb[0].mxu0 %v5200
      %v5309 = vpop.f32.mrb[0].mxu0
      %v5310 = vadd.f32 0.0, %v5309
      %v5311 = vpop.f32.mrb[0].mxu0
      %v5312 = vpop.f32.mrb[0].mxu0
      %v5313 = vadd.f32 0.0, %v5312
      %v5314 = vpop.f32.mrb[0].mxu0
      %5315 = vmatprep.mubr.bf16.mxu0 0
      %5316 = vmatmul.mubr.bf16.gmra.mrb[0].mxu0 %v5203
      %v5317 = vpop.f32.mrb[0].mxu0
      %v5318 = vadd.f32 0.0, %v5317
      %v5319 = vpop.f32.mrb[0].mxu0
      %v5320 = vpop.f32.mrb[0].mxu0
      %v5321 = vadd.f32 0.0, %v5320
      %v5322 = vpop.f32.mrb[0].mxu0
      %5323 = vmatprep.mubr.bf16.mxu0 0
      %5324 = vmatmul.mubr.bf16.gmra.mrb[0].mxu0 %v5206
      %v5325 = vpop.f32.mrb[0].mxu0
      %v5326 = vadd.f32 0.0, %v5325
      %v5327 = vpop.f32.mrb[0].mxu0
      %v5328 = vpop.f32.mrb[0].mxu0
      %v5329 = vadd.f32 0.0, %v5328
      %v5330 = vpop.f32.mrb[0].mxu0
      %5331 = vmatprep.mubr.bf16.mxu0 0
      %5332 = vmatmul.mubr.bf16.gmra.mrb[0].mxu0 %v5209
      %v5333 = vpop.f32.mrb[0].mxu0
      %v5334 = vadd.f32 0.0, %v5333
      %v5335 = vpop.f32.mrb[0].mxu0
      %v5336 = vpop.f32.mrb[0].mxu0
      %v5337 = vadd.f32 0.0, %v5336
      %v5338 = vpop.f32.mrb[0].mxu0
      %5339 = vmatprep.mubr.bf16.mxu0 0
      %5340 = vmatmul.mubr.bf16.gmra.mrb[0].mxu0 %v5212
      %v5341 = vpop.f32.mrb[0].mxu0
      %v5342 = vadd.f32 0.0, %v5341
      %v5343 = vpop.f32.mrb[0].mxu0
      %v5344 = vpop.f32.mrb[0].mxu0
      %v5345 = vadd.f32 0.0, %v5344
      %v5346 = vpop.f32.mrb[0].mxu0
      %5347 = vmatprep.mubr.bf16.mxu0 0
      %5348 = vmatmul.mubr.bf16.gmra.mrb[0].mxu0 %v5215
      %v5349 = vpop.f32.mrb[0].mxu0
      %v5350 = vadd.f32 0.0, %v5349
      %v5351 = vpop.f32.mrb[0].mxu0
      %v5352 = vpop.f32.mrb[0].mxu0
      %v5353 = vadd.f32 0.0, %v5352
      %v5354 = vpop.f32.mrb[0].mxu0
      %5355 = vmatprep.mubr.bf16.mxu0 0
      %5356 = vmatmul.mubr.bf16.gmra.mrb[0].mxu0 %v5218
      %v5357 = vpop.f32.mrb[0].mxu0
      %v5358 = vadd.f32 0.0, %v5357
      %v5359 = vpop.f32.mrb[0].mxu0
      %v5360 = vpop.f32.mrb[0].mxu0
      %v5361 = vadd.f32 0.0, %v5360
      %v5362 = vpop.f32.mrb[0].mxu0
      %5363 = vmatprep.mubr.bf16.mxu0 0
      %5364 = vmatmul.mubr.bf16.gmra.mrb[0].mxu0 %v5221
      %v5365 = vpop.f32.mrb[0].mxu0
      %v5366 = vadd.f32 0.0, %v5365
      %v5367 = vpop.f32.mrb[0].mxu0
      %v5368 = vpop.f32.mrb[0].mxu0
      %v5369 = vadd.f32 0.0, %v5368
      %v5370 = vpop.f32.mrb[0].mxu0
      %5371 = vmatprep.mubr.bf16.mxu0 0
      %5372 = vmatmul.mubr.bf16.gmra.mrb[0].mxu0 %v5224
      %v5373 = vpop.f32.mrb[0].mxu0
      %v5374 = vadd.f32 0.0, %v5373
      %v5375 = vpop.f32.mrb[0].mxu0
      %v5376 = vpop.f32.mrb[0].mxu0
      %v5377 = vadd.f32 0.0, %v5376
      %v5378 = vpop.f32.mrb[0].mxu0
      %5379 = vmatprep.mubr.bf16.mxu0 0
      %5380 = vmatmul.mubr.bf16.gmra.mrb[0].mxu0 %v5227
      %v5381 = vpop.f32.mrb[0].mxu0
      %v5382 = vadd.f32 0.0, %v5381
      %v5383 = vpop.f32.mrb[0].mxu0
      %v5384 = vpop.f32.mrb[0].mxu0
      %v5385 = vadd.f32 0.0, %v5384
      %v5386 = vpop.f32.mrb[0].mxu0
      %5387 = vmatprep.mubr.bf16.mxu0 0
      %5388 = vmatmul.mubr.bf16.gmra.mrb[0].mxu0 %v5230
      %v5389 = vpop.f32.mrb[0].mxu0
      %v5390 = vadd.f32 0.0, %v5389
      %v5391 = vpop.f32.mrb[0].mxu0
      %v5392 = vpop.f32.mrb[0].mxu0
      %v5393 = vadd.f32 0.0, %v5392
      %v5394 = vpop.f32.mrb[0].mxu0
      %5395 = vdwg.mxu0
      %v5396 = vadd.f32 %v5134, %v5270
      %v5397 = vadd.f32 %v5135, %v5273
      %v5398 = vadd.f32 %v5136, %v5278
      %v5399 = vadd.f32 %v5137, %v5281
      %v5400 = vadd.f32 %v5138, %v5286
      %v5401 = vadd.f32 %v5139, %v5289
      %v5402 = vadd.f32 %v5140, %v5294
      %v5403 = vadd.f32 %v5141, %v5297
      %v5404 = vadd.f32 %v5142, %v5302
      %v5405 = vadd.f32 %v5143, %v5305
      %v5406 = vadd.f32 %v5144, %v5310
      %v5407 = vadd.f32 %v5145, %v5313
      %v5408 = vadd.f32 %v5146, %v5318
      %v5409 = vadd.f32 %v5147, %v5321
      %v5410 = vadd.f32 %v5148, %v5326
      %v5411 = vadd.f32 %v5149, %v5329
      %v5412 = vadd.f32 %v5150, %v5334
      %v5413 = vadd.f32 %v5151, %v5337
      %v5414 = vadd.f32 %v5152, %v5342
      %v5415 = vadd.f32 %v5153, %v5345
      %v5416 = vadd.f32 %v5154, %v5350
      %v5417 = vadd.f32 %v5155, %v5353
      %v5418 = vadd.f32 %v5156, %v5358
      %v5419 = vadd.f32 %v5157, %v5361
      %v5420 = vadd.f32 %v5158, %v5366
      %v5421 = vadd.f32 %v5159, %v5369
      %v5422 = vadd.f32 %v5160, %v5374
      %v5423 = vadd.f32 %v5161, %v5377
      %v5424 = vadd.f32 %v5162, %v5382
      %v5425 = vadd.f32 %v5163, %v5385
      %v5426 = vadd.f32 %v5164, %v5390
      %v5427 = vadd.f32 %v5165, %v5393
      %5428 = vst.msk [vmem:[#allocation3] sm:$0xff] %vm791, %v5396
      %5429 = vst.msk [vmem:[#allocation3 + $0x8] sm:$0xff] %vm791, %v5397
      %5430 = vst.msk [vmem:[#allocation3 + $0x10] sm:$0xff] %vm791, %v5398
      %5431 = vst.msk [vmem:[#allocation3 + $0x18] sm:$0xff] %vm791, %v5399
      %5432 = vst.msk [vmem:[#allocation3 + $0x20] sm:$0xff] %vm791, %v5400
      %5433 = vst.msk [vmem:[#allocation3 + $0x28] sm:$0xff] %vm791, %v5401
      %5434 = vst.msk [vmem:[#allocation3 + $0x30] sm:$0xff] %vm791, %v5402
      %5435 = vst.msk [vmem:[#allocation3 + $0x38] sm:$0xff] %vm791, %v5403
      %5436 = vst.msk [vmem:[#allocation3 + $0x40] sm:$0xff] %vm791, %v5404
      %5437 = vst.msk [vmem:[#allocation3 + $0x48] sm:$0xff] %vm791, %v5405
      %5438 = vst.msk [vmem:[#allocation3 + $0x50] sm:$0xff] %vm791, %v5406
      %5439 = vst.msk [vmem:[#allocation3 + $0x58] sm:$0xff] %vm791, %v5407
      %5440 = vst.msk [vmem:[#allocation3 + $0x60] sm:$0xff] %vm791, %v5408
      %5441 = vst.msk [vmem:[#allocation3 + $0x68] sm:$0xff] %vm791, %v5409
      %5442 = vst.msk [vmem:[#allocation3 + $0x70] sm:$0xff] %vm791, %v5410
      %5443 = vst.msk [vmem:[#allocation3 + $0x78] sm:$0xff] %vm791, %v5411
      %5444 = vst.msk [vmem:[#allocation3 + $0x80] sm:$0xff] %vm791, %v5412
      %5445 = vst.msk [vmem:[#allocation3 + $0x88] sm:$0xff] %vm791, %v5413
      %5446 = vst.msk [vmem:[#allocation3 + $0x90] sm:$0xff] %vm791, %v5414
      %5447 = vst.msk [vmem:[#allocation3 + $0x98] sm:$0xff] %vm791, %v5415
      %5448 = vst.msk [vmem:[#allocation3 + $0xa0] sm:$0xff] %vm791, %v5416
      %5449 = vst.msk [vmem:[#allocation3 + $0xa8] sm:$0xff] %vm791, %v5417
      %5450 = vst.msk [vmem:[#allocation3 + $0xb0] sm:$0xff] %vm791, %v5418
      %5451 = vst.msk [vmem:[#allocation3 + $0xb8] sm:$0xff] %vm791, %v5419
      %5452 = vst.msk [vmem:[#allocation3 + $0xc0] sm:$0xff] %vm791, %v5420
      %5453 = vst.msk [vmem:[#allocation3 + $0xc8] sm:$0xff] %vm791, %v5421
      %5454 = vst.msk [vmem:[#allocation3 + $0xd0] sm:$0xff] %vm791, %v5422
      %5455 = vst.msk [vmem:[#allocation3 + $0xd8] sm:$0xff] %vm791, %v5423
      %5456 = vst.msk [vmem:[#allocation3 + $0xe0] sm:$0xff] %vm791, %v5424
      %5457 = vst.msk [vmem:[#allocation3 + $0xe8] sm:$0xff] %vm791, %v5425
      %5458 = vst.msk [vmem:[#allocation3 + $0xf0] sm:$0xff] %vm791, %v5426
      %5459 = vst.msk [vmem:[#allocation3 + $0xf8] sm:$0xff] %vm791, %v5427
      %v5460 = vld [vmem:[#allocation3] sm:$0xff]
      %v5461 = vld [vmem:[#allocation3 + $0x8] sm:$0xff]
      %v5462 = vld [vmem:[#allocation3 + $0x10] sm:$0xff]
      %v5463 = vld [vmem:[#allocation3 + $0x18] sm:$0xff]
      %v5464 = vld [vmem:[#allocation3 + $0x20] sm:$0xff]
      %v5465 = vld [vmem:[#allocation3 + $0x28] sm:$0xff]
      %v5466 = vld [vmem:[#allocation3 + $0x30] sm:$0xff]
      %v5467 = vld [vmem:[#allocation3 + $0x38] sm:$0xff]
      %v5468 = vld [vmem:[#allocation3 + $0x40] sm:$0xff]
      %v5469 = vld [vmem:[#allocation3 + $0x48] sm:$0xff]
      %v5470 = vld [vmem:[#allocation3 + $0x50] sm:$0xff]
      %v5471 = vld [vmem:[#allocation3 + $0x58] sm:$0xff]
      %v5472 = vld [vmem:[#allocation3 + $0x60] sm:$0xff]
      %v5473 = vld [vmem:[#allocation3 + $0x68] sm:$0xff]
      %v5474 = vld [vmem:[#allocation3 + $0x70] sm:$0xff]
      %v5475 = vld [vmem:[#allocation3 + $0x78] sm:$0xff]
      %v5476 = vld [vmem:[#allocation3 + $0x80] sm:$0xff]
      %v5477 = vld [vmem:[#allocation3 + $0x88] sm:$0xff]
      %v5478 = vld [vmem:[#allocation3 + $0x90] sm:$0xff]
      %v5479 = vld [vmem:[#allocation3 + $0x98] sm:$0xff]
      %v5480 = vld [vmem:[#allocation3 + $0xa0] sm:$0xff]
      %v5481 = vld [vmem:[#allocation3 + $0xa8] sm:$0xff]
      %v5482 = vld [vmem:[#allocation3 + $0xb0] sm:$0xff]
      %v5483 = vld [vmem:[#allocation3 + $0xb8] sm:$0xff]
      %v5484 = vld [vmem:[#allocation3 + $0xc0] sm:$0xff]
      %v5485 = vld [vmem:[#allocation3 + $0xc8] sm:$0xff]
      %v5486 = vld [vmem:[#allocation3 + $0xd0] sm:$0xff]
      %v5487 = vld [vmem:[#allocation3 + $0xd8] sm:$0xff]
      %v5488 = vld [vmem:[#allocation3 + $0xe0] sm:$0xff]
      %v5489 = vld [vmem:[#allocation3 + $0xe8] sm:$0xff]
      %v5490 = vld [vmem:[#allocation3 + $0xf0] sm:$0xff]
      %v5491 = vld [vmem:[#allocation3 + $0xf8] sm:$0xff]
      %v5492 = vld [vmem:[%s5] sm:$0x1]
      %v5494 = vlaneseq
      %v5495 = vshrl.u32 %v5494, 7
      %v5496 = vsub.s32 0, %v5495
      %v5497 = vrot.slane %v5492, %v5496
      %v5499 = vmul.f32 %v5460, %v5497
      %v5500 = vmul.f32 %v5461, %v5497
      %v5501 = vmul.f32 %v5462, %v5497
      %v5502 = vmul.f32 %v5463, %v5497
      %v5503 = vmul.f32 %v5464, %v5497
      %v5504 = vmul.f32 %v5465, %v5497
      %v5505 = vmul.f32 %v5466, %v5497
      %v5506 = vmul.f32 %v5467, %v5497
      %v5507 = vmul.f32 %v5468, %v5497
      %v5508 = vmul.f32 %v5469, %v5497
      %v5509 = vmul.f32 %v5470, %v5497
      %v5510 = vmul.f32 %v5471, %v5497
      %v5511 = vmul.f32 %v5472, %v5497
      %v5512 = vmul.f32 %v5473, %v5497
      %v5513 = vmul.f32 %v5474, %v5497
      %v5514 = vmul.f32 %v5475, %v5497
      %v5515 = vmul.f32 %v5476, %v5497
      %v5516 = vmul.f32 %v5477, %v5497
      %v5517 = vmul.f32 %v5478, %v5497
      %v5518 = vmul.f32 %v5479, %v5497
      %v5519 = vmul.f32 %v5480, %v5497
      %v5520 = vmul.f32 %v5481, %v5497
      %v5521 = vmul.f32 %v5482, %v5497
      %v5522 = vmul.f32 %v5483, %v5497
      %v5523 = vmul.f32 %v5484, %v5497
      %v5524 = vmul.f32 %v5485, %v5497
      %v5525 = vmul.f32 %v5486, %v5497
      %v5526 = vmul.f32 %v5487, %v5497
      %v5527 = vmul.f32 %v5488, %v5497
      %v5528 = vmul.f32 %v5489, %v5497
      %v5529 = vmul.f32 %v5490, %v5497
      %v5530 = vmul.f32 %v5491, %v5497
      %v5531 = vld [vmem:[%s6] sm:$0x1]
      %v5533 = vlaneseq
      %v5534 = vshrl.u32 %v5533, 7
      %v5535 = vsub.s32 0, %v5534
      %v5536 = vrot.slane %v5531, %v5535
      %v5538 = vadd.f32 %v5499, %v5536
      %v5539 = vadd.f32 %v5500, %v5536
      %v5540 = vadd.f32 %v5501, %v5536
      %v5541 = vadd.f32 %v5502, %v5536
      %v5542 = vadd.f32 %v5503, %v5536
      %v5543 = vadd.f32 %v5504, %v5536
      %v5544 = vadd.f32 %v5505, %v5536
      %v5545 = vadd.f32 %v5506, %v5536
      %v5546 = vadd.f32 %v5507, %v5536
      %v5547 = vadd.f32 %v5508, %v5536
      %v5548 = vadd.f32 %v5509, %v5536
      %v5549 = vadd.f32 %v5510, %v5536
      %v5550 = vadd.f32 %v5511, %v5536
      %v5551 = vadd.f32 %v5512, %v5536
      %v5552 = vadd.f32 %v5513, %v5536
      %v5553 = vadd.f32 %v5514, %v5536
      %v5554 = vadd.f32 %v5515, %v5536
      %v5555 = vadd.f32 %v5516, %v5536
      %v5556 = vadd.f32 %v5517, %v5536
      %v5557 = vadd.f32 %v5518, %v5536
      %v5558 = vadd.f32 %v5519, %v5536
      %v5559 = vadd.f32 %v5520, %v5536
      %v5560 = vadd.f32 %v5521, %v5536
      %v5561 = vadd.f32 %v5522, %v5536
      %v5562 = vadd.f32 %v5523, %v5536
      %v5563 = vadd.f32 %v5524, %v5536
      %v5564 = vadd.f32 %v5525, %v5536
      %v5565 = vadd.f32 %v5526, %v5536
      %v5566 = vadd.f32 %v5527, %v5536
      %v5567 = vadd.f32 %v5528, %v5536
      %v5568 = vadd.f32 %v5529, %v5536
      %v5569 = vadd.f32 %v5530, %v5536
      %v5570 = vmax.f32 %v5538, 0.0
      %v5571 = vmax.f32 %v5539, 0.0
      %v5572 = vmax.f32 %v5540, 0.0
      %v5573 = vmax.f32 %v5541, 0.0
      %v5574 = vmax.f32 %v5542, 0.0
      %v5575 = vmax.f32 %v5543, 0.0
      %v5576 = vmax.f32 %v5544, 0.0
      %v5577 = vmax.f32 %v5545, 0.0
      %v5578 = vmax.f32 %v5546, 0.0
      %v5579 = vmax.f32 %v5547, 0.0
      %v5580 = vmax.f32 %v5548, 0.0
      %v5581 = vmax.f32 %v5549, 0.0
      %v5582 = vmax.f32 %v5550, 0.0
      %v5583 = vmax.f32 %v5551, 0.0
      %v5584 = vmax.f32 %v5552, 0.0
      %v5585 = vmax.f32 %v5553, 0.0
      %v5586 = vmax.f32 %v5554, 0.0
      %v5587 = vmax.f32 %v5555, 0.0
      %v5588 = vmax.f32 %v5556, 0.0
      %v5589 = vmax.f32 %v5557, 0.0
      %v5590 = vmax.f32 %v5558, 0.0
      %v5591 = vmax.f32 %v5559, 0.0
      %v5592 = vmax.f32 %v5560, 0.0
      %v5593 = vmax.f32 %v5561, 0.0
      %v5594 = vmax.f32 %v5562, 0.0
      %v5595 = vmax.f32 %v5563, 0.0
      %v5596 = vmax.f32 %v5564, 0.0
      %v5597 = vmax.f32 %v5565, 0.0
      %v5598 = vmax.f32 %v5566, 0.0
      %v5599 = vmax.f32 %v5567, 0.0
      %v5600 = vmax.f32 %v5568, 0.0
      %v5601 = vmax.f32 %v5569, 0.0
      %v5602 = vpack.c.bf16 %v5571, %v5570
      %v5603 = vpack.c.bf16 %v5573, %v5572
      %v5604 = vpack.c.bf16 %v5575, %v5574
      %v5605 = vpack.c.bf16 %v5577, %v5576
      %v5606 = vpack.c.bf16 %v5579, %v5578
      %v5607 = vpack.c.bf16 %v5581, %v5580
      %v5608 = vpack.c.bf16 %v5583, %v5582
      %v5609 = vpack.c.bf16 %v5585, %v5584
      %v5610 = vpack.c.bf16 %v5587, %v5586
      %v5611 = vpack.c.bf16 %v5589, %v5588
      %v5612 = vpack.c.bf16 %v5591, %v5590
      %v5613 = vpack.c.bf16 %v5593, %v5592
      %v5614 = vpack.c.bf16 %v5595, %v5594
      %v5615 = vpack.c.bf16 %v5597, %v5596
      %v5616 = vpack.c.bf16 %v5599, %v5598
      %v5617 = vpack.c.bf16 %v5601, %v5600
      %v5618 = vld [vmem:[%s7] sm:$0x3]
      %v5620 = vsel %vm791, %v5602, 0
      %v5623 = vsel %vm791, %v5603, 0
      %v5626 = vsel %vm791, %v5604, 0
      %v5629 = vsel %vm791, %v5605, 0
      %v5632 = vsel %vm791, %v5606, 0
      %v5635 = vsel %vm791, %v5607, 0
      %v5638 = vsel %vm791, %v5608, 0
      %v5641 = vsel %vm791, %v5609, 0
      %v5644 = vsel %vm791, %v5610, 0
      %v5647 = vsel %vm791, %v5611, 0
      %v5650 = vsel %vm791, %v5612, 0
      %v5653 = vsel %vm791, %v5613, 0
      %v5656 = vsel %vm791, %v5614, 0
      %v5659 = vsel %vm791, %v5615, 0
      %v5662 = vsel %vm791, %v5616, 0
      %v5665 = vsel %vm791, %v5617, 0
      %v5668 = vsel %vm1247, %v5618, 0
      %5670 = vmatprep.subr.bf16.mxu0 0
      %5671 = vmatpush1.bf16.msra.mxu0 %v5668
      %5672 = vmatprep.subr.bf16.mxu0 0
      %5673 = vmatpush1.bf16.msra.mxu0 0
      %5674 = vmatprep.subr.bf16.mxu0 0
      %5675 = vmatpush1.bf16.msra.mxu0 0
      %5676 = vmatprep.subr.bf16.mxu0 0
      %5677 = vmatpush1.bf16.msra.mxu0 0
      %5678 = vmatprep.subr.bf16.mxu0 0
      %5679 = vmatpush1.bf16.msra.mxu0 0
      %5680 = vmatprep.subr.bf16.mxu0 0
      %5681 = vmatpush1.bf16.msra.mxu0 0
      %5682 = vmatprep.subr.bf16.mxu0 0
      %5683 = vmatpush1.bf16.msra.mxu0 0
      %5684 = vmatprep.subr.bf16.mxu0 0
      %5685 = vmatpush1.bf16.msra.mxu0 0
      %5686 = vmatprep.subr.bf16.mxu0 0
      %5687 = vmatpush1.bf16.msra.mxu0 0
      %5688 = vmatprep.subr.bf16.mxu0 0
      %5689 = vmatpush1.bf16.msra.mxu0 0
      %5690 = vmatprep.subr.bf16.mxu0 0
      %5691 = vmatpush1.bf16.msra.mxu0 0
      %5692 = vmatprep.subr.bf16.mxu0 0
      %5693 = vmatpush1.bf16.msra.mxu0 0
      %5694 = vmatprep.subr.bf16.mxu0 0
      %5695 = vmatpush1.bf16.msra.mxu0 0
      %5696 = vmatprep.subr.bf16.mxu0 0
      %5697 = vmatpush1.bf16.msra.mxu0 0
      %5698 = vmatprep.subr.bf16.mxu0 0
      %5699 = vmatpush1.bf16.msra.mxu0 0
      %5700 = vmatprep.subr.bf16.mxu0 0
      %5701 = vmatpush1.bf16.msra.mxu0 0
      %5702 = vmatprep.mubr.bf16.mxu0 0
      %5703 = vmatmul.mubr.bf16.gmra.mrb[0].mxu0 %v5620
      %v5704 = vpop.f32.mrb[0].mxu0
      %v5705 = vadd.f32 0.0, %v5704
      %v5706 = vpop.f32.mrb[0].mxu0
      %v5707 = vpop.f32.mrb[0].mxu0
      %v5708 = vadd.f32 0.0, %v5707
      %v5709 = vpop.f32.mrb[0].mxu0
      %5710 = vmatprep.mubr.bf16.mxu0 0
      %5711 = vmatmul.mubr.bf16.gmra.mrb[0].mxu0 %v5623
      %v5712 = vpop.f32.mrb[0].mxu0
      %v5713 = vadd.f32 0.0, %v5712
      %v5714 = vpop.f32.mrb[0].mxu0
      %v5715 = vpop.f32.mrb[0].mxu0
      %v5716 = vadd.f32 0.0, %v5715
      %v5717 = vpop.f32.mrb[0].mxu0
      %5718 = vmatprep.mubr.bf16.mxu0 0
      %5719 = vmatmul.mubr.bf16.gmra.mrb[0].mxu0 %v5626
      %v5720 = vpop.f32.mrb[0].mxu0
      %v5721 = vadd.f32 0.0, %v5720
      %v5722 = vpop.f32.mrb[0].mxu0
      %v5723 = vpop.f32.mrb[0].mxu0
      %v5724 = vadd.f32 0.0, %v5723
      %v5725 = vpop.f32.mrb[0].mxu0
      %5726 = vmatprep.mubr.bf16.mxu0 0
      %5727 = vmatmul.mubr.bf16.gmra.mrb[0].mxu0 %v5629
      %v5728 = vpop.f32.mrb[0].mxu0
      %v5729 = vadd.f32 0.0, %v5728
      %v5730 = vpop.f32.mrb[0].mxu0
      %v5731 = vpop.f32.mrb[0].mxu0
      %v5732 = vadd.f32 0.0, %v5731
      %v5733 = vpop.f32.mrb[0].mxu0
      %5734 = vmatprep.mubr.bf16.mxu0 0
      %5735 = vmatmul.mubr.bf16.gmra.mrb[0].mxu0 %v5632
      %v5736 = vpop.f32.mrb[0].mxu0
      %v5737 = vadd.f32 0.0, %v5736
      %v5738 = vpop.f32.mrb[0].mxu0
      %v5739 = vpop.f32.mrb[0].mxu0
      %v5740 = vadd.f32 0.0, %v5739
      %v5741 = vpop.f32.mrb[0].mxu0
      %5742 = vmatprep.mubr.bf16.mxu0 0
      %5743 = vmatmul.mubr.bf16.gmra.mrb[0].mxu0 %v5635
      %v5744 = vpop.f32.mrb[0].mxu0
      %v5745 = vadd.f32 0.0, %v5744
      %v5746 = vpop.f32.mrb[0].mxu0
      %v5747 = vpop.f32.mrb[0].mxu0
      %v5748 = vadd.f32 0.0, %v5747
      %v5749 = vpop.f32.mrb[0].mxu0
      %5750 = vmatprep.mubr.bf16.mxu0 0
      %5751 = vmatmul.mubr.bf16.gmra.mrb[0].mxu0 %v5638
      %v5752 = vpop.f32.mrb[0].mxu0
      %v5753 = vadd.f32 0.0, %v5752
      %v5754 = vpop.f32.mrb[0].mxu0
      %v5755 = vpop.f32.mrb[0].mxu0
      %v5756 = vadd.f32 0.0, %v5755
      %v5757 = vpop.f32.mrb[0].mxu0
      %5758 = vmatprep.mubr.bf16.mxu0 0
      %5759 = vmatmul.mubr.bf16.gmra.mrb[0].mxu0 %v5641
      %v5760 = vpop.f32.mrb[0].mxu0
      %v5761 = vadd.f32 0.0, %v5760
      %v5762 = vpop.f32.mrb[0].mxu0
      %v5763 = vpop.f32.mrb[0].mxu0
      %v5764 = vadd.f32 0.0, %v5763
      %v5765 = vpop.f32.mrb[0].mxu0
      %5766 = vmatprep.mubr.bf16.mxu0 0
      %5767 = vmatmul.mubr.bf16.gmra.mrb[0].mxu0 %v5644
      %v5768 = vpop.f32.mrb[0].mxu0
      %v5769 = vadd.f32 0.0, %v5768
      %v5770 = vpop.f32.mrb[0].mxu0
      %v5771 = vpop.f32.mrb[0].mxu0
      %v5772 = vadd.f32 0.0, %v5771
      %v5773 = vpop.f32.mrb[0].mxu0
      %5774 = vmatprep.mubr.bf16.mxu0 0
      %5775 = vmatmul.mubr.bf16.gmra.mrb[0].mxu0 %v5647
      %v5776 = vpop.f32.mrb[0].mxu0
      %v5777 = vadd.f32 0.0, %v5776
      %v5778 = vpop.f32.mrb[0].mxu0
      %v5779 = vpop.f32.mrb[0].mxu0
      %v5780 = vadd.f32 0.0, %v5779
      %v5781 = vpop.f32.mrb[0].mxu0
      %5782 = vmatprep.mubr.bf16.mxu0 0
      %5783 = vmatmul.mubr.bf16.gmra.mrb[0].mxu0 %v5650
      %v5784 = vpop.f32.mrb[0].mxu0
      %v5785 = vadd.f32 0.0, %v5784
      %v5786 = vpop.f32.mrb[0].mxu0
      %v5787 = vpop.f32.mrb[0].mxu0
      %v5788 = vadd.f32 0.0, %v5787
      %v5789 = vpop.f32.mrb[0].mxu0
      %5790 = vmatprep.mubr.bf16.mxu0 0
      %5791 = vmatmul.mubr.bf16.gmra.mrb[0].mxu0 %v5653
      %v5792 = vpop.f32.mrb[0].mxu0
      %v5793 = vadd.f32 0.0, %v5792
      %v5794 = vpop.f32.mrb[0].mxu0
      %v5795 = vpop.f32.mrb[0].mxu0
      %v5796 = vadd.f32 0.0, %v5795
      %v5797 = vpop.f32.mrb[0].mxu0
      %5798 = vmatprep.mubr.bf16.mxu0 0
      %5799 = vmatmul.mubr.bf16.gmra.mrb[0].mxu0 %v5656
      %v5800 = vpop.f32.mrb[0].mxu0
      %v5801 = vadd.f32 0.0, %v5800
      %v5802 = vpop.f32.mrb[0].mxu0
      %v5803 = vpop.f32.mrb[0].mxu0
      %v5804 = vadd.f32 0.0, %v5803
      %v5805 = vpop.f32.mrb[0].mxu0
      %5806 = vmatprep.mubr.bf16.mxu0 0
      %5807 = vmatmul.mubr.bf16.gmra.mrb[0].mxu0 %v5659
      %v5808 = vpop.f32.mrb[0].mxu0
      %v5809 = vadd.f32 0.0, %v5808
      %v5810 = vpop.f32.mrb[0].mxu0
      %v5811 = vpop.f32.mrb[0].mxu0
      %v5812 = vadd.f32 0.0, %v5811
      %v5813 = vpop.f32.mrb[0].mxu0
      %5814 = vmatprep.mubr.bf16.mxu0 0
      %5815 = vmatmul.mubr.bf16.gmra.mrb[0].mxu0 %v5662
      %v5816 = vpop.f32.mrb[0].mxu0
      %v5817 = vadd.f32 0.0, %v5816
      %v5818 = vpop.f32.mrb[0].mxu0
      %v5819 = vpop.f32.mrb[0].mxu0
      %v5820 = vadd.f32 0.0, %v5819
      %v5821 = vpop.f32.mrb[0].mxu0
      %5822 = vmatprep.mubr.bf16.mxu0 0
      %5823 = vmatmul.mubr.bf16.gmra.mrb[0].mxu0 %v5665
      %v5824 = vpop.f32.mrb[0].mxu0
      %v5825 = vadd.f32 0.0, %v5824
      %v5826 = vpop.f32.mrb[0].mxu0
      %v5827 = vpop.f32.mrb[0].mxu0
      %v5828 = vadd.f32 0.0, %v5827
      %v5829 = vpop.f32.mrb[0].mxu0
      %5830 = vdwg.mxu0
      %v5831 = vld [vmem:[%s8] sm:$0x1]
      %v5833 = vlaneseq
      %v5834 = vshrl.u32 %v5833, 7
      %v5835 = vsub.s32 0, %v5834
      %v5836 = vrot.slane %v5831, %v5835
      %v5838 = vmul.f32 %v5705, %v5836
      %v5839 = vmul.f32 %v5708, %v5836
      %v5840 = vmul.f32 %v5713, %v5836
      %v5841 = vmul.f32 %v5716, %v5836
      %v5842 = vmul.f32 %v5721, %v5836
      %v5843 = vmul.f32 %v5724, %v5836
      %v5844 = vmul.f32 %v5729, %v5836
      %v5845 = vmul.f32 %v5732, %v5836
      %v5846 = vmul.f32 %v5737, %v5836
      %v5847 = vmul.f32 %v5740, %v5836
      %v5848 = vmul.f32 %v5745, %v5836
      %v5849 = vmul.f32 %v5748, %v5836
      %v5850 = vmul.f32 %v5753, %v5836
      %v5851 = vmul.f32 %v5756, %v5836
      %v5852 = vmul.f32 %v5761, %v5836
      %v5853 = vmul.f32 %v5764, %v5836
      %v5854 = vmul.f32 %v5769, %v5836
      %v5855 = vmul.f32 %v5772, %v5836
      %v5856 = vmul.f32 %v5777, %v5836
      %v5857 = vmul.f32 %v5780, %v5836
      %v5858 = vmul.f32 %v5785, %v5836
      %v5859 = vmul.f32 %v5788, %v5836
      %v5860 = vmul.f32 %v5793, %v5836
      %v5861 = vmul.f32 %v5796, %v5836
      %v5862 = vmul.f32 %v5801, %v5836
      %v5863 = vmul.f32 %v5804, %v5836
      %v5864 = vmul.f32 %v5809, %v5836
      %v5865 = vmul.f32 %v5812, %v5836
      %v5866 = vmul.f32 %v5817, %v5836
      %v5867 = vmul.f32 %v5820, %v5836
      %v5868 = vmul.f32 %v5825, %v5836
      %v5869 = vmul.f32 %v5828, %v5836
      %v5870 = vld [vmem:[%s9] sm:$0x1]
      %v5872 = vlaneseq
      %v5873 = vshrl.u32 %v5872, 7
      %v5874 = vsub.s32 0, %v5873
      %v5875 = vrot.slane %v5870, %v5874
      %v5877 = vadd.f32 %v5838, %v5875
      %v5878 = vadd.f32 %v5839, %v5875
      %v5879 = vadd.f32 %v5840, %v5875
      %v5880 = vadd.f32 %v5841, %v5875
      %v5881 = vadd.f32 %v5842, %v5875
      %v5882 = vadd.f32 %v5843, %v5875
      %v5883 = vadd.f32 %v5844, %v5875
      %v5884 = vadd.f32 %v5845, %v5875
      %v5885 = vadd.f32 %v5846, %v5875
      %v5886 = vadd.f32 %v5847, %v5875
      %v5887 = vadd.f32 %v5848, %v5875
      %v5888 = vadd.f32 %v5849, %v5875
      %v5889 = vadd.f32 %v5850, %v5875
      %v5890 = vadd.f32 %v5851, %v5875
      %v5891 = vadd.f32 %v5852, %v5875
      %v5892 = vadd.f32 %v5853, %v5875
      %v5893 = vadd.f32 %v5854, %v5875
      %v5894 = vadd.f32 %v5855, %v5875
      %v5895 = vadd.f32 %v5856, %v5875
      %v5896 = vadd.f32 %v5857, %v5875
      %v5897 = vadd.f32 %v5858, %v5875
      %v5898 = vadd.f32 %v5859, %v5875
      %v5899 = vadd.f32 %v5860, %v5875
      %v5900 = vadd.f32 %v5861, %v5875
      %v5901 = vadd.f32 %v5862, %v5875
      %v5902 = vadd.f32 %v5863, %v5875
      %v5903 = vadd.f32 %v5864, %v5875
      %v5904 = vadd.f32 %v5865, %v5875
      %v5905 = vadd.f32 %v5866, %v5875
      %v5906 = vadd.f32 %v5867, %v5875
      %v5907 = vadd.f32 %v5868, %v5875
      %v5908 = vadd.f32 %v5869, %v5875
      %v5909 = vadd.f32 %v5877, %v415
      %v5910 = vadd.f32 %v5878, %v416
      %v5911 = vadd.f32 %v5879, %v417
      %v5912 = vadd.f32 %v5880, %v418
      %v5913 = vadd.f32 %v5881, %v419
      %v5914 = vadd.f32 %v5882, %v420
      %v5915 = vadd.f32 %v5883, %v421
      %v5916 = vadd.f32 %v5884, %v422
      %v5917 = vadd.f32 %v5885, %v423
      %v5918 = vadd.f32 %v5886, %v424
      %v5919 = vadd.f32 %v5887, %v425
      %v5920 = vadd.f32 %v5888, %v426
      %v5921 = vadd.f32 %v5889, %v427
      %v5922 = vadd.f32 %v5890, %v428
      %v5923 = vadd.f32 %v5891, %v429
      %v5924 = vadd.f32 %v5892, %v430
      %v5925 = vadd.f32 %v5893, %v431
      %v5926 = vadd.f32 %v5894, %v432
      %v5927 = vadd.f32 %v5895, %v433
      %v5928 = vadd.f32 %v5896, %v434
      %v5929 = vadd.f32 %v5897, %v435
      %v5930 = vadd.f32 %v5898, %v436
      %v5931 = vadd.f32 %v5899, %v437
      %v5932 = vadd.f32 %v5900, %v438
      %v5933 = vadd.f32 %v5901, %v439
      %v5934 = vadd.f32 %v5902, %v440
      %v5935 = vadd.f32 %v5903, %v441
      %v5936 = vadd.f32 %v5904, %v442
      %v5937 = vadd.f32 %v5905, %v443
      %v5938 = vadd.f32 %v5906, %v444
      %v5939 = vadd.f32 %v5907, %v445
      %v5940 = vadd.f32 %v5908, %v446
      %v5941 = vmax.f32 %v5909, 0.0
      %v5942 = vmax.f32 %v5910, 0.0
      %v5943 = vmax.f32 %v5911, 0.0
      %v5944 = vmax.f32 %v5912, 0.0
      %v5945 = vmax.f32 %v5913, 0.0
      %v5946 = vmax.f32 %v5914, 0.0
      %v5947 = vmax.f32 %v5915, 0.0
      %v5948 = vmax.f32 %v5916, 0.0
      %v5949 = vmax.f32 %v5917, 0.0
      %v5950 = vmax.f32 %v5918, 0.0
      %v5951 = vmax.f32 %v5919, 0.0
      %v5952 = vmax.f32 %v5920, 0.0
      %v5953 = vmax.f32 %v5921, 0.0
      %v5954 = vmax.f32 %v5922, 0.0
      %v5955 = vmax.f32 %v5923, 0.0
      %v5956 = vmax.f32 %v5924, 0.0
      %v5957 = vmax.f32 %v5925, 0.0
      %v5958 = vmax.f32 %v5926, 0.0
      %v5959 = vmax.f32 %v5927, 0.0
      %v5960 = vmax.f32 %v5928, 0.0
      %v5961 = vmax.f32 %v5929, 0.0
      %v5962 = vmax.f32 %v5930, 0.0
      %v5963 = vmax.f32 %v5931, 0.0
      %v5964 = vmax.f32 %v5932, 0.0
      %v5965 = vmax.f32 %v5933, 0.0
      %v5966 = vmax.f32 %v5934, 0.0
      %v5967 = vmax.f32 %v5935, 0.0
      %v5968 = vmax.f32 %v5936, 0.0
      %v5969 = vmax.f32 %v5937, 0.0
      %v5970 = vmax.f32 %v5938, 0.0
      %v5971 = vmax.f32 %v5939, 0.0
      %v5972 = vmax.f32 %v5940, 0.0
      %5973 = vst.msk [vmem:[%s413] sm:$0xff] %vm471, %v5941
      %5974 = vst.msk [vmem:[%s413 + $0x8] sm:$0xff] %vm471, %v5942
      %5975 = vst.msk [vmem:[%s413 + $0x10] sm:$0xff] %vm471, %v5943
      %5976 = vst.msk [vmem:[%s413 + $0x18] sm:$0xff] %vm471, %v5944
      %5977 = vst.msk [vmem:[%s413 + $0x20] sm:$0xff] %vm471, %v5945
      %5978 = vst.msk [vmem:[%s413 + $0x28] sm:$0xff] %vm471, %v5946
      %5979 = vst.msk [vmem:[%s413 + $0x30] sm:$0xff] %vm471, %v5947
      %5980 = vst.msk [vmem:[%s413 + $0x38] sm:$0xff] %vm471, %v5948
      %5981 = vst.msk [vmem:[%s413 + $0x40] sm:$0xff] %vm471, %v5949
      %5982 = vst.msk [vmem:[%s413 + $0x48] sm:$0xff] %vm471, %v5950
      %5983 = vst.msk [vmem:[%s413 + $0x50] sm:$0xff] %vm471, %v5951
      %5984 = vst.msk [vmem:[%s413 + $0x58] sm:$0xff] %vm471, %v5952
      %5985 = vst.msk [vmem:[%s413 + $0x60] sm:$0xff] %vm471, %v5953
      %5986 = vst.msk [vmem:[%s413 + $0x68] sm:$0xff] %vm471, %v5954
      %5987 = vst.msk [vmem:[%s413 + $0x70] sm:$0xff] %vm471, %v5955
      %5988 = vst.msk [vmem:[%s413 + $0x78] sm:$0xff] %vm471, %v5956
      %5989 = vst.msk [vmem:[%s413 + $0x80] sm:$0xff] %vm471, %v5957
      %5990 = vst.msk [vmem:[%s413 + $0x88] sm:$0xff] %vm471, %v5958
      %5991 = vst.msk [vmem:[%s413 + $0x90] sm:$0xff] %vm471, %v5959
      %5992 = vst.msk [vmem:[%s413 + $0x98] sm:$0xff] %vm471, %v5960
      %5993 = vst.msk [vmem:[%s413 + $0xa0] sm:$0xff] %vm471, %v5961
      %5994 = vst.msk [vmem:[%s413 + $0xa8] sm:$0xff] %vm471, %v5962
      %5995 = vst.msk [vmem:[%s413 + $0xb0] sm:$0xff] %vm471, %v5963
      %5996 = vst.msk [vmem:[%s413 + $0xb8] sm:$0xff] %vm471, %v5964
      %5997 = vst.msk [vmem:[%s413 + $0xc0] sm:$0xff] %vm471, %v5965
      %5998 = vst.msk [vmem:[%s413 + $0xc8] sm:$0xff] %vm471, %v5966
      %5999 = vst.msk [vmem:[%s413 + $0xd0] sm:$0xff] %vm471, %v5967
      %6000 = vst.msk [vmem:[%s413 + $0xd8] sm:$0xff] %vm471, %v5968
      %6001 = vst.msk [vmem:[%s413 + $0xe0] sm:$0xff] %vm471, %v5969
      %6002 = vst.msk [vmem:[%s413 + $0xe8] sm:$0xff] %vm471, %v5970
      %6003 = vst.msk [vmem:[%s413 + $0xf0] sm:$0xff] %vm471, %v5971
      %6004 = vst.msk [vmem:[%s413 + $0xf8] sm:$0xff] %vm471, %v5972
      %p6005 = scmp.lt.s32.totalorder %s23, 1
      %s6006 = scalar_select %p6005, %s23, 1
      %s6007 = smul.addr %s6006, 32
      %s6008 = smul.addr %s6007, 8
      %s6009 = scalar_lea.vmem %s12, %s6008
      // Predicated region
      $region69: #{bottleneck_forward.1} parent=67 // pred_check
        %p6010 = pneg %p298
      $region70: #{bottleneck_forward.1} parent=67 // pred_check_branch
        %6012 = sbr.rel (%p6010) target = $region72
      $region71: #{bottleneck_forward.1} parent=67 // pred_region
        _
      $region72: #{bottleneck_forward.1} parent=67 // pred_fallthru
        _
    $region68: #{bottleneck_forward.1} parent=5 // pred_fallthru
      _
    %p6013 = scmp.le.s32.totalorder 2, %s18
    // Predicated region
    $region73: #{bottleneck_forward.1} parent=5 // pred_check
      %p6014 = pneg %p6013
    $region74: #{bottleneck_forward.1} parent=5 // pred_check_branch
      %6016 = sbr.rel (%p6014) target = $region76
    $region75: #{bottleneck_forward.1} parent=5 // pred_region
      %s6017 = ssub.s32 %s18, 2
      // Predicated region
      $region77: #{bottleneck_forward.1} parent=75 // pred_check
        %p6018 = pneg %p304
      $region78: #{bottleneck_forward.1} parent=75 // pred_check_branch
        %6020 = sbr.rel (%p6018) target = $region80
      $region79: #{bottleneck_forward.1} parent=75 // pred_region
        %p6021 = scmp.lt.s32.totalorder %s24, 1
        %s6022 = scalar_select %p6021, %s24, 1
        %s6023 = smul.addr %s6022, 32
        %s6024 = smul.addr %s6023, 8
        %s6025 = scalar_lea.vmem %s12, %s6024
      $region80: #{bottleneck_forward.1} parent=75 // pred_fallthru
        _
    $region76: #{bottleneck_forward.1} parent=5 // pred_fallthru
      _
  $region6: #{bottleneck_forward.1} parent=0 // loop_footer
    %s22 = sadd.s32 1, %s18
  $region7: #{bottleneck_forward.1} parent=0 // loop_footer_branch
    %17 = sbr.rel target = $region3
  $region8: #{bottleneck_forward.1} parent=0 // loop_exit
    _

</llo_original>
